<compile_context>
chip_gen: v7x
topology: tpu7x:2x2x1
jax: 0.10.0
libtpu: 0.0.40
codegen_flags: <defaults>
</compile_context>

<pallas_src>
import functools

import jax
import jax.numpy as jnp
import numpy as np
from jax.experimental import pallas as pl
from jax.experimental.pallas import tpu as pltpu

DIM = 80          # mel feature dim (module default)
HEADS = 4
HEAD_DIM = DIM // HEADS
FF_DIM = 256
CONV_CH = 64
LN_EPS = 1e-5


def _tap_deltas(D):
    # tap k = di*3 + dj (di = time shift index, dj = mel shift index) moves the
    # flat (t, d) index by (di-1)*D + (dj-1)
    return [(di - 1) * D + (dj - 1) for di in range(3) for dj in range(3)]


def _choose_bblk(B, T):
    """Batch rows folded per grid step; keep >= 2 grid steps for v7x megacore."""
    target = max(1, 128 // max(T, 1))        # aim for ~128 sublane rows per block
    bblk = max(1, min(B, target))
    while bblk > 1 and B % bblk:
        bblk -= 1
    if bblk == B and B > 1:                  # keep at least 2 grid steps
        bblk = max(1, B // 2)
        while bblk > 1 and B % bblk:
            bblk -= 1
    return bblk


# ---------------------------------------------------------------------------
# In-kernel building blocks
# ---------------------------------------------------------------------------
def _layer_norm(h, g, b):
    mu = jnp.mean(h, axis=-1, keepdims=True)
    var = jnp.mean((h - mu) ** 2, axis=-1, keepdims=True)
    return (h - mu) * jax.lax.rsqrt(var + LN_EPS) * g + b


def _transformer(x, idx, wqkv_ref, wo_ref, wf1_ref, wf2_ref, tvec_ref,
                 *, bblk, T, D, heads, hd):
    """AudioTransformerBlock on the flattened (bblk*T, D) activation."""
    wqkv = wqkv_ref[idx]                      # (D, 3D)   fused [Wq|Wk|Wv]
    wo = wo_ref[idx]                          # (D, D)
    w1 = wf1_ref[idx]                         # (D, F)
    w2 = wf2_ref[idx]                         # (F, D)
    vec = tvec_ref[idx]                       # (8, F)    packed bias/LN vectors

    b_qkv = vec[0:1, 0:3 * D]
    bo = vec[1:2, 0:D]
    g1, be1 = vec[2:3, 0:D], vec[3:4, 0:D]
    b1 = vec[4:5, :]
    b2 = vec[5:6, 0:D]
    g2, be2 = vec[6:7, 0:D], vec[7:8, 0:D]

    # fused QKV projection: ONE (M, D) x (D, 3D) matmul for all batch rows
    qkv = jnp.dot(x, wqkv, preferred_element_type=jnp.float32) + b_qkv

    scale = 1.0 / float(np.sqrt(hd))
    per_batch = []
    for b in range(bblk):                     # small static loop (bblk * heads)
        r0 = b * T
        head_outs = []
        for h in range(heads):
            q = qkv[r0:r0 + T, h * hd:(h + 1) * hd]
            k = qkv[r0:r0 + T, D + h * hd:D + (h + 1) * hd]
            v = qkv[r0:r0 + T, 2 * D + h * hd:2 * D + (h + 1) * hd]
            s = jax.lax.dot_general(q * scale, k, (((1,), (1,)), ((), ())),
                                    preferred_element_type=jnp.float32)   # (T,T)
            s = s - jnp.max(s, axis=-1, keepdims=True)
            e = jnp.exp(s)
            p = e / jnp.sum(e, axis=-1, keepdims=True)        # exact divide
            head_outs.append(jnp.dot(p, v, preferred_element_type=jnp.float32))
        per_batch.append(jnp.concatenate(head_outs, axis=-1))            # (T, D)
    attn = per_batch[0] if bblk == 1 else jnp.concatenate(per_batch, axis=0)
    # single output projection over all heads / all batch rows
    attn = jnp.dot(attn, wo, preferred_element_type=jnp.float32) + bo

    h1 = _layer_norm(x + attn, g1, be1)
    f = jnp.maximum(jnp.dot(h1, w1, preferred_element_type=jnp.float32) + b1, 0.0)
    f = jnp.dot(f, w2, preferred_element_type=jnp.float32) + b2
    return _layer_norm(h1 + f, g2, be2)


def _conv_block_flat(blk, cw1_ref, cw2_ref, tmask, xpad_ref, cpad_ref,
                     *, MD, D, pad):
    """AudioConvBlock on the lane-flattened (m, d) activation held in xpad_ref.

    conv1 = (C,9) @ (9, M*D) and conv2 = (9,C) @ (C, M*D): two plain 2-D MXU
    matmuls.  The 3x3 taps / combine are zero-guarded windowed loads from the
    flat scratch, masked at time / mel / batch boundaries via `tmask`.
    """
    cw1 = cw1_ref[blk]                        # (C, 10) = [w1 taps | b1]
    cw2 = cw2_ref[blk]                        # (10, C) = [w2 taps ; b2 row]
    w1 = cw1[:, 0:9]                          # (C, 9)
    b1 = cw1[:, 9:10]                         # (C, 1)
    w2 = cw2[0:9, :]                          # (9, C)
    b2 = cw2[9:10, 0:1]                       # (1, 1)

    deltas = _tap_deltas(D)

    taps = jnp.concatenate(
        [xpad_ref[0:1, pad + dlt:pad + dlt + MD] * tmask[k:k + 1, :]
         for k, dlt in enumerate(deltas)], axis=0)                        # (9, MD)

    h = jax.lax.dot_general(w1, taps, (((1,), (0,)), ((), ())),
                            preferred_element_type=jnp.float32)           # (C, MD)
    h = jnp.maximum(h + b1, 0.0)

    contrib = jax.lax.dot_general(w2, h, (((1,), (0,)), ((), ())),
                                  preferred_element_type=jnp.float32)     # (9, MD)
    cpad_ref[:, pad:pad + MD] = contrib

    acc = jnp.zeros((1, MD), jnp.float32)
    for k, dlt in enumerate(deltas):
        acc = acc + cpad_ref[k:k + 1, pad + dlt:pad + dlt + MD] * tmask[k:k + 1, :]
    y = jnp.maximum(acc + b2, 0.0)
    xpad_ref[0:1, pad:pad + MD] = y           # becomes the next stage's input


# ---------------------------------------------------------------------------
# Fused kernel: transformer1 -> conv1 -> conv2 -> transformer2
# ---------------------------------------------------------------------------
def _fused_kernel(x_ref, wqkv_ref, wo_ref, wf1_ref, wf2_ref, tvec_ref,
                  cw1_ref, cw2_ref, mask_ref, o_ref, xpad_ref, cpad_ref,
                  *, bblk, T, D, heads, hd, pad):
    M = bblk * T
    MD = M * D

    x = x_ref[0] if bblk == 1 else x_ref[...].reshape(M, D)
    tmask = mask_ref[...]                                                  # (9, MD)

    # zero the guard lanes of the flat scratches (scratch is per-core, so do it
    # every grid step rather than only on program_id == 0)
    zg1 = jnp.zeros((1, pad), jnp.float32)
    zg9 = jnp.zeros((9, pad), jnp.float32)
    xpad_ref[0:1, 0:pad] = zg1
    xpad_ref[0:1, pad + MD:pad + MD + pad] = zg1
    cpad_ref[:, 0:pad] = zg9
    cpad_ref[:, pad + MD:pad + MD + pad] = zg9

    # ---- transformer 1 ----
    x = _transformer(x, 0, wqkv_ref, wo_ref, wf1_ref, wf2_ref, tvec_ref,
                     bblk=bblk, T=T, D=D, heads=heads, hd=hd)

    # ---- conv blocks on the lane-flattened activation ----
    for m in range(M):                        # pack the (M, D) rows into flat lanes
        xpad_ref[0:1, pad + m * D:pad + (m + 1) * D] = x[m:m + 1, :]
    for blk in range(2):
        _conv_block_flat(blk, cw1_ref, cw2_ref, tmask, xpad_ref, cpad_ref,
                         MD=MD, D=D, pad=pad)
    x = jnp.concatenate(
        [xpad_ref[0:1, pad + m * D:pad + (m + 1) * D] for m in range(M)], axis=0)

    # ---- transformer 2 ----
    x = _transformer(x, 1, wqkv_ref, wo_ref, wf1_ref, wf2_ref, tvec_ref,
                     bblk=bblk, T=T, D=D, heads=heads, hd=hd)

    if bblk == 1:
        o_ref[0] = x
    else:
        o_ref[...] = x.reshape(bblk, T, D)


# ---------------------------------------------------------------------------
# Wrapper: weight packing (tiny XLA ops) + single pallas_call
# ---------------------------------------------------------------------------
def _pack_transformer(p):
    D, F = DIM, FF_DIM
    w_qkv = jnp.concatenate([p["wq"], p["wk"], p["wv"]], axis=1)          # (D, 3D)
    b_qkv = jnp.concatenate([p["bq"], p["bk"], p["bv"]], axis=1)          # (1, 3D)
    vec = jnp.zeros((8, F), jnp.float32)
    vec = vec.at[0:1, 0:3 * D].set(b_qkv)
    vec = vec.at[1:2, 0:D].set(p["bo"])
    vec = vec.at[2:3, 0:D].set(p["g1"])
    vec = vec.at[3:4, 0:D].set(p["be1"])
    vec = vec.at[4:5, :].set(p["b1"])
    vec = vec.at[5:6, 0:D].set(p["b2"])
    vec = vec.at[6:7, 0:D].set(p["g2"])
    vec = vec.at[7:8, 0:D].set(p["be2"])
    return w_qkv, p["wo"], p["w1"], p["w2"], vec


def _pack_conv(p):
    C = CONV_CH
    # weights stored torch-style (out_c/in_c, kh, kw) with kh over mel (D) and
    # kw over time (T).  Kernel tap k = di*3 + dj (di=time, dj=mel) -> [kh=dj, kw=di].
    w1k = jnp.transpose(p["w1"], (0, 2, 1)).reshape(C, 9)                 # (C, 9)
    w2k = jnp.transpose(p["w2"], (0, 2, 1)).reshape(C, 9)                 # (C, 9)
    cw1 = jnp.concatenate([w1k, p["b1"].reshape(C, 1)], axis=1)           # (C, 10)
    cw2 = jnp.zeros((10, C), jnp.float32)
    cw2 = cw2.at[0:9, :].set(w2k.T)                                       # (9, C)
    cw2 = cw2.at[9, 0].set(p["b2"])
    return cw1, cw2


def _tap_masks(bblk, T, D):
    """(9, bblk*T*D) 0/1 masks zeroing taps that cross time / mel / batch edges."""
    t = np.arange(bblk * T) % T
    d = np.arange(D)
    rows = []
    for di in range(3):
        for dj in range(3):
            tm = np.ones(bblk * T, np.float32)
            if di == 0:
                tm = (t >= 1).astype(np.float32)
            elif di == 2:
                tm = (t <= T - 2).astype(np.float32)
            dm = np.ones(D, np.float32)
            if dj == 0:
                dm = (d >= 1).astype(np.float32)
            elif dj == 2:
                dm = (d <= D - 2).astype(np.float32)
            rows.append((tm[:, None] * dm[None, :]).reshape(-1))
    return jnp.asarray(np.stack(rows, axis=0))


def mel_autoencoder_forward(x, params, *, bblk=None):
    B, T, D = x.shape
    assert D == DIM and T % 8 == 0
    x = x.astype(jnp.float32)
    if bblk is None:
        bblk = _choose_bblk(B, T)
    assert B % bblk == 0
    grid = (B // bblk,)
    MD = bblk * T * D
    pad = max(128, D + 2)                     # flat-scratch guard width (>= D+1)

    tp = [_pack_transformer(params["t1"]), _pack_transformer(params["t2"])]
    w_qkv, w_o, w_f1, w_f2, t_vec = [jnp.stack([a, b]) for a, b in zip(*tp)]
    cp = [_pack_conv(params["c1"]), _pack_conv(params["c2"])]
    cw1, cw2 = [jnp.stack([a, b]) for a, b in zip(*cp)]
    tap_mask = _tap_masks(bblk, T, D)

    weights = (w_qkv, w_o, w_f1, w_f2, t_vec, cw1, cw2, tap_mask)

    kernel = functools.partial(_fused_kernel, bblk=bblk, T=T, D=D,
                               heads=HEADS, hd=HEAD_DIM, pad=pad)

    in_specs = [pl.BlockSpec((bblk, T, D), lambda i: (i, 0, 0))]
    in_specs += [pl.BlockSpec(w.shape, lambda i, n=w.ndim: (0,) * n)
                 for w in weights]

    return pl.pallas_call(
        kernel,
        out_shape=jax.ShapeDtypeStruct((B, T, D), jnp.float32),
        grid=grid,
        in_specs=in_specs,
        out_specs=pl.BlockSpec((bblk, T, D), lambda i: (i, 0, 0)),
        scratch_shapes=[pltpu.VMEM((1, MD + 2 * pad), jnp.float32),
                        pltpu.VMEM((9, MD + 2 * pad), jnp.float32)],
        compiler_params=pltpu.CompilerParams(
            dimension_semantics=("parallel",),
            vmem_limit_bytes=64 * 1024 * 1024),
    )(x, *weights)


# ---------------------------------------------------------------------------
# Deterministic synthetic parameters
# ---------------------------------------------------------------------------
def init_transformer_params(key):
    ks = jax.random.split(key, 16)
    D, F = DIM, FF_DIM
    s = 0.08

    def n(k, shape, sc=s):
        return jax.random.normal(k, shape, jnp.float32) * sc

    return {
        "wq": n(ks[0], (D, D)), "bq": n(ks[1], (1, D)),
        "wk": n(ks[2], (D, D)), "bk": n(ks[3], (1, D)),
        "wv": n(ks[4], (D, D)), "bv": n(ks[5], (1, D)),
        "wo": n(ks[6], (D, D)), "bo": n(ks[7], (1, D)),
        "g1": 1.0 + n(ks[8], (1, D), 0.05), "be1": n(ks[9], (1, D), 0.05),
        "w1": n(ks[10], (D, F)), "b1": n(ks[11], (1, F)),
        "w2": n(ks[12], (F, D)), "b2": n(ks[13], (1, D)),
        "g2": 1.0 + n(ks[14], (1, D), 0.05), "be2": n(ks[15], (1, D), 0.05),
    }


def init_conv_params(key):
    ks = jax.random.split(key, 4)
    return {
        "w1": jax.random.normal(ks[0], (CONV_CH, 3, 3), jnp.float32) * 0.15,
        "b1": jax.random.normal(ks[1], (CONV_CH,), jnp.float32) * 0.05,
        "w2": jax.random.normal(ks[2], (CONV_CH, 3, 3), jnp.float32) * 0.05,
        "b2": jax.random.normal(ks[3], (), jnp.float32) * 0.05,
    }


# ---------------------------------------------------------------------------
# Pure-JAX reference (for correctness check)
# ---------------------------------------------------------------------------
def _ref_ln(x, g, b):
    mu = x.mean(-1, keepdims=True)
    var = ((x - mu) ** 2).mean(-1, keepdims=True)
    return (x - mu) / jnp.sqrt(var + LN_EPS) * g + b


def ref_transformer(x, p):
    B, T, D = x.shape
    H, hd = HEADS, HEAD_DIM
    q = x @ p["wq"] + p["bq"]
    k = x @ p["wk"] + p["bk"]
    v = x @ p["wv"] + p["bv"]
    qh = q.reshape(B, T, H, hd).transpose(0, 2, 1, 3)
    kh = k.reshape(B, T, H, hd).transpose(0, 2, 1, 3)
    vh = v.reshape(B, T, H, hd).transpose(0, 2, 1, 3)
    s = jnp.einsum("bhtd,bhsd->bhts", qh, kh) / np.sqrt(hd)
    a = jax.nn.softmax(s, axis=-1)
    o = jnp.einsum("bhts,bhsd->bhtd", a, vh).transpose(0, 2, 1, 3).reshape(B, T, D)
    o = o @ p["wo"] + p["bo"]
    h = _ref_ln(x + o, p["g1"], p["be1"])
    f = jnp.maximum(h @ p["w1"] + p["b1"], 0.0) @ p["w2"] + p["b2"]
    return _ref_ln(h + f, p["g2"], p["be2"])


def ref_conv_block(x, p):
    C = CONV_CH
    xi = jnp.transpose(x, (0, 2, 1))[:, None]                             # (B,1,D,T)
    h = jax.lax.conv_general_dilated(xi, p["w1"][:, None], (1, 1),
                                     [(1, 1), (1, 1)],
                                     dimension_numbers=("NCHW", "OIHW", "NCHW"))
    h = jnp.maximum(h + p["b1"].reshape(1, C, 1, 1), 0.0)
    o = jax.lax.conv_general_dilated(h, p["w2"][None], (1, 1),
                                     [(1, 1), (1, 1)],
                                     dimension_numbers=("NCHW", "OIHW", "NCHW"))
    o = jnp.maximum(o + p["b2"], 0.0)
    return jnp.transpose(o[:, 0], (0, 2, 1))                              # (B,T,D)


def ref_forward(x, params):
    x = ref_transformer(x, params["t1"])
    x = ref_conv_block(x, params["c1"])
    x = ref_conv_block(x, params["c2"])
    x = ref_transformer(x, params["t2"])
    return x


# ---------------------------------------------------------------------------
if __name__ == "__main__":
    key = jax.random.PRNGKey(0)
    kx, k1, k2, k3, k4 = jax.random.split(key, 5)
    B, T = 2, 16
    x = jax.random.normal(kx, (B, T, DIM), jnp.float32)

    params = {
        "t1": init_transformer_params(k1),
        "c1": init_conv_params(k2),
        "c2": init_conv_params(k3),
        "t2": init_transformer_params(k4),
    }

    out = jax.jit(mel_autoencoder_forward)(x, params)
    out = jax.block_until_ready(out)

    assert out.shape == (B, T, DIM)
    assert bool(jnp.all(jnp.isfinite(out)))

    with jax.default_matmul_precision("highest"):
        ref = ref_forward(x, params)
    np.testing.assert_allclose(np.asarray(out), np.asarray(ref),
                               rtol=2e-3, atol=2e-3)

    print("KERNEL_OK")
</pallas_src>

<mosaic_0001>
module attributes {stable_mosaic.version = 11 : i64} {
  func.func @_fused_kernel(%arg0: i32, %arg1: memref<1x16x80xf32, #tpu.memory_space<vmem>>, %arg2: memref<2x80x240xf32, #tpu.memory_space<vmem>>, %arg3: memref<2x80x80xf32, #tpu.memory_space<vmem>>, %arg4: memref<2x80x256xf32, #tpu.memory_space<vmem>>, %arg5: memref<2x256x80xf32, #tpu.memory_space<vmem>>, %arg6: memref<2x8x256xf32, #tpu.memory_space<vmem>>, %arg7: memref<2x64x10xf32, #tpu.memory_space<vmem>>, %arg8: memref<2x10x64xf32, #tpu.memory_space<vmem>>, %arg9: memref<9x1280xf32, #tpu.memory_space<vmem>>, %arg10: memref<1x16x80xf32, #tpu.memory_space<vmem>>, %arg11: memref<1x1536xf32, #tpu.memory_space<vmem>>, %arg12: memref<9x1536xf32, #tpu.memory_space<vmem>>) attributes {dimension_semantics = [#tpu.dimension_semantics<parallel>], iteration_bounds = array<i64: 2>, scalar_prefetch = 0 : i64, scratch_operands = 2 : i64, tpu.core_type = #tpu.core_type<tc>, window_params = [{transform_indices = @transform_0, window_bounds = array<i64: 1, 16, 80>}, {pipeline_mode = #tpu.pipeline_mode<synchronous>, transform_indices = @transform_1, window_bounds = array<i64: 2, 80, 240>}, {pipeline_mode = #tpu.pipeline_mode<synchronous>, transform_indices = @transform_2, window_bounds = array<i64: 2, 80, 80>}, {pipeline_mode = #tpu.pipeline_mode<synchronous>, transform_indices = @transform_3, window_bounds = array<i64: 2, 80, 256>}, {pipeline_mode = #tpu.pipeline_mode<synchronous>, transform_indices = @transform_4, window_bounds = array<i64: 2, 256, 80>}, {pipeline_mode = #tpu.pipeline_mode<synchronous>, transform_indices = @transform_5, window_bounds = array<i64: 2, 8, 256>}, {pipeline_mode = #tpu.pipeline_mode<synchronous>, transform_indices = @transform_6, window_bounds = array<i64: 2, 64, 10>}, {pipeline_mode = #tpu.pipeline_mode<synchronous>, transform_indices = @transform_7, window_bounds = array<i64: 2, 10, 64>}, {pipeline_mode = #tpu.pipeline_mode<synchronous>, transform_indices = @transform_8, window_bounds = array<i64: 9, 1280>}, {transform_indices = @transform_9, window_bounds = array<i64: 1, 16, 80>}]} {
    %c0 = arith.constant 0 : index
    %c0_0 = arith.constant 0 : index
    %c0_1 = arith.constant 0 : index
    %0 = vector.load %arg1[%c0, %c0_0, %c0_1] : memref<1x16x80xf32, #tpu.memory_space<vmem>>, vector<1x16x80xf32>
    %1 = vector.shape_cast %0 : vector<1x16x80xf32> to vector<16x80xf32>
    %c0_2 = arith.constant 0 : index
    %c0_3 = arith.constant 0 : index
    %2 = vector.load %arg9[%c0_2, %c0_3] : memref<9x1280xf32, #tpu.memory_space<vmem>>, vector<9x1280xf32>
    %cst = arith.constant 0.000000e+00 : f32
    %3 = vector.broadcast %cst : f32 to vector<1x128xf32>
    %cst_4 = arith.constant 0.000000e+00 : f32
    %4 = vector.broadcast %cst_4 : f32 to vector<9x128xf32>
    %c0_5 = arith.constant 0 : index
    %c0_6 = arith.constant 0 : index
    %5 = vector.load %arg11[%c0_5, %c0_6] : memref<1x1536xf32, #tpu.memory_space<vmem>>, vector<1x128xf32>
    tpu.vector_store %arg11[%c0_5, %c0_6], %3 {strides = array<i32>} : memref<1x1536xf32, #tpu.memory_space<vmem>>, vector<1x128xf32>,
    %c0_7 = arith.constant 0 : index
    %c1408 = arith.constant 1408 : index
    %6 = vector.load %arg11[%c0_7, %c1408] : memref<1x1536xf32, #tpu.memory_space<vmem>>, vector<1x128xf32>
    tpu.vector_store %arg11[%c0_7, %c1408], %3 {strides = array<i32>} : memref<1x1536xf32, #tpu.memory_space<vmem>>, vector<1x128xf32>,
    %c0_8 = arith.constant 0 : index
    %c0_9 = arith.constant 0 : index
    %7 = vector.load %arg12[%c0_8, %c0_9] : memref<9x1536xf32, #tpu.memory_space<vmem>>, vector<9x128xf32>
    tpu.vector_store %arg12[%c0_8, %c0_9], %4 {strides = array<i32>} : memref<9x1536xf32, #tpu.memory_space<vmem>>, vector<9x128xf32>,
    %c0_10 = arith.constant 0 : index
    %c1408_11 = arith.constant 1408 : index
    %8 = vector.load %arg12[%c0_10, %c1408_11] : memref<9x1536xf32, #tpu.memory_space<vmem>>, vector<9x128xf32>
    tpu.vector_store %arg12[%c0_10, %c1408_11], %4 {strides = array<i32>} : memref<9x1536xf32, #tpu.memory_space<vmem>>, vector<9x128xf32>,
    %c0_12 = arith.constant 0 : index
    %c0_13 = arith.constant 0 : index
    %c0_14 = arith.constant 0 : index
    %9 = vector.load %arg2[%c0_12, %c0_13, %c0_14] : memref<2x80x240xf32, #tpu.memory_space<vmem>>, vector<1x80x240xf32>
    %10 = vector.shape_cast %9 : vector<1x80x240xf32> to vector<80x240xf32>
    %c0_15 = arith.constant 0 : index
    %c0_16 = arith.constant 0 : index
    %c0_17 = arith.constant 0 : index
    %11 = vector.load %arg3[%c0_15, %c0_16, %c0_17] : memref<2x80x80xf32, #tpu.memory_space<vmem>>, vector<1x80x80xf32>
    %12 = vector.shape_cast %11 : vector<1x80x80xf32> to vector<80x80xf32>
    %c0_18 = arith.constant 0 : index
    %c0_19 = arith.constant 0 : index
    %c0_20 = arith.constant 0 : index
    %13 = vector.load %arg4[%c0_18, %c0_19, %c0_20] : memref<2x80x256xf32, #tpu.memory_space<vmem>>, vector<1x80x256xf32>
    %14 = vector.shape_cast %13 : vector<1x80x256xf32> to vector<80x256xf32>
    %c0_21 = arith.constant 0 : index
    %c0_22 = arith.constant 0 : index
    %c0_23 = arith.constant 0 : index
    %15 = vector.load %arg5[%c0_21, %c0_22, %c0_23] : memref<2x256x80xf32, #tpu.memory_space<vmem>>, vector<1x256x80xf32>
    %16 = vector.shape_cast %15 : vector<1x256x80xf32> to vector<256x80xf32>
    %c0_24 = arith.constant 0 : index
    %c0_25 = arith.constant 0 : index
    %c0_26 = arith.constant 0 : index
    %17 = vector.load %arg6[%c0_24, %c0_25, %c0_26] : memref<2x8x256xf32, #tpu.memory_space<vmem>>, vector<1x8x256xf32>
    %18 = vector.shape_cast %17 : vector<1x8x256xf32> to vector<8x256xf32>
    %19 = vector.extract_strided_slice %18 {offsets = [0, 0], sizes = [1, 240], strides = [1, 1]} : vector<8x256xf32> to vector<1x240xf32>
    %20 = vector.extract_strided_slice %18 {offsets = [1, 0], sizes = [1, 80], strides = [1, 1]} : vector<8x256xf32> to vector<1x80xf32>
    %21 = vector.extract_strided_slice %18 {offsets = [2, 0], sizes = [1, 80], strides = [1, 1]} : vector<8x256xf32> to vector<1x80xf32>
    %22 = vector.extract_strided_slice %18 {offsets = [3, 0], sizes = [1, 80], strides = [1, 1]} : vector<8x256xf32> to vector<1x80xf32>
    %23 = vector.extract_strided_slice %18 {offsets = [4, 0], sizes = [1, 256], strides = [1, 1]} : vector<8x256xf32> to vector<1x256xf32>
    %24 = vector.extract_strided_slice %18 {offsets = [5, 0], sizes = [1, 80], strides = [1, 1]} : vector<8x256xf32> to vector<1x80xf32>
    %25 = vector.extract_strided_slice %18 {offsets = [6, 0], sizes = [1, 80], strides = [1, 1]} : vector<8x256xf32> to vector<1x80xf32>
    %26 = vector.extract_strided_slice %18 {offsets = [7, 0], sizes = [1, 80], strides = [1, 1]} : vector<8x256xf32> to vector<1x80xf32>
    %cst_27 = arith.constant dense<0.000000e+00> : vector<16x240xf32>
    %27 = tpu.matmul %1, %10, %cst_27 {dimension_numbers = #tpu.dot_dimension_numbers<[1], [0], [0], [1], [0, 0, 1, 1], [], []>} : vector<16x80xf32>, vector<80x240xf32>, vector<16x240xf32> -> vector<16x240xf32>
    %28 = vector.broadcast %19 : vector<1x240xf32> to vector<16x240xf32>
    %29 = arith.addf %27, %28 : vector<16x240xf32>
    %30 = vector.extract_strided_slice %29 {offsets = [0, 0], sizes = [16, 20], strides = [1, 1]} : vector<16x240xf32> to vector<16x20xf32>
    %31 = vector.extract_strided_slice %29 {offsets = [0, 80], sizes = [16, 20], strides = [1, 1]} : vector<16x240xf32> to vector<16x20xf32>
    %32 = vector.extract_strided_slice %29 {offsets = [0, 160], sizes = [16, 20], strides = [1, 1]} : vector<16x240xf32> to vector<16x20xf32>
    %cst_28 = arith.constant 0.223606795 : f32
    %33 = vector.broadcast %cst_28 : f32 to vector<16x20xf32>
    %34 = arith.mulf %30, %33 : vector<16x20xf32>
    %cst_29 = arith.constant dense<0.000000e+00> : vector<16x16xf32>
    %35 = tpu.matmul %34, %31, %cst_29 {dimension_numbers = #tpu.dot_dimension_numbers<[1], [1], [0], [0], [0, 0, 1, 0], [], []>} : vector<16x20xf32>, vector<16x20xf32>, vector<16x16xf32> -> vector<16x16xf32>
    %cst_30 = arith.constant dense<0xFF800000> : vector<16xf32>
    %36 = vector.multi_reduction <maximumf>, %35, %cst_30 [1] : vector<16x16xf32> to vector<16xf32>
    %37 = vector.shape_cast %36 : vector<16xf32> to vector<16x1xf32>
    %38 = vector.broadcast %37 : vector<16x1xf32> to vector<16x16xf32>
    %39 = arith.subf %35, %38 : vector<16x16xf32>
    %40 = math.exp %39 : vector<16x16xf32>
    %cst_31 = arith.constant dense<0.000000e+00> : vector<16xf32>
    %41 = vector.multi_reduction <add>, %40, %cst_31 [1] : vector<16x16xf32> to vector<16xf32>
    %42 = vector.shape_cast %41 : vector<16xf32> to vector<16x1xf32>
    %43 = vector.broadcast %42 : vector<16x1xf32> to vector<16x16xf32>
    %44 = arith.divf %40, %43 : vector<16x16xf32>
    %cst_32 = arith.constant dense<0.000000e+00> : vector<16x20xf32>
    %45 = tpu.matmul %44, %32, %cst_32 {dimension_numbers = #tpu.dot_dimension_numbers<[1], [0], [0], [1], [0, 0, 1, 1], [], []>} : vector<16x16xf32>, vector<16x20xf32>, vector<16x20xf32> -> vector<16x20xf32>
    %46 = vector.extract_strided_slice %29 {offsets = [0, 20], sizes = [16, 20], strides = [1, 1]} : vector<16x240xf32> to vector<16x20xf32>
    %47 = vector.extract_strided_slice %29 {offsets = [0, 100], sizes = [16, 20], strides = [1, 1]} : vector<16x240xf32> to vector<16x20xf32>
    %48 = vector.extract_strided_slice %29 {offsets = [0, 180], sizes = [16, 20], strides = [1, 1]} : vector<16x240xf32> to vector<16x20xf32>
    %cst_33 = arith.constant 0.223606795 : f32
    %49 = vector.broadcast %cst_33 : f32 to vector<16x20xf32>
    %50 = arith.mulf %46, %49 : vector<16x20xf32>
    %cst_34 = arith.constant dense<0.000000e+00> : vector<16x16xf32>
    %51 = tpu.matmul %50, %47, %cst_34 {dimension_numbers = #tpu.dot_dimension_numbers<[1], [1], [0], [0], [0, 0, 1, 0], [], []>} : vector<16x20xf32>, vector<16x20xf32>, vector<16x16xf32> -> vector<16x16xf32>
    %cst_35 = arith.constant dense<0xFF800000> : vector<16xf32>
    %52 = vector.multi_reduction <maximumf>, %51, %cst_35 [1] : vector<16x16xf32> to vector<16xf32>
    %53 = vector.shape_cast %52 : vector<16xf32> to vector<16x1xf32>
    %54 = vector.broadcast %53 : vector<16x1xf32> to vector<16x16xf32>
    %55 = arith.subf %51, %54 : vector<16x16xf32>
    %56 = math.exp %55 : vector<16x16xf32>
    %cst_36 = arith.constant dense<0.000000e+00> : vector<16xf32>
    %57 = vector.multi_reduction <add>, %56, %cst_36 [1] : vector<16x16xf32> to vector<16xf32>
    %58 = vector.shape_cast %57 : vector<16xf32> to vector<16x1xf32>
    %59 = vector.broadcast %58 : vector<16x1xf32> to vector<16x16xf32>
    %60 = arith.divf %56, %59 : vector<16x16xf32>
    %cst_37 = arith.constant dense<0.000000e+00> : vector<16x20xf32>
    %61 = tpu.matmul %60, %48, %cst_37 {dimension_numbers = #tpu.dot_dimension_numbers<[1], [0], [0], [1], [0, 0, 1, 1], [], []>} : vector<16x16xf32>, vector<16x20xf32>, vector<16x20xf32> -> vector<16x20xf32>
    %62 = vector.extract_strided_slice %29 {offsets = [0, 40], sizes = [16, 20], strides = [1, 1]} : vector<16x240xf32> to vector<16x20xf32>
    %63 = vector.extract_strided_slice %29 {offsets = [0, 120], sizes = [16, 20], strides = [1, 1]} : vector<16x240xf32> to vector<16x20xf32>
    %64 = vector.extract_strided_slice %29 {offsets = [0, 200], sizes = [16, 20], strides = [1, 1]} : vector<16x240xf32> to vector<16x20xf32>
    %cst_38 = arith.constant 0.223606795 : f32
    %65 = vector.broadcast %cst_38 : f32 to vector<16x20xf32>
    %66 = arith.mulf %62, %65 : vector<16x20xf32>
    %cst_39 = arith.constant dense<0.000000e+00> : vector<16x16xf32>
    %67 = tpu.matmul %66, %63, %cst_39 {dimension_numbers = #tpu.dot_dimension_numbers<[1], [1], [0], [0], [0, 0, 1, 0], [], []>} : vector<16x20xf32>, vector<16x20xf32>, vector<16x16xf32> -> vector<16x16xf32>
    %cst_40 = arith.constant dense<0xFF800000> : vector<16xf32>
    %68 = vector.multi_reduction <maximumf>, %67, %cst_40 [1] : vector<16x16xf32> to vector<16xf32>
    %69 = vector.shape_cast %68 : vector<16xf32> to vector<16x1xf32>
    %70 = vector.broadcast %69 : vector<16x1xf32> to vector<16x16xf32>
    %71 = arith.subf %67, %70 : vector<16x16xf32>
    %72 = math.exp %71 : vector<16x16xf32>
    %cst_41 = arith.constant dense<0.000000e+00> : vector<16xf32>
    %73 = vector.multi_reduction <add>, %72, %cst_41 [1] : vector<16x16xf32> to vector<16xf32>
    %74 = vector.shape_cast %73 : vector<16xf32> to vector<16x1xf32>
    %75 = vector.broadcast %74 : vector<16x1xf32> to vector<16x16xf32>
    %76 = arith.divf %72, %75 : vector<16x16xf32>
    %cst_42 = arith.constant dense<0.000000e+00> : vector<16x20xf32>
    %77 = tpu.matmul %76, %64, %cst_42 {dimension_numbers = #tpu.dot_dimension_numbers<[1], [0], [0], [1], [0, 0, 1, 1], [], []>} : vector<16x16xf32>, vector<16x20xf32>, vector<16x20xf32> -> vector<16x20xf32>
    %78 = vector.extract_strided_slice %29 {offsets = [0, 60], sizes = [16, 20], strides = [1, 1]} : vector<16x240xf32> to vector<16x20xf32>
    %79 = vector.extract_strided_slice %29 {offsets = [0, 140], sizes = [16, 20], strides = [1, 1]} : vector<16x240xf32> to vector<16x20xf32>
    %80 = vector.extract_strided_slice %29 {offsets = [0, 220], sizes = [16, 20], strides = [1, 1]} : vector<16x240xf32> to vector<16x20xf32>
    %cst_43 = arith.constant 0.223606795 : f32
    %81 = vector.broadcast %cst_43 : f32 to vector<16x20xf32>
    %82 = arith.mulf %78, %81 : vector<16x20xf32>
    %cst_44 = arith.constant dense<0.000000e+00> : vector<16x16xf32>
    %83 = tpu.matmul %82, %79, %cst_44 {dimension_numbers = #tpu.dot_dimension_numbers<[1], [1], [0], [0], [0, 0, 1, 0], [], []>} : vector<16x20xf32>, vector<16x20xf32>, vector<16x16xf32> -> vector<16x16xf32>
    %cst_45 = arith.constant dense<0xFF800000> : vector<16xf32>
    %84 = vector.multi_reduction <maximumf>, %83, %cst_45 [1] : vector<16x16xf32> to vector<16xf32>
    %85 = vector.shape_cast %84 : vector<16xf32> to vector<16x1xf32>
    %86 = vector.broadcast %85 : vector<16x1xf32> to vector<16x16xf32>
    %87 = arith.subf %83, %86 : vector<16x16xf32>
    %88 = math.exp %87 : vector<16x16xf32>
    %cst_46 = arith.constant dense<0.000000e+00> : vector<16xf32>
    %89 = vector.multi_reduction <add>, %88, %cst_46 [1] : vector<16x16xf32> to vector<16xf32>
    %90 = vector.shape_cast %89 : vector<16xf32> to vector<16x1xf32>
    %91 = vector.broadcast %90 : vector<16x1xf32> to vector<16x16xf32>
    %92 = arith.divf %88, %91 : vector<16x16xf32>
    %cst_47 = arith.constant dense<0.000000e+00> : vector<16x20xf32>
    %93 = tpu.matmul %92, %80, %cst_47 {dimension_numbers = #tpu.dot_dimension_numbers<[1], [0], [0], [1], [0, 0, 1, 1], [], []>} : vector<16x16xf32>, vector<16x20xf32>, vector<16x20xf32> -> vector<16x20xf32>
    %94 = tpu.concatenate %45, %61, %77, %93 in 1 : vector<16x20xf32>, vector<16x20xf32>, vector<16x20xf32>, vector<16x20xf32> -> vector<16x80xf32>
    %cst_48 = arith.constant dense<0.000000e+00> : vector<16x80xf32>
    %95 = tpu.matmul %94, %12, %cst_48 {dimension_numbers = #tpu.dot_dimension_numbers<[1], [0], [0], [1], [0, 0, 1, 1], [], []>} : vector<16x80xf32>, vector<80x80xf32>, vector<16x80xf32> -> vector<16x80xf32>
    %96 = vector.broadcast %20 : vector<1x80xf32> to vector<16x80xf32>
    %97 = arith.addf %95, %96 : vector<16x80xf32>
    %98 = arith.addf %1, %97 : vector<16x80xf32>
    %cst_49 = arith.constant dense<0.000000e+00> : vector<16xf32>
    %99 = vector.multi_reduction <add>, %98, %cst_49 [1] : vector<16x80xf32> to vector<16xf32>
    %100 = vector.shape_cast %99 : vector<16xf32> to vector<16x1xf32>
    %cst_50 = arith.constant 8.000000e+01 : f32
    %101 = vector.broadcast %cst_50 : f32 to vector<16x1xf32>
    %102 = arith.divf %100, %101 : vector<16x1xf32>
    %103 = vector.broadcast %102 : vector<16x1xf32> to vector<16x80xf32>
    %104 = arith.subf %98, %103 : vector<16x80xf32>
    %105 = arith.mulf %104, %104 : vector<16x80xf32>
    %cst_51 = arith.constant dense<0.000000e+00> : vector<16xf32>
    %106 = vector.multi_reduction <add>, %105, %cst_51 [1] : vector<16x80xf32> to vector<16xf32>
    %107 = vector.shape_cast %106 : vector<16xf32> to vector<16x1xf32>
    %cst_52 = arith.constant 8.000000e+01 : f32
    %108 = vector.broadcast %cst_52 : f32 to vector<16x1xf32>
    %109 = arith.divf %107, %108 : vector<16x1xf32>
    %110 = vector.broadcast %102 : vector<16x1xf32> to vector<16x80xf32>
    %111 = arith.subf %98, %110 : vector<16x80xf32>
    %cst_53 = arith.constant 9.99999974E-6 : f32
    %112 = vector.broadcast %cst_53 : f32 to vector<16x1xf32>
    %113 = arith.addf %109, %112 : vector<16x1xf32>
    %114 = math.rsqrt %113 : vector<16x1xf32>
    %115 = vector.broadcast %114 : vector<16x1xf32> to vector<16x80xf32>
    %116 = arith.mulf %111, %115 : vector<16x80xf32>
    %117 = vector.broadcast %21 : vector<1x80xf32> to vector<16x80xf32>
    %118 = arith.mulf %116, %117 : vector<16x80xf32>
    %119 = vector.broadcast %22 : vector<1x80xf32> to vector<16x80xf32>
    %120 = arith.addf %118, %119 : vector<16x80xf32>
    %cst_54 = arith.constant dense<0.000000e+00> : vector<16x256xf32>
    %121 = tpu.matmul %120, %14, %cst_54 {dimension_numbers = #tpu.dot_dimension_numbers<[1], [0], [0], [1], [0, 0, 1, 1], [], []>} : vector<16x80xf32>, vector<80x256xf32>, vector<16x256xf32> -> vector<16x256xf32>
    %122 = vector.broadcast %23 : vector<1x256xf32> to vector<16x256xf32>
    %123 = arith.addf %121, %122 : vector<16x256xf32>
    %cst_55 = arith.constant 0.000000e+00 : f32
    %124 = vector.broadcast %cst_55 : f32 to vector<16x256xf32>
    %125 = arith.maximumf %123, %124 : vector<16x256xf32>
    %cst_56 = arith.constant dense<0.000000e+00> : vector<16x80xf32>
    %126 = tpu.matmul %125, %16, %cst_56 {dimension_numbers = #tpu.dot_dimension_numbers<[1], [0], [0], [1], [0, 0, 1, 1], [], []>} : vector<16x256xf32>, vector<256x80xf32>, vector<16x80xf32> -> vector<16x80xf32>
    %127 = vector.broadcast %24 : vector<1x80xf32> to vector<16x80xf32>
    %128 = arith.addf %126, %127 : vector<16x80xf32>
    %129 = arith.addf %120, %128 : vector<16x80xf32>
    %cst_57 = arith.constant dense<0.000000e+00> : vector<16xf32>
    %130 = vector.multi_reduction <add>, %129, %cst_57 [1] : vector<16x80xf32> to vector<16xf32>
    %131 = vector.shape_cast %130 : vector<16xf32> to vector<16x1xf32>
    %cst_58 = arith.constant 8.000000e+01 : f32
    %132 = vector.broadcast %cst_58 : f32 to vector<16x1xf32>
    %133 = arith.divf %131, %132 : vector<16x1xf32>
    %134 = vector.broadcast %133 : vector<16x1xf32> to vector<16x80xf32>
    %135 = arith.subf %129, %134 : vector<16x80xf32>
    %136 = arith.mulf %135, %135 : vector<16x80xf32>
    %cst_59 = arith.constant dense<0.000000e+00> : vector<16xf32>
    %137 = vector.multi_reduction <add>, %136, %cst_59 [1] : vector<16x80xf32> to vector<16xf32>
    %138 = vector.shape_cast %137 : vector<16xf32> to vector<16x1xf32>
    %cst_60 = arith.constant 8.000000e+01 : f32
    %139 = vector.broadcast %cst_60 : f32 to vector<16x1xf32>
    %140 = arith.divf %138, %139 : vector<16x1xf32>
    %141 = vector.broadcast %133 : vector<16x1xf32> to vector<16x80xf32>
    %142 = arith.subf %129, %141 : vector<16x80xf32>
    %cst_61 = arith.constant 9.99999974E-6 : f32
    %143 = vector.broadcast %cst_61 : f32 to vector<16x1xf32>
    %144 = arith.addf %140, %143 : vector<16x1xf32>
    %145 = math.rsqrt %144 : vector<16x1xf32>
    %146 = vector.broadcast %145 : vector<16x1xf32> to vector<16x80xf32>
    %147 = arith.mulf %142, %146 : vector<16x80xf32>
    %148 = vector.broadcast %25 : vector<1x80xf32> to vector<16x80xf32>
    %149 = arith.mulf %147, %148 : vector<16x80xf32>
    %150 = vector.broadcast %26 : vector<1x80xf32> to vector<16x80xf32>
    %151 = arith.addf %149, %150 : vector<16x80xf32>
    %152 = vector.extract_strided_slice %151 {offsets = [0, 0], sizes = [1, 80], strides = [1, 1]} : vector<16x80xf32> to vector<1x80xf32>
    %c0_62 = arith.constant 0 : index
    %c128 = arith.constant 128 : index
    %153 = vector.load %arg11[%c0_62, %c128] : memref<1x1536xf32, #tpu.memory_space<vmem>>, vector<1x80xf32>
    tpu.vector_store %arg11[%c0_62, %c128], %152 {strides = array<i32>} : memref<1x1536xf32, #tpu.memory_space<vmem>>, vector<1x80xf32>,
    %154 = vector.extract_strided_slice %151 {offsets = [1, 0], sizes = [1, 80], strides = [1, 1]} : vector<16x80xf32> to vector<1x80xf32>
    %c0_63 = arith.constant 0 : index
    %c208 = arith.constant 208 : index
    %155 = vector.load %arg11[%c0_63, %c208] : memref<1x1536xf32, #tpu.memory_space<vmem>>, vector<1x80xf32>
    tpu.vector_store %arg11[%c0_63, %c208], %154 {strides = array<i32>} : memref<1x1536xf32, #tpu.memory_space<vmem>>, vector<1x80xf32>,
    %156 = vector.extract_strided_slice %151 {offsets = [2, 0], sizes = [1, 80], strides = [1, 1]} : vector<16x80xf32> to vector<1x80xf32>
    %c0_64 = arith.constant 0 : index
    %c288 = arith.constant 288 : index
    %157 = vector.load %arg11[%c0_64, %c288] : memref<1x1536xf32, #tpu.memory_space<vmem>>, vector<1x80xf32>
    tpu.vector_store %arg11[%c0_64, %c288], %156 {strides = array<i32>} : memref<1x1536xf32, #tpu.memory_space<vmem>>, vector<1x80xf32>,
    %158 = vector.extract_strided_slice %151 {offsets = [3, 0], sizes = [1, 80], strides = [1, 1]} : vector<16x80xf32> to vector<1x80xf32>
    %c0_65 = arith.constant 0 : index
    %c368 = arith.constant 368 : index
    %159 = vector.load %arg11[%c0_65, %c368] : memref<1x1536xf32, #tpu.memory_space<vmem>>, vector<1x80xf32>
    tpu.vector_store %arg11[%c0_65, %c368], %158 {strides = array<i32>} : memref<1x1536xf32, #tpu.memory_space<vmem>>, vector<1x80xf32>,
    %160 = vector.extract_strided_slice %151 {offsets = [4, 0], sizes = [1, 80], strides = [1, 1]} : vector<16x80xf32> to vector<1x80xf32>
    %c0_66 = arith.constant 0 : index
    %c448 = arith.constant 448 : index
    %161 = vector.load %arg11[%c0_66, %c448] : memref<1x1536xf32, #tpu.memory_space<vmem>>, vector<1x80xf32>
    tpu.vector_store %arg11[%c0_66, %c448], %160 {strides = array<i32>} : memref<1x1536xf32, #tpu.memory_space<vmem>>, vector<1x80xf32>,
    %162 = vector.extract_strided_slice %151 {offsets = [5, 0], sizes = [1, 80], strides = [1, 1]} : vector<16x80xf32> to vector<1x80xf32>
    %c0_67 = arith.constant 0 : index
    %c528 = arith.constant 528 : index
    %163 = vector.load %arg11[%c0_67, %c528] : memref<1x1536xf32, #tpu.memory_space<vmem>>, vector<1x80xf32>
    tpu.vector_store %arg11[%c0_67, %c528], %162 {strides = array<i32>} : memref<1x1536xf32, #tpu.memory_space<vmem>>, vector<1x80xf32>,
    %164 = vector.extract_strided_slice %151 {offsets = [6, 0], sizes = [1, 80], strides = [1, 1]} : vector<16x80xf32> to vector<1x80xf32>
    %c0_68 = arith.constant 0 : index
    %c608 = arith.constant 608 : index
    %165 = vector.load %arg11[%c0_68, %c608] : memref<1x1536xf32, #tpu.memory_space<vmem>>, vector<1x80xf32>
    tpu.vector_store %arg11[%c0_68, %c608], %164 {strides = array<i32>} : memref<1x1536xf32, #tpu.memory_space<vmem>>, vector<1x80xf32>,
    %166 = vector.extract_strided_slice %151 {offsets = [7, 0], sizes = [1, 80], strides = [1, 1]} : vector<16x80xf32> to vector<1x80xf32>
    %c0_69 = arith.constant 0 : index
    %c688 = arith.constant 688 : index
    %167 = vector.load %arg11[%c0_69, %c688] : memref<1x1536xf32, #tpu.memory_space<vmem>>, vector<1x80xf32>
    tpu.vector_store %arg11[%c0_69, %c688], %166 {strides = array<i32>} : memref<1x1536xf32, #tpu.memory_space<vmem>>, vector<1x80xf32>,
    %168 = vector.extract_strided_slice %151 {offsets = [8, 0], sizes = [1, 80], strides = [1, 1]} : vector<16x80xf32> to vector<1x80xf32>
    %c0_70 = arith.constant 0 : index
    %c768 = arith.constant 768 : index
    %169 = vector.load %arg11[%c0_70, %c768] : memref<1x1536xf32, #tpu.memory_space<vmem>>, vector<1x80xf32>
    tpu.vector_store %arg11[%c0_70, %c768], %168 {strides = array<i32>} : memref<1x1536xf32, #tpu.memory_space<vmem>>, vector<1x80xf32>,
    %170 = vector.extract_strided_slice %151 {offsets = [9, 0], sizes = [1, 80], strides = [1, 1]} : vector<16x80xf32> to vector<1x80xf32>
    %c0_71 = arith.constant 0 : index
    %c848 = arith.constant 848 : index
    %171 = vector.load %arg11[%c0_71, %c848] : memref<1x1536xf32, #tpu.memory_space<vmem>>, vector<1x80xf32>
    tpu.vector_store %arg11[%c0_71, %c848], %170 {strides = array<i32>} : memref<1x1536xf32, #tpu.memory_space<vmem>>, vector<1x80xf32>,
    %172 = vector.extract_strided_slice %151 {offsets = [10, 0], sizes = [1, 80], strides = [1, 1]} : vector<16x80xf32> to vector<1x80xf32>
    %c0_72 = arith.constant 0 : index
    %c928 = arith.constant 928 : index
    %173 = vector.load %arg11[%c0_72, %c928] : memref<1x1536xf32, #tpu.memory_space<vmem>>, vector<1x80xf32>
    tpu.vector_store %arg11[%c0_72, %c928], %172 {strides = array<i32>} : memref<1x1536xf32, #tpu.memory_space<vmem>>, vector<1x80xf32>,
    %174 = vector.extract_strided_slice %151 {offsets = [11, 0], sizes = [1, 80], strides = [1, 1]} : vector<16x80xf32> to vector<1x80xf32>
    %c0_73 = arith.constant 0 : index
    %c1008 = arith.constant 1008 : index
    %175 = vector.load %arg11[%c0_73, %c1008] : memref<1x1536xf32, #tpu.memory_space<vmem>>, vector<1x80xf32>
    tpu.vector_store %arg11[%c0_73, %c1008], %174 {strides = array<i32>} : memref<1x1536xf32, #tpu.memory_space<vmem>>, vector<1x80xf32>,
    %176 = vector.extract_strided_slice %151 {offsets = [12, 0], sizes = [1, 80], strides = [1, 1]} : vector<16x80xf32> to vector<1x80xf32>
    %c0_74 = arith.constant 0 : index
    %c1088 = arith.constant 1088 : index
    %177 = vector.load %arg11[%c0_74, %c1088] : memref<1x1536xf32, #tpu.memory_space<vmem>>, vector<1x80xf32>
    tpu.vector_store %arg11[%c0_74, %c1088], %176 {strides = array<i32>} : memref<1x1536xf32, #tpu.memory_space<vmem>>, vector<1x80xf32>,
    %178 = vector.extract_strided_slice %151 {offsets = [13, 0], sizes = [1, 80], strides = [1, 1]} : vector<16x80xf32> to vector<1x80xf32>
    %c0_75 = arith.constant 0 : index
    %c1168 = arith.constant 1168 : index
    %179 = vector.load %arg11[%c0_75, %c1168] : memref<1x1536xf32, #tpu.memory_space<vmem>>, vector<1x80xf32>
    tpu.vector_store %arg11[%c0_75, %c1168], %178 {strides = array<i32>} : memref<1x1536xf32, #tpu.memory_space<vmem>>, vector<1x80xf32>,
    %180 = vector.extract_strided_slice %151 {offsets = [14, 0], sizes = [1, 80], strides = [1, 1]} : vector<16x80xf32> to vector<1x80xf32>
    %c0_76 = arith.constant 0 : index
    %c1248 = arith.constant 1248 : index
    %181 = vector.load %arg11[%c0_76, %c1248] : memref<1x1536xf32, #tpu.memory_space<vmem>>, vector<1x80xf32>
    tpu.vector_store %arg11[%c0_76, %c1248], %180 {strides = array<i32>} : memref<1x1536xf32, #tpu.memory_space<vmem>>, vector<1x80xf32>,
    %182 = vector.extract_strided_slice %151 {offsets = [15, 0], sizes = [1, 80], strides = [1, 1]} : vector<16x80xf32> to vector<1x80xf32>
    %c0_77 = arith.constant 0 : index
    %c1328 = arith.constant 1328 : index
    %183 = vector.load %arg11[%c0_77, %c1328] : memref<1x1536xf32, #tpu.memory_space<vmem>>, vector<1x80xf32>
    tpu.vector_store %arg11[%c0_77, %c1328], %182 {strides = array<i32>} : memref<1x1536xf32, #tpu.memory_space<vmem>>, vector<1x80xf32>,
    %c0_78 = arith.constant 0 : index
    %c0_79 = arith.constant 0 : index
    %c0_80 = arith.constant 0 : index
    %184 = vector.load %arg7[%c0_78, %c0_79, %c0_80] : memref<2x64x10xf32, #tpu.memory_space<vmem>>, vector<1x64x10xf32>
    %185 = vector.shape_cast %184 : vector<1x64x10xf32> to vector<64x10xf32>
    %c0_81 = arith.constant 0 : index
    %c0_82 = arith.constant 0 : index
    %c0_83 = arith.constant 0 : index
    %186 = vector.load %arg8[%c0_81, %c0_82, %c0_83] : memref<2x10x64xf32, #tpu.memory_space<vmem>>, vector<1x10x64xf32>
    %187 = vector.shape_cast %186 : vector<1x10x64xf32> to vector<10x64xf32>
    %188 = vector.extract_strided_slice %185 {offsets = [0, 0], sizes = [64, 9], strides = [1, 1]} : vector<64x10xf32> to vector<64x9xf32>
    %189 = vector.extract_strided_slice %185 {offsets = [0, 9], sizes = [64, 1], strides = [1, 1]} : vector<64x10xf32> to vector<64x1xf32>
    %190 = vector.extract_strided_slice %187 {offsets = [0, 0], sizes = [9, 64], strides = [1, 1]} : vector<10x64xf32> to vector<9x64xf32>
    %191 = vector.extract_strided_slice %187 {offsets = [9, 0], sizes = [1, 1], strides = [1, 1]} : vector<10x64xf32> to vector<1x1xf32>
    %c0_84 = arith.constant 0 : index
    %c47 = arith.constant 47 : index
    %192 = vector.load %arg11[%c0_84, %c47] : memref<1x1536xf32, #tpu.memory_space<vmem>>, vector<1x1280xf32>
    %193 = vector.extract_strided_slice %2 {offsets = [0, 0], sizes = [1, 1280], strides = [1, 1]} : vector<9x1280xf32> to vector<1x1280xf32>
    %194 = arith.mulf %192, %193 : vector<1x1280xf32>
    %c0_85 = arith.constant 0 : index
    %c48 = arith.constant 48 : index
    %195 = vector.load %arg11[%c0_85, %c48] : memref<1x1536xf32, #tpu.memory_space<vmem>>, vector<1x1280xf32>
    %196 = vector.extract_strided_slice %2 {offsets = [1, 0], sizes = [1, 1280], strides = [1, 1]} : vector<9x1280xf32> to vector<1x1280xf32>
    %197 = arith.mulf %195, %196 : vector<1x1280xf32>
    %c0_86 = arith.constant 0 : index
    %c49 = arith.constant 49 : index
    %198 = vector.load %arg11[%c0_86, %c49] : memref<1x1536xf32, #tpu.memory_space<vmem>>, vector<1x1280xf32>
    %199 = vector.extract_strided_slice %2 {offsets = [2, 0], sizes = [1, 1280], strides = [1, 1]} : vector<9x1280xf32> to vector<1x1280xf32>
    %200 = arith.mulf %198, %199 : vector<1x1280xf32>
    %c0_87 = arith.constant 0 : index
    %c127 = arith.constant 127 : index
    %201 = vector.load %arg11[%c0_87, %c127] : memref<1x1536xf32, #tpu.memory_space<vmem>>, vector<1x1280xf32>
    %202 = vector.extract_strided_slice %2 {offsets = [3, 0], sizes = [1, 1280], strides = [1, 1]} : vector<9x1280xf32> to vector<1x1280xf32>
    %203 = arith.mulf %201, %202 : vector<1x1280xf32>
    %c0_88 = arith.constant 0 : index
    %c128_89 = arith.constant 128 : index
    %204 = vector.load %arg11[%c0_88, %c128_89] : memref<1x1536xf32, #tpu.memory_space<vmem>>, vector<1x1280xf32>
    %205 = vector.extract_strided_slice %2 {offsets = [4, 0], sizes = [1, 1280], strides = [1, 1]} : vector<9x1280xf32> to vector<1x1280xf32>
    %206 = arith.mulf %204, %205 : vector<1x1280xf32>
    %c0_90 = arith.constant 0 : index
    %c129 = arith.constant 129 : index
    %207 = vector.load %arg11[%c0_90, %c129] : memref<1x1536xf32, #tpu.memory_space<vmem>>, vector<1x1280xf32>
    %208 = vector.extract_strided_slice %2 {offsets = [5, 0], sizes = [1, 1280], strides = [1, 1]} : vector<9x1280xf32> to vector<1x1280xf32>
    %209 = arith.mulf %207, %208 : vector<1x1280xf32>
    %c0_91 = arith.constant 0 : index
    %c207 = arith.constant 207 : index
    %210 = vector.load %arg11[%c0_91, %c207] : memref<1x1536xf32, #tpu.memory_space<vmem>>, vector<1x1280xf32>
    %211 = vector.extract_strided_slice %2 {offsets = [6, 0], sizes = [1, 1280], strides = [1, 1]} : vector<9x1280xf32> to vector<1x1280xf32>
    %212 = arith.mulf %210, %211 : vector<1x1280xf32>
    %c0_92 = arith.constant 0 : index
    %c208_93 = arith.constant 208 : index
    %213 = vector.load %arg11[%c0_92, %c208_93] : memref<1x1536xf32, #tpu.memory_space<vmem>>, vector<1x1280xf32>
    %214 = vector.extract_strided_slice %2 {offsets = [7, 0], sizes = [1, 1280], strides = [1, 1]} : vector<9x1280xf32> to vector<1x1280xf32>
    %215 = arith.mulf %213, %214 : vector<1x1280xf32>
    %c0_94 = arith.constant 0 : index
    %c209 = arith.constant 209 : index
    %216 = vector.load %arg11[%c0_94, %c209] : memref<1x1536xf32, #tpu.memory_space<vmem>>, vector<1x1280xf32>
    %217 = vector.extract_strided_slice %2 {offsets = [8, 0], sizes = [1, 1280], strides = [1, 1]} : vector<9x1280xf32> to vector<1x1280xf32>
    %218 = arith.mulf %216, %217 : vector<1x1280xf32>
    %219 = tpu.concatenate %194, %197, %200, %203, %206, %209, %212, %215, %218 in 0 : vector<1x1280xf32>, vector<1x1280xf32>, vector<1x1280xf32>, vector<1x1280xf32>, vector<1x1280xf32>, vector<1x1280xf32>, vector<1x1280xf32>, vector<1x1280xf32>, vector<1x1280xf32> -> vector<9x1280xf32>
    %cst_95 = arith.constant dense<0.000000e+00> : vector<64x1280xf32>
    %220 = tpu.matmul %188, %219, %cst_95 {dimension_numbers = #tpu.dot_dimension_numbers<[1], [0], [0], [1], [0, 0, 1, 1], [], []>} : vector<64x9xf32>, vector<9x1280xf32>, vector<64x1280xf32> -> vector<64x1280xf32>
    %221 = vector.broadcast %189 : vector<64x1xf32> to vector<64x1280xf32>
    %222 = arith.addf %220, %221 : vector<64x1280xf32>
    %cst_96 = arith.constant 0.000000e+00 : f32
    %223 = vector.broadcast %cst_96 : f32 to vector<64x1280xf32>
    %224 = arith.maximumf %222, %223 : vector<64x1280xf32>
    %cst_97 = arith.constant dense<0.000000e+00> : vector<9x1280xf32>
    %225 = tpu.matmul %190, %224, %cst_97 {dimension_numbers = #tpu.dot_dimension_numbers<[1], [0], [0], [1], [0, 0, 1, 1], [], []>} : vector<9x64xf32>, vector<64x1280xf32>, vector<9x1280xf32> -> vector<9x1280xf32>
    %c0_98 = arith.constant 0 : index
    %c128_99 = arith.constant 128 : index
    %226 = vector.load %arg12[%c0_98, %c128_99] : memref<9x1536xf32, #tpu.memory_space<vmem>>, vector<9x1280xf32>
    tpu.vector_store %arg12[%c0_98, %c128_99], %225 {strides = array<i32>} : memref<9x1536xf32, #tpu.memory_space<vmem>>, vector<9x1280xf32>,
    %cst_100 = arith.constant 0.000000e+00 : f32
    %227 = vector.broadcast %cst_100 : f32 to vector<1x1280xf32>
    %c0_101 = arith.constant 0 : index
    %c47_102 = arith.constant 47 : index
    %228 = vector.load %arg12[%c0_101, %c47_102] : memref<9x1536xf32, #tpu.memory_space<vmem>>, vector<1x1280xf32>
    %229 = vector.extract_strided_slice %2 {offsets = [0, 0], sizes = [1, 1280], strides = [1, 1]} : vector<9x1280xf32> to vector<1x1280xf32>
    %230 = arith.mulf %228, %229 : vector<1x1280xf32>
    %231 = arith.addf %227, %230 : vector<1x1280xf32>
    %c1 = arith.constant 1 : index
    %c48_103 = arith.constant 48 : index
    %232 = vector.load %arg12[%c1, %c48_103] : memref<9x1536xf32, #tpu.memory_space<vmem>>, vector<1x1280xf32>
    %233 = vector.extract_strided_slice %2 {offsets = [1, 0], sizes = [1, 1280], strides = [1, 1]} : vector<9x1280xf32> to vector<1x1280xf32>
    %234 = arith.mulf %232, %233 : vector<1x1280xf32>
    %235 = arith.addf %231, %234 : vector<1x1280xf32>
    %c2 = arith.constant 2 : index
    %c49_104 = arith.constant 49 : index
    %236 = vector.load %arg12[%c2, %c49_104] : memref<9x1536xf32, #tpu.memory_space<vmem>>, vector<1x1280xf32>
    %237 = vector.extract_strided_slice %2 {offsets = [2, 0], sizes = [1, 1280], strides = [1, 1]} : vector<9x1280xf32> to vector<1x1280xf32>
    %238 = arith.mulf %236, %237 : vector<1x1280xf32>
    %239 = arith.addf %235, %238 : vector<1x1280xf32>
    %c3 = arith.constant 3 : index
    %c127_105 = arith.constant 127 : index
    %240 = vector.load %arg12[%c3, %c127_105] : memref<9x1536xf32, #tpu.memory_space<vmem>>, vector<1x1280xf32>
    %241 = vector.extract_strided_slice %2 {offsets = [3, 0], sizes = [1, 1280], strides = [1, 1]} : vector<9x1280xf32> to vector<1x1280xf32>
    %242 = arith.mulf %240, %241 : vector<1x1280xf32>
    %243 = arith.addf %239, %242 : vector<1x1280xf32>
    %c4 = arith.constant 4 : index
    %c128_106 = arith.constant 128 : index
    %244 = vector.load %arg12[%c4, %c128_106] : memref<9x1536xf32, #tpu.memory_space<vmem>>, vector<1x1280xf32>
    %245 = vector.extract_strided_slice %2 {offsets = [4, 0], sizes = [1, 1280], strides = [1, 1]} : vector<9x1280xf32> to vector<1x1280xf32>
    %246 = arith.mulf %244, %245 : vector<1x1280xf32>
    %247 = arith.addf %243, %246 : vector<1x1280xf32>
    %c5 = arith.constant 5 : index
    %c129_107 = arith.constant 129 : index
    %248 = vector.load %arg12[%c5, %c129_107] : memref<9x1536xf32, #tpu.memory_space<vmem>>, vector<1x1280xf32>
    %249 = vector.extract_strided_slice %2 {offsets = [5, 0], sizes = [1, 1280], strides = [1, 1]} : vector<9x1280xf32> to vector<1x1280xf32>
    %250 = arith.mulf %248, %249 : vector<1x1280xf32>
    %251 = arith.addf %247, %250 : vector<1x1280xf32>
    %c6 = arith.constant 6 : index
    %c207_108 = arith.constant 207 : index
    %252 = vector.load %arg12[%c6, %c207_108] : memref<9x1536xf32, #tpu.memory_space<vmem>>, vector<1x1280xf32>
    %253 = vector.extract_strided_slice %2 {offsets = [6, 0], sizes = [1, 1280], strides = [1, 1]} : vector<9x1280xf32> to vector<1x1280xf32>
    %254 = arith.mulf %252, %253 : vector<1x1280xf32>
    %255 = arith.addf %251, %254 : vector<1x1280xf32>
    %c7 = arith.constant 7 : index
    %c208_109 = arith.constant 208 : index
    %256 = vector.load %arg12[%c7, %c208_109] : memref<9x1536xf32, #tpu.memory_space<vmem>>, vector<1x1280xf32>
    %257 = vector.extract_strided_slice %2 {offsets = [7, 0], sizes = [1, 1280], strides = [1, 1]} : vector<9x1280xf32> to vector<1x1280xf32>
    %258 = arith.mulf %256, %257 : vector<1x1280xf32>
    %259 = arith.addf %255, %258 : vector<1x1280xf32>
    %c8 = arith.constant 8 : index
    %c209_110 = arith.constant 209 : index
    %260 = vector.load %arg12[%c8, %c209_110] : memref<9x1536xf32, #tpu.memory_space<vmem>>, vector<1x1280xf32>
    %261 = vector.extract_strided_slice %2 {offsets = [8, 0], sizes = [1, 1280], strides = [1, 1]} : vector<9x1280xf32> to vector<1x1280xf32>
    %262 = arith.mulf %260, %261 : vector<1x1280xf32>
    %263 = arith.addf %259, %262 : vector<1x1280xf32>
    %264 = vector.broadcast %191 : vector<1x1xf32> to vector<1x1280xf32>
    %265 = arith.addf %263, %264 : vector<1x1280xf32>
    %cst_111 = arith.constant 0.000000e+00 : f32
    %266 = vector.broadcast %cst_111 : f32 to vector<1x1280xf32>
    %267 = arith.maximumf %265, %266 : vector<1x1280xf32>
    %c0_112 = arith.constant 0 : index
    %c128_113 = arith.constant 128 : index
    %268 = vector.load %arg11[%c0_112, %c128_113] : memref<1x1536xf32, #tpu.memory_space<vmem>>, vector<1x1280xf32>
    tpu.vector_store %arg11[%c0_112, %c128_113], %267 {strides = array<i32>} : memref<1x1536xf32, #tpu.memory_space<vmem>>, vector<1x1280xf32>,
    %c1_114 = arith.constant 1 : index
    %c0_115 = arith.constant 0 : index
    %c0_116 = arith.constant 0 : index
    %269 = vector.load %arg7[%c1_114, %c0_115, %c0_116] : memref<2x64x10xf32, #tpu.memory_space<vmem>>, vector<1x64x10xf32>
    %270 = vector.shape_cast %269 : vector<1x64x10xf32> to vector<64x10xf32>
    %c1_117 = arith.constant 1 : index
    %c0_118 = arith.constant 0 : index
    %c0_119 = arith.constant 0 : index
    %271 = vector.load %arg8[%c1_117, %c0_118, %c0_119] : memref<2x10x64xf32, #tpu.memory_space<vmem>>, vector<1x10x64xf32>
    %272 = vector.shape_cast %271 : vector<1x10x64xf32> to vector<10x64xf32>
    %273 = vector.extract_strided_slice %270 {offsets = [0, 0], sizes = [64, 9], strides = [1, 1]} : vector<64x10xf32> to vector<64x9xf32>
    %274 = vector.extract_strided_slice %270 {offsets = [0, 9], sizes = [64, 1], strides = [1, 1]} : vector<64x10xf32> to vector<64x1xf32>
    %275 = vector.extract_strided_slice %272 {offsets = [0, 0], sizes = [9, 64], strides = [1, 1]} : vector<10x64xf32> to vector<9x64xf32>
    %276 = vector.extract_strided_slice %272 {offsets = [9, 0], sizes = [1, 1], strides = [1, 1]} : vector<10x64xf32> to vector<1x1xf32>
    %c0_120 = arith.constant 0 : index
    %c47_121 = arith.constant 47 : index
    %277 = vector.load %arg11[%c0_120, %c47_121] : memref<1x1536xf32, #tpu.memory_space<vmem>>, vector<1x1280xf32>
    %278 = vector.extract_strided_slice %2 {offsets = [0, 0], sizes = [1, 1280], strides = [1, 1]} : vector<9x1280xf32> to vector<1x1280xf32>
    %279 = arith.mulf %277, %278 : vector<1x1280xf32>
    %c0_122 = arith.constant 0 : index
    %c48_123 = arith.constant 48 : index
    %280 = vector.load %arg11[%c0_122, %c48_123] : memref<1x1536xf32, #tpu.memory_space<vmem>>, vector<1x1280xf32>
    %281 = vector.extract_strided_slice %2 {offsets = [1, 0], sizes = [1, 1280], strides = [1, 1]} : vector<9x1280xf32> to vector<1x1280xf32>
    %282 = arith.mulf %280, %281 : vector<1x1280xf32>
    %c0_124 = arith.constant 0 : index
    %c49_125 = arith.constant 49 : index
    %283 = vector.load %arg11[%c0_124, %c49_125] : memref<1x1536xf32, #tpu.memory_space<vmem>>, vector<1x1280xf32>
    %284 = vector.extract_strided_slice %2 {offsets = [2, 0], sizes = [1, 1280], strides = [1, 1]} : vector<9x1280xf32> to vector<1x1280xf32>
    %285 = arith.mulf %283, %284 : vector<1x1280xf32>
    %c0_126 = arith.constant 0 : index
    %c127_127 = arith.constant 127 : index
    %286 = vector.load %arg11[%c0_126, %c127_127] : memref<1x1536xf32, #tpu.memory_space<vmem>>, vector<1x1280xf32>
    %287 = vector.extract_strided_slice %2 {offsets = [3, 0], sizes = [1, 1280], strides = [1, 1]} : vector<9x1280xf32> to vector<1x1280xf32>
    %288 = arith.mulf %286, %287 : vector<1x1280xf32>
    %c0_128 = arith.constant 0 : index
    %c128_129 = arith.constant 128 : index
    %289 = vector.load %arg11[%c0_128, %c128_129] : memref<1x1536xf32, #tpu.memory_space<vmem>>, vector<1x1280xf32>
    %290 = vector.extract_strided_slice %2 {offsets = [4, 0], sizes = [1, 1280], strides = [1, 1]} : vector<9x1280xf32> to vector<1x1280xf32>
    %291 = arith.mulf %289, %290 : vector<1x1280xf32>
    %c0_130 = arith.constant 0 : index
    %c129_131 = arith.constant 129 : index
    %292 = vector.load %arg11[%c0_130, %c129_131] : memref<1x1536xf32, #tpu.memory_space<vmem>>, vector<1x1280xf32>
    %293 = vector.extract_strided_slice %2 {offsets = [5, 0], sizes = [1, 1280], strides = [1, 1]} : vector<9x1280xf32> to vector<1x1280xf32>
    %294 = arith.mulf %292, %293 : vector<1x1280xf32>
    %c0_132 = arith.constant 0 : index
    %c207_133 = arith.constant 207 : index
    %295 = vector.load %arg11[%c0_132, %c207_133] : memref<1x1536xf32, #tpu.memory_space<vmem>>, vector<1x1280xf32>
    %296 = vector.extract_strided_slice %2 {offsets = [6, 0], sizes = [1, 1280], strides = [1, 1]} : vector<9x1280xf32> to vector<1x1280xf32>
    %297 = arith.mulf %295, %296 : vector<1x1280xf32>
    %c0_134 = arith.constant 0 : index
    %c208_135 = arith.constant 208 : index
    %298 = vector.load %arg11[%c0_134, %c208_135] : memref<1x1536xf32, #tpu.memory_space<vmem>>, vector<1x1280xf32>
    %299 = vector.extract_strided_slice %2 {offsets = [7, 0], sizes = [1, 1280], strides = [1, 1]} : vector<9x1280xf32> to vector<1x1280xf32>
    %300 = arith.mulf %298, %299 : vector<1x1280xf32>
    %c0_136 = arith.constant 0 : index
    %c209_137 = arith.constant 209 : index
    %301 = vector.load %arg11[%c0_136, %c209_137] : memref<1x1536xf32, #tpu.memory_space<vmem>>, vector<1x1280xf32>
    %302 = vector.extract_strided_slice %2 {offsets = [8, 0], sizes = [1, 1280], strides = [1, 1]} : vector<9x1280xf32> to vector<1x1280xf32>
    %303 = arith.mulf %301, %302 : vector<1x1280xf32>
    %304 = tpu.concatenate %279, %282, %285, %288, %291, %294, %297, %300, %303 in 0 : vector<1x1280xf32>, vector<1x1280xf32>, vector<1x1280xf32>, vector<1x1280xf32>, vector<1x1280xf32>, vector<1x1280xf32>, vector<1x1280xf32>, vector<1x1280xf32>, vector<1x1280xf32> -> vector<9x1280xf32>
    %cst_138 = arith.constant dense<0.000000e+00> : vector<64x1280xf32>
    %305 = tpu.matmul %273, %304, %cst_138 {dimension_numbers = #tpu.dot_dimension_numbers<[1], [0], [0], [1], [0, 0, 1, 1], [], []>} : vector<64x9xf32>, vector<9x1280xf32>, vector<64x1280xf32> -> vector<64x1280xf32>
    %306 = vector.broadcast %274 : vector<64x1xf32> to vector<64x1280xf32>
    %307 = arith.addf %305, %306 : vector<64x1280xf32>
    %cst_139 = arith.constant 0.000000e+00 : f32
    %308 = vector.broadcast %cst_139 : f32 to vector<64x1280xf32>
    %309 = arith.maximumf %307, %308 : vector<64x1280xf32>
    %cst_140 = arith.constant dense<0.000000e+00> : vector<9x1280xf32>
    %310 = tpu.matmul %275, %309, %cst_140 {dimension_numbers = #tpu.dot_dimension_numbers<[1], [0], [0], [1], [0, 0, 1, 1], [], []>} : vector<9x64xf32>, vector<64x1280xf32>, vector<9x1280xf32> -> vector<9x1280xf32>
    %c0_141 = arith.constant 0 : index
    %c128_142 = arith.constant 128 : index
    %311 = vector.load %arg12[%c0_141, %c128_142] : memref<9x1536xf32, #tpu.memory_space<vmem>>, vector<9x1280xf32>
    tpu.vector_store %arg12[%c0_141, %c128_142], %310 {strides = array<i32>} : memref<9x1536xf32, #tpu.memory_space<vmem>>, vector<9x1280xf32>,
    %cst_143 = arith.constant 0.000000e+00 : f32
    %312 = vector.broadcast %cst_143 : f32 to vector<1x1280xf32>
    %c0_144 = arith.constant 0 : index
    %c47_145 = arith.constant 47 : index
    %313 = vector.load %arg12[%c0_144, %c47_145] : memref<9x1536xf32, #tpu.memory_space<vmem>>, vector<1x1280xf32>
    %314 = vector.extract_strided_slice %2 {offsets = [0, 0], sizes = [1, 1280], strides = [1, 1]} : vector<9x1280xf32> to vector<1x1280xf32>
    %315 = arith.mulf %313, %314 : vector<1x1280xf32>
    %316 = arith.addf %312, %315 : vector<1x1280xf32>
    %c1_146 = arith.constant 1 : index
    %c48_147 = arith.constant 48 : index
    %317 = vector.load %arg12[%c1_146, %c48_147] : memref<9x1536xf32, #tpu.memory_space<vmem>>, vector<1x1280xf32>
    %318 = vector.extract_strided_slice %2 {offsets = [1, 0], sizes = [1, 1280], strides = [1, 1]} : vector<9x1280xf32> to vector<1x1280xf32>
    %319 = arith.mulf %317, %318 : vector<1x1280xf32>
    %320 = arith.addf %316, %319 : vector<1x1280xf32>
    %c2_148 = arith.constant 2 : index
    %c49_149 = arith.constant 49 : index
    %321 = vector.load %arg12[%c2_148, %c49_149] : memref<9x1536xf32, #tpu.memory_space<vmem>>, vector<1x1280xf32>
    %322 = vector.extract_strided_slice %2 {offsets = [2, 0], sizes = [1, 1280], strides = [1, 1]} : vector<9x1280xf32> to vector<1x1280xf32>
    %323 = arith.mulf %321, %322 : vector<1x1280xf32>
    %324 = arith.addf %320, %323 : vector<1x1280xf32>
    %c3_150 = arith.constant 3 : index
    %c127_151 = arith.constant 127 : index
    %325 = vector.load %arg12[%c3_150, %c127_151] : memref<9x1536xf32, #tpu.memory_space<vmem>>, vector<1x1280xf32>
    %326 = vector.extract_strided_slice %2 {offsets = [3, 0], sizes = [1, 1280], strides = [1, 1]} : vector<9x1280xf32> to vector<1x1280xf32>
    %327 = arith.mulf %325, %326 : vector<1x1280xf32>
    %328 = arith.addf %324, %327 : vector<1x1280xf32>
    %c4_152 = arith.constant 4 : index
    %c128_153 = arith.constant 128 : index
    %329 = vector.load %arg12[%c4_152, %c128_153] : memref<9x1536xf32, #tpu.memory_space<vmem>>, vector<1x1280xf32>
    %330 = vector.extract_strided_slice %2 {offsets = [4, 0], sizes = [1, 1280], strides = [1, 1]} : vector<9x1280xf32> to vector<1x1280xf32>
    %331 = arith.mulf %329, %330 : vector<1x1280xf32>
    %332 = arith.addf %328, %331 : vector<1x1280xf32>
    %c5_154 = arith.constant 5 : index
    %c129_155 = arith.constant 129 : index
    %333 = vector.load %arg12[%c5_154, %c129_155] : memref<9x1536xf32, #tpu.memory_space<vmem>>, vector<1x1280xf32>
    %334 = vector.extract_strided_slice %2 {offsets = [5, 0], sizes = [1, 1280], strides = [1, 1]} : vector<9x1280xf32> to vector<1x1280xf32>
    %335 = arith.mulf %333, %334 : vector<1x1280xf32>
    %336 = arith.addf %332, %335 : vector<1x1280xf32>
    %c6_156 = arith.constant 6 : index
    %c207_157 = arith.constant 207 : index
    %337 = vector.load %arg12[%c6_156, %c207_157] : memref<9x1536xf32, #tpu.memory_space<vmem>>, vector<1x1280xf32>
    %338 = vector.extract_strided_slice %2 {offsets = [6, 0], sizes = [1, 1280], strides = [1, 1]} : vector<9x1280xf32> to vector<1x1280xf32>
    %339 = arith.mulf %337, %338 : vector<1x1280xf32>
    %340 = arith.addf %336, %339 : vector<1x1280xf32>
    %c7_158 = arith.constant 7 : index
    %c208_159 = arith.constant 208 : index
    %341 = vector.load %arg12[%c7_158, %c208_159] : memref<9x1536xf32, #tpu.memory_space<vmem>>, vector<1x1280xf32>
    %342 = vector.extract_strided_slice %2 {offsets = [7, 0], sizes = [1, 1280], strides = [1, 1]} : vector<9x1280xf32> to vector<1x1280xf32>
    %343 = arith.mulf %341, %342 : vector<1x1280xf32>
    %344 = arith.addf %340, %343 : vector<1x1280xf32>
    %c8_160 = arith.constant 8 : index
    %c209_161 = arith.constant 209 : index
    %345 = vector.load %arg12[%c8_160, %c209_161] : memref<9x1536xf32, #tpu.memory_space<vmem>>, vector<1x1280xf32>
    %346 = vector.extract_strided_slice %2 {offsets = [8, 0], sizes = [1, 1280], strides = [1, 1]} : vector<9x1280xf32> to vector<1x1280xf32>
    %347 = arith.mulf %345, %346 : vector<1x1280xf32>
    %348 = arith.addf %344, %347 : vector<1x1280xf32>
    %349 = vector.broadcast %276 : vector<1x1xf32> to vector<1x1280xf32>
    %350 = arith.addf %348, %349 : vector<1x1280xf32>
    %cst_162 = arith.constant 0.000000e+00 : f32
    %351 = vector.broadcast %cst_162 : f32 to vector<1x1280xf32>
    %352 = arith.maximumf %350, %351 : vector<1x1280xf32>
    %c0_163 = arith.constant 0 : index
    %c128_164 = arith.constant 128 : index
    %353 = vector.load %arg11[%c0_163, %c128_164] : memref<1x1536xf32, #tpu.memory_space<vmem>>, vector<1x1280xf32>
    tpu.vector_store %arg11[%c0_163, %c128_164], %352 {strides = array<i32>} : memref<1x1536xf32, #tpu.memory_space<vmem>>, vector<1x1280xf32>,
    %c0_165 = arith.constant 0 : index
    %c128_166 = arith.constant 128 : index
    %354 = vector.load %arg11[%c0_165, %c128_166] : memref<1x1536xf32, #tpu.memory_space<vmem>>, vector<1x80xf32>
    %c0_167 = arith.constant 0 : index
    %c208_168 = arith.constant 208 : index
    %355 = vector.load %arg11[%c0_167, %c208_168] : memref<1x1536xf32, #tpu.memory_space<vmem>>, vector<1x80xf32>
    %c0_169 = arith.constant 0 : index
    %c288_170 = arith.constant 288 : index
    %356 = vector.load %arg11[%c0_169, %c288_170] : memref<1x1536xf32, #tpu.memory_space<vmem>>, vector<1x80xf32>
    %c0_171 = arith.constant 0 : index
    %c368_172 = arith.constant 368 : index
    %357 = vector.load %arg11[%c0_171, %c368_172] : memref<1x1536xf32, #tpu.memory_space<vmem>>, vector<1x80xf32>
    %c0_173 = arith.constant 0 : index
    %c448_174 = arith.constant 448 : index
    %358 = vector.load %arg11[%c0_173, %c448_174] : memref<1x1536xf32, #tpu.memory_space<vmem>>, vector<1x80xf32>
    %c0_175 = arith.constant 0 : index
    %c528_176 = arith.constant 528 : index
    %359 = vector.load %arg11[%c0_175, %c528_176] : memref<1x1536xf32, #tpu.memory_space<vmem>>, vector<1x80xf32>
    %c0_177 = arith.constant 0 : index
    %c608_178 = arith.constant 608 : index
    %360 = vector.load %arg11[%c0_177, %c608_178] : memref<1x1536xf32, #tpu.memory_space<vmem>>, vector<1x80xf32>
    %c0_179 = arith.constant 0 : index
    %c688_180 = arith.constant 688 : index
    %361 = vector.load %arg11[%c0_179, %c688_180] : memref<1x1536xf32, #tpu.memory_space<vmem>>, vector<1x80xf32>
    %c0_181 = arith.constant 0 : index
    %c768_182 = arith.constant 768 : index
    %362 = vector.load %arg11[%c0_181, %c768_182] : memref<1x1536xf32, #tpu.memory_space<vmem>>, vector<1x80xf32>
    %c0_183 = arith.constant 0 : index
    %c848_184 = arith.constant 848 : index
    %363 = vector.load %arg11[%c0_183, %c848_184] : memref<1x1536xf32, #tpu.memory_space<vmem>>, vector<1x80xf32>
    %c0_185 = arith.constant 0 : index
    %c928_186 = arith.constant 928 : index
    %364 = vector.load %arg11[%c0_185, %c928_186] : memref<1x1536xf32, #tpu.memory_space<vmem>>, vector<1x80xf32>
    %c0_187 = arith.constant 0 : index
    %c1008_188 = arith.constant 1008 : index
    %365 = vector.load %arg11[%c0_187, %c1008_188] : memref<1x1536xf32, #tpu.memory_space<vmem>>, vector<1x80xf32>
    %c0_189 = arith.constant 0 : index
    %c1088_190 = arith.constant 1088 : index
    %366 = vector.load %arg11[%c0_189, %c1088_190] : memref<1x1536xf32, #tpu.memory_space<vmem>>, vector<1x80xf32>
    %c0_191 = arith.constant 0 : index
    %c1168_192 = arith.constant 1168 : index
    %367 = vector.load %arg11[%c0_191, %c1168_192] : memref<1x1536xf32, #tpu.memory_space<vmem>>, vector<1x80xf32>
    %c0_193 = arith.constant 0 : index
    %c1248_194 = arith.constant 1248 : index
    %368 = vector.load %arg11[%c0_193, %c1248_194] : memref<1x1536xf32, #tpu.memory_space<vmem>>, vector<1x80xf32>
    %c0_195 = arith.constant 0 : index
    %c1328_196 = arith.constant 1328 : index
    %369 = vector.load %arg11[%c0_195, %c1328_196] : memref<1x1536xf32, #tpu.memory_space<vmem>>, vector<1x80xf32>
    %370 = tpu.concatenate %354, %355, %356, %357, %358, %359, %360, %361, %362, %363, %364, %365, %366, %367, %368, %369 in 0 : vector<1x80xf32>, vector<1x80xf32>, vector<1x80xf32>, vector<1x80xf32>, vector<1x80xf32>, vector<1x80xf32>, vector<1x80xf32>, vector<1x80xf32>, vector<1x80xf32>, vector<1x80xf32>, vector<1x80xf32>, vector<1x80xf32>, vector<1x80xf32>, vector<1x80xf32>, vector<1x80xf32>, vector<1x80xf32> -> vector<16x80xf32>
    %c1_197 = arith.constant 1 : index
    %c0_198 = arith.constant 0 : index
    %c0_199 = arith.constant 0 : index
    %371 = vector.load %arg2[%c1_197, %c0_198, %c0_199] : memref<2x80x240xf32, #tpu.memory_space<vmem>>, vector<1x80x240xf32>
    %372 = vector.shape_cast %371 : vector<1x80x240xf32> to vector<80x240xf32>
    %c1_200 = arith.constant 1 : index
    %c0_201 = arith.constant 0 : index
    %c0_202 = arith.constant 0 : index
    %373 = vector.load %arg3[%c1_200, %c0_201, %c0_202] : memref<2x80x80xf32, #tpu.memory_space<vmem>>, vector<1x80x80xf32>
    %374 = vector.shape_cast %373 : vector<1x80x80xf32> to vector<80x80xf32>
    %c1_203 = arith.constant 1 : index
    %c0_204 = arith.constant 0 : index
    %c0_205 = arith.constant 0 : index
    %375 = vector.load %arg4[%c1_203, %c0_204, %c0_205] : memref<2x80x256xf32, #tpu.memory_space<vmem>>, vector<1x80x256xf32>
    %376 = vector.shape_cast %375 : vector<1x80x256xf32> to vector<80x256xf32>
    %c1_206 = arith.constant 1 : index
    %c0_207 = arith.constant 0 : index
    %c0_208 = arith.constant 0 : index
    %377 = vector.load %arg5[%c1_206, %c0_207, %c0_208] : memref<2x256x80xf32, #tpu.memory_space<vmem>>, vector<1x256x80xf32>
    %378 = vector.shape_cast %377 : vector<1x256x80xf32> to vector<256x80xf32>
    %c1_209 = arith.constant 1 : index
    %c0_210 = arith.constant 0 : index
    %c0_211 = arith.constant 0 : index
    %379 = vector.load %arg6[%c1_209, %c0_210, %c0_211] : memref<2x8x256xf32, #tpu.memory_space<vmem>>, vector<1x8x256xf32>
    %380 = vector.shape_cast %379 : vector<1x8x256xf32> to vector<8x256xf32>
    %381 = vector.extract_strided_slice %380 {offsets = [0, 0], sizes = [1, 240], strides = [1, 1]} : vector<8x256xf32> to vector<1x240xf32>
    %382 = vector.extract_strided_slice %380 {offsets = [1, 0], sizes = [1, 80], strides = [1, 1]} : vector<8x256xf32> to vector<1x80xf32>
    %383 = vector.extract_strided_slice %380 {offsets = [2, 0], sizes = [1, 80], strides = [1, 1]} : vector<8x256xf32> to vector<1x80xf32>
    %384 = vector.extract_strided_slice %380 {offsets = [3, 0], sizes = [1, 80], strides = [1, 1]} : vector<8x256xf32> to vector<1x80xf32>
    %385 = vector.extract_strided_slice %380 {offsets = [4, 0], sizes = [1, 256], strides = [1, 1]} : vector<8x256xf32> to vector<1x256xf32>
    %386 = vector.extract_strided_slice %380 {offsets = [5, 0], sizes = [1, 80], strides = [1, 1]} : vector<8x256xf32> to vector<1x80xf32>
    %387 = vector.extract_strided_slice %380 {offsets = [6, 0], sizes = [1, 80], strides = [1, 1]} : vector<8x256xf32> to vector<1x80xf32>
    %388 = vector.extract_strided_slice %380 {offsets = [7, 0], sizes = [1, 80], strides = [1, 1]} : vector<8x256xf32> to vector<1x80xf32>
    %cst_212 = arith.constant dense<0.000000e+00> : vector<16x240xf32>
    %389 = tpu.matmul %370, %372, %cst_212 {dimension_numbers = #tpu.dot_dimension_numbers<[1], [0], [0], [1], [0, 0, 1, 1], [], []>} : vector<16x80xf32>, vector<80x240xf32>, vector<16x240xf32> -> vector<16x240xf32>
    %390 = vector.broadcast %381 : vector<1x240xf32> to vector<16x240xf32>
    %391 = arith.addf %389, %390 : vector<16x240xf32>
    %392 = vector.extract_strided_slice %391 {offsets = [0, 0], sizes = [16, 20], strides = [1, 1]} : vector<16x240xf32> to vector<16x20xf32>
    %393 = vector.extract_strided_slice %391 {offsets = [0, 80], sizes = [16, 20], strides = [1, 1]} : vector<16x240xf32> to vector<16x20xf32>
    %394 = vector.extract_strided_slice %391 {offsets = [0, 160], sizes = [16, 20], strides = [1, 1]} : vector<16x240xf32> to vector<16x20xf32>
    %cst_213 = arith.constant 0.223606795 : f32
    %395 = vector.broadcast %cst_213 : f32 to vector<16x20xf32>
    %396 = arith.mulf %392, %395 : vector<16x20xf32>
    %cst_214 = arith.constant dense<0.000000e+00> : vector<16x16xf32>
    %397 = tpu.matmul %396, %393, %cst_214 {dimension_numbers = #tpu.dot_dimension_numbers<[1], [1], [0], [0], [0, 0, 1, 0], [], []>} : vector<16x20xf32>, vector<16x20xf32>, vector<16x16xf32> -> vector<16x16xf32>
    %cst_215 = arith.constant dense<0xFF800000> : vector<16xf32>
    %398 = vector.multi_reduction <maximumf>, %397, %cst_215 [1] : vector<16x16xf32> to vector<16xf32>
    %399 = vector.shape_cast %398 : vector<16xf32> to vector<16x1xf32>
    %400 = vector.broadcast %399 : vector<16x1xf32> to vector<16x16xf32>
    %401 = arith.subf %397, %400 : vector<16x16xf32>
    %402 = math.exp %401 : vector<16x16xf32>
    %cst_216 = arith.constant dense<0.000000e+00> : vector<16xf32>
    %403 = vector.multi_reduction <add>, %402, %cst_216 [1] : vector<16x16xf32> to vector<16xf32>
    %404 = vector.shape_cast %403 : vector<16xf32> to vector<16x1xf32>
    %405 = vector.broadcast %404 : vector<16x1xf32> to vector<16x16xf32>
    %406 = arith.divf %402, %405 : vector<16x16xf32>
    %cst_217 = arith.constant dense<0.000000e+00> : vector<16x20xf32>
    %407 = tpu.matmul %406, %394, %cst_217 {dimension_numbers = #tpu.dot_dimension_numbers<[1], [0], [0], [1], [0, 0, 1, 1], [], []>} : vector<16x16xf32>, vector<16x20xf32>, vector<16x20xf32> -> vector<16x20xf32>
    %408 = vector.extract_strided_slice %391 {offsets = [0, 20], sizes = [16, 20], strides = [1, 1]} : vector<16x240xf32> to vector<16x20xf32>
    %409 = vector.extract_strided_slice %391 {offsets = [0, 100], sizes = [16, 20], strides = [1, 1]} : vector<16x240xf32> to vector<16x20xf32>
    %410 = vector.extract_strided_slice %391 {offsets = [0, 180], sizes = [16, 20], strides = [1, 1]} : vector<16x240xf32> to vector<16x20xf32>
    %cst_218 = arith.constant 0.223606795 : f32
    %411 = vector.broadcast %cst_218 : f32 to vector<16x20xf32>
    %412 = arith.mulf %408, %411 : vector<16x20xf32>
    %cst_219 = arith.constant dense<0.000000e+00> : vector<16x16xf32>
    %413 = tpu.matmul %412, %409, %cst_219 {dimension_numbers = #tpu.dot_dimension_numbers<[1], [1], [0], [0], [0, 0, 1, 0], [], []>} : vector<16x20xf32>, vector<16x20xf32>, vector<16x16xf32> -> vector<16x16xf32>
    %cst_220 = arith.constant dense<0xFF800000> : vector<16xf32>
    %414 = vector.multi_reduction <maximumf>, %413, %cst_220 [1] : vector<16x16xf32> to vector<16xf32>
    %415 = vector.shape_cast %414 : vector<16xf32> to vector<16x1xf32>
    %416 = vector.broadcast %415 : vector<16x1xf32> to vector<16x16xf32>
    %417 = arith.subf %413, %416 : vector<16x16xf32>
    %418 = math.exp %417 : vector<16x16xf32>
    %cst_221 = arith.constant dense<0.000000e+00> : vector<16xf32>
    %419 = vector.multi_reduction <add>, %418, %cst_221 [1] : vector<16x16xf32> to vector<16xf32>
    %420 = vector.shape_cast %419 : vector<16xf32> to vector<16x1xf32>
    %421 = vector.broadcast %420 : vector<16x1xf32> to vector<16x16xf32>
    %422 = arith.divf %418, %421 : vector<16x16xf32>
    %cst_222 = arith.constant dense<0.000000e+00> : vector<16x20xf32>
    %423 = tpu.matmul %422, %410, %cst_222 {dimension_numbers = #tpu.dot_dimension_numbers<[1], [0], [0], [1], [0, 0, 1, 1], [], []>} : vector<16x16xf32>, vector<16x20xf32>, vector<16x20xf32> -> vector<16x20xf32>
    %424 = vector.extract_strided_slice %391 {offsets = [0, 40], sizes = [16, 20], strides = [1, 1]} : vector<16x240xf32> to vector<16x20xf32>
    %425 = vector.extract_strided_slice %391 {offsets = [0, 120], sizes = [16, 20], strides = [1, 1]} : vector<16x240xf32> to vector<16x20xf32>
    %426 = vector.extract_strided_slice %391 {offsets = [0, 200], sizes = [16, 20], strides = [1, 1]} : vector<16x240xf32> to vector<16x20xf32>
    %cst_223 = arith.constant 0.223606795 : f32
    %427 = vector.broadcast %cst_223 : f32 to vector<16x20xf32>
    %428 = arith.mulf %424, %427 : vector<16x20xf32>
    %cst_224 = arith.constant dense<0.000000e+00> : vector<16x16xf32>
    %429 = tpu.matmul %428, %425, %cst_224 {dimension_numbers = #tpu.dot_dimension_numbers<[1], [1], [0], [0], [0, 0, 1, 0], [], []>} : vector<16x20xf32>, vector<16x20xf32>, vector<16x16xf32> -> vector<16x16xf32>
    %cst_225 = arith.constant dense<0xFF800000> : vector<16xf32>
    %430 = vector.multi_reduction <maximumf>, %429, %cst_225 [1] : vector<16x16xf32> to vector<16xf32>
    %431 = vector.shape_cast %430 : vector<16xf32> to vector<16x1xf32>
    %432 = vector.broadcast %431 : vector<16x1xf32> to vector<16x16xf32>
    %433 = arith.subf %429, %432 : vector<16x16xf32>
    %434 = math.exp %433 : vector<16x16xf32>
    %cst_226 = arith.constant dense<0.000000e+00> : vector<16xf32>
    %435 = vector.multi_reduction <add>, %434, %cst_226 [1] : vector<16x16xf32> to vector<16xf32>
    %436 = vector.shape_cast %435 : vector<16xf32> to vector<16x1xf32>
    %437 = vector.broadcast %436 : vector<16x1xf32> to vector<16x16xf32>
    %438 = arith.divf %434, %437 : vector<16x16xf32>
    %cst_227 = arith.constant dense<0.000000e+00> : vector<16x20xf32>
    %439 = tpu.matmul %438, %426, %cst_227 {dimension_numbers = #tpu.dot_dimension_numbers<[1], [0], [0], [1], [0, 0, 1, 1], [], []>} : vector<16x16xf32>, vector<16x20xf32>, vector<16x20xf32> -> vector<16x20xf32>
    %440 = vector.extract_strided_slice %391 {offsets = [0, 60], sizes = [16, 20], strides = [1, 1]} : vector<16x240xf32> to vector<16x20xf32>
    %441 = vector.extract_strided_slice %391 {offsets = [0, 140], sizes = [16, 20], strides = [1, 1]} : vector<16x240xf32> to vector<16x20xf32>
    %442 = vector.extract_strided_slice %391 {offsets = [0, 220], sizes = [16, 20], strides = [1, 1]} : vector<16x240xf32> to vector<16x20xf32>
    %cst_228 = arith.constant 0.223606795 : f32
    %443 = vector.broadcast %cst_228 : f32 to vector<16x20xf32>
    %444 = arith.mulf %440, %443 : vector<16x20xf32>
    %cst_229 = arith.constant dense<0.000000e+00> : vector<16x16xf32>
    %445 = tpu.matmul %444, %441, %cst_229 {dimension_numbers = #tpu.dot_dimension_numbers<[1], [1], [0], [0], [0, 0, 1, 0], [], []>} : vector<16x20xf32>, vector<16x20xf32>, vector<16x16xf32> -> vector<16x16xf32>
    %cst_230 = arith.constant dense<0xFF800000> : vector<16xf32>
    %446 = vector.multi_reduction <maximumf>, %445, %cst_230 [1] : vector<16x16xf32> to vector<16xf32>
    %447 = vector.shape_cast %446 : vector<16xf32> to vector<16x1xf32>
    %448 = vector.broadcast %447 : vector<16x1xf32> to vector<16x16xf32>
    %449 = arith.subf %445, %448 : vector<16x16xf32>
    %450 = math.exp %449 : vector<16x16xf32>
    %cst_231 = arith.constant dense<0.000000e+00> : vector<16xf32>
    %451 = vector.multi_reduction <add>, %450, %cst_231 [1] : vector<16x16xf32> to vector<16xf32>
    %452 = vector.shape_cast %451 : vector<16xf32> to vector<16x1xf32>
    %453 = vector.broadcast %452 : vector<16x1xf32> to vector<16x16xf32>
    %454 = arith.divf %450, %453 : vector<16x16xf32>
    %cst_232 = arith.constant dense<0.000000e+00> : vector<16x20xf32>
    %455 = tpu.matmul %454, %442, %cst_232 {dimension_numbers = #tpu.dot_dimension_numbers<[1], [0], [0], [1], [0, 0, 1, 1], [], []>} : vector<16x16xf32>, vector<16x20xf32>, vector<16x20xf32> -> vector<16x20xf32>
    %456 = tpu.concatenate %407, %423, %439, %455 in 1 : vector<16x20xf32>, vector<16x20xf32>, vector<16x20xf32>, vector<16x20xf32> -> vector<16x80xf32>
    %cst_233 = arith.constant dense<0.000000e+00> : vector<16x80xf32>
    %457 = tpu.matmul %456, %374, %cst_233 {dimension_numbers = #tpu.dot_dimension_numbers<[1], [0], [0], [1], [0, 0, 1, 1], [], []>} : vector<16x80xf32>, vector<80x80xf32>, vector<16x80xf32> -> vector<16x80xf32>
    %458 = vector.broadcast %382 : vector<1x80xf32> to vector<16x80xf32>
    %459 = arith.addf %457, %458 : vector<16x80xf32>
    %460 = arith.addf %370, %459 : vector<16x80xf32>
    %cst_234 = arith.constant dense<0.000000e+00> : vector<16xf32>
    %461 = vector.multi_reduction <add>, %460, %cst_234 [1] : vector<16x80xf32> to vector<16xf32>
    %462 = vector.shape_cast %461 : vector<16xf32> to vector<16x1xf32>
    %cst_235 = arith.constant 8.000000e+01 : f32
    %463 = vector.broadcast %cst_235 : f32 to vector<16x1xf32>
    %464 = arith.divf %462, %463 : vector<16x1xf32>
    %465 = vector.broadcast %464 : vector<16x1xf32> to vector<16x80xf32>
    %466 = arith.subf %460, %465 : vector<16x80xf32>
    %467 = arith.mulf %466, %466 : vector<16x80xf32>
    %cst_236 = arith.constant dense<0.000000e+00> : vector<16xf32>
    %468 = vector.multi_reduction <add>, %467, %cst_236 [1] : vector<16x80xf32> to vector<16xf32>
    %469 = vector.shape_cast %468 : vector<16xf32> to vector<16x1xf32>
    %cst_237 = arith.constant 8.000000e+01 : f32
    %470 = vector.broadcast %cst_237 : f32 to vector<16x1xf32>
    %471 = arith.divf %469, %470 : vector<16x1xf32>
    %472 = vector.broadcast %464 : vector<16x1xf32> to vector<16x80xf32>
    %473 = arith.subf %460, %472 : vector<16x80xf32>
    %cst_238 = arith.constant 9.99999974E-6 : f32
    %474 = vector.broadcast %cst_238 : f32 to vector<16x1xf32>
    %475 = arith.addf %471, %474 : vector<16x1xf32>
    %476 = math.rsqrt %475 : vector<16x1xf32>
    %477 = vector.broadcast %476 : vector<16x1xf32> to vector<16x80xf32>
    %478 = arith.mulf %473, %477 : vector<16x80xf32>
    %479 = vector.broadcast %383 : vector<1x80xf32> to vector<16x80xf32>
    %480 = arith.mulf %478, %479 : vector<16x80xf32>
    %481 = vector.broadcast %384 : vector<1x80xf32> to vector<16x80xf32>
    %482 = arith.addf %480, %481 : vector<16x80xf32>
    %cst_239 = arith.constant dense<0.000000e+00> : vector<16x256xf32>
    %483 = tpu.matmul %482, %376, %cst_239 {dimension_numbers = #tpu.dot_dimension_numbers<[1], [0], [0], [1], [0, 0, 1, 1], [], []>} : vector<16x80xf32>, vector<80x256xf32>, vector<16x256xf32> -> vector<16x256xf32>
    %484 = vector.broadcast %385 : vector<1x256xf32> to vector<16x256xf32>
    %485 = arith.addf %483, %484 : vector<16x256xf32>
    %cst_240 = arith.constant 0.000000e+00 : f32
    %486 = vector.broadcast %cst_240 : f32 to vector<16x256xf32>
    %487 = arith.maximumf %485, %486 : vector<16x256xf32>
    %cst_241 = arith.constant dense<0.000000e+00> : vector<16x80xf32>
    %488 = tpu.matmul %487, %378, %cst_241 {dimension_numbers = #tpu.dot_dimension_numbers<[1], [0], [0], [1], [0, 0, 1, 1], [], []>} : vector<16x256xf32>, vector<256x80xf32>, vector<16x80xf32> -> vector<16x80xf32>
    %489 = vector.broadcast %386 : vector<1x80xf32> to vector<16x80xf32>
    %490 = arith.addf %488, %489 : vector<16x80xf32>
    %491 = arith.addf %482, %490 : vector<16x80xf32>
    %cst_242 = arith.constant dense<0.000000e+00> : vector<16xf32>
    %492 = vector.multi_reduction <add>, %491, %cst_242 [1] : vector<16x80xf32> to vector<16xf32>
    %493 = vector.shape_cast %492 : vector<16xf32> to vector<16x1xf32>
    %cst_243 = arith.constant 8.000000e+01 : f32
    %494 = vector.broadcast %cst_243 : f32 to vector<16x1xf32>
    %495 = arith.divf %493, %494 : vector<16x1xf32>
    %496 = vector.broadcast %495 : vector<16x1xf32> to vector<16x80xf32>
    %497 = arith.subf %491, %496 : vector<16x80xf32>
    %498 = arith.mulf %497, %497 : vector<16x80xf32>
    %cst_244 = arith.constant dense<0.000000e+00> : vector<16xf32>
    %499 = vector.multi_reduction <add>, %498, %cst_244 [1] : vector<16x80xf32> to vector<16xf32>
    %500 = vector.shape_cast %499 : vector<16xf32> to vector<16x1xf32>
    %cst_245 = arith.constant 8.000000e+01 : f32
    %501 = vector.broadcast %cst_245 : f32 to vector<16x1xf32>
    %502 = arith.divf %500, %501 : vector<16x1xf32>
    %503 = vector.broadcast %495 : vector<16x1xf32> to vector<16x80xf32>
    %504 = arith.subf %491, %503 : vector<16x80xf32>
    %cst_246 = arith.constant 9.99999974E-6 : f32
    %505 = vector.broadcast %cst_246 : f32 to vector<16x1xf32>
    %506 = arith.addf %502, %505 : vector<16x1xf32>
    %507 = math.rsqrt %506 : vector<16x1xf32>
    %508 = vector.broadcast %507 : vector<16x1xf32> to vector<16x80xf32>
    %509 = arith.mulf %504, %508 : vector<16x80xf32>
    %510 = vector.broadcast %387 : vector<1x80xf32> to vector<16x80xf32>
    %511 = arith.mulf %509, %510 : vector<16x80xf32>
    %512 = vector.broadcast %388 : vector<1x80xf32> to vector<16x80xf32>
    %513 = arith.addf %511, %512 : vector<16x80xf32>
    %c0_247 = arith.constant 0 : index
    %c0_248 = arith.constant 0 : index
    %c0_249 = arith.constant 0 : index
    %514 = vector.load %arg10[%c0_247, %c0_248, %c0_249] : memref<1x16x80xf32, #tpu.memory_space<vmem>>, vector<1x16x80xf32>
    %515 = vector.shape_cast %514 : vector<1x16x80xf32> to vector<16x80xf32>
    %516 = vector.shape_cast %513 : vector<16x80xf32> to vector<1x16x80xf32>
    tpu.vector_store %arg10[%c0_247, %c0_248, %c0_249], %516 {strides = array<i32>} : memref<1x16x80xf32, #tpu.memory_space<vmem>>, vector<1x16x80xf32>,
    return
  }
  func.func @transform_0(%arg0: i32) -> (i32, i32, i32) {
    %c0_i32 = arith.constant 0 : i32
    %c0_i32_0 = arith.constant 0 : i32
    %c0_i32_1 = arith.constant 0 : i32
    return %arg0, %c0_i32, %c0_i32_0 : i32, i32, i32
  }
  func.func @transform_1(%arg0: i32) -> (i32, i32, i32) {
    %c0_i32 = arith.constant 0 : i32
    %c0_i32_0 = arith.constant 0 : i32
    %c0_i32_1 = arith.constant 0 : i32
    %c0_i32_2 = arith.constant 0 : i32
    return %c0_i32, %c0_i32_0, %c0_i32_1 : i32, i32, i32
  }
  func.func @transform_2(%arg0: i32) -> (i32, i32, i32) {
    %c0_i32 = arith.constant 0 : i32
    %c0_i32_0 = arith.constant 0 : i32
    %c0_i32_1 = arith.constant 0 : i32
    %c0_i32_2 = arith.constant 0 : i32
    return %c0_i32, %c0_i32_0, %c0_i32_1 : i32, i32, i32
  }
  func.func @transform_3(%arg0: i32) -> (i32, i32, i32) {
    %c0_i32 = arith.constant 0 : i32
    %c0_i32_0 = arith.constant 0 : i32
    %c0_i32_1 = arith.constant 0 : i32
    %c0_i32_2 = arith.constant 0 : i32
    return %c0_i32, %c0_i32_0, %c0_i32_1 : i32, i32, i32
  }
  func.func @transform_4(%arg0: i32) -> (i32, i32, i32) {
    %c0_i32 = arith.constant 0 : i32
    %c0_i32_0 = arith.constant 0 : i32
    %c0_i32_1 = arith.constant 0 : i32
    %c0_i32_2 = arith.constant 0 : i32
    return %c0_i32, %c0_i32_0, %c0_i32_1 : i32, i32, i32
  }
  func.func @transform_5(%arg0: i32) -> (i32, i32, i32) {
    %c0_i32 = arith.constant 0 : i32
    %c0_i32_0 = arith.constant 0 : i32
    %c0_i32_1 = arith.constant 0 : i32
    %c0_i32_2 = arith.constant 0 : i32
    return %c0_i32, %c0_i32_0, %c0_i32_1 : i32, i32, i32
  }
  func.func @transform_6(%arg0: i32) -> (i32, i32, i32) {
    %c0_i32 = arith.constant 0 : i32
    %c0_i32_0 = arith.constant 0 : i32
    %c0_i32_1 = arith.constant 0 : i32
    %c0_i32_2 = arith.constant 0 : i32
    return %c0_i32, %c0_i32_0, %c0_i32_1 : i32, i32, i32
  }
  func.func @transform_7(%arg0: i32) -> (i32, i32, i32) {
    %c0_i32 = arith.constant 0 : i32
    %c0_i32_0 = arith.constant 0 : i32
    %c0_i32_1 = arith.constant 0 : i32
    %c0_i32_2 = arith.constant 0 : i32
    return %c0_i32, %c0_i32_0, %c0_i32_1 : i32, i32, i32
  }
  func.func @transform_8(%arg0: i32) -> (i32, i32) {
    %c0_i32 = arith.constant 0 : i32
    %c0_i32_0 = arith.constant 0 : i32
    %c0_i32_1 = arith.constant 0 : i32
    return %c0_i32, %c0_i32_0 : i32, i32
  }
  func.func @transform_9(%arg0: i32) -> (i32, i32, i32) {
    %c0_i32 = arith.constant 0 : i32
    %c0_i32_0 = arith.constant 0 : i32
    %c0_i32_1 = arith.constant 0 : i32
    return %arg0, %c0_i32, %c0_i32_0 : i32, i32, i32
  }
}

</mosaic_0001>

<llo_original>
// kernel: mel_autoencoder_forward.1
$region0: #{mel_autoencoder_forward.1}
  #allocation0 [shape = 'u32[]', space=smem, size = 0x4, offset = 0x4, fixed_abs, tag = 'smem constant byte address 0x4 - core index']
  #allocation1 [shape = 'u32[144,128]{1,0:T(1,128)}', space=vmem, size = 0x12000, scoped, tag = 'internal scratch']
  #allocation2 [shape = 'f32[1,1536]{1,0:T(1,128)}', space=vmem, size = 0x1800, scoped, tag = 'scratch operand']
  #allocation3 [shape = 'f32[9,1536]{1,0:T(8,128)}', space=vmem, size = 0x18000, scoped, tag = 'scratch operand']
  %s0 = inlined_call_operand.hbm [shape: f32[2,16,80], index: 0, kind: input, shape index: {}]
  %s1 = inlined_call_operand.hbm [shape: f32[2,80,240], index: 1, kind: input, shape index: {}]
  %s2 = inlined_call_operand.hbm [shape: f32[2,80,80], index: 2, kind: input, shape index: {}]
  %s3 = inlined_call_operand.hbm [shape: f32[2,80,256], index: 3, kind: input, shape index: {}]
  %s4 = inlined_call_operand.hbm [shape: f32[2,256,80], index: 4, kind: input, shape index: {}]
  %s5 = inlined_call_operand.hbm [shape: f32[2,8,256], index: 5, kind: input, shape index: {}]
  %s6 = inlined_call_operand.hbm [shape: f32[2,64,10], index: 6, kind: input, shape index: {}]
  %s7 = inlined_call_operand.hbm [shape: f32[2,10,64], index: 7, kind: input, shape index: {}]
  %s8 = inlined_call_operand.hbm [shape: f32[9,1280], index: 8, kind: input, shape index: {}]
  %s9 = inlined_call_operand.hbm [shape: f32[2,16,80], index: 9, kind: output, shape index: {}]
  %s10 = sld [smem:[#allocation0]]
  $region105: #{mel_autoencoder_forward.1} parent=0
    _
  %s12 = ssub.s32 1, %s10
  %s13 = scalar_select 0, %s12, %s10
  $region1: #{mel_autoencoder_forward.1} parent=0
    #allocation4 [shape = 'u8[16384]{0}', space=vmem, size = 0x4000, scoped, tag = 'input window, operand 0']
    #allocation5 [shape = 's32[2]{0}', space=sflag, size = 0x8, scoped, tag = 'scoped memory for mel_autoencoder_forward.1']
    #allocation6 [shape = 's32[2]{0}', space=sflag, size = 0x8, scoped, tag = 'scoped memory for mel_autoencoder_forward.1']
    #allocation7 [shape = 'u8[163840]{0}', space=vmem, size = 0x28000, scoped, tag = 'input window, operand 1, single buffered']
    #allocation8 [shape = 's32[1]{0}', space=sflag, size = 0x4, scoped, tag = 'scoped memory for mel_autoencoder_forward.1']
    #allocation9 [shape = 'u8[81920]{0}', space=vmem, size = 0x14000, scoped, tag = 'input window, operand 2, single buffered']
    #allocation10 [shape = 'u8[163840]{0}', space=vmem, size = 0x28000, scoped, tag = 'input window, operand 3, single buffered']
    #allocation11 [shape = 's32[1]{0}', space=sflag, size = 0x4, scoped, tag = 'scoped memory for mel_autoencoder_forward.1']
    #allocation12 [shape = 'u8[262144]{0}', space=vmem, size = 0x40000, scoped, tag = 'input window, operand 4, single buffered']
    #allocation13 [shape = 'u8[16384]{0}', space=vmem, size = 0x4000, scoped, tag = 'input window, operand 5, single buffered']
    #allocation14 [shape = 's32[1]{0}', space=sflag, size = 0x4, scoped, tag = 'scoped memory for mel_autoencoder_forward.1']
    #allocation15 [shape = 'u8[65536]{0}', space=vmem, size = 0x10000, scoped, tag = 'input window, operand 6, single buffered']
    #allocation16 [shape = 'u8[16384]{0}', space=vmem, size = 0x4000, scoped, tag = 'input window, operand 7, single buffered']
    #allocation17 [shape = 's32[1]{0}', space=sflag, size = 0x4, scoped, tag = 'scoped memory for mel_autoencoder_forward.1']
    #allocation18 [shape = 'u8[81920]{0}', space=vmem, size = 0x14000, scoped, tag = 'input window, operand 8, single buffered']
    #allocation19 [shape = 'u8[16384]{0}', space=vmem, size = 0x4000, scoped, tag = 'output window, operand 0']
    %14 = vsyncpa [#allocation5], 0
    %s15 = scalar_lea.sflag [#allocation5], 1
    %16 = vsyncpa %s15, 0
    %17 = vsyncpa [#allocation8], 0
    %18 = vsyncpa [#allocation11], 0
    %19 = vsyncpa [#allocation14], 0
    %20 = vsyncpa [#allocation17], 0
    %21 = vsyncpa [#allocation6], 0
    %s22 = scalar_lea.sflag [#allocation6], 1
    %23 = vsyncpa %s22, 0
    loop: start=0, step=1, limit=4
    $region2: #{mel_autoencoder_forward.1} parent=1 // loop_pre_header
      _
    $region3: #{mel_autoencoder_forward.1} parent=1 // loop_header
      %s25 = sphi 0, %s29
      %p26 = scmp.ge.s32.totalorder %s25, 4
      %s35 = sphi 0, %s37
      %s38 = sphi 0, %s35
      %s39 = sphi 0, %s38
      %s55 = sphi 0, %s39
      %s59 = sphi 0, %s59
      %s61 = sphi 0, %s59
      %s62 = sphi 0, %s61
      %s76 = sphi 0, %s62
      %s80 = sphi 0, %s80
      %s82 = sphi 0, %s80
      %s83 = sphi 0, %s82
      %s97 = sphi 0, %s83
      %s101 = sphi 0, %s101
      %s103 = sphi 0, %s101
      %s104 = sphi 0, %s103
      %s118 = sphi 0, %s104
      %s122 = sphi 0, %s122
      %s124 = sphi 0, %s122
      %s125 = sphi 0, %s124
      %s139 = sphi 0, %s125
      %s143 = sphi 0, %s143
      %s145 = sphi 0, %s143
      %s146 = sphi 0, %s145
      %s160 = sphi 0, %s146
      %s164 = sphi 0, %s164
      %s166 = sphi 0, %s164
      %s167 = sphi 0, %s166
      %s181 = sphi 0, %s167
      %s185 = sphi 0, %s185
      %s187 = sphi 0, %s185
      %s188 = sphi 0, %s187
      %s202 = sphi 0, %s188
      %s206 = sphi 0, %s206
      %s208 = sphi 0, %s206
      %s209 = sphi 0, %s208
      %s223 = sphi 0, %s209
      %s229 = sphi 0, %s231
      %s232 = sphi 0, %s229
      %s233 = sphi 0, %s232
      %s249 = sphi 0, %s233
    $region4: #{mel_autoencoder_forward.1} parent=1 // loop_header_branch
      %28 = sbr.rel (%p26) target = $region8
    $region5: #{mel_autoencoder_forward.1} parent=1 // loop_body
      %s30 = ssub.s32 %s25, 1
      %s31 = ssub.s32 %s25, 2
      %s32 = sadd.s32 %s25, 1
      %s33 = ssub.s32 %s25, %s32
      %p34 = scmp.eq.s32.totalorder %s33, 0
      %s36 = sadd.s32 %s35, 1
      %s37 = scalar_select %p34, %s35, %s36
      %p40 = pneg %p34
      %p41 = scmp.eq.s32.totalorder %s25, 1
      %p42 = por %p40, %p41
      %p43 = scmp.ne.s32.totalorder %s35, %s38
      %p44 = scmp.eq.s32.totalorder %s25, 0
      %p45 = por %p43, %p44
      %p46 = scmp.ne.s32.totalorder %s35, %s38
      %p47 = scmp.eq.s32.totalorder %s30, 1
      %p48 = por %p46, %p47
      %p49 = scmp.ne.s32.totalorder %s38, %s39
      %p50 = scmp.eq.s32.totalorder %s30, 0
      %p51 = por %p49, %p50
      %p52 = scmp.ne.s32.totalorder %s38, %s39
      %p53 = scmp.eq.s32.totalorder %s31, 1
      %p54 = por %p52, %p53
      %p56 = scmp.ne.s32.totalorder %s39, %s55
      %p57 = scmp.eq.s32.totalorder %s31, 0
      %p58 = por %p56, %p57
      %s60 = sadd.s32 %s59, 1
      %p63 = scmp.eq.s32.totalorder %s25, 1
      %p64 = scmp.ne.s32.totalorder %s59, %s61
      %p65 = scmp.eq.s32.totalorder %s25, 0
      %p66 = por %p64, %p65
      %p67 = scmp.ne.s32.totalorder %s59, %s61
      %p68 = scmp.eq.s32.totalorder %s30, 1
      %p69 = por %p67, %p68
      %p70 = scmp.ne.s32.totalorder %s61, %s62
      %p71 = scmp.eq.s32.totalorder %s30, 0
      %p72 = por %p70, %p71
      %p73 = scmp.ne.s32.totalorder %s61, %s62
      %p74 = scmp.eq.s32.totalorder %s31, 1
      %p75 = por %p73, %p74
      %p77 = scmp.ne.s32.totalorder %s62, %s76
      %p78 = scmp.eq.s32.totalorder %s31, 0
      %p79 = por %p77, %p78
      %s81 = sadd.s32 %s80, 1
      %p84 = scmp.eq.s32.totalorder %s25, 1
      %p85 = scmp.ne.s32.totalorder %s80, %s82
      %p86 = scmp.eq.s32.totalorder %s25, 0
      %p87 = por %p85, %p86
      %p88 = scmp.ne.s32.totalorder %s80, %s82
      %p89 = scmp.eq.s32.totalorder %s30, 1
      %p90 = por %p88, %p89
      %p91 = scmp.ne.s32.totalorder %s82, %s83
      %p92 = scmp.eq.s32.totalorder %s30, 0
      %p93 = por %p91, %p92
      %p94 = scmp.ne.s32.totalorder %s82, %s83
      %p95 = scmp.eq.s32.totalorder %s31, 1
      %p96 = por %p94, %p95
      %p98 = scmp.ne.s32.totalorder %s83, %s97
      %p99 = scmp.eq.s32.totalorder %s31, 0
      %p100 = por %p98, %p99
      %s102 = sadd.s32 %s101, 1
      %p105 = scmp.eq.s32.totalorder %s25, 1
      %p106 = scmp.ne.s32.totalorder %s101, %s103
      %p107 = scmp.eq.s32.totalorder %s25, 0
      %p108 = por %p106, %p107
      %p109 = scmp.ne.s32.totalorder %s101, %s103
      %p110 = scmp.eq.s32.totalorder %s30, 1
      %p111 = por %p109, %p110
      %p112 = scmp.ne.s32.totalorder %s103, %s104
      %p113 = scmp.eq.s32.totalorder %s30, 0
      %p114 = por %p112, %p113
      %p115 = scmp.ne.s32.totalorder %s103, %s104
      %p116 = scmp.eq.s32.totalorder %s31, 1
      %p117 = por %p115, %p116
      %p119 = scmp.ne.s32.totalorder %s104, %s118
      %p120 = scmp.eq.s32.totalorder %s31, 0
      %p121 = por %p119, %p120
      %s123 = sadd.s32 %s122, 1
      %p126 = scmp.eq.s32.totalorder %s25, 1
      %p127 = scmp.ne.s32.totalorder %s122, %s124
      %p128 = scmp.eq.s32.totalorder %s25, 0
      %p129 = por %p127, %p128
      %p130 = scmp.ne.s32.totalorder %s122, %s124
      %p131 = scmp.eq.s32.totalorder %s30, 1
      %p132 = por %p130, %p131
      %p133 = scmp.ne.s32.totalorder %s124, %s125
      %p134 = scmp.eq.s32.totalorder %s30, 0
      %p135 = por %p133, %p134
      %p136 = scmp.ne.s32.totalorder %s124, %s125
      %p137 = scmp.eq.s32.totalorder %s31, 1
      %p138 = por %p136, %p137
      %p140 = scmp.ne.s32.totalorder %s125, %s139
      %p141 = scmp.eq.s32.totalorder %s31, 0
      %p142 = por %p140, %p141
      %s144 = sadd.s32 %s143, 1
      %p147 = scmp.eq.s32.totalorder %s25, 1
      %p148 = scmp.ne.s32.totalorder %s143, %s145
      %p149 = scmp.eq.s32.totalorder %s25, 0
      %p150 = por %p148, %p149
      %p151 = scmp.ne.s32.totalorder %s143, %s145
      %p152 = scmp.eq.s32.totalorder %s30, 1
      %p153 = por %p151, %p152
      %p154 = scmp.ne.s32.totalorder %s145, %s146
      %p155 = scmp.eq.s32.totalorder %s30, 0
      %p156 = por %p154, %p155
      %p157 = scmp.ne.s32.totalorder %s145, %s146
      %p158 = scmp.eq.s32.totalorder %s31, 1
      %p159 = por %p157, %p158
      %p161 = scmp.ne.s32.totalorder %s146, %s160
      %p162 = scmp.eq.s32.totalorder %s31, 0
      %p163 = por %p161, %p162
      %s165 = sadd.s32 %s164, 1
      %p168 = scmp.eq.s32.totalorder %s25, 1
      %p169 = scmp.ne.s32.totalorder %s164, %s166
      %p170 = scmp.eq.s32.totalorder %s25, 0
      %p171 = por %p169, %p170
      %p172 = scmp.ne.s32.totalorder %s164, %s166
      %p173 = scmp.eq.s32.totalorder %s30, 1
      %p174 = por %p172, %p173
      %p175 = scmp.ne.s32.totalorder %s166, %s167
      %p176 = scmp.eq.s32.totalorder %s30, 0
      %p177 = por %p175, %p176
      %p178 = scmp.ne.s32.totalorder %s166, %s167
      %p179 = scmp.eq.s32.totalorder %s31, 1
      %p180 = por %p178, %p179
      %p182 = scmp.ne.s32.totalorder %s167, %s181
      %p183 = scmp.eq.s32.totalorder %s31, 0
      %p184 = por %p182, %p183
      %s186 = sadd.s32 %s185, 1
      %p189 = scmp.eq.s32.totalorder %s25, 1
      %p190 = scmp.ne.s32.totalorder %s185, %s187
      %p191 = scmp.eq.s32.totalorder %s25, 0
      %p192 = por %p190, %p191
      %p193 = scmp.ne.s32.totalorder %s185, %s187
      %p194 = scmp.eq.s32.totalorder %s30, 1
      %p195 = por %p193, %p194
      %p196 = scmp.ne.s32.totalorder %s187, %s188
      %p197 = scmp.eq.s32.totalorder %s30, 0
      %p198 = por %p196, %p197
      %p199 = scmp.ne.s32.totalorder %s187, %s188
      %p200 = scmp.eq.s32.totalorder %s31, 1
      %p201 = por %p199, %p200
      %p203 = scmp.ne.s32.totalorder %s188, %s202
      %p204 = scmp.eq.s32.totalorder %s31, 0
      %p205 = por %p203, %p204
      %s207 = sadd.s32 %s206, 1
      %p210 = scmp.eq.s32.totalorder %s25, 1
      %p211 = scmp.ne.s32.totalorder %s206, %s208
      %p212 = scmp.eq.s32.totalorder %s25, 0
      %p213 = por %p211, %p212
      %p214 = scmp.ne.s32.totalorder %s206, %s208
      %p215 = scmp.eq.s32.totalorder %s30, 1
      %p216 = por %p214, %p215
      %p217 = scmp.ne.s32.totalorder %s208, %s209
      %p218 = scmp.eq.s32.totalorder %s30, 0
      %p219 = por %p217, %p218
      %p220 = scmp.ne.s32.totalorder %s208, %s209
      %p221 = scmp.eq.s32.totalorder %s31, 1
      %p222 = por %p220, %p221
      %p224 = scmp.ne.s32.totalorder %s209, %s223
      %p225 = scmp.eq.s32.totalorder %s31, 0
      %p226 = por %p224, %p225
      %s227 = ssub.s32 %s25, %s32
      %p228 = scmp.eq.s32.totalorder %s227, 0
      %s230 = sadd.s32 %s229, 1
      %s231 = scalar_select %p228, %s229, %s230
      %p234 = pneg %p228
      %p235 = scmp.eq.s32.totalorder %s25, 1
      %p236 = por %p234, %p235
      %p237 = scmp.ne.s32.totalorder %s229, %s232
      %p238 = scmp.eq.s32.totalorder %s25, 0
      %p239 = por %p237, %p238
      %p240 = scmp.ne.s32.totalorder %s229, %s232
      %p241 = scmp.eq.s32.totalorder %s30, 1
      %p242 = por %p240, %p241
      %p243 = scmp.ne.s32.totalorder %s232, %s233
      %p244 = scmp.eq.s32.totalorder %s30, 0
      %p245 = por %p243, %p244
      %p246 = scmp.ne.s32.totalorder %s232, %s233
      %p247 = scmp.eq.s32.totalorder %s31, 1
      %p248 = por %p246, %p247
      %p250 = scmp.ne.s32.totalorder %s233, %s249
      %p251 = scmp.eq.s32.totalorder %s31, 0
      %p252 = por %p250, %p251
      %p253 = scmp.le.s32.totalorder 1, %s25
      %p254 = scmp.lt.s32.totalorder %s25, 3
      %p255 = pnand %p253, %p254
      %p256 = pneg %p255
      // Predicated region
      $region9: #{mel_autoencoder_forward.1} parent=5 // pred_check
        _
      $region10: #{mel_autoencoder_forward.1} parent=5 // pred_check_branch
        %258 = sbr.rel (%p255) target = $region12
      $region11: #{mel_autoencoder_forward.1} parent=5 // pred_region
        %s259 = ssub.s32 %s25, 1
        // Predicated region
        $region13: #{mel_autoencoder_forward.1} parent=11 // pred_check
          %p260 = pneg %p72
        $region14: #{mel_autoencoder_forward.1} parent=11 // pred_check_branch
          %262 = sbr.rel (%p260) target = $region16
        $region15: #{mel_autoencoder_forward.1} parent=11 // pred_region
          %s264 = ssub.s32 5120, 5120
          %265 = vsyncadd [#allocation8], %s264
          %s266 = sshll.u32 [#allocation7], 4
          %s267 = int_to_ptr.vmem [resolvable:$true] %s266
          %272 = dma.hbm_to_vmem [thread:$0]  %s1, 5120, %s267, [#allocation8], 256, 256, 16
        $region16: #{mel_autoencoder_forward.1} parent=11 // pred_fallthru
          _
        // Predicated region
        $region17: #{mel_autoencoder_forward.1} parent=11 // pred_check
          %p273 = pneg %p93
        $region18: #{mel_autoencoder_forward.1} parent=11 // pred_check_branch
          %275 = sbr.rel (%p273) target = $region20
        $region19: #{mel_autoencoder_forward.1} parent=11 // pred_region
          %s277 = ssub.s32 2560, 2560
          %278 = vsyncadd [#allocation8], %s277
          %s279 = sshll.u32 [#allocation9], 4
          %s280 = int_to_ptr.vmem [resolvable:$true] %s279
          %285 = dma.hbm_to_vmem [thread:$0]  %s2, 2560, %s280, [#allocation8], 128, 128, 8
        $region20: #{mel_autoencoder_forward.1} parent=11 // pred_fallthru
          _
        // Predicated region
        $region21: #{mel_autoencoder_forward.1} parent=11 // pred_check
          %p286 = pneg %p114
        $region22: #{mel_autoencoder_forward.1} parent=11 // pred_check_branch
          %288 = sbr.rel (%p286) target = $region24
        $region23: #{mel_autoencoder_forward.1} parent=11 // pred_region
          %s290 = ssub.s32 5120, 5120
          %291 = vsyncadd [#allocation11], %s290
          %s292 = sshll.u32 [#allocation10], 4
          %s293 = int_to_ptr.vmem [resolvable:$true] %s292
          %298 = dma.hbm_to_vmem [thread:$0]  %s3, 5120, %s293, [#allocation11], 256, 256, 16
        $region24: #{mel_autoencoder_forward.1} parent=11 // pred_fallthru
          _
        // Predicated region
        $region25: #{mel_autoencoder_forward.1} parent=11 // pred_check
          %p299 = pneg %p135
        $region26: #{mel_autoencoder_forward.1} parent=11 // pred_check_branch
          %301 = sbr.rel (%p299) target = $region28
        $region27: #{mel_autoencoder_forward.1} parent=11 // pred_region
          %s303 = ssub.s32 8192, 8192
          %304 = vsyncadd [#allocation11], %s303
          %s305 = sshll.u32 [#allocation12], 4
          %s306 = int_to_ptr.vmem [resolvable:$true] %s305
          %311 = dma.hbm_to_vmem [thread:$0]  %s4, 8192, %s306, [#allocation11], 128, 128, 8
        $region28: #{mel_autoencoder_forward.1} parent=11 // pred_fallthru
          _
        // Predicated region
        $region29: #{mel_autoencoder_forward.1} parent=11 // pred_check
          %p312 = pneg %p156
        $region30: #{mel_autoencoder_forward.1} parent=11 // pred_check_branch
          %314 = sbr.rel (%p312) target = $region32
        $region31: #{mel_autoencoder_forward.1} parent=11 // pred_region
          %s316 = ssub.s32 512, 512
          %317 = vsyncadd [#allocation14], %s316
          %s318 = sshll.u32 [#allocation13], 4
          %s319 = int_to_ptr.vmem [resolvable:$true] %s318
          %324 = dma.hbm_to_vmem [thread:$0]  %s5, 512, %s319, [#allocation14], 256, 256, 16
        $region32: #{mel_autoencoder_forward.1} parent=11 // pred_fallthru
          _
        // Predicated region
        $region33: #{mel_autoencoder_forward.1} parent=11 // pred_check
          %p325 = pneg %p177
        $region34: #{mel_autoencoder_forward.1} parent=11 // pred_check_branch
          %327 = sbr.rel (%p325) target = $region36
        $region35: #{mel_autoencoder_forward.1} parent=11 // pred_region
          %s329 = ssub.s32 2048, 2048
          %330 = vsyncadd [#allocation14], %s329
          %s331 = sshll.u32 [#allocation15], 4
          %s332 = int_to_ptr.vmem [resolvable:$true] %s331
          %337 = dma.hbm_to_vmem [thread:$0]  %s6, 2048, %s332, [#allocation14], 128, 128, 8
        $region36: #{mel_autoencoder_forward.1} parent=11 // pred_fallthru
          _
        // Predicated region
        $region37: #{mel_autoencoder_forward.1} parent=11 // pred_check
          %p338 = pneg %p198
        $region38: #{mel_autoencoder_forward.1} parent=11 // pred_check_branch
          %340 = sbr.rel (%p338) target = $region40
        $region39: #{mel_autoencoder_forward.1} parent=11 // pred_region
          %s342 = ssub.s32 512, 512
          %343 = vsyncadd [#allocation17], %s342
          %s344 = sshll.u32 [#allocation16], 4
          %s345 = int_to_ptr.vmem [resolvable:$true] %s344
          %350 = dma.hbm_to_vmem [thread:$0]  %s7, 512, %s345, [#allocation17], 128, 128, 8
        $region40: #{mel_autoencoder_forward.1} parent=11 // pred_fallthru
          _
        // Predicated region
        $region41: #{mel_autoencoder_forward.1} parent=11 // pred_check
          %p351 = pneg %p219
        $region42: #{mel_autoencoder_forward.1} parent=11 // pred_check_branch
          %353 = sbr.rel (%p351) target = $region44
        $region43: #{mel_autoencoder_forward.1} parent=11 // pred_region
          %s355 = ssub.s32 2560, 2560
          %356 = vsyncadd [#allocation17], %s355
          %s357 = sshll.u32 [#allocation18], 4
          %s358 = int_to_ptr.vmem [resolvable:$true] %s357
          %363 = dma.hbm_to_vmem [thread:$0]  %s8, 2560, %s358, [#allocation17], 1280, 1280, 80
        $region44: #{mel_autoencoder_forward.1} parent=11 // pred_fallthru
          _
      $region12: #{mel_autoencoder_forward.1} parent=5 // pred_fallthru
        _
      %p364 = scmp.lt.s32.totalorder %s25, 2
      // Predicated region
      $region45: #{mel_autoencoder_forward.1} parent=5 // pred_check
        %p365 = pneg %p364
      $region46: #{mel_autoencoder_forward.1} parent=5 // pred_check_branch
        %367 = sbr.rel (%p365) target = $region48
      $region47: #{mel_autoencoder_forward.1} parent=5 // pred_region
        // Predicated region
        $region49: #{mel_autoencoder_forward.1} parent=47 // pred_check
          %p368 = pneg %p45
        $region50: #{mel_autoencoder_forward.1} parent=47 // pred_check_branch
          %370 = sbr.rel (%p368) target = $region52
        $region51: #{mel_autoencoder_forward.1} parent=47 // pred_region
          %s371 = sand.u32 %s35, 1
          %s372 = scalar_lea.sflag [#allocation5], %s371
          %s373 = sand.u32 %s35, 1
          %s374 = smul.addr %s373, 16
          %s375 = scalar_lea.vmem [#allocation4], %s374
          %s377 = ssub.s32 256, 256
          %378 = vsyncadd %s372, %s377
          %s379 = smul.addr %s25, 2
          %s380 = smul.addr %s379, 128
          %s381 = scalar_lea.hbm %s0, %s380
          %s382 = sshll.u32 %s375, 4
          %s383 = int_to_ptr.vmem [resolvable:$true] %s382
          %388 = dma.hbm_to_vmem [thread:$0]  %s381, 256, %s383, %s372, 128, 128, 8
        $region52: #{mel_autoencoder_forward.1} parent=47 // pred_fallthru
          _
      $region48: #{mel_autoencoder_forward.1} parent=5 // pred_fallthru
        _
      %p389 = scmp.le.s32.totalorder 1, %s25
      %p390 = scmp.lt.s32.totalorder %s25, 3
      %p391 = pnand %p389, %p390
      %p392 = pneg %p391
      // Predicated region
      $region53: #{mel_autoencoder_forward.1} parent=5 // pred_check
        _
      $region54: #{mel_autoencoder_forward.1} parent=5 // pred_check_branch
        %394 = sbr.rel (%p391) target = $region56
      $region55: #{mel_autoencoder_forward.1} parent=5 // pred_region
        %s395 = ssub.s32 %s25, 1
        %s396 = sand.u32 %s38, 1
        %s397 = scalar_lea.sflag [#allocation5], %s396
        %s398 = sand.u32 %s38, 1
        %s399 = smul.addr %s398, 16
        %s400 = scalar_lea.vmem [#allocation4], %s399
        // Predicated region
        $region57: #{mel_autoencoder_forward.1} parent=55 // pred_check
          %p401 = pneg %p51
        $region58: #{mel_autoencoder_forward.1} parent=55 // pred_check_branch
          %403 = sbr.rel (%p401) target = $region60
        $region59: #{mel_autoencoder_forward.1} parent=55 // pred_region
          %404 = dma.done %s397, 256
        $region60: #{mel_autoencoder_forward.1} parent=55 // pred_fallthru
          _
        // Predicated region
        $region61: #{mel_autoencoder_forward.1} parent=55 // pred_check
          %p405 = pneg %p72
        $region62: #{mel_autoencoder_forward.1} parent=55 // pred_check_branch
          %407 = sbr.rel (%p405) target = $region64
        $region63: #{mel_autoencoder_forward.1} parent=55 // pred_region
          %408 = dma.done [#allocation8], 5120
        $region64: #{mel_autoencoder_forward.1} parent=55 // pred_fallthru
          _
        // Predicated region
        $region65: #{mel_autoencoder_forward.1} parent=55 // pred_check
          %p409 = pneg %p93
        $region66: #{mel_autoencoder_forward.1} parent=55 // pred_check_branch
          %411 = sbr.rel (%p409) target = $region68
        $region67: #{mel_autoencoder_forward.1} parent=55 // pred_region
          %412 = dma.done [#allocation8], 2560
        $region68: #{mel_autoencoder_forward.1} parent=55 // pred_fallthru
          _
        // Predicated region
        $region69: #{mel_autoencoder_forward.1} parent=55 // pred_check
          %p413 = pneg %p114
        $region70: #{mel_autoencoder_forward.1} parent=55 // pred_check_branch
          %415 = sbr.rel (%p413) target = $region72
        $region71: #{mel_autoencoder_forward.1} parent=55 // pred_region
          %416 = dma.done [#allocation11], 5120
        $region72: #{mel_autoencoder_forward.1} parent=55 // pred_fallthru
          _
        // Predicated region
        $region73: #{mel_autoencoder_forward.1} parent=55 // pred_check
          %p417 = pneg %p135
        $region74: #{mel_autoencoder_forward.1} parent=55 // pred_check_branch
          %419 = sbr.rel (%p417) target = $region76
        $region75: #{mel_autoencoder_forward.1} parent=55 // pred_region
          %420 = dma.done [#allocation11], 8192
        $region76: #{mel_autoencoder_forward.1} parent=55 // pred_fallthru
          _
        // Predicated region
        $region77: #{mel_autoencoder_forward.1} parent=55 // pred_check
          %p421 = pneg %p156
        $region78: #{mel_autoencoder_forward.1} parent=55 // pred_check_branch
          %423 = sbr.rel (%p421) target = $region80
        $region79: #{mel_autoencoder_forward.1} parent=55 // pred_region
          %424 = dma.done [#allocation14], 512
        $region80: #{mel_autoencoder_forward.1} parent=55 // pred_fallthru
          _
        // Predicated region
        $region81: #{mel_autoencoder_forward.1} parent=55 // pred_check
          %p425 = pneg %p177
        $region82: #{mel_autoencoder_forward.1} parent=55 // pred_check_branch
          %427 = sbr.rel (%p425) target = $region84
        $region83: #{mel_autoencoder_forward.1} parent=55 // pred_region
          %428 = dma.done [#allocation14], 2048
        $region84: #{mel_autoencoder_forward.1} parent=55 // pred_fallthru
          _
        // Predicated region
        $region85: #{mel_autoencoder_forward.1} parent=55 // pred_check
          %p429 = pneg %p198
        $region86: #{mel_autoencoder_forward.1} parent=55 // pred_check_branch
          %431 = sbr.rel (%p429) target = $region88
        $region87: #{mel_autoencoder_forward.1} parent=55 // pred_region
          %432 = dma.done [#allocation17], 512
        $region88: #{mel_autoencoder_forward.1} parent=55 // pred_fallthru
          _
        // Predicated region
        $region89: #{mel_autoencoder_forward.1} parent=55 // pred_check
          %p433 = pneg %p219
        $region90: #{mel_autoencoder_forward.1} parent=55 // pred_check_branch
          %435 = sbr.rel (%p433) target = $region92
        $region91: #{mel_autoencoder_forward.1} parent=55 // pred_region
          %436 = dma.done [#allocation17], 2560
        $region92: #{mel_autoencoder_forward.1} parent=55 // pred_fallthru
          _
        %s437 = sand.u32 %s38, 1
        %s438 = scalar_lea.sflag [#allocation5], %s437
        %s439 = sand.u32 %s38, 1
        %s440 = smul.addr %s439, 16
        %s441 = scalar_lea.vmem [#allocation4], %s440
        %p442 = pneg %p51
        %p443 = pneg %p48
        %p444 = pneg %p72
        %p445 = pneg %p69
        %p446 = pneg %p93
        %p447 = pneg %p90
        %p448 = pneg %p114
        %p449 = pneg %p111
        %p450 = pneg %p135
        %p451 = pneg %p132
        %p452 = pneg %p156
        %p453 = pneg %p153
        %p454 = pneg %p177
        %p455 = pneg %p174
        %p456 = pneg %p198
        %p457 = pneg %p195
        %p458 = pneg %p219
        %p459 = pneg %p216
        %p460 = pneg %p245
        %p461 = pneg %p242
        %s462 = sand.u32 %s232, 1
        %s463 = scalar_lea.sflag [#allocation6], %s462
        %s464 = sand.u32 %s232, 1
        %s465 = smul.addr %s464, 16
        %s466 = scalar_lea.vmem [#allocation19], %s465
        %v467 = vld [vmem:[%s400] sm:$0xff]
        %v468 = vld [vmem:[%s400 + $0x8] sm:$0xff]
        %v469 = vld [vmem:[#allocation18] sm:$0xff]
        %v470 = vld [vmem:[#allocation18 + $0x8] sm:$0xff]
        %v471 = vld [vmem:[#allocation18 + $0x10] sm:$0xff]
        %v472 = vld [vmem:[#allocation18 + $0x18] sm:$0xff]
        %v473 = vld [vmem:[#allocation18 + $0x20] sm:$0xff]
        %v474 = vld [vmem:[#allocation18 + $0x28] sm:$0xff]
        %v475 = vld [vmem:[#allocation18 + $0x30] sm:$0xff]
        %v476 = vld [vmem:[#allocation18 + $0x38] sm:$0xff]
        %v477 = vld [vmem:[#allocation18 + $0x40] sm:$0xff]
        %v478 = vld [vmem:[#allocation18 + $0x48] sm:$0xff]
        %v479 = vld [vmem:[#allocation18 + $0x50] sm:$0x1]
        %v480 = vld [vmem:[#allocation18 + $0x58] sm:$0x1]
        %v481 = vld [vmem:[#allocation18 + $0x60] sm:$0x1]
        %v482 = vld [vmem:[#allocation18 + $0x68] sm:$0x1]
        %v483 = vld [vmem:[#allocation18 + $0x70] sm:$0x1]
        %v484 = vld [vmem:[#allocation18 + $0x78] sm:$0x1]
        %v485 = vld [vmem:[#allocation18 + $0x80] sm:$0x1]
        %v486 = vld [vmem:[#allocation18 + $0x88] sm:$0x1]
        %v487 = vld [vmem:[#allocation18 + $0x90] sm:$0x1]
        %v488 = vld [vmem:[#allocation18 + $0x98] sm:$0x1]
        %v489 = vlaneseq
        %vm490 = vcmp.ge.s32.totalorder %v489, 0
        %vm491 = vcmp.lt.s32.totalorder %v489, 128
        %vm492 = vmand %vm490, %vm491
        %493 = vst.msk [vmem:[#allocation2] sm:$0x1] %vm492, 0.0
        %494 = vst.msk [vmem:[#allocation2 + $0xb] sm:$0x1] %vm492, 0.0
        %495 = vst [vmem:[#allocation3] sm:$0xff] 0.0
        %496 = vst [vmem:[#allocation3 + $0x60] sm:$0x1] 0.0
        %497 = vst [vmem:[#allocation3 + $0x58] sm:$0xff] 0.0
        %498 = vst [vmem:[#allocation3 + $0xb8] sm:$0x1] 0.0
        %v499 = vld [vmem:[#allocation7] sm:$0xff]
        %v500 = vld [vmem:[#allocation7 + $0x8] sm:$0xff]
        %v501 = vld [vmem:[#allocation7 + $0x10] sm:$0xff]
        %v502 = vld [vmem:[#allocation7 + $0x18] sm:$0xff]
        %v503 = vld [vmem:[#allocation7 + $0x20] sm:$0xff]
        %v504 = vld [vmem:[#allocation7 + $0x28] sm:$0xff]
        %v505 = vld [vmem:[#allocation7 + $0x30] sm:$0xff]
        %v506 = vld [vmem:[#allocation7 + $0x38] sm:$0xff]
        %v507 = vld [vmem:[#allocation7 + $0x40] sm:$0xff]
        %v508 = vld [vmem:[#allocation7 + $0x48] sm:$0xff]
        %v509 = vld [vmem:[#allocation7 + $0x50] sm:$0xff]
        %v510 = vld [vmem:[#allocation7 + $0x58] sm:$0xff]
        %v511 = vld [vmem:[#allocation7 + $0x60] sm:$0xff]
        %v512 = vld [vmem:[#allocation7 + $0x68] sm:$0xff]
        %v513 = vld [vmem:[#allocation7 + $0x70] sm:$0xff]
        %v514 = vld [vmem:[#allocation7 + $0x78] sm:$0xff]
        %v515 = vld [vmem:[#allocation7 + $0x80] sm:$0xff]
        %v516 = vld [vmem:[#allocation7 + $0x88] sm:$0xff]
        %v517 = vld [vmem:[#allocation7 + $0x90] sm:$0xff]
        %v518 = vld [vmem:[#allocation7 + $0x98] sm:$0xff]
        %v519 = vld [vmem:[#allocation9] sm:$0xff]
        %v520 = vld [vmem:[#allocation9 + $0x8] sm:$0xff]
        %v521 = vld [vmem:[#allocation9 + $0x10] sm:$0xff]
        %v522 = vld [vmem:[#allocation9 + $0x18] sm:$0xff]
        %v523 = vld [vmem:[#allocation9 + $0x20] sm:$0xff]
        %v524 = vld [vmem:[#allocation9 + $0x28] sm:$0xff]
        %v525 = vld [vmem:[#allocation9 + $0x30] sm:$0xff]
        %v526 = vld [vmem:[#allocation9 + $0x38] sm:$0xff]
        %v527 = vld [vmem:[#allocation9 + $0x40] sm:$0xff]
        %v528 = vld [vmem:[#allocation9 + $0x48] sm:$0xff]
        %v529 = vld [vmem:[#allocation10] sm:$0xff]
        %v530 = vld [vmem:[#allocation10 + $0x8] sm:$0xff]
        %v531 = vld [vmem:[#allocation10 + $0x10] sm:$0xff]
        %v532 = vld [vmem:[#allocation10 + $0x18] sm:$0xff]
        %v533 = vld [vmem:[#allocation10 + $0x20] sm:$0xff]
        %v534 = vld [vmem:[#allocation10 + $0x28] sm:$0xff]
        %v535 = vld [vmem:[#allocation10 + $0x30] sm:$0xff]
        %v536 = vld [vmem:[#allocation10 + $0x38] sm:$0xff]
        %v537 = vld [vmem:[#allocation10 + $0x40] sm:$0xff]
        %v538 = vld [vmem:[#allocation10 + $0x48] sm:$0xff]
        %v539 = vld [vmem:[#allocation10 + $0x50] sm:$0xff]
        %v540 = vld [vmem:[#allocation10 + $0x58] sm:$0xff]
        %v541 = vld [vmem:[#allocation10 + $0x60] sm:$0xff]
        %v542 = vld [vmem:[#allocation10 + $0x68] sm:$0xff]
        %v543 = vld [vmem:[#allocation10 + $0x70] sm:$0xff]
        %v544 = vld [vmem:[#allocation10 + $0x78] sm:$0xff]
        %v545 = vld [vmem:[#allocation10 + $0x80] sm:$0xff]
        %v546 = vld [vmem:[#allocation10 + $0x88] sm:$0xff]
        %v547 = vld [vmem:[#allocation10 + $0x90] sm:$0xff]
        %v548 = vld [vmem:[#allocation10 + $0x98] sm:$0xff]
        %v549 = vld [vmem:[#allocation12] sm:$0xff]
        %v550 = vld [vmem:[#allocation12 + $0x8] sm:$0xff]
        %v551 = vld [vmem:[#allocation12 + $0x10] sm:$0xff]
        %v552 = vld [vmem:[#allocation12 + $0x18] sm:$0xff]
        %v553 = vld [vmem:[#allocation12 + $0x20] sm:$0xff]
        %v554 = vld [vmem:[#allocation12 + $0x28] sm:$0xff]
        %v555 = vld [vmem:[#allocation12 + $0x30] sm:$0xff]
        %v556 = vld [vmem:[#allocation12 + $0x38] sm:$0xff]
        %v557 = vld [vmem:[#allocation12 + $0x40] sm:$0xff]
        %v558 = vld [vmem:[#allocation12 + $0x48] sm:$0xff]
        %v559 = vld [vmem:[#allocation12 + $0x50] sm:$0xff]
        %v560 = vld [vmem:[#allocation12 + $0x58] sm:$0xff]
        %v561 = vld [vmem:[#allocation12 + $0x60] sm:$0xff]
        %v562 = vld [vmem:[#allocation12 + $0x68] sm:$0xff]
        %v563 = vld [vmem:[#allocation12 + $0x70] sm:$0xff]
        %v564 = vld [vmem:[#allocation12 + $0x78] sm:$0xff]
        %v565 = vld [vmem:[#allocation12 + $0x80] sm:$0xff]
        %v566 = vld [vmem:[#allocation12 + $0x88] sm:$0xff]
        %v567 = vld [vmem:[#allocation12 + $0x90] sm:$0xff]
        %v568 = vld [vmem:[#allocation12 + $0x98] sm:$0xff]
        %v569 = vld [vmem:[#allocation12 + $0xa0] sm:$0xff]
        %v570 = vld [vmem:[#allocation12 + $0xa8] sm:$0xff]
        %v571 = vld [vmem:[#allocation12 + $0xb0] sm:$0xff]
        %v572 = vld [vmem:[#allocation12 + $0xb8] sm:$0xff]
        %v573 = vld [vmem:[#allocation12 + $0xc0] sm:$0xff]
        %v574 = vld [vmem:[#allocation12 + $0xc8] sm:$0xff]
        %v575 = vld [vmem:[#allocation12 + $0xd0] sm:$0xff]
        %v576 = vld [vmem:[#allocation12 + $0xd8] sm:$0xff]
        %v577 = vld [vmem:[#allocation12 + $0xe0] sm:$0xff]
        %v578 = vld [vmem:[#allocation12 + $0xe8] sm:$0xff]
        %v579 = vld [vmem:[#allocation12 + $0xf0] sm:$0xff]
        %v580 = vld [vmem:[#allocation12 + $0xf8] sm:$0xff]
        %v581 = vld [vmem:[#allocation13] sm:$0xff]
        %v582 = vld [vmem:[#allocation13 + $0x8] sm:$0xff]
        %v583 = vlaneseq
        %v584 = vshrl.u32 %v583, 7
        %v585 = vsub.s32 0, %v584
        %v586 = vrot.slane %v581, %v585
        %v587 = vlaneseq
        %v588 = vshrl.u32 %v587, 7
        %v589 = vsub.s32 0, %v588
        %v590 = vrot.slane %v582, %v589
        %vm591 = vcmask 654336
        %v593 = vsel %vm591, %v467, 0
        %v596 = vsel %vm591, %v468, 0
        %598 = vmatprep.subr.mxu0 %v500
        %599 = vmatpush1.msra.mxu0 %v499
        %600 = vmatprep.subr.mxu0 %v502
        %601 = vmatpush1.msra.mxu0 %v501
        %602 = vmatprep.subr.mxu0 %v504
        %603 = vmatpush1.msra.mxu0 %v503
        %604 = vmatprep.subr.mxu0 %v506
        %605 = vmatpush1.msra.mxu0 %v505
        %606 = vmatprep.subr.mxu0 %v508
        %607 = vmatpush1.msra.mxu0 %v507
        %608 = vmatprep.subr.mxu0 %v510
        %609 = vmatpush1.msra.mxu0 %v509
        %610 = vmatprep.subr.mxu0 %v512
        %611 = vmatpush1.msra.mxu0 %v511
        %612 = vmatprep.subr.mxu0 %v514
        %613 = vmatpush1.msra.mxu0 %v513
        %614 = vmatprep.subr.mxu0 %v516
        %615 = vmatpush1.msra.mxu0 %v515
        %616 = vmatprep.subr.mxu0 %v518
        %617 = vmatpush1.msra.mxu0 %v517
        %618 = vmatprep.subr.mxu0 0.0
        %619 = vmatpush1.msra.mxu0 0.0
        %620 = vmatprep.subr.mxu0 0.0
        %621 = vmatpush1.msra.mxu0 0.0
        %622 = vmatprep.subr.mxu0 0.0
        %623 = vmatpush1.msra.mxu0 0.0
        %624 = vmatprep.subr.mxu0 0.0
        %625 = vmatpush1.msra.mxu0 0.0
        %626 = vmatprep.subr.mxu0 0.0
        %627 = vmatpush1.msra.mxu0 0.0
        %628 = vmatprep.subr.mxu0 0.0
        %629 = vmatpush1.msra.mxu0 0.0
        %630 = vmatprep.subr.mxu0 0.0
        %631 = vmatpush1.msra.mxu0 0.0
        %632 = vmatprep.subr.mxu0 0.0
        %633 = vmatpush1.msra.mxu0 0.0
        %634 = vmatprep.subr.mxu0 0.0
        %635 = vmatpush1.msra.mxu0 0.0
        %636 = vmatprep.subr.mxu0 0.0
        %637 = vmatpush1.msra.mxu0 0.0
        %638 = vmatprep.subr.mxu0 0.0
        %639 = vmatpush1.msra.mxu0 0.0
        %640 = vmatprep.subr.mxu0 0.0
        %641 = vmatpush1.msra.mxu0 0.0
        %642 = vmatprep.subr.mxu0 0.0
        %643 = vmatpush1.msra.mxu0 0.0
        %644 = vmatprep.subr.mxu0 0.0
        %645 = vmatpush1.msra.mxu0 0.0
        %646 = vmatprep.subr.mxu0 0.0
        %647 = vmatpush1.msra.mxu0 0.0
        %648 = vmatprep.subr.mxu0 0.0
        %649 = vmatpush1.msra.mxu0 0.0
        %650 = vmatprep.subr.mxu0 0.0
        %651 = vmatpush1.msra.mxu0 0.0
        %652 = vmatprep.subr.mxu0 0.0
        %653 = vmatpush1.msra.mxu0 0.0
        %654 = vmatprep.subr.mxu0 0.0
        %655 = vmatpush1.msra.mxu0 0.0
        %656 = vmatprep.subr.mxu0 0.0
        %657 = vmatpush1.msra.mxu0 0.0
        %658 = vmatprep.subr.mxu0 0.0
        %659 = vmatpush1.msra.mxu0 0.0
        %660 = vmatprep.subr.mxu0 0.0
        %661 = vmatpush1.msra.mxu0 0.0
        %662 = vmatprep.mubr.f32.mxu0 0.0
        %663 = vmatmul.mubr.f32.gmra.mrb[0].mxu0 %v593
        %v664 = vpop.f32.mrb[0].mxu0
        %v665 = vadd.f32 %v586, %v664
        %v666 = vpop.f32.mrb[0].mxu0
        %v667 = vadd.f32 %v590, %v666
        %668 = vmatprep.mubr.f32.mxu0 0.0
        %669 = vmatmul.mubr.f32.gmra.mrb[0].mxu0 %v596
        %v670 = vpop.f32.mrb[0].mxu0
        %v671 = vadd.f32 %v586, %v670
        %v672 = vpop.f32.mrb[0].mxu0
        %v673 = vadd.f32 %v590, %v672
        %674 = vdwg.mxu0
        %v675 = vmul.f32 %v665, 0.2236068
        %v676 = vmul.f32 %v671, 0.2236068
        %679 = vrot.lane.b32.xlu0 %v665, 48
        %v680 = vpop.permute.xlu0 %679
        %681 = vrot.lane.b32.xlu0 %v671, 48
        %v682 = vpop.permute.xlu0 %681
        %vm683 = vcmask 162816
        %v685 = vsel %vm683, %v675, 0
        %v688 = vsel %vm683, %v676, 0
        %v690 = vsel %vm683, %v680, 0
        %v692 = vsel %vm683, %v682, 0
        %694 = vmatprep.subr.mxu0 0.0
        %695 = vmatpush1.xpose.msra.mxu0 %v690
        %696 = vmatprep.subr.mxu0 0.0
        %697 = vmatpush1.xpose.msra.mxu0 %v692
        %698 = vmatprep.subr.mxu0 0.0
        %699 = vmatpush1.xpose.msra.mxu0 0.0
        %700 = vmatprep.subr.mxu0 0.0
        %701 = vmatpush1.xpose.msra.mxu0 0.0
        %702 = vmatprep.subr.mxu0 0.0
        %703 = vmatpush1.xpose.msra.mxu0 0.0
        %704 = vmatprep.subr.mxu0 0.0
        %705 = vmatpush1.xpose.msra.mxu0 0.0
        %706 = vmatprep.subr.mxu0 0.0
        %707 = vmatpush1.xpose.msra.mxu0 0.0
        %708 = vmatprep.subr.mxu0 0.0
        %709 = vmatpush1.xpose.msra.mxu0 0.0
        %710 = vmatprep.subr.mxu0 0.0
        %711 = vmatpush1.xpose.msra.mxu0 0.0
        %712 = vmatprep.subr.mxu0 0.0
        %713 = vmatpush1.xpose.msra.mxu0 0.0
        %714 = vmatprep.subr.mxu0 0.0
        %715 = vmatpush1.xpose.msra.mxu0 0.0
        %716 = vmatprep.subr.mxu0 0.0
        %717 = vmatpush1.xpose.msra.mxu0 0.0
        %718 = vmatprep.subr.mxu0 0.0
        %719 = vmatpush1.xpose.msra.mxu0 0.0
        %720 = vmatprep.subr.mxu0 0.0
        %721 = vmatpush1.xpose.msra.mxu0 0.0
        %722 = vmatprep.subr.mxu0 0.0
        %723 = vmatpush1.xpose.msra.mxu0 0.0
        %724 = vmatprep.subr.mxu0 0.0
        %725 = vmatpush1.xpose.msra.mxu0 0.0
        %726 = vmatprep.subr.mxu0 0.0
        %727 = vmatpush1.xpose.msra.mxu0 0.0
        %728 = vmatprep.subr.mxu0 0.0
        %729 = vmatpush1.xpose.msra.mxu0 0.0
        %730 = vmatprep.subr.mxu0 0.0
        %731 = vmatpush1.xpose.msra.mxu0 0.0
        %732 = vmatprep.subr.mxu0 0.0
        %733 = vmatpush1.xpose.msra.mxu0 0.0
        %734 = vmatprep.subr.mxu0 0.0
        %735 = vmatpush1.xpose.msra.mxu0 0.0
        %736 = vmatprep.subr.mxu0 0.0
        %737 = vmatpush1.xpose.msra.mxu0 0.0
        %738 = vmatprep.subr.mxu0 0.0
        %739 = vmatpush1.xpose.msra.mxu0 0.0
        %740 = vmatprep.subr.mxu0 0.0
        %741 = vmatpush1.xpose.msra.mxu0 0.0
        %742 = vmatprep.subr.mxu0 0.0
        %743 = vmatpush1.xpose.msra.mxu0 0.0
        %744 = vmatprep.subr.mxu0 0.0
        %745 = vmatpush1.xpose.msra.mxu0 0.0
        %746 = vmatprep.subr.mxu0 0.0
        %747 = vmatpush1.xpose.msra.mxu0 0.0
        %748 = vmatprep.subr.mxu0 0.0
        %749 = vmatpush1.xpose.msra.mxu0 0.0
        %750 = vmatprep.subr.mxu0 0.0
        %751 = vmatpush1.xpose.msra.mxu0 0.0
        %752 = vmatprep.subr.mxu0 0.0
        %753 = vmatpush1.xpose.msra.mxu0 0.0
        %754 = vmatprep.subr.mxu0 0.0
        %755 = vmatpush1.xpose.msra.mxu0 0.0
        %756 = vmatprep.subr.mxu0 0.0
        %757 = vmatpush1.xpose.msra.mxu0 0.0
        %758 = vmatprep.mubr.f32.mxu0 0.0
        %759 = vmatmul.mubr.f32.gmra.mrb[0].mxu0 %v685
        %v760 = vpop.f32.mrb[0].mxu0
        %v761 = vadd.f32 0.0, %v760
        %v762 = vpop.f32.mrb[0].mxu0
        %763 = vmatprep.mubr.f32.mxu0 0.0
        %764 = vmatmul.mubr.f32.gmra.mrb[0].mxu0 %v688
        %v765 = vpop.f32.mrb[0].mxu0
        %v766 = vadd.f32 0.0, %v765
        %v767 = vpop.f32.mrb[0].mxu0
        %768 = vdwg.mxu0
        %vm769 = vcmask 130048
        %v770 = vsel %vm769, %v761, -inf
        %771 = vmax.xlane.f32.xlu0 %v770
        %v772 = vpop.xlane.xlu0 %771
        %v773 = vsel %vm769, %v766, -inf
        %774 = vmax.xlane.f32.xlu0 %v773
        %v775 = vpop.xlane.xlu0 %774
        %v776 = vsub.f32 %v761, %v772
        %v777 = vsub.f32 %v766, %v775
        %v778 = vmul.f32 %v776, 1.442695
        %v779 = vpow.pop %v778
        %v780 = vmul.f32 %v777, 1.442695
        %v781 = vpow.pop %v780
        %v782 = vsel %vm769, %v779, 0.0
        %783 = vadd.xlane.f32.xlu0 %v782
        %v784 = vpop.xlane.xlu0 %783
        %v785 = vsel %vm769, %v781, 0.0
        %786 = vadd.xlane.f32.xlu0 %v785
        %v787 = vpop.xlane.xlu0 %786
        %v788 = vrcp.pop %v784
        %v789 = vmul.f32 %v779, %v788
        %v790 = vrcp.pop %v787
        %v791 = vmul.f32 %v781, %v790
        %794 = vrot.lane.b32.xlu0 %v667, 96
        %v795 = vpop.permute.xlu0 %794
        %796 = vrot.lane.b32.xlu0 %v673, 96
        %v797 = vpop.permute.xlu0 %796
        %v801 = vsel %vm769, %v789, 0
        %v804 = vsel %vm769, %v791, 0
        %806 = vmatprep.subr.mxu0 0.0
        %807 = vmatpush1.msra.mxu0 %v795
        %808 = vmatprep.subr.mxu0 0.0
        %809 = vmatpush1.msra.mxu0 %v797
        %810 = vmatprep.subr.mxu0 0.0
        %811 = vmatpush1.msra.mxu0 0.0
        %812 = vmatprep.subr.mxu0 0.0
        %813 = vmatpush1.msra.mxu0 0.0
        %814 = vmatprep.subr.mxu0 0.0
        %815 = vmatpush1.msra.mxu0 0.0
        %816 = vmatprep.subr.mxu0 0.0
        %817 = vmatpush1.msra.mxu0 0.0
        %818 = vmatprep.subr.mxu0 0.0
        %819 = vmatpush1.msra.mxu0 0.0
        %820 = vmatprep.subr.mxu0 0.0
        %821 = vmatpush1.msra.mxu0 0.0
        %822 = vmatprep.subr.mxu0 0.0
        %823 = vmatpush1.msra.mxu0 0.0
        %824 = vmatprep.subr.mxu0 0.0
        %825 = vmatpush1.msra.mxu0 0.0
        %826 = vmatprep.subr.mxu0 0.0
        %827 = vmatpush1.msra.mxu0 0.0
        %828 = vmatprep.subr.mxu0 0.0
        %829 = vmatpush1.msra.mxu0 0.0
        %830 = vmatprep.subr.mxu0 0.0
        %831 = vmatpush1.msra.mxu0 0.0
        %832 = vmatprep.subr.mxu0 0.0
        %833 = vmatpush1.msra.mxu0 0.0
        %834 = vmatprep.subr.mxu0 0.0
        %835 = vmatpush1.msra.mxu0 0.0
        %836 = vmatprep.subr.mxu0 0.0
        %837 = vmatpush1.msra.mxu0 0.0
        %838 = vmatprep.subr.mxu0 0.0
        %839 = vmatpush1.msra.mxu0 0.0
        %840 = vmatprep.subr.mxu0 0.0
        %841 = vmatpush1.msra.mxu0 0.0
        %842 = vmatprep.subr.mxu0 0.0
        %843 = vmatpush1.msra.mxu0 0.0
        %844 = vmatprep.subr.mxu0 0.0
        %845 = vmatpush1.msra.mxu0 0.0
        %846 = vmatprep.subr.mxu0 0.0
        %847 = vmatpush1.msra.mxu0 0.0
        %848 = vmatprep.subr.mxu0 0.0
        %849 = vmatpush1.msra.mxu0 0.0
        %850 = vmatprep.subr.mxu0 0.0
        %851 = vmatpush1.msra.mxu0 0.0
        %852 = vmatprep.subr.mxu0 0.0
        %853 = vmatpush1.msra.mxu0 0.0
        %854 = vmatprep.subr.mxu0 0.0
        %855 = vmatpush1.msra.mxu0 0.0
        %856 = vmatprep.subr.mxu0 0.0
        %857 = vmatpush1.msra.mxu0 0.0
        %858 = vmatprep.subr.mxu0 0.0
        %859 = vmatpush1.msra.mxu0 0.0
        %860 = vmatprep.subr.mxu0 0.0
        %861 = vmatpush1.msra.mxu0 0.0
        %862 = vmatprep.subr.mxu0 0.0
        %863 = vmatpush1.msra.mxu0 0.0
        %864 = vmatprep.subr.mxu0 0.0
        %865 = vmatpush1.msra.mxu0 0.0
        %866 = vmatprep.subr.mxu0 0.0
        %867 = vmatpush1.msra.mxu0 0.0
        %868 = vmatprep.subr.mxu0 0.0
        %869 = vmatpush1.msra.mxu0 0.0
        %870 = vmatprep.mubr.f32.mxu0 0.0
        %871 = vmatmul.mubr.f32.gmra.mrb[0].mxu0 %v801
        %v872 = vpop.f32.mrb[0].mxu0
        %v873 = vadd.f32 0.0, %v872
        %v874 = vpop.f32.mrb[0].mxu0
        %875 = vmatprep.mubr.f32.mxu0 0.0
        %876 = vmatmul.mubr.f32.gmra.mrb[0].mxu0 %v804
        %v877 = vpop.f32.mrb[0].mxu0
        %v878 = vadd.f32 0.0, %v877
        %v879 = vpop.f32.mrb[0].mxu0
        %880 = vdwg.mxu0
        %881 = vrot.lane.b32.xlu0 %v675, 108
        %v882 = vpop.permute.xlu0 %881
        %883 = vrot.lane.b32.xlu0 %v676, 108
        %v884 = vpop.permute.xlu0 %883
        %885 = vrot.lane.b32.xlu0 %v665, 28
        %v886 = vpop.permute.xlu0 %885
        %887 = vrot.lane.b32.xlu0 %v671, 28
        %v888 = vpop.permute.xlu0 %887
        %v889 = vsel %vm683, %v882, 0
        %v891 = vsel %vm683, %v884, 0
        %v893 = vsel %vm683, %v886, 0
        %v895 = vsel %vm683, %v888, 0
        %897 = vmatprep.subr.mxu0 0.0
        %898 = vmatpush1.xpose.msra.mxu0 %v893
        %899 = vmatprep.subr.mxu0 0.0
        %900 = vmatpush1.xpose.msra.mxu0 %v895
        %901 = vmatprep.subr.mxu0 0.0
        %902 = vmatpush1.xpose.msra.mxu0 0.0
        %903 = vmatprep.subr.mxu0 0.0
        %904 = vmatpush1.xpose.msra.mxu0 0.0
        %905 = vmatprep.subr.mxu0 0.0
        %906 = vmatpush1.xpose.msra.mxu0 0.0
        %907 = vmatprep.subr.mxu0 0.0
        %908 = vmatpush1.xpose.msra.mxu0 0.0
        %909 = vmatprep.subr.mxu0 0.0
        %910 = vmatpush1.xpose.msra.mxu0 0.0
        %911 = vmatprep.subr.mxu0 0.0
        %912 = vmatpush1.xpose.msra.mxu0 0.0
        %913 = vmatprep.subr.mxu0 0.0
        %914 = vmatpush1.xpose.msra.mxu0 0.0
        %915 = vmatprep.subr.mxu0 0.0
        %916 = vmatpush1.xpose.msra.mxu0 0.0
        %917 = vmatprep.subr.mxu0 0.0
        %918 = vmatpush1.xpose.msra.mxu0 0.0
        %919 = vmatprep.subr.mxu0 0.0
        %920 = vmatpush1.xpose.msra.mxu0 0.0
        %921 = vmatprep.subr.mxu0 0.0
        %922 = vmatpush1.xpose.msra.mxu0 0.0
        %923 = vmatprep.subr.mxu0 0.0
        %924 = vmatpush1.xpose.msra.mxu0 0.0
        %925 = vmatprep.subr.mxu0 0.0
        %926 = vmatpush1.xpose.msra.mxu0 0.0
        %927 = vmatprep.subr.mxu0 0.0
        %928 = vmatpush1.xpose.msra.mxu0 0.0
        %929 = vmatprep.subr.mxu0 0.0
        %930 = vmatpush1.xpose.msra.mxu0 0.0
        %931 = vmatprep.subr.mxu0 0.0
        %932 = vmatpush1.xpose.msra.mxu0 0.0
        %933 = vmatprep.subr.mxu0 0.0
        %934 = vmatpush1.xpose.msra.mxu0 0.0
        %935 = vmatprep.subr.mxu0 0.0
        %936 = vmatpush1.xpose.msra.mxu0 0.0
        %937 = vmatprep.subr.mxu0 0.0
        %938 = vmatpush1.xpose.msra.mxu0 0.0
        %939 = vmatprep.subr.mxu0 0.0
        %940 = vmatpush1.xpose.msra.mxu0 0.0
        %941 = vmatprep.subr.mxu0 0.0
        %942 = vmatpush1.xpose.msra.mxu0 0.0
        %943 = vmatprep.subr.mxu0 0.0
        %944 = vmatpush1.xpose.msra.mxu0 0.0
        %945 = vmatprep.subr.mxu0 0.0
        %946 = vmatpush1.xpose.msra.mxu0 0.0
        %947 = vmatprep.subr.mxu0 0.0
        %948 = vmatpush1.xpose.msra.mxu0 0.0
        %949 = vmatprep.subr.mxu0 0.0
        %950 = vmatpush1.xpose.msra.mxu0 0.0
        %951 = vmatprep.subr.mxu0 0.0
        %952 = vmatpush1.xpose.msra.mxu0 0.0
        %953 = vmatprep.subr.mxu0 0.0
        %954 = vmatpush1.xpose.msra.mxu0 0.0
        %955 = vmatprep.subr.mxu0 0.0
        %956 = vmatpush1.xpose.msra.mxu0 0.0
        %957 = vmatprep.subr.mxu0 0.0
        %958 = vmatpush1.xpose.msra.mxu0 0.0
        %959 = vmatprep.subr.mxu0 0.0
        %960 = vmatpush1.xpose.msra.mxu0 0.0
        %961 = vmatprep.mubr.f32.mxu0 0.0
        %962 = vmatmul.mubr.f32.gmra.mrb[0].mxu0 %v889
        %v963 = vpop.f32.mrb[0].mxu0
        %v964 = vadd.f32 0.0, %v963
        %v965 = vpop.f32.mrb[0].mxu0
        %966 = vmatprep.mubr.f32.mxu0 0.0
        %967 = vmatmul.mubr.f32.gmra.mrb[0].mxu0 %v891
        %v968 = vpop.f32.mrb[0].mxu0
        %v969 = vadd.f32 0.0, %v968
        %v970 = vpop.f32.mrb[0].mxu0
        %971 = vdwg.mxu0
        %v972 = vsel %vm769, %v964, -inf
        %973 = vmax.xlane.f32.xlu0 %v972
        %v974 = vpop.xlane.xlu0 %973
        %v975 = vsel %vm769, %v969, -inf
        %976 = vmax.xlane.f32.xlu0 %v975
        %v977 = vpop.xlane.xlu0 %976
        %v978 = vsub.f32 %v964, %v974
        %v979 = vsub.f32 %v969, %v977
        %v980 = vmul.f32 %v978, 1.442695
        %v981 = vpow.pop %v980
        %v982 = vmul.f32 %v979, 1.442695
        %v983 = vpow.pop %v982
        %v984 = vsel %vm769, %v981, 0.0
        %985 = vadd.xlane.f32.xlu0 %v984
        %v986 = vpop.xlane.xlu0 %985
        %v987 = vsel %vm769, %v983, 0.0
        %988 = vadd.xlane.f32.xlu0 %v987
        %v989 = vpop.xlane.xlu0 %988
        %v990 = vrcp.pop %v986
        %v991 = vmul.f32 %v981, %v990
        %v992 = vrcp.pop %v989
        %v993 = vmul.f32 %v983, %v992
        %994 = vrot.lane.b32.xlu0 %v667, 76
        %v995 = vpop.permute.xlu0 %994
        %996 = vrot.lane.b32.xlu0 %v673, 76
        %v997 = vpop.permute.xlu0 %996
        %v1001 = vsel %vm769, %v991, 0
        %v1004 = vsel %vm769, %v993, 0
        %1006 = vmatprep.subr.mxu0 0.0
        %1007 = vmatpush1.msra.mxu0 %v995
        %1008 = vmatprep.subr.mxu0 0.0
        %1009 = vmatpush1.msra.mxu0 %v997
        %1010 = vmatprep.subr.mxu0 0.0
        %1011 = vmatpush1.msra.mxu0 0.0
        %1012 = vmatprep.subr.mxu0 0.0
        %1013 = vmatpush1.msra.mxu0 0.0
        %1014 = vmatprep.subr.mxu0 0.0
        %1015 = vmatpush1.msra.mxu0 0.0
        %1016 = vmatprep.subr.mxu0 0.0
        %1017 = vmatpush1.msra.mxu0 0.0
        %1018 = vmatprep.subr.mxu0 0.0
        %1019 = vmatpush1.msra.mxu0 0.0
        %1020 = vmatprep.subr.mxu0 0.0
        %1021 = vmatpush1.msra.mxu0 0.0
        %1022 = vmatprep.subr.mxu0 0.0
        %1023 = vmatpush1.msra.mxu0 0.0
        %1024 = vmatprep.subr.mxu0 0.0
        %1025 = vmatpush1.msra.mxu0 0.0
        %1026 = vmatprep.subr.mxu0 0.0
        %1027 = vmatpush1.msra.mxu0 0.0
        %1028 = vmatprep.subr.mxu0 0.0
        %1029 = vmatpush1.msra.mxu0 0.0
        %1030 = vmatprep.subr.mxu0 0.0
        %1031 = vmatpush1.msra.mxu0 0.0
        %1032 = vmatprep.subr.mxu0 0.0
        %1033 = vmatpush1.msra.mxu0 0.0
        %1034 = vmatprep.subr.mxu0 0.0
        %1035 = vmatpush1.msra.mxu0 0.0
        %1036 = vmatprep.subr.mxu0 0.0
        %1037 = vmatpush1.msra.mxu0 0.0
        %1038 = vmatprep.subr.mxu0 0.0
        %1039 = vmatpush1.msra.mxu0 0.0
        %1040 = vmatprep.subr.mxu0 0.0
        %1041 = vmatpush1.msra.mxu0 0.0
        %1042 = vmatprep.subr.mxu0 0.0
        %1043 = vmatpush1.msra.mxu0 0.0
        %1044 = vmatprep.subr.mxu0 0.0
        %1045 = vmatpush1.msra.mxu0 0.0
        %1046 = vmatprep.subr.mxu0 0.0
        %1047 = vmatpush1.msra.mxu0 0.0
        %1048 = vmatprep.subr.mxu0 0.0
        %1049 = vmatpush1.msra.mxu0 0.0
        %1050 = vmatprep.subr.mxu0 0.0
        %1051 = vmatpush1.msra.mxu0 0.0
        %1052 = vmatprep.subr.mxu0 0.0
        %1053 = vmatpush1.msra.mxu0 0.0
        %1054 = vmatprep.subr.mxu0 0.0
        %1055 = vmatpush1.msra.mxu0 0.0
        %1056 = vmatprep.subr.mxu0 0.0
        %1057 = vmatpush1.msra.mxu0 0.0
        %1058 = vmatprep.subr.mxu0 0.0
        %1059 = vmatpush1.msra.mxu0 0.0
        %1060 = vmatprep.subr.mxu0 0.0
        %1061 = vmatpush1.msra.mxu0 0.0
        %1062 = vmatprep.subr.mxu0 0.0
        %1063 = vmatpush1.msra.mxu0 0.0
        %1064 = vmatprep.subr.mxu0 0.0
        %1065 = vmatpush1.msra.mxu0 0.0
        %1066 = vmatprep.subr.mxu0 0.0
        %1067 = vmatpush1.msra.mxu0 0.0
        %1068 = vmatprep.subr.mxu0 0.0
        %1069 = vmatpush1.msra.mxu0 0.0
        %1070 = vmatprep.mubr.f32.mxu0 0.0
        %1071 = vmatmul.mubr.f32.gmra.mrb[0].mxu0 %v1001
        %v1072 = vpop.f32.mrb[0].mxu0
        %v1073 = vadd.f32 0.0, %v1072
        %v1074 = vpop.f32.mrb[0].mxu0
        %1075 = vmatprep.mubr.f32.mxu0 0.0
        %1076 = vmatmul.mubr.f32.gmra.mrb[0].mxu0 %v1004
        %v1077 = vpop.f32.mrb[0].mxu0
        %v1078 = vadd.f32 0.0, %v1077
        %v1079 = vpop.f32.mrb[0].mxu0
        %1080 = vdwg.mxu0
        %1081 = vrot.lane.b32.xlu0 %v675, 88
        %v1082 = vpop.permute.xlu0 %1081
        %1083 = vrot.lane.b32.xlu0 %v676, 88
        %v1084 = vpop.permute.xlu0 %1083
        %1085 = vrot.lane.b32.xlu0 %v665, 8
        %v1086 = vpop.permute.xlu0 %1085
        %1087 = vrot.lane.b32.xlu0 %v667, 8
        %v1088 = vpop.permute.xlu0 %1087
        %1089 = vrot.lane.b32.xlu0 %v671, 8
        %v1090 = vpop.permute.xlu0 %1089
        %1091 = vrot.lane.b32.xlu0 %v673, 8
        %v1092 = vpop.permute.xlu0 %1091
        %vm1093 = vcmask 64512
        %v1094 = vsel %vm1093, %v1086, %v1088
        %v1095 = vsel %vm1093, %v1090, %v1092
        %v1096 = vsel %vm683, %v1082, 0
        %v1098 = vsel %vm683, %v1084, 0
        %v1100 = vsel %vm683, %v1094, 0
        %v1102 = vsel %vm683, %v1095, 0
        %1104 = vmatprep.subr.mxu0 0.0
        %1105 = vmatpush1.xpose.msra.mxu0 %v1100
        %1106 = vmatprep.subr.mxu0 0.0
        %1107 = vmatpush1.xpose.msra.mxu0 %v1102
        %1108 = vmatprep.subr.mxu0 0.0
        %1109 = vmatpush1.xpose.msra.mxu0 0.0
        %1110 = vmatprep.subr.mxu0 0.0
        %1111 = vmatpush1.xpose.msra.mxu0 0.0
        %1112 = vmatprep.subr.mxu0 0.0
        %1113 = vmatpush1.xpose.msra.mxu0 0.0
        %1114 = vmatprep.subr.mxu0 0.0
        %1115 = vmatpush1.xpose.msra.mxu0 0.0
        %1116 = vmatprep.subr.mxu0 0.0
        %1117 = vmatpush1.xpose.msra.mxu0 0.0
        %1118 = vmatprep.subr.mxu0 0.0
        %1119 = vmatpush1.xpose.msra.mxu0 0.0
        %1120 = vmatprep.subr.mxu0 0.0
        %1121 = vmatpush1.xpose.msra.mxu0 0.0
        %1122 = vmatprep.subr.mxu0 0.0
        %1123 = vmatpush1.xpose.msra.mxu0 0.0
        %1124 = vmatprep.subr.mxu0 0.0
        %1125 = vmatpush1.xpose.msra.mxu0 0.0
        %1126 = vmatprep.subr.mxu0 0.0
        %1127 = vmatpush1.xpose.msra.mxu0 0.0
        %1128 = vmatprep.subr.mxu0 0.0
        %1129 = vmatpush1.xpose.msra.mxu0 0.0
        %1130 = vmatprep.subr.mxu0 0.0
        %1131 = vmatpush1.xpose.msra.mxu0 0.0
        %1132 = vmatprep.subr.mxu0 0.0
        %1133 = vmatpush1.xpose.msra.mxu0 0.0
        %1134 = vmatprep.subr.mxu0 0.0
        %1135 = vmatpush1.xpose.msra.mxu0 0.0
        %1136 = vmatprep.subr.mxu0 0.0
        %1137 = vmatpush1.xpose.msra.mxu0 0.0
        %1138 = vmatprep.subr.mxu0 0.0
        %1139 = vmatpush1.xpose.msra.mxu0 0.0
        %1140 = vmatprep.subr.mxu0 0.0
        %1141 = vmatpush1.xpose.msra.mxu0 0.0
        %1142 = vmatprep.subr.mxu0 0.0
        %1143 = vmatpush1.xpose.msra.mxu0 0.0
        %1144 = vmatprep.subr.mxu0 0.0
        %1145 = vmatpush1.xpose.msra.mxu0 0.0
        %1146 = vmatprep.subr.mxu0 0.0
        %1147 = vmatpush1.xpose.msra.mxu0 0.0
        %1148 = vmatprep.subr.mxu0 0.0
        %1149 = vmatpush1.xpose.msra.mxu0 0.0
        %1150 = vmatprep.subr.mxu0 0.0
        %1151 = vmatpush1.xpose.msra.mxu0 0.0
        %1152 = vmatprep.subr.mxu0 0.0
        %1153 = vmatpush1.xpose.msra.mxu0 0.0
        %1154 = vmatprep.subr.mxu0 0.0
        %1155 = vmatpush1.xpose.msra.mxu0 0.0
        %1156 = vmatprep.subr.mxu0 0.0
        %1157 = vmatpush1.xpose.msra.mxu0 0.0
        %1158 = vmatprep.subr.mxu0 0.0
        %1159 = vmatpush1.xpose.msra.mxu0 0.0
        %1160 = vmatprep.subr.mxu0 0.0
        %1161 = vmatpush1.xpose.msra.mxu0 0.0
        %1162 = vmatprep.subr.mxu0 0.0
        %1163 = vmatpush1.xpose.msra.mxu0 0.0
        %1164 = vmatprep.subr.mxu0 0.0
        %1165 = vmatpush1.xpose.msra.mxu0 0.0
        %1166 = vmatprep.subr.mxu0 0.0
        %1167 = vmatpush1.xpose.msra.mxu0 0.0
        %1168 = vmatprep.mubr.f32.mxu0 0.0
        %1169 = vmatmul.mubr.f32.gmra.mrb[0].mxu0 %v1096
        %v1170 = vpop.f32.mrb[0].mxu0
        %v1171 = vadd.f32 0.0, %v1170
        %v1172 = vpop.f32.mrb[0].mxu0
        %1173 = vmatprep.mubr.f32.mxu0 0.0
        %1174 = vmatmul.mubr.f32.gmra.mrb[0].mxu0 %v1098
        %v1175 = vpop.f32.mrb[0].mxu0
        %v1176 = vadd.f32 0.0, %v1175
        %v1177 = vpop.f32.mrb[0].mxu0
        %1178 = vdwg.mxu0
        %v1179 = vsel %vm769, %v1171, -inf
        %1180 = vmax.xlane.f32.xlu0 %v1179
        %v1181 = vpop.xlane.xlu0 %1180
        %v1182 = vsel %vm769, %v1176, -inf
        %1183 = vmax.xlane.f32.xlu0 %v1182
        %v1184 = vpop.xlane.xlu0 %1183
        %v1185 = vsub.f32 %v1171, %v1181
        %v1186 = vsub.f32 %v1176, %v1184
        %v1187 = vmul.f32 %v1185, 1.442695
        %v1188 = vpow.pop %v1187
        %v1189 = vmul.f32 %v1186, 1.442695
        %v1190 = vpow.pop %v1189
        %v1191 = vsel %vm769, %v1188, 0.0
        %1192 = vadd.xlane.f32.xlu0 %v1191
        %v1193 = vpop.xlane.xlu0 %1192
        %v1194 = vsel %vm769, %v1190, 0.0
        %1195 = vadd.xlane.f32.xlu0 %v1194
        %v1196 = vpop.xlane.xlu0 %1195
        %v1197 = vrcp.pop %v1193
        %v1198 = vmul.f32 %v1188, %v1197
        %v1199 = vrcp.pop %v1196
        %v1200 = vmul.f32 %v1190, %v1199
        %1201 = vrot.lane.b32.xlu0 %v667, 56
        %v1202 = vpop.permute.xlu0 %1201
        %1203 = vrot.lane.b32.xlu0 %v673, 56
        %v1204 = vpop.permute.xlu0 %1203
        %v1208 = vsel %vm769, %v1198, 0
        %v1211 = vsel %vm769, %v1200, 0
        %1213 = vmatprep.subr.mxu0 0.0
        %1214 = vmatpush1.msra.mxu0 %v1202
        %1215 = vmatprep.subr.mxu0 0.0
        %1216 = vmatpush1.msra.mxu0 %v1204
        %1217 = vmatprep.subr.mxu0 0.0
        %1218 = vmatpush1.msra.mxu0 0.0
        %1219 = vmatprep.subr.mxu0 0.0
        %1220 = vmatpush1.msra.mxu0 0.0
        %1221 = vmatprep.subr.mxu0 0.0
        %1222 = vmatpush1.msra.mxu0 0.0
        %1223 = vmatprep.subr.mxu0 0.0
        %1224 = vmatpush1.msra.mxu0 0.0
        %1225 = vmatprep.subr.mxu0 0.0
        %1226 = vmatpush1.msra.mxu0 0.0
        %1227 = vmatprep.subr.mxu0 0.0
        %1228 = vmatpush1.msra.mxu0 0.0
        %1229 = vmatprep.subr.mxu0 0.0
        %1230 = vmatpush1.msra.mxu0 0.0
        %1231 = vmatprep.subr.mxu0 0.0
        %1232 = vmatpush1.msra.mxu0 0.0
        %1233 = vmatprep.subr.mxu0 0.0
        %1234 = vmatpush1.msra.mxu0 0.0
        %1235 = vmatprep.subr.mxu0 0.0
        %1236 = vmatpush1.msra.mxu0 0.0
        %1237 = vmatprep.subr.mxu0 0.0
        %1238 = vmatpush1.msra.mxu0 0.0
        %1239 = vmatprep.subr.mxu0 0.0
        %1240 = vmatpush1.msra.mxu0 0.0
        %1241 = vmatprep.subr.mxu0 0.0
        %1242 = vmatpush1.msra.mxu0 0.0
        %1243 = vmatprep.subr.mxu0 0.0
        %1244 = vmatpush1.msra.mxu0 0.0
        %1245 = vmatprep.subr.mxu0 0.0
        %1246 = vmatpush1.msra.mxu0 0.0
        %1247 = vmatprep.subr.mxu0 0.0
        %1248 = vmatpush1.msra.mxu0 0.0
        %1249 = vmatprep.subr.mxu0 0.0
        %1250 = vmatpush1.msra.mxu0 0.0
        %1251 = vmatprep.subr.mxu0 0.0
        %1252 = vmatpush1.msra.mxu0 0.0
        %1253 = vmatprep.subr.mxu0 0.0
        %1254 = vmatpush1.msra.mxu0 0.0
        %1255 = vmatprep.subr.mxu0 0.0
        %1256 = vmatpush1.msra.mxu0 0.0
        %1257 = vmatprep.subr.mxu0 0.0
        %1258 = vmatpush1.msra.mxu0 0.0
        %1259 = vmatprep.subr.mxu0 0.0
        %1260 = vmatpush1.msra.mxu0 0.0
        %1261 = vmatprep.subr.mxu0 0.0
        %1262 = vmatpush1.msra.mxu0 0.0
        %1263 = vmatprep.subr.mxu0 0.0
        %1264 = vmatpush1.msra.mxu0 0.0
        %1265 = vmatprep.subr.mxu0 0.0
        %1266 = vmatpush1.msra.mxu0 0.0
        %1267 = vmatprep.subr.mxu0 0.0
        %1268 = vmatpush1.msra.mxu0 0.0
        %1269 = vmatprep.subr.mxu0 0.0
        %1270 = vmatpush1.msra.mxu0 0.0
        %1271 = vmatprep.subr.mxu0 0.0
        %1272 = vmatpush1.msra.mxu0 0.0
        %1273 = vmatprep.subr.mxu0 0.0
        %1274 = vmatpush1.msra.mxu0 0.0
        %1275 = vmatprep.subr.mxu0 0.0
        %1276 = vmatpush1.msra.mxu0 0.0
        %1277 = vmatprep.mubr.f32.mxu0 0.0
        %1278 = vmatmul.mubr.f32.gmra.mrb[0].mxu0 %v1208
        %v1279 = vpop.f32.mrb[0].mxu0
        %v1280 = vadd.f32 0.0, %v1279
        %v1281 = vpop.f32.mrb[0].mxu0
        %1282 = vmatprep.mubr.f32.mxu0 0.0
        %1283 = vmatmul.mubr.f32.gmra.mrb[0].mxu0 %v1211
        %v1284 = vpop.f32.mrb[0].mxu0
        %v1285 = vadd.f32 0.0, %v1284
        %v1286 = vpop.f32.mrb[0].mxu0
        %1287 = vdwg.mxu0
        %1288 = vrot.lane.b32.xlu0 %v675, 68
        %v1289 = vpop.permute.xlu0 %1288
        %1290 = vrot.lane.b32.xlu0 %v676, 68
        %v1291 = vpop.permute.xlu0 %1290
        %1292 = vrot.lane.b32.xlu0 %v667, 116
        %v1293 = vpop.permute.xlu0 %1292
        %1294 = vrot.lane.b32.xlu0 %v673, 116
        %v1295 = vpop.permute.xlu0 %1294
        %v1296 = vsel %vm683, %v1289, 0
        %v1298 = vsel %vm683, %v1291, 0
        %v1300 = vsel %vm683, %v1293, 0
        %v1302 = vsel %vm683, %v1295, 0
        %1304 = vmatprep.subr.mxu0 0.0
        %1305 = vmatpush1.xpose.msra.mxu0 %v1300
        %1306 = vmatprep.subr.mxu0 0.0
        %1307 = vmatpush1.xpose.msra.mxu0 %v1302
        %1308 = vmatprep.subr.mxu0 0.0
        %1309 = vmatpush1.xpose.msra.mxu0 0.0
        %1310 = vmatprep.subr.mxu0 0.0
        %1311 = vmatpush1.xpose.msra.mxu0 0.0
        %1312 = vmatprep.subr.mxu0 0.0
        %1313 = vmatpush1.xpose.msra.mxu0 0.0
        %1314 = vmatprep.subr.mxu0 0.0
        %1315 = vmatpush1.xpose.msra.mxu0 0.0
        %1316 = vmatprep.subr.mxu0 0.0
        %1317 = vmatpush1.xpose.msra.mxu0 0.0
        %1318 = vmatprep.subr.mxu0 0.0
        %1319 = vmatpush1.xpose.msra.mxu0 0.0
        %1320 = vmatprep.subr.mxu0 0.0
        %1321 = vmatpush1.xpose.msra.mxu0 0.0
        %1322 = vmatprep.subr.mxu0 0.0
        %1323 = vmatpush1.xpose.msra.mxu0 0.0
        %1324 = vmatprep.subr.mxu0 0.0
        %1325 = vmatpush1.xpose.msra.mxu0 0.0
        %1326 = vmatprep.subr.mxu0 0.0
        %1327 = vmatpush1.xpose.msra.mxu0 0.0
        %1328 = vmatprep.subr.mxu0 0.0
        %1329 = vmatpush1.xpose.msra.mxu0 0.0
        %1330 = vmatprep.subr.mxu0 0.0
        %1331 = vmatpush1.xpose.msra.mxu0 0.0
        %1332 = vmatprep.subr.mxu0 0.0
        %1333 = vmatpush1.xpose.msra.mxu0 0.0
        %1334 = vmatprep.subr.mxu0 0.0
        %1335 = vmatpush1.xpose.msra.mxu0 0.0
        %1336 = vmatprep.subr.mxu0 0.0
        %1337 = vmatpush1.xpose.msra.mxu0 0.0
        %1338 = vmatprep.subr.mxu0 0.0
        %1339 = vmatpush1.xpose.msra.mxu0 0.0
        %1340 = vmatprep.subr.mxu0 0.0
        %1341 = vmatpush1.xpose.msra.mxu0 0.0
        %1342 = vmatprep.subr.mxu0 0.0
        %1343 = vmatpush1.xpose.msra.mxu0 0.0
        %1344 = vmatprep.subr.mxu0 0.0
        %1345 = vmatpush1.xpose.msra.mxu0 0.0
        %1346 = vmatprep.subr.mxu0 0.0
        %1347 = vmatpush1.xpose.msra.mxu0 0.0
        %1348 = vmatprep.subr.mxu0 0.0
        %1349 = vmatpush1.xpose.msra.mxu0 0.0
        %1350 = vmatprep.subr.mxu0 0.0
        %1351 = vmatpush1.xpose.msra.mxu0 0.0
        %1352 = vmatprep.subr.mxu0 0.0
        %1353 = vmatpush1.xpose.msra.mxu0 0.0
        %1354 = vmatprep.subr.mxu0 0.0
        %1355 = vmatpush1.xpose.msra.mxu0 0.0
        %1356 = vmatprep.subr.mxu0 0.0
        %1357 = vmatpush1.xpose.msra.mxu0 0.0
        %1358 = vmatprep.subr.mxu0 0.0
        %1359 = vmatpush1.xpose.msra.mxu0 0.0
        %1360 = vmatprep.subr.mxu0 0.0
        %1361 = vmatpush1.xpose.msra.mxu0 0.0
        %1362 = vmatprep.subr.mxu0 0.0
        %1363 = vmatpush1.xpose.msra.mxu0 0.0
        %1364 = vmatprep.subr.mxu0 0.0
        %1365 = vmatpush1.xpose.msra.mxu0 0.0
        %1366 = vmatprep.subr.mxu0 0.0
        %1367 = vmatpush1.xpose.msra.mxu0 0.0
        %1368 = vmatprep.mubr.f32.mxu0 0.0
        %1369 = vmatmul.mubr.f32.gmra.mrb[0].mxu0 %v1296
        %v1370 = vpop.f32.mrb[0].mxu0
        %v1371 = vadd.f32 0.0, %v1370
        %v1372 = vpop.f32.mrb[0].mxu0
        %1373 = vmatprep.mubr.f32.mxu0 0.0
        %1374 = vmatmul.mubr.f32.gmra.mrb[0].mxu0 %v1298
        %v1375 = vpop.f32.mrb[0].mxu0
        %v1376 = vadd.f32 0.0, %v1375
        %v1377 = vpop.f32.mrb[0].mxu0
        %1378 = vdwg.mxu0
        %v1379 = vsel %vm769, %v1371, -inf
        %1380 = vmax.xlane.f32.xlu0 %v1379
        %v1381 = vpop.xlane.xlu0 %1380
        %v1382 = vsel %vm769, %v1376, -inf
        %1383 = vmax.xlane.f32.xlu0 %v1382
        %v1384 = vpop.xlane.xlu0 %1383
        %v1385 = vsub.f32 %v1371, %v1381
        %v1386 = vsub.f32 %v1376, %v1384
        %v1387 = vmul.f32 %v1385, 1.442695
        %v1388 = vpow.pop %v1387
        %v1389 = vmul.f32 %v1386, 1.442695
        %v1390 = vpow.pop %v1389
        %v1391 = vsel %vm769, %v1388, 0.0
        %1392 = vadd.xlane.f32.xlu0 %v1391
        %v1393 = vpop.xlane.xlu0 %1392
        %v1394 = vsel %vm769, %v1390, 0.0
        %1395 = vadd.xlane.f32.xlu0 %v1394
        %v1396 = vpop.xlane.xlu0 %1395
        %v1397 = vrcp.pop %v1393
        %v1398 = vmul.f32 %v1388, %v1397
        %v1399 = vrcp.pop %v1396
        %v1400 = vmul.f32 %v1390, %v1399
        %1401 = vrot.lane.b32.xlu0 %v667, 36
        %v1402 = vpop.permute.xlu0 %1401
        %1403 = vrot.lane.b32.xlu0 %v673, 36
        %v1404 = vpop.permute.xlu0 %1403
        %v1408 = vsel %vm769, %v1398, 0
        %v1411 = vsel %vm769, %v1400, 0
        %1413 = vmatprep.subr.mxu0 0.0
        %1414 = vmatpush1.msra.mxu0 %v1402
        %1415 = vmatprep.subr.mxu0 0.0
        %1416 = vmatpush1.msra.mxu0 %v1404
        %1417 = vmatprep.subr.mxu0 0.0
        %1418 = vmatpush1.msra.mxu0 0.0
        %1419 = vmatprep.subr.mxu0 0.0
        %1420 = vmatpush1.msra.mxu0 0.0
        %1421 = vmatprep.subr.mxu0 0.0
        %1422 = vmatpush1.msra.mxu0 0.0
        %1423 = vmatprep.subr.mxu0 0.0
        %1424 = vmatpush1.msra.mxu0 0.0
        %1425 = vmatprep.subr.mxu0 0.0
        %1426 = vmatpush1.msra.mxu0 0.0
        %1427 = vmatprep.subr.mxu0 0.0
        %1428 = vmatpush1.msra.mxu0 0.0
        %1429 = vmatprep.subr.mxu0 0.0
        %1430 = vmatpush1.msra.mxu0 0.0
        %1431 = vmatprep.subr.mxu0 0.0
        %1432 = vmatpush1.msra.mxu0 0.0
        %1433 = vmatprep.subr.mxu0 0.0
        %1434 = vmatpush1.msra.mxu0 0.0
        %1435 = vmatprep.subr.mxu0 0.0
        %1436 = vmatpush1.msra.mxu0 0.0
        %1437 = vmatprep.subr.mxu0 0.0
        %1438 = vmatpush1.msra.mxu0 0.0
        %1439 = vmatprep.subr.mxu0 0.0
        %1440 = vmatpush1.msra.mxu0 0.0
        %1441 = vmatprep.subr.mxu0 0.0
        %1442 = vmatpush1.msra.mxu0 0.0
        %1443 = vmatprep.subr.mxu0 0.0
        %1444 = vmatpush1.msra.mxu0 0.0
        %1445 = vmatprep.subr.mxu0 0.0
        %1446 = vmatpush1.msra.mxu0 0.0
        %1447 = vmatprep.subr.mxu0 0.0
        %1448 = vmatpush1.msra.mxu0 0.0
        %1449 = vmatprep.subr.mxu0 0.0
        %1450 = vmatpush1.msra.mxu0 0.0
        %1451 = vmatprep.subr.mxu0 0.0
        %1452 = vmatpush1.msra.mxu0 0.0
        %1453 = vmatprep.subr.mxu0 0.0
        %1454 = vmatpush1.msra.mxu0 0.0
        %1455 = vmatprep.subr.mxu0 0.0
        %1456 = vmatpush1.msra.mxu0 0.0
        %1457 = vmatprep.subr.mxu0 0.0
        %1458 = vmatpush1.msra.mxu0 0.0
        %1459 = vmatprep.subr.mxu0 0.0
        %1460 = vmatpush1.msra.mxu0 0.0
        %1461 = vmatprep.subr.mxu0 0.0
        %1462 = vmatpush1.msra.mxu0 0.0
        %1463 = vmatprep.subr.mxu0 0.0
        %1464 = vmatpush1.msra.mxu0 0.0
        %1465 = vmatprep.subr.mxu0 0.0
        %1466 = vmatpush1.msra.mxu0 0.0
        %1467 = vmatprep.subr.mxu0 0.0
        %1468 = vmatpush1.msra.mxu0 0.0
        %1469 = vmatprep.subr.mxu0 0.0
        %1470 = vmatpush1.msra.mxu0 0.0
        %1471 = vmatprep.subr.mxu0 0.0
        %1472 = vmatpush1.msra.mxu0 0.0
        %1473 = vmatprep.subr.mxu0 0.0
        %1474 = vmatpush1.msra.mxu0 0.0
        %1475 = vmatprep.subr.mxu0 0.0
        %1476 = vmatpush1.msra.mxu0 0.0
        %1477 = vmatprep.mubr.f32.mxu0 0.0
        %1478 = vmatmul.mubr.f32.gmra.mrb[0].mxu0 %v1408
        %v1479 = vpop.f32.mrb[0].mxu0
        %v1480 = vadd.f32 0.0, %v1479
        %v1481 = vpop.f32.mrb[0].mxu0
        %1482 = vmatprep.mubr.f32.mxu0 0.0
        %1483 = vmatmul.mubr.f32.gmra.mrb[0].mxu0 %v1411
        %v1484 = vpop.f32.mrb[0].mxu0
        %v1485 = vadd.f32 0.0, %v1484
        %v1486 = vpop.f32.mrb[0].mxu0
        %1487 = vdwg.mxu0
        %1490 = vrot.lane.b32.xlu0 %v1073, 20
        %v1491 = vpop.permute.xlu0 %1490
        %1492 = vrot.lane.b32.xlu0 %v1078, 20
        %v1493 = vpop.permute.xlu0 %1492
        %1498 = vrot.lane.b32.xlu0 %v1280, 40
        %v1499 = vpop.permute.xlu0 %1498
        %1500 = vrot.lane.b32.xlu0 %v1285, 40
        %v1501 = vpop.permute.xlu0 %1500
        %1506 = vrot.lane.b32.xlu0 %v1480, 60
        %v1507 = vpop.permute.xlu0 %1506
        %1508 = vrot.lane.b32.xlu0 %v1485, 60
        %v1509 = vpop.permute.xlu0 %1508
        %v1512 = vsel %vm683, %v873, %v1491
        %v1513 = vsel %vm683, %v878, %v1493
        %vm1514 = vcmask 326656
        %v1515 = vsel %vm1514, %v1512, %v1499
        %v1516 = vsel %vm1514, %v1513, %v1501
        %vm1517 = vcmask 490496
        %v1518 = vsel %vm1517, %v1515, %v1507
        %v1519 = vsel %vm1517, %v1516, %v1509
        %v1520 = vlaneseq
        %v1521 = vshrl.u32 %v1520, 7
        %v1522 = vsub.s32 1, %v1521
        %v1523 = vrot.slane %v581, %v1522
        %v1525 = vsel %vm591, %v1518, 0
        %v1528 = vsel %vm591, %v1519, 0
        %1530 = vmatprep.subr.mxu0 0.0
        %1531 = vmatpush1.msra.mxu0 %v519
        %1532 = vmatprep.subr.mxu0 0.0
        %1533 = vmatpush1.msra.mxu0 %v520
        %1534 = vmatprep.subr.mxu0 0.0
        %1535 = vmatpush1.msra.mxu0 %v521
        %1536 = vmatprep.subr.mxu0 0.0
        %1537 = vmatpush1.msra.mxu0 %v522
        %1538 = vmatprep.subr.mxu0 0.0
        %1539 = vmatpush1.msra.mxu0 %v523
        %1540 = vmatprep.subr.mxu0 0.0
        %1541 = vmatpush1.msra.mxu0 %v524
        %1542 = vmatprep.subr.mxu0 0.0
        %1543 = vmatpush1.msra.mxu0 %v525
        %1544 = vmatprep.subr.mxu0 0.0
        %1545 = vmatpush1.msra.mxu0 %v526
        %1546 = vmatprep.subr.mxu0 0.0
        %1547 = vmatpush1.msra.mxu0 %v527
        %1548 = vmatprep.subr.mxu0 0.0
        %1549 = vmatpush1.msra.mxu0 %v528
        %1550 = vmatprep.subr.mxu0 0.0
        %1551 = vmatpush1.msra.mxu0 0.0
        %1552 = vmatprep.subr.mxu0 0.0
        %1553 = vmatpush1.msra.mxu0 0.0
        %1554 = vmatprep.subr.mxu0 0.0
        %1555 = vmatpush1.msra.mxu0 0.0
        %1556 = vmatprep.subr.mxu0 0.0
        %1557 = vmatpush1.msra.mxu0 0.0
        %1558 = vmatprep.subr.mxu0 0.0
        %1559 = vmatpush1.msra.mxu0 0.0
        %1560 = vmatprep.subr.mxu0 0.0
        %1561 = vmatpush1.msra.mxu0 0.0
        %1562 = vmatprep.subr.mxu0 0.0
        %1563 = vmatpush1.msra.mxu0 0.0
        %1564 = vmatprep.subr.mxu0 0.0
        %1565 = vmatpush1.msra.mxu0 0.0
        %1566 = vmatprep.subr.mxu0 0.0
        %1567 = vmatpush1.msra.mxu0 0.0
        %1568 = vmatprep.subr.mxu0 0.0
        %1569 = vmatpush1.msra.mxu0 0.0
        %1570 = vmatprep.subr.mxu0 0.0
        %1571 = vmatpush1.msra.mxu0 0.0
        %1572 = vmatprep.subr.mxu0 0.0
        %1573 = vmatpush1.msra.mxu0 0.0
        %1574 = vmatprep.subr.mxu0 0.0
        %1575 = vmatpush1.msra.mxu0 0.0
        %1576 = vmatprep.subr.mxu0 0.0
        %1577 = vmatpush1.msra.mxu0 0.0
        %1578 = vmatprep.subr.mxu0 0.0
        %1579 = vmatpush1.msra.mxu0 0.0
        %1580 = vmatprep.subr.mxu0 0.0
        %1581 = vmatpush1.msra.mxu0 0.0
        %1582 = vmatprep.subr.mxu0 0.0
        %1583 = vmatpush1.msra.mxu0 0.0
        %1584 = vmatprep.subr.mxu0 0.0
        %1585 = vmatpush1.msra.mxu0 0.0
        %1586 = vmatprep.subr.mxu0 0.0
        %1587 = vmatpush1.msra.mxu0 0.0
        %1588 = vmatprep.subr.mxu0 0.0
        %1589 = vmatpush1.msra.mxu0 0.0
        %1590 = vmatprep.subr.mxu0 0.0
        %1591 = vmatpush1.msra.mxu0 0.0
        %1592 = vmatprep.subr.mxu0 0.0
        %1593 = vmatpush1.msra.mxu0 0.0
        %1594 = vmatprep.mubr.f32.mxu0 0.0
        %1595 = vmatmul.mubr.f32.gmra.mrb[0].mxu0 %v1525
        %v1596 = vpop.f32.mrb[0].mxu0
        %v1597 = vadd.f32 %v1523, %v1596
        %v1598 = vpop.f32.mrb[0].mxu0
        %1599 = vmatprep.mubr.f32.mxu0 0.0
        %1600 = vmatmul.mubr.f32.gmra.mrb[0].mxu0 %v1528
        %v1601 = vpop.f32.mrb[0].mxu0
        %v1602 = vadd.f32 %v1523, %v1601
        %v1603 = vpop.f32.mrb[0].mxu0
        %1604 = vdwg.mxu0
        %v1605 = vadd.f32 %v467, %v1597
        %v1606 = vadd.f32 %v468, %v1602
        %v1607 = vsel %vm591, %v1605, 0.0
        %1608 = vadd.xlane.f32.xlu0 %v1607
        %v1609 = vpop.xlane.xlu0 %1608
        %v1610 = vsel %vm591, %v1606, 0.0
        %1611 = vadd.xlane.f32.xlu0 %v1610
        %v1612 = vpop.xlane.xlu0 %1611
        %v1613 = vrcp.pop 80.0
        %v1614 = vmul.f32 %v1609, %v1613
        %v1615 = vmul.f32 %v1612, %v1613
        %v1616 = vsub.f32 %v1605, %v1614
        %v1617 = vsub.f32 %v1606, %v1615
        %v1618 = vmul.f32 %v1616, %v1616
        %v1619 = vmul.f32 %v1617, %v1617
        %v1620 = vsel %vm591, %v1618, 0.0
        %1621 = vadd.xlane.f32.xlu0 %v1620
        %v1622 = vpop.xlane.xlu0 %1621
        %v1623 = vsel %vm591, %v1619, 0.0
        %1624 = vadd.xlane.f32.xlu0 %v1623
        %v1625 = vpop.xlane.xlu0 %1624
        %v1626 = vmul.f32 %v1622, %v1613
        %v1627 = vmul.f32 %v1625, %v1613
        %v1628 = vadd.f32 %v1626, 1e-05
        %v1629 = vadd.f32 %v1627, 1e-05
        %v1630 = vrsqrt.pop %v1628
        %v1631 = vrsqrt.pop %v1629
        %v1632 = vmul.f32 %v1616, %v1630
        %v1633 = vmul.f32 %v1617, %v1631
        %v1634 = vlaneseq
        %v1635 = vshrl.u32 %v1634, 7
        %v1636 = vsub.s32 2, %v1635
        %v1637 = vrot.slane %v581, %v1636
        %v1638 = vmul.f32 %v1632, %v1637
        %v1639 = vmul.f32 %v1633, %v1637
        %v1640 = vlaneseq
        %v1641 = vshrl.u32 %v1640, 7
        %v1642 = vsub.s32 3, %v1641
        %v1643 = vrot.slane %v581, %v1642
        %v1644 = vadd.f32 %v1638, %v1643
        %v1645 = vadd.f32 %v1639, %v1643
        %v1646 = vlaneseq
        %v1647 = vshrl.u32 %v1646, 7
        %v1648 = vsub.s32 4, %v1647
        %v1649 = vrot.slane %v581, %v1648
        %v1650 = vlaneseq
        %v1651 = vshrl.u32 %v1650, 7
        %v1652 = vsub.s32 4, %v1651
        %v1653 = vrot.slane %v582, %v1652
        %v1655 = vsel %vm591, %v1644, 0
        %v1658 = vsel %vm591, %v1645, 0
        %1660 = vmatprep.subr.mxu0 %v530
        %1661 = vmatpush1.msra.mxu0 %v529
        %1662 = vmatprep.subr.mxu0 %v532
        %1663 = vmatpush1.msra.mxu0 %v531
        %1664 = vmatprep.subr.mxu0 %v534
        %1665 = vmatpush1.msra.mxu0 %v533
        %1666 = vmatprep.subr.mxu0 %v536
        %1667 = vmatpush1.msra.mxu0 %v535
        %1668 = vmatprep.subr.mxu0 %v538
        %1669 = vmatpush1.msra.mxu0 %v537
        %1670 = vmatprep.subr.mxu0 %v540
        %1671 = vmatpush1.msra.mxu0 %v539
        %1672 = vmatprep.subr.mxu0 %v542
        %1673 = vmatpush1.msra.mxu0 %v541
        %1674 = vmatprep.subr.mxu0 %v544
        %1675 = vmatpush1.msra.mxu0 %v543
        %1676 = vmatprep.subr.mxu0 %v546
        %1677 = vmatpush1.msra.mxu0 %v545
        %1678 = vmatprep.subr.mxu0 %v548
        %1679 = vmatpush1.msra.mxu0 %v547
        %1680 = vmatprep.subr.mxu0 0.0
        %1681 = vmatpush1.msra.mxu0 0.0
        %1682 = vmatprep.subr.mxu0 0.0
        %1683 = vmatpush1.msra.mxu0 0.0
        %1684 = vmatprep.subr.mxu0 0.0
        %1685 = vmatpush1.msra.mxu0 0.0
        %1686 = vmatprep.subr.mxu0 0.0
        %1687 = vmatpush1.msra.mxu0 0.0
        %1688 = vmatprep.subr.mxu0 0.0
        %1689 = vmatpush1.msra.mxu0 0.0
        %1690 = vmatprep.subr.mxu0 0.0
        %1691 = vmatpush1.msra.mxu0 0.0
        %1692 = vmatprep.subr.mxu0 0.0
        %1693 = vmatpush1.msra.mxu0 0.0
        %1694 = vmatprep.subr.mxu0 0.0
        %1695 = vmatpush1.msra.mxu0 0.0
        %1696 = vmatprep.subr.mxu0 0.0
        %1697 = vmatpush1.msra.mxu0 0.0
        %1698 = vmatprep.subr.mxu0 0.0
        %1699 = vmatpush1.msra.mxu0 0.0
        %1700 = vmatprep.subr.mxu0 0.0
        %1701 = vmatpush1.msra.mxu0 0.0
        %1702 = vmatprep.subr.mxu0 0.0
        %1703 = vmatpush1.msra.mxu0 0.0
        %1704 = vmatprep.subr.mxu0 0.0
        %1705 = vmatpush1.msra.mxu0 0.0
        %1706 = vmatprep.subr.mxu0 0.0
        %1707 = vmatpush1.msra.mxu0 0.0
        %1708 = vmatprep.subr.mxu0 0.0
        %1709 = vmatpush1.msra.mxu0 0.0
        %1710 = vmatprep.subr.mxu0 0.0
        %1711 = vmatpush1.msra.mxu0 0.0
        %1712 = vmatprep.subr.mxu0 0.0
        %1713 = vmatpush1.msra.mxu0 0.0
        %1714 = vmatprep.subr.mxu0 0.0
        %1715 = vmatpush1.msra.mxu0 0.0
        %1716 = vmatprep.subr.mxu0 0.0
        %1717 = vmatpush1.msra.mxu0 0.0
        %1718 = vmatprep.subr.mxu0 0.0
        %1719 = vmatpush1.msra.mxu0 0.0
        %1720 = vmatprep.subr.mxu0 0.0
        %1721 = vmatpush1.msra.mxu0 0.0
        %1722 = vmatprep.subr.mxu0 0.0
        %1723 = vmatpush1.msra.mxu0 0.0
        %1724 = vmatprep.mubr.f32.mxu0 0.0
        %1725 = vmatmul.mubr.f32.gmra.mrb[0].mxu0 %v1655
        %v1726 = vpop.f32.mrb[0].mxu0
        %v1727 = vadd.f32 %v1649, %v1726
        %v1728 = vpop.f32.mrb[0].mxu0
        %v1729 = vadd.f32 %v1653, %v1728
        %1730 = vmatprep.mubr.f32.mxu0 0.0
        %1731 = vmatmul.mubr.f32.gmra.mrb[0].mxu0 %v1658
        %v1732 = vpop.f32.mrb[0].mxu0
        %v1733 = vadd.f32 %v1649, %v1732
        %v1734 = vpop.f32.mrb[0].mxu0
        %v1735 = vadd.f32 %v1653, %v1734
        %1736 = vdwg.mxu0
        %v1737 = vmax.f32 %v1727, 0.0
        %v1738 = vmax.f32 %v1729, 0.0
        %v1739 = vmax.f32 %v1733, 0.0
        %v1740 = vmax.f32 %v1735, 0.0
        %v1741 = vlaneseq
        %v1742 = vshrl.u32 %v1741, 7
        %v1743 = vsub.s32 5, %v1742
        %v1744 = vrot.slane %v581, %v1743
        %1745 = vmatprep.subr.mxu0 0.0
        %1746 = vmatpush1.msra.mxu0 %v549
        %1747 = vmatprep.subr.mxu0 0.0
        %1748 = vmatpush1.msra.mxu0 %v550
        %1749 = vmatprep.subr.mxu0 0.0
        %1750 = vmatpush1.msra.mxu0 %v551
        %1751 = vmatprep.subr.mxu0 0.0
        %1752 = vmatpush1.msra.mxu0 %v552
        %1753 = vmatprep.subr.mxu0 0.0
        %1754 = vmatpush1.msra.mxu0 %v553
        %1755 = vmatprep.subr.mxu0 0.0
        %1756 = vmatpush1.msra.mxu0 %v554
        %1757 = vmatprep.subr.mxu0 0.0
        %1758 = vmatpush1.msra.mxu0 %v555
        %1759 = vmatprep.subr.mxu0 0.0
        %1760 = vmatpush1.msra.mxu0 %v556
        %1761 = vmatprep.subr.mxu0 0.0
        %1762 = vmatpush1.msra.mxu0 %v557
        %1763 = vmatprep.subr.mxu0 0.0
        %1764 = vmatpush1.msra.mxu0 %v558
        %1765 = vmatprep.subr.mxu0 0.0
        %1766 = vmatpush1.msra.mxu0 %v559
        %1767 = vmatprep.subr.mxu0 0.0
        %1768 = vmatpush1.msra.mxu0 %v560
        %1769 = vmatprep.subr.mxu0 0.0
        %1770 = vmatpush1.msra.mxu0 %v561
        %1771 = vmatprep.subr.mxu0 0.0
        %1772 = vmatpush1.msra.mxu0 %v562
        %1773 = vmatprep.subr.mxu0 0.0
        %1774 = vmatpush1.msra.mxu0 %v563
        %1775 = vmatprep.subr.mxu0 0.0
        %1776 = vmatpush1.msra.mxu0 %v564
        %1777 = vmatprep.subr.mxu0 0.0
        %1778 = vmatpush1.msra.mxu0 %v565
        %1779 = vmatprep.subr.mxu0 0.0
        %1780 = vmatpush1.msra.mxu0 %v566
        %1781 = vmatprep.subr.mxu0 0.0
        %1782 = vmatpush1.msra.mxu0 %v567
        %1783 = vmatprep.subr.mxu0 0.0
        %1784 = vmatpush1.msra.mxu0 %v568
        %1785 = vmatprep.subr.mxu0 0.0
        %1786 = vmatpush1.msra.mxu0 %v569
        %1787 = vmatprep.subr.mxu0 0.0
        %1788 = vmatpush1.msra.mxu0 %v570
        %1789 = vmatprep.subr.mxu0 0.0
        %1790 = vmatpush1.msra.mxu0 %v571
        %1791 = vmatprep.subr.mxu0 0.0
        %1792 = vmatpush1.msra.mxu0 %v572
        %1793 = vmatprep.subr.mxu0 0.0
        %1794 = vmatpush1.msra.mxu0 %v573
        %1795 = vmatprep.subr.mxu0 0.0
        %1796 = vmatpush1.msra.mxu0 %v574
        %1797 = vmatprep.subr.mxu0 0.0
        %1798 = vmatpush1.msra.mxu0 %v575
        %1799 = vmatprep.subr.mxu0 0.0
        %1800 = vmatpush1.msra.mxu0 %v576
        %1801 = vmatprep.subr.mxu0 0.0
        %1802 = vmatpush1.msra.mxu0 %v577
        %1803 = vmatprep.subr.mxu0 0.0
        %1804 = vmatpush1.msra.mxu0 %v578
        %1805 = vmatprep.subr.mxu0 0.0
        %1806 = vmatpush1.msra.mxu0 %v579
        %1807 = vmatprep.subr.mxu0 0.0
        %1808 = vmatpush1.msra.mxu0 %v580
        %1809 = vmatprep.mubr.f32.mxu0 %v1738
        %1810 = vmatmul.mubr.f32.gmra.mrb[0].mxu0 %v1737
        %v1811 = vpop.f32.mrb[0].mxu0
        %v1812 = vadd.f32 %v1744, %v1811
        %v1813 = vpop.f32.mrb[0].mxu0
        %1814 = vmatprep.mubr.f32.mxu0 %v1740
        %1815 = vmatmul.mubr.f32.gmra.mrb[0].mxu0 %v1739
        %v1816 = vpop.f32.mrb[0].mxu0
        %v1817 = vadd.f32 %v1744, %v1816
        %v1818 = vpop.f32.mrb[0].mxu0
        %1819 = vdwg.mxu0
        %v1820 = vadd.f32 %v1644, %v1812
        %v1821 = vadd.f32 %v1645, %v1817
        %v1822 = vsel %vm591, %v1820, 0.0
        %1823 = vadd.xlane.f32.xlu0 %v1822
        %v1824 = vpop.xlane.xlu0 %1823
        %v1825 = vsel %vm591, %v1821, 0.0
        %1826 = vadd.xlane.f32.xlu0 %v1825
        %v1827 = vpop.xlane.xlu0 %1826
        %v1828 = vmul.f32 %v1824, %v1613
        %v1829 = vmul.f32 %v1827, %v1613
        %v1830 = vsub.f32 %v1820, %v1828
        %v1831 = vsub.f32 %v1821, %v1829
        %v1832 = vmul.f32 %v1830, %v1830
        %v1833 = vmul.f32 %v1831, %v1831
        %v1834 = vsel %vm591, %v1832, 0.0
        %1835 = vadd.xlane.f32.xlu0 %v1834
        %v1836 = vpop.xlane.xlu0 %1835
        %v1837 = vsel %vm591, %v1833, 0.0
        %1838 = vadd.xlane.f32.xlu0 %v1837
        %v1839 = vpop.xlane.xlu0 %1838
        %v1840 = vmul.f32 %v1836, %v1613
        %v1841 = vmul.f32 %v1839, %v1613
        %v1842 = vadd.f32 %v1840, 1e-05
        %v1843 = vadd.f32 %v1841, 1e-05
        %v1844 = vrsqrt.pop %v1842
        %v1845 = vrsqrt.pop %v1843
        %v1846 = vmul.f32 %v1830, %v1844
        %v1847 = vmul.f32 %v1831, %v1845
        %v1848 = vlaneseq
        %v1849 = vshrl.u32 %v1848, 7
        %v1850 = vsub.s32 6, %v1849
        %v1851 = vrot.slane %v581, %v1850
        %v1852 = vmul.f32 %v1846, %v1851
        %v1853 = vmul.f32 %v1847, %v1851
        %v1854 = vlaneseq
        %v1855 = vshrl.u32 %v1854, 7
        %v1856 = vsub.s32 7, %v1855
        %v1857 = vrot.slane %v581, %v1856
        %v1858 = vadd.f32 %v1852, %v1857
        %v1859 = vadd.f32 %v1853, %v1857
        %vm1860 = vcmp.lt.s32.totalorder %v489, 80
        %vm1861 = vmand %vm490, %vm1860
        %1862 = vst.msk [vmem:[#allocation2 + $0x1] sm:$0x1] %vm1861, %v1858
        %v1865 = vunpack.c.l.s4 1966171168
        %v1866 = vunpack.c.0.s8 %v1865
        %v1867 = vlaneseq
        %v1868 = vshrl.u32 %v1867, 7
        %v1869 = vsub.s32 %v1866, %v1868
        %v1870 = vrot.slane %v1858, %v1869
        %v1871 = vcombine.high %v1870, %v1870
        %v1873 = vunpack.c.l.s4 1966171168
        %v1874 = vunpack.c.0.s8 %v1873
        %v1875 = vlaneseq
        %v1876 = vshrl.u32 %v1875, 7
        %v1877 = vsub.s32 %v1874, %v1876
        %v1878 = vrot.slane %v1870, %v1877
        %v1880 = vunpack.c.l.s4 1966171168
        %v1881 = vunpack.c.0.s8 %v1880
        %v1882 = vlaneseq
        %v1883 = vshrl.u32 %v1882, 7
        %v1884 = vsub.s32 %v1881, %v1883
        %v1885 = vrot.slane %v1871, %v1884
        %1886 = vrot.lane.b32.xlu0 %v1885, 80
        %v1887 = vpop.permute.xlu0 %1886
        %v1888 = vrot.slane %v1887, 7
        %v1889 = vsel %vm591, %v1888, %v1887
        %vm1891 = vcmp.ge.s32.totalorder %v489, 80
        %vm1892 = vcmp.lt.s32.totalorder %v489, 160
        %vm1893 = vmand %vm1891, %vm1892
        %1894 = vst.msk [vmem:[#allocation2 + $0x1] sm:$0x3] %vm1893, %v1889
        %v1895 = vcombine.high %v1878, %v1878
        %1896 = vrot.lane.b32.xlu0 %v1895, 32
        %v1897 = vpop.permute.xlu0 %1896
        %vm1899 = vcmp.ge.s32.totalorder %v489, 32
        %vm1900 = vcmp.lt.s32.totalorder %v489, 112
        %vm1901 = vmand %vm1899, %vm1900
        %1902 = vst.msk [vmem:[#allocation2 + $0x2] sm:$0x1] %vm1901, %v1897
        %v1903 = vcombine.high %v1885, %v1885
        %1904 = vrot.lane.b32.xlu0 %v1903, 112
        %v1905 = vpop.permute.xlu0 %1904
        %v1906 = vrot.slane %v1905, 7
        %vm1907 = vcmask 916480
        %v1908 = vsel %vm1907, %v1906, %v1905
        %vm1910 = vcmp.ge.s32.totalorder %v489, 112
        %vm1911 = vcmp.lt.s32.totalorder %v489, 192
        %vm1912 = vmand %vm1910, %vm1911
        %1913 = vst.msk [vmem:[#allocation2 + $0x2] sm:$0x3] %vm1912, %v1908
        %v1914 = vcombine.high %v1858, %v1858
        %v1916 = vunpack.c.l.s4 1966171168
        %v1917 = vunpack.c.0.s8 %v1916
        %v1918 = vlaneseq
        %v1919 = vshrl.u32 %v1918, 7
        %v1920 = vsub.s32 %v1917, %v1919
        %v1921 = vrot.slane %v1914, %v1920
        %v1923 = vunpack.c.l.s4 1966171168
        %v1924 = vunpack.c.0.s8 %v1923
        %v1925 = vlaneseq
        %v1926 = vshrl.u32 %v1925, 7
        %v1927 = vsub.s32 %v1924, %v1926
        %v1928 = vrot.slane %v1921, %v1927
        %1929 = vrot.lane.b32.xlu0 %v1928, 64
        %v1930 = vpop.permute.xlu0 %1929
        %v1931 = vrot.slane %v1930, 7
        %vm1932 = vcmask 523264
        %v1933 = vsel %vm1932, %v1931, %v1930
        %vm1935 = vcmp.ge.s32.totalorder %v489, 64
        %vm1936 = vcmp.lt.s32.totalorder %v489, 144
        %vm1937 = vmand %vm1935, %vm1936
        %1938 = vst.msk [vmem:[#allocation2 + $0x3] sm:$0x3] %vm1937, %v1933
        %v1939 = vcombine.high %v1921, %v1921
        %v1941 = vunpack.c.l.s4 1966171168
        %v1942 = vunpack.c.0.s8 %v1941
        %v1943 = vlaneseq
        %v1944 = vshrl.u32 %v1943, 7
        %v1945 = vsub.s32 %v1942, %v1944
        %v1946 = vrot.slane %v1939, %v1945
        %1947 = vrot.lane.b32.xlu0 %v1946, 16
        %v1948 = vpop.permute.xlu0 %1947
        %vm1950 = vcmp.ge.s32.totalorder %v489, 16
        %vm1951 = vcmp.lt.s32.totalorder %v489, 96
        %vm1952 = vmand %vm1950, %vm1951
        %1953 = vst.msk [vmem:[#allocation2 + $0x4] sm:$0x1] %vm1952, %v1948
        %v1954 = vcombine.high %v1928, %v1928
        %1955 = vrot.lane.b32.xlu0 %v1954, 96
        %v1956 = vpop.permute.xlu0 %1955
        %v1957 = vrot.slane %v1956, 7
        %vm1958 = vcmask 785408
        %v1959 = vsel %vm1958, %v1957, %v1956
        %vm1961 = vcmp.ge.s32.totalorder %v489, 96
        %vm1962 = vcmp.lt.s32.totalorder %v489, 176
        %vm1963 = vmand %vm1961, %vm1962
        %1964 = vst.msk [vmem:[#allocation2 + $0x4] sm:$0x3] %vm1963, %v1959
        %v1965 = vcombine.high %v1946, %v1946
        %1966 = vrot.lane.b32.xlu0 %v1965, 48
        %v1967 = vpop.permute.xlu0 %1966
        %vm1969 = vcmp.ge.s32.totalorder %v489, 48
        %vm1970 = vmand %vm1969, %vm491
        %1971 = vst.msk [vmem:[#allocation2 + $0x5] sm:$0x1] %vm1970, %v1967
        %1972 = vst.msk [vmem:[#allocation2 + $0x6] sm:$0x1] %vm1861, %v1859
        %v1975 = vunpack.c.l.s4 1966171168
        %v1976 = vunpack.c.0.s8 %v1975
        %v1977 = vlaneseq
        %v1978 = vshrl.u32 %v1977, 7
        %v1979 = vsub.s32 %v1976, %v1978
        %v1980 = vrot.slane %v1859, %v1979
        %v1981 = vcombine.high %v1980, %v1980
        %v1983 = vunpack.c.l.s4 1966171168
        %v1984 = vunpack.c.0.s8 %v1983
        %v1985 = vlaneseq
        %v1986 = vshrl.u32 %v1985, 7
        %v1987 = vsub.s32 %v1984, %v1986
        %v1988 = vrot.slane %v1980, %v1987
        %v1990 = vunpack.c.l.s4 1966171168
        %v1991 = vunpack.c.0.s8 %v1990
        %v1992 = vlaneseq
        %v1993 = vshrl.u32 %v1992, 7
        %v1994 = vsub.s32 %v1991, %v1993
        %v1995 = vrot.slane %v1981, %v1994
        %1996 = vrot.lane.b32.xlu0 %v1995, 80
        %v1997 = vpop.permute.xlu0 %1996
        %v1998 = vrot.slane %v1997, 7
        %v1999 = vsel %vm591, %v1998, %v1997
        %2001 = vst.msk [vmem:[#allocation2 + $0x6] sm:$0x3] %vm1893, %v1999
        %v2002 = vcombine.high %v1988, %v1988
        %2003 = vrot.lane.b32.xlu0 %v2002, 32
        %v2004 = vpop.permute.xlu0 %2003
        %2006 = vst.msk [vmem:[#allocation2 + $0x7] sm:$0x1] %vm1901, %v2004
        %v2007 = vcombine.high %v1995, %v1995
        %2008 = vrot.lane.b32.xlu0 %v2007, 112
        %v2009 = vpop.permute.xlu0 %2008
        %v2010 = vrot.slane %v2009, 7
        %v2011 = vsel %vm1907, %v2010, %v2009
        %2013 = vst.msk [vmem:[#allocation2 + $0x7] sm:$0x3] %vm1912, %v2011
        %v2014 = vcombine.high %v1859, %v1859
        %v2016 = vunpack.c.l.s4 1966171168
        %v2017 = vunpack.c.0.s8 %v2016
        %v2018 = vlaneseq
        %v2019 = vshrl.u32 %v2018, 7
        %v2020 = vsub.s32 %v2017, %v2019
        %v2021 = vrot.slane %v2014, %v2020
        %v2023 = vunpack.c.l.s4 1966171168
        %v2024 = vunpack.c.0.s8 %v2023
        %v2025 = vlaneseq
        %v2026 = vshrl.u32 %v2025, 7
        %v2027 = vsub.s32 %v2024, %v2026
        %v2028 = vrot.slane %v2021, %v2027
        %2029 = vrot.lane.b32.xlu0 %v2028, 64
        %v2030 = vpop.permute.xlu0 %2029
        %v2031 = vrot.slane %v2030, 7
        %v2032 = vsel %vm1932, %v2031, %v2030
        %2034 = vst.msk [vmem:[#allocation2 + $0x8] sm:$0x3] %vm1937, %v2032
        %v2035 = vcombine.high %v2021, %v2021
        %v2037 = vunpack.c.l.s4 1966171168
        %v2038 = vunpack.c.0.s8 %v2037
        %v2039 = vlaneseq
        %v2040 = vshrl.u32 %v2039, 7
        %v2041 = vsub.s32 %v2038, %v2040
        %v2042 = vrot.slane %v2035, %v2041
        %2043 = vrot.lane.b32.xlu0 %v2042, 16
        %v2044 = vpop.permute.xlu0 %2043
        %2046 = vst.msk [vmem:[#allocation2 + $0x9] sm:$0x1] %vm1952, %v2044
        %v2047 = vcombine.high %v2028, %v2028
        %2048 = vrot.lane.b32.xlu0 %v2047, 96
        %v2049 = vpop.permute.xlu0 %2048
        %v2050 = vrot.slane %v2049, 7
        %v2051 = vsel %vm1958, %v2050, %v2049
        %2053 = vst.msk [vmem:[#allocation2 + $0x9] sm:$0x3] %vm1963, %v2051
        %v2054 = vcombine.high %v2042, %v2042
        %2055 = vrot.lane.b32.xlu0 %v2054, 48
        %v2056 = vpop.permute.xlu0 %2055
        %2058 = vst.msk [vmem:[#allocation2 + $0xa] sm:$0x1] %vm1970, %v2056
        %v2059 = vld [vmem:[#allocation15] sm:$0xff]
        %v2060 = vld [vmem:[#allocation15 + $0x8] sm:$0xff]
        %v2061 = vld [vmem:[#allocation15 + $0x10] sm:$0xff]
        %v2062 = vld [vmem:[#allocation15 + $0x18] sm:$0xff]
        %v2063 = vld [vmem:[#allocation15 + $0x20] sm:$0xff]
        %v2064 = vld [vmem:[#allocation15 + $0x28] sm:$0xff]
        %v2065 = vld [vmem:[#allocation15 + $0x30] sm:$0xff]
        %v2066 = vld [vmem:[#allocation15 + $0x38] sm:$0xff]
        %v2067 = vld [vmem:[#allocation16] sm:$0xff]
        %v2068 = vld [vmem:[#allocation16 + $0x8] sm:$0x3]
        %v2069 = vld [vmem:[#allocation2] sm:$0xff]
        %v2070 = vld [vmem:[#allocation2 + $0x8] sm:$0x7]
        %v2081 = vcombine.low %v469, %v470
        %v2082 = vcombine.low %v471, %v472
        %v2083 = vcombine.low %v473, %v474
        %v2084 = vcombine.low %v475, %v476
        %v2086 = vunpack.c.l.s4 1966171168
        %v2087 = vunpack.c.0.s8 %v2086
        %v2088 = vlaneseq
        %v2089 = vshrl.u32 %v2088, 7
        %v2090 = vsub.s32 %v2087, %v2089
        %v2091 = vrot.slane %v2081, %v2090
        %v2093 = vunpack.c.l.s4 1966171168
        %v2094 = vunpack.c.0.s8 %v2093
        %v2095 = vlaneseq
        %v2096 = vshrl.u32 %v2095, 7
        %v2097 = vsub.s32 %v2094, %v2096
        %v2098 = vrot.slane %v2082, %v2097
        %v2100 = vunpack.c.l.s4 1966171168
        %v2101 = vunpack.c.0.s8 %v2100
        %v2102 = vlaneseq
        %v2103 = vshrl.u32 %v2102, 7
        %v2104 = vsub.s32 %v2101, %v2103
        %v2105 = vrot.slane %v2083, %v2104
        %v2107 = vunpack.c.l.s4 1966171168
        %v2108 = vunpack.c.0.s8 %v2107
        %v2109 = vlaneseq
        %v2110 = vshrl.u32 %v2109, 7
        %v2111 = vsub.s32 %v2108, %v2110
        %v2112 = vrot.slane %v2084, %v2111
        %v2113 = vcombine.low %v2091, %v2098
        %v2114 = vcombine.low %v2105, %v2112
        %v2116 = vunpack.c.l.s4 1966171168
        %v2117 = vunpack.c.0.s8 %v2116
        %v2118 = vlaneseq
        %v2119 = vshrl.u32 %v2118, 7
        %v2120 = vsub.s32 %v2117, %v2119
        %v2121 = vrot.slane %v2113, %v2120
        %v2123 = vunpack.c.l.s4 1966171168
        %v2124 = vunpack.c.0.s8 %v2123
        %v2125 = vlaneseq
        %v2126 = vshrl.u32 %v2125, 7
        %v2127 = vsub.s32 %v2124, %v2126
        %v2128 = vrot.slane %v2114, %v2127
        %v2129 = vcombine.low %v2121, %v2128
        %v2130 = vcombine.low %v477, %v478
        %v2132 = vunpack.c.l.s4 1966171168
        %v2133 = vunpack.c.0.s8 %v2132
        %v2134 = vlaneseq
        %v2135 = vshrl.u32 %v2134, 7
        %v2136 = vsub.s32 %v2133, %v2135
        %v2137 = vrot.slane %v2130, %v2136
        %v2139 = vunpack.c.l.s4 1966171168
        %v2140 = vunpack.c.0.s8 %v2139
        %v2141 = vlaneseq
        %v2142 = vshrl.u32 %v2141, 7
        %v2143 = vsub.s32 %v2140, %v2142
        %v2144 = vrot.slane %v2137, %v2143
        %2145 = vrot.lane.b32.xlu0 %v2129, 47
        %v2146 = vpop.permute.xlu0 %2145
        %2147 = vrot.lane.b32.xlu0 %v2144, 47
        %v2148 = vpop.permute.xlu0 %2147
        %v2149 = vrot.slane %v2146, 7
        %v2150 = vrot.slane %v2148, 7
        %vm2151 = vcmask 384000
        %v2152 = vsel %vm2151, %v2149, %v2146
        %vm2153 = vcmask 1040384
        %v2154 = vsel %vm2153, %v2149, %v2150
        %v2155 = vsel %vm2151, %v2154, %v2148
        %v2158 = vmul.f32 %v2069, %v2152
        %v2159 = vmul.f32 %v2070, %v2155
        %v2160 = vcombine.high %v2091, %v2098
        %v2161 = vcombine.high %v2105, %v2112
        %v2163 = vunpack.c.l.s4 1966171168
        %v2164 = vunpack.c.0.s8 %v2163
        %v2165 = vlaneseq
        %v2166 = vshrl.u32 %v2165, 7
        %v2167 = vsub.s32 %v2164, %v2166
        %v2168 = vrot.slane %v2160, %v2167
        %v2170 = vunpack.c.l.s4 1966171168
        %v2171 = vunpack.c.0.s8 %v2170
        %v2172 = vlaneseq
        %v2173 = vshrl.u32 %v2172, 7
        %v2174 = vsub.s32 %v2171, %v2173
        %v2175 = vrot.slane %v2161, %v2174
        %v2176 = vcombine.low %v2168, %v2175
        %v2177 = vcombine.high %v2137, %v2137
        %v2179 = vunpack.c.l.s4 1966171168
        %v2180 = vunpack.c.0.s8 %v2179
        %v2181 = vlaneseq
        %v2182 = vshrl.u32 %v2181, 7
        %v2183 = vsub.s32 %v2180, %v2182
        %v2184 = vrot.slane %v2177, %v2183
        %2185 = vrot.lane.b32.xlu0 %v2176, 48
        %v2186 = vpop.permute.xlu0 %2185
        %2187 = vrot.lane.b32.xlu0 %v2184, 48
        %v2188 = vpop.permute.xlu0 %2187
        %v2189 = vrot.slane %v2186, 7
        %v2190 = vrot.slane %v2188, 7
        %vm2191 = vcmask 392192
        %v2192 = vsel %vm2191, %v2189, %v2186
        %v2193 = vsel %vm2153, %v2189, %v2190
        %v2194 = vsel %vm2191, %v2193, %v2188
        %v2197 = vmul.f32 %v2069, %v2192
        %v2198 = vmul.f32 %v2070, %v2194
        %v2199 = vcombine.high %v2121, %v2128
        %v2200 = vcombine.high %v2144, %v2144
        %2201 = vrot.lane.b32.xlu0 %v2199, 49
        %v2202 = vpop.permute.xlu0 %2201
        %2203 = vrot.lane.b32.xlu0 %v2200, 49
        %v2204 = vpop.permute.xlu0 %2203
        %v2205 = vrot.slane %v2202, 7
        %v2206 = vrot.slane %v2204, 7
        %vm2207 = vcmask 400384
        %v2208 = vsel %vm2207, %v2205, %v2202
        %v2209 = vsel %vm2153, %v2205, %v2206
        %v2210 = vsel %vm2207, %v2209, %v2204
        %v2213 = vmul.f32 %v2069, %v2208
        %v2214 = vmul.f32 %v2070, %v2210
        %v2215 = vcombine.high %v2168, %v2175
        %v2216 = vcombine.high %v2184, %v2184
        %2217 = vrot.lane.b32.xlu0 %v2215, 127
        %v2218 = vpop.permute.xlu0 %2217
        %2219 = vrot.lane.b32.xlu0 %v2216, 127
        %v2220 = vpop.permute.xlu0 %2219
        %v2221 = vrot.slane %v2218, 7
        %v2222 = vrot.slane %v2220, 7
        %vm2223 = vcmask 1039360
        %v2224 = vsel %vm2223, %v2221, %v2218
        %v2225 = vsel %vm2153, %v2221, %v2222
        %v2226 = vsel %vm2223, %v2225, %v2220
        %v2229 = vmul.f32 %v2069, %v2224
        %v2230 = vmul.f32 %v2070, %v2226
        %v2231 = vld [vmem:[#allocation2 + $0x1] sm:$0xff]
        %v2232 = vld [vmem:[#allocation2 + $0x9] sm:$0x3]
        %v2233 = vcombine.high %v469, %v470
        %v2234 = vcombine.high %v471, %v472
        %v2235 = vcombine.high %v473, %v474
        %v2236 = vcombine.high %v475, %v476
        %v2238 = vunpack.c.l.s4 1966171168
        %v2239 = vunpack.c.0.s8 %v2238
        %v2240 = vlaneseq
        %v2241 = vshrl.u32 %v2240, 7
        %v2242 = vsub.s32 %v2239, %v2241
        %v2243 = vrot.slane %v2233, %v2242
        %v2245 = vunpack.c.l.s4 1966171168
        %v2246 = vunpack.c.0.s8 %v2245
        %v2247 = vlaneseq
        %v2248 = vshrl.u32 %v2247, 7
        %v2249 = vsub.s32 %v2246, %v2248
        %v2250 = vrot.slane %v2234, %v2249
        %v2252 = vunpack.c.l.s4 1966171168
        %v2253 = vunpack.c.0.s8 %v2252
        %v2254 = vlaneseq
        %v2255 = vshrl.u32 %v2254, 7
        %v2256 = vsub.s32 %v2253, %v2255
        %v2257 = vrot.slane %v2235, %v2256
        %v2259 = vunpack.c.l.s4 1966171168
        %v2260 = vunpack.c.0.s8 %v2259
        %v2261 = vlaneseq
        %v2262 = vshrl.u32 %v2261, 7
        %v2263 = vsub.s32 %v2260, %v2262
        %v2264 = vrot.slane %v2236, %v2263
        %v2265 = vcombine.low %v2243, %v2250
        %v2266 = vcombine.low %v2257, %v2264
        %v2268 = vunpack.c.l.s4 1966171168
        %v2269 = vunpack.c.0.s8 %v2268
        %v2270 = vlaneseq
        %v2271 = vshrl.u32 %v2270, 7
        %v2272 = vsub.s32 %v2269, %v2271
        %v2273 = vrot.slane %v2265, %v2272
        %v2275 = vunpack.c.l.s4 1966171168
        %v2276 = vunpack.c.0.s8 %v2275
        %v2277 = vlaneseq
        %v2278 = vshrl.u32 %v2277, 7
        %v2279 = vsub.s32 %v2276, %v2278
        %v2280 = vrot.slane %v2266, %v2279
        %v2281 = vcombine.low %v2273, %v2280
        %v2282 = vcombine.high %v477, %v478
        %v2284 = vunpack.c.l.s4 1966171168
        %v2285 = vunpack.c.0.s8 %v2284
        %v2286 = vlaneseq
        %v2287 = vshrl.u32 %v2286, 7
        %v2288 = vsub.s32 %v2285, %v2287
        %v2289 = vrot.slane %v2282, %v2288
        %v2291 = vunpack.c.l.s4 1966171168
        %v2292 = vunpack.c.0.s8 %v2291
        %v2293 = vlaneseq
        %v2294 = vshrl.u32 %v2293, 7
        %v2295 = vsub.s32 %v2292, %v2294
        %v2296 = vrot.slane %v2289, %v2295
        %v2299 = vmul.f32 %v2231, %v2281
        %v2300 = vmul.f32 %v2232, %v2296
        %v2301 = vld [vmem:[#allocation2 + $0x1] sm:$0xff]
        %v2302 = vld [vmem:[#allocation2 + $0x9] sm:$0x7]
        %v2303 = vcombine.high %v2243, %v2250
        %v2304 = vcombine.high %v2257, %v2264
        %v2306 = vunpack.c.l.s4 1966171168
        %v2307 = vunpack.c.0.s8 %v2306
        %v2308 = vlaneseq
        %v2309 = vshrl.u32 %v2308, 7
        %v2310 = vsub.s32 %v2307, %v2309
        %v2311 = vrot.slane %v2303, %v2310
        %v2313 = vunpack.c.l.s4 1966171168
        %v2314 = vunpack.c.0.s8 %v2313
        %v2315 = vlaneseq
        %v2316 = vshrl.u32 %v2315, 7
        %v2317 = vsub.s32 %v2314, %v2316
        %v2318 = vrot.slane %v2304, %v2317
        %v2319 = vcombine.low %v2311, %v2318
        %v2320 = vcombine.high %v2289, %v2289
        %v2322 = vunpack.c.l.s4 1966171168
        %v2323 = vunpack.c.0.s8 %v2322
        %v2324 = vlaneseq
        %v2325 = vshrl.u32 %v2324, 7
        %v2326 = vsub.s32 %v2323, %v2325
        %v2327 = vrot.slane %v2320, %v2326
        %2328 = vrot.lane.b32.xlu0 %v2319, 1
        %v2329 = vpop.permute.xlu0 %2328
        %2330 = vrot.lane.b32.xlu0 %v2327, 1
        %v2331 = vpop.permute.xlu0 %2330
        %v2332 = vrot.slane %v2329, 7
        %v2333 = vrot.slane %v2331, 7
        %vm2334 = vcmask 7168
        %v2335 = vsel %vm2334, %v2332, %v2329
        %v2336 = vsel %vm2153, %v2332, %v2333
        %v2337 = vsel %vm2334, %v2336, %v2331
        %v2340 = vmul.f32 %v2301, %v2335
        %v2341 = vmul.f32 %v2302, %v2337
        %v2342 = vcombine.high %v2273, %v2280
        %v2343 = vcombine.high %v2296, %v2296
        %2344 = vrot.lane.b32.xlu0 %v2342, 79
        %v2345 = vpop.permute.xlu0 %2344
        %2346 = vrot.lane.b32.xlu0 %v2343, 79
        %v2347 = vpop.permute.xlu0 %2346
        %v2348 = vrot.slane %v2345, 7
        %v2349 = vrot.slane %v2347, 7
        %vm2350 = vcmask 646144
        %v2351 = vsel %vm2350, %v2348, %v2345
        %v2352 = vsel %vm2153, %v2348, %v2349
        %v2353 = vsel %vm2350, %v2352, %v2347
        %v2356 = vmul.f32 %v2301, %v2351
        %v2357 = vmul.f32 %v2302, %v2353
        %v2358 = vcombine.high %v2311, %v2318
        %v2359 = vcombine.high %v2327, %v2327
        %2360 = vrot.lane.b32.xlu0 %v2358, 80
        %v2361 = vpop.permute.xlu0 %2360
        %2362 = vrot.lane.b32.xlu0 %v2359, 80
        %v2363 = vpop.permute.xlu0 %2362
        %v2364 = vrot.slane %v2361, 7
        %v2365 = vrot.slane %v2363, 7
        %v2366 = vsel %vm591, %v2364, %v2361
        %v2367 = vsel %vm2153, %v2364, %v2365
        %v2368 = vsel %vm591, %v2367, %v2363
        %v2371 = vmul.f32 %v2301, %v2366
        %v2372 = vmul.f32 %v2302, %v2368
        %v2383 = vcombine.low %v479, %v480
        %v2384 = vcombine.low %v481, %v482
        %v2385 = vcombine.low %v483, %v484
        %v2386 = vcombine.low %v485, %v486
        %v2388 = vunpack.c.l.s4 1966171168
        %v2389 = vunpack.c.0.s8 %v2388
        %v2390 = vlaneseq
        %v2391 = vshrl.u32 %v2390, 7
        %v2392 = vsub.s32 %v2389, %v2391
        %v2393 = vrot.slane %v2383, %v2392
        %v2395 = vunpack.c.l.s4 1966171168
        %v2396 = vunpack.c.0.s8 %v2395
        %v2397 = vlaneseq
        %v2398 = vshrl.u32 %v2397, 7
        %v2399 = vsub.s32 %v2396, %v2398
        %v2400 = vrot.slane %v2384, %v2399
        %v2402 = vunpack.c.l.s4 1966171168
        %v2403 = vunpack.c.0.s8 %v2402
        %v2404 = vlaneseq
        %v2405 = vshrl.u32 %v2404, 7
        %v2406 = vsub.s32 %v2403, %v2405
        %v2407 = vrot.slane %v2385, %v2406
        %v2409 = vunpack.c.l.s4 1966171168
        %v2410 = vunpack.c.0.s8 %v2409
        %v2411 = vlaneseq
        %v2412 = vshrl.u32 %v2411, 7
        %v2413 = vsub.s32 %v2410, %v2412
        %v2414 = vrot.slane %v2386, %v2413
        %v2415 = vcombine.low %v2393, %v2400
        %v2416 = vcombine.low %v2407, %v2414
        %v2418 = vunpack.c.l.s4 1966171168
        %v2419 = vunpack.c.0.s8 %v2418
        %v2420 = vlaneseq
        %v2421 = vshrl.u32 %v2420, 7
        %v2422 = vsub.s32 %v2419, %v2421
        %v2423 = vrot.slane %v2415, %v2422
        %v2425 = vunpack.c.l.s4 1966171168
        %v2426 = vunpack.c.0.s8 %v2425
        %v2427 = vlaneseq
        %v2428 = vshrl.u32 %v2427, 7
        %v2429 = vsub.s32 %v2426, %v2428
        %v2430 = vrot.slane %v2416, %v2429
        %v2431 = vcombine.low %v2423, %v2430
        %v2432 = vcombine.low %v487, %v488
        %v2434 = vunpack.c.l.s4 1966171168
        %v2435 = vunpack.c.0.s8 %v2434
        %v2436 = vlaneseq
        %v2437 = vshrl.u32 %v2436, 7
        %v2438 = vsub.s32 %v2435, %v2437
        %v2439 = vrot.slane %v2432, %v2438
        %v2441 = vunpack.c.l.s4 1966171168
        %v2442 = vunpack.c.0.s8 %v2441
        %v2443 = vlaneseq
        %v2444 = vshrl.u32 %v2443, 7
        %v2445 = vsub.s32 %v2442, %v2444
        %v2446 = vrot.slane %v2439, %v2445
        %2447 = vrot.lane.b32.xlu0 %v2431, 81
        %v2448 = vpop.permute.xlu0 %2447
        %2449 = vrot.lane.b32.xlu0 %v2446, 81
        %v2450 = vpop.permute.xlu0 %2449
        %v2451 = vrot.slane %v2448, 7
        %v2452 = vrot.slane %v2450, 7
        %vm2453 = vcmask 662528
        %v2454 = vsel %vm2453, %v2451, %v2448
        %v2455 = vsel %vm2153, %v2451, %v2452
        %v2456 = vsel %vm2453, %v2455, %v2450
        %v2459 = vmul.f32 %v2301, %v2454
        %v2460 = vmul.f32 %v2302, %v2456
        %v2463 = vlaneseq
        %v2464 = vshrl.u32 %v2463, 7
        %v2465 = vsub.s32 0, %v2464
        %v2466 = vrot.slane %v2158, %v2465
        %v2467 = vlaneseq
        %v2468 = vshrl.u32 %v2467, 7
        %v2469 = vsub.s32 1, %v2468
        %v2470 = vrot.slane %v2158, %v2469
        %v2471 = vlaneseq
        %v2472 = vshrl.u32 %v2471, 7
        %v2473 = vsub.s32 2, %v2472
        %v2474 = vrot.slane %v2158, %v2473
        %v2475 = vlaneseq
        %v2476 = vshrl.u32 %v2475, 7
        %v2477 = vsub.s32 3, %v2476
        %v2478 = vrot.slane %v2158, %v2477
        %v2479 = vlaneseq
        %v2480 = vshrl.u32 %v2479, 7
        %v2481 = vsub.s32 4, %v2480
        %v2482 = vrot.slane %v2158, %v2481
        %v2483 = vlaneseq
        %v2484 = vshrl.u32 %v2483, 7
        %v2485 = vsub.s32 5, %v2484
        %v2486 = vrot.slane %v2158, %v2485
        %v2487 = vlaneseq
        %v2488 = vshrl.u32 %v2487, 7
        %v2489 = vsub.s32 6, %v2488
        %v2490 = vrot.slane %v2158, %v2489
        %v2491 = vlaneseq
        %v2492 = vshrl.u32 %v2491, 7
        %v2493 = vsub.s32 7, %v2492
        %v2494 = vrot.slane %v2158, %v2493
        %v2495 = vlaneseq
        %v2496 = vshrl.u32 %v2495, 7
        %v2497 = vsub.s32 0, %v2496
        %v2498 = vrot.slane %v2159, %v2497
        %v2499 = vlaneseq
        %v2500 = vshrl.u32 %v2499, 7
        %v2501 = vsub.s32 1, %v2500
        %v2502 = vrot.slane %v2159, %v2501
        %v2503 = vlaneseq
        %v2504 = vshrl.u32 %v2503, 7
        %v2505 = vsub.s32 2, %v2504
        %v2506 = vrot.slane %v2159, %v2505
        %v2520 = vlaneseq
        %v2521 = vshrl.u32 %v2520, 7
        %v2522 = vsub.s32 0, %v2521
        %v2523 = vrot.slane %v2197, %v2522
        %v2524 = vlaneseq
        %v2525 = vshrl.u32 %v2524, 7
        %v2526 = vsub.s32 1, %v2525
        %v2527 = vrot.slane %v2197, %v2526
        %v2528 = vlaneseq
        %v2529 = vshrl.u32 %v2528, 7
        %v2530 = vsub.s32 2, %v2529
        %v2531 = vrot.slane %v2197, %v2530
        %v2532 = vlaneseq
        %v2533 = vshrl.u32 %v2532, 7
        %v2534 = vsub.s32 3, %v2533
        %v2535 = vrot.slane %v2197, %v2534
        %v2536 = vlaneseq
        %v2537 = vshrl.u32 %v2536, 7
        %v2538 = vsub.s32 4, %v2537
        %v2539 = vrot.slane %v2197, %v2538
        %v2540 = vlaneseq
        %v2541 = vshrl.u32 %v2540, 7
        %v2542 = vsub.s32 5, %v2541
        %v2543 = vrot.slane %v2197, %v2542
        %v2544 = vlaneseq
        %v2545 = vshrl.u32 %v2544, 7
        %v2546 = vsub.s32 6, %v2545
        %v2547 = vrot.slane %v2197, %v2546
        %v2548 = vlaneseq
        %v2549 = vshrl.u32 %v2548, 7
        %v2550 = vsub.s32 7, %v2549
        %v2551 = vrot.slane %v2197, %v2550
        %v2552 = vlaneseq
        %v2553 = vshrl.u32 %v2552, 7
        %v2554 = vsub.s32 0, %v2553
        %v2555 = vrot.slane %v2198, %v2554
        %v2556 = vlaneseq
        %v2557 = vshrl.u32 %v2556, 7
        %v2558 = vsub.s32 1, %v2557
        %v2559 = vrot.slane %v2198, %v2558
        %v2560 = vlaneseq
        %v2561 = vshrl.u32 %v2560, 7
        %v2562 = vsub.s32 2, %v2561
        %v2563 = vrot.slane %v2198, %v2562
        %2564 = vrot.lane.b32.xlu0 %v2523, 127
        %v2565 = vpop.permute.xlu0 %2564
        %2566 = vrot.lane.b32.xlu0 %v2527, 127
        %v2567 = vpop.permute.xlu0 %2566
        %2568 = vrot.lane.b32.xlu0 %v2531, 127
        %v2569 = vpop.permute.xlu0 %2568
        %2570 = vrot.lane.b32.xlu0 %v2535, 127
        %v2571 = vpop.permute.xlu0 %2570
        %2572 = vrot.lane.b32.xlu0 %v2539, 127
        %v2573 = vpop.permute.xlu0 %2572
        %2574 = vrot.lane.b32.xlu0 %v2543, 127
        %v2575 = vpop.permute.xlu0 %2574
        %2576 = vrot.lane.b32.xlu0 %v2547, 127
        %v2577 = vpop.permute.xlu0 %2576
        %2578 = vrot.lane.b32.xlu0 %v2551, 127
        %v2579 = vpop.permute.xlu0 %2578
        %2580 = vrot.lane.b32.xlu0 %v2555, 127
        %v2581 = vpop.permute.xlu0 %2580
        %2582 = vrot.lane.b32.xlu0 %v2559, 127
        %v2583 = vpop.permute.xlu0 %2582
        %2584 = vrot.lane.b32.xlu0 %v2563, 127
        %v2585 = vpop.permute.xlu0 %2584
        %v2586 = vsel %vm2223, %v2565, %v2567
        %v2587 = vsel %vm2223, %v2567, %v2569
        %v2588 = vsel %vm2223, %v2569, %v2571
        %v2589 = vsel %vm2223, %v2571, %v2573
        %v2590 = vsel %vm2223, %v2573, %v2575
        %v2591 = vsel %vm2223, %v2575, %v2577
        %v2592 = vsel %vm2223, %v2577, %v2579
        %v2593 = vsel %vm2223, %v2579, %v2581
        %v2594 = vsel %vm2223, %v2581, %v2583
        %v2595 = vsel %vm2223, %v2583, %v2585
        %v2609 = vlaneseq
        %v2610 = vshrl.u32 %v2609, 7
        %v2611 = vsub.s32 0, %v2610
        %v2612 = vrot.slane %v2213, %v2611
        %v2613 = vlaneseq
        %v2614 = vshrl.u32 %v2613, 7
        %v2615 = vsub.s32 1, %v2614
        %v2616 = vrot.slane %v2213, %v2615
        %v2617 = vlaneseq
        %v2618 = vshrl.u32 %v2617, 7
        %v2619 = vsub.s32 2, %v2618
        %v2620 = vrot.slane %v2213, %v2619
        %v2621 = vlaneseq
        %v2622 = vshrl.u32 %v2621, 7
        %v2623 = vsub.s32 3, %v2622
        %v2624 = vrot.slane %v2213, %v2623
        %v2625 = vlaneseq
        %v2626 = vshrl.u32 %v2625, 7
        %v2627 = vsub.s32 4, %v2626
        %v2628 = vrot.slane %v2213, %v2627
        %v2629 = vlaneseq
        %v2630 = vshrl.u32 %v2629, 7
        %v2631 = vsub.s32 5, %v2630
        %v2632 = vrot.slane %v2213, %v2631
        %v2633 = vlaneseq
        %v2634 = vshrl.u32 %v2633, 7
        %v2635 = vsub.s32 6, %v2634
        %v2636 = vrot.slane %v2213, %v2635
        %v2637 = vlaneseq
        %v2638 = vshrl.u32 %v2637, 7
        %v2639 = vsub.s32 7, %v2638
        %v2640 = vrot.slane %v2213, %v2639
        %v2641 = vlaneseq
        %v2642 = vshrl.u32 %v2641, 7
        %v2643 = vsub.s32 0, %v2642
        %v2644 = vrot.slane %v2214, %v2643
        %v2645 = vlaneseq
        %v2646 = vshrl.u32 %v2645, 7
        %v2647 = vsub.s32 1, %v2646
        %v2648 = vrot.slane %v2214, %v2647
        %v2649 = vlaneseq
        %v2650 = vshrl.u32 %v2649, 7
        %v2651 = vsub.s32 2, %v2650
        %v2652 = vrot.slane %v2214, %v2651
        %2653 = vrot.lane.b32.xlu0 %v2612, 126
        %v2654 = vpop.permute.xlu0 %2653
        %2655 = vrot.lane.b32.xlu0 %v2616, 126
        %v2656 = vpop.permute.xlu0 %2655
        %2657 = vrot.lane.b32.xlu0 %v2620, 126
        %v2658 = vpop.permute.xlu0 %2657
        %2659 = vrot.lane.b32.xlu0 %v2624, 126
        %v2660 = vpop.permute.xlu0 %2659
        %2661 = vrot.lane.b32.xlu0 %v2628, 126
        %v2662 = vpop.permute.xlu0 %2661
        %2663 = vrot.lane.b32.xlu0 %v2632, 126
        %v2664 = vpop.permute.xlu0 %2663
        %2665 = vrot.lane.b32.xlu0 %v2636, 126
        %v2666 = vpop.permute.xlu0 %2665
        %2667 = vrot.lane.b32.xlu0 %v2640, 126
        %v2668 = vpop.permute.xlu0 %2667
        %2669 = vrot.lane.b32.xlu0 %v2644, 126
        %v2670 = vpop.permute.xlu0 %2669
        %2671 = vrot.lane.b32.xlu0 %v2648, 126
        %v2672 = vpop.permute.xlu0 %2671
        %2673 = vrot.lane.b32.xlu0 %v2652, 126
        %v2674 = vpop.permute.xlu0 %2673
        %vm2675 = vcmask 1031168
        %v2676 = vsel %vm2675, %v2654, %v2656
        %v2677 = vsel %vm2675, %v2656, %v2658
        %v2678 = vsel %vm2675, %v2658, %v2660
        %v2679 = vsel %vm2675, %v2660, %v2662
        %v2680 = vsel %vm2675, %v2662, %v2664
        %v2681 = vsel %vm2675, %v2664, %v2666
        %v2682 = vsel %vm2675, %v2666, %v2668
        %v2683 = vsel %vm2675, %v2668, %v2670
        %v2684 = vsel %vm2675, %v2670, %v2672
        %v2685 = vsel %vm2675, %v2672, %v2674
        %v2699 = vlaneseq
        %v2700 = vshrl.u32 %v2699, 7
        %v2701 = vsub.s32 0, %v2700
        %v2702 = vrot.slane %v2229, %v2701
        %v2703 = vlaneseq
        %v2704 = vshrl.u32 %v2703, 7
        %v2705 = vsub.s32 1, %v2704
        %v2706 = vrot.slane %v2229, %v2705
        %v2707 = vlaneseq
        %v2708 = vshrl.u32 %v2707, 7
        %v2709 = vsub.s32 2, %v2708
        %v2710 = vrot.slane %v2229, %v2709
        %v2711 = vlaneseq
        %v2712 = vshrl.u32 %v2711, 7
        %v2713 = vsub.s32 3, %v2712
        %v2714 = vrot.slane %v2229, %v2713
        %v2715 = vlaneseq
        %v2716 = vshrl.u32 %v2715, 7
        %v2717 = vsub.s32 4, %v2716
        %v2718 = vrot.slane %v2229, %v2717
        %v2719 = vlaneseq
        %v2720 = vshrl.u32 %v2719, 7
        %v2721 = vsub.s32 5, %v2720
        %v2722 = vrot.slane %v2229, %v2721
        %v2723 = vlaneseq
        %v2724 = vshrl.u32 %v2723, 7
        %v2725 = vsub.s32 6, %v2724
        %v2726 = vrot.slane %v2229, %v2725
        %v2727 = vlaneseq
        %v2728 = vshrl.u32 %v2727, 7
        %v2729 = vsub.s32 7, %v2728
        %v2730 = vrot.slane %v2229, %v2729
        %v2731 = vlaneseq
        %v2732 = vshrl.u32 %v2731, 7
        %v2733 = vsub.s32 0, %v2732
        %v2734 = vrot.slane %v2230, %v2733
        %v2735 = vlaneseq
        %v2736 = vshrl.u32 %v2735, 7
        %v2737 = vsub.s32 1, %v2736
        %v2738 = vrot.slane %v2230, %v2737
        %v2739 = vlaneseq
        %v2740 = vshrl.u32 %v2739, 7
        %v2741 = vsub.s32 2, %v2740
        %v2742 = vrot.slane %v2230, %v2741
        %2743 = vrot.lane.b32.xlu0 %v2702, 48
        %v2744 = vpop.permute.xlu0 %2743
        %2745 = vrot.lane.b32.xlu0 %v2706, 48
        %v2746 = vpop.permute.xlu0 %2745
        %2747 = vrot.lane.b32.xlu0 %v2710, 48
        %v2748 = vpop.permute.xlu0 %2747
        %2749 = vrot.lane.b32.xlu0 %v2714, 48
        %v2750 = vpop.permute.xlu0 %2749
        %2751 = vrot.lane.b32.xlu0 %v2718, 48
        %v2752 = vpop.permute.xlu0 %2751
        %2753 = vrot.lane.b32.xlu0 %v2722, 48
        %v2754 = vpop.permute.xlu0 %2753
        %2755 = vrot.lane.b32.xlu0 %v2726, 48
        %v2756 = vpop.permute.xlu0 %2755
        %2757 = vrot.lane.b32.xlu0 %v2730, 48
        %v2758 = vpop.permute.xlu0 %2757
        %2759 = vrot.lane.b32.xlu0 %v2734, 48
        %v2760 = vpop.permute.xlu0 %2759
        %2761 = vrot.lane.b32.xlu0 %v2738, 48
        %v2762 = vpop.permute.xlu0 %2761
        %2763 = vrot.lane.b32.xlu0 %v2742, 48
        %v2764 = vpop.permute.xlu0 %2763
        %v2765 = vsel %vm2191, %v2744, %v2746
        %v2766 = vsel %vm2191, %v2746, %v2748
        %v2767 = vsel %vm2191, %v2748, %v2750
        %v2768 = vsel %vm2191, %v2750, %v2752
        %v2769 = vsel %vm2191, %v2752, %v2754
        %v2770 = vsel %vm2191, %v2754, %v2756
        %v2771 = vsel %vm2191, %v2756, %v2758
        %v2772 = vsel %vm2191, %v2758, %v2760
        %v2773 = vsel %vm2191, %v2760, %v2762
        %v2774 = vsel %vm2191, %v2762, %v2764
        %v2788 = vlaneseq
        %v2789 = vshrl.u32 %v2788, 7
        %v2790 = vsub.s32 0, %v2789
        %v2791 = vrot.slane %v2299, %v2790
        %v2792 = vlaneseq
        %v2793 = vshrl.u32 %v2792, 7
        %v2794 = vsub.s32 1, %v2793
        %v2795 = vrot.slane %v2299, %v2794
        %v2796 = vlaneseq
        %v2797 = vshrl.u32 %v2796, 7
        %v2798 = vsub.s32 2, %v2797
        %v2799 = vrot.slane %v2299, %v2798
        %v2800 = vlaneseq
        %v2801 = vshrl.u32 %v2800, 7
        %v2802 = vsub.s32 3, %v2801
        %v2803 = vrot.slane %v2299, %v2802
        %v2804 = vlaneseq
        %v2805 = vshrl.u32 %v2804, 7
        %v2806 = vsub.s32 4, %v2805
        %v2807 = vrot.slane %v2299, %v2806
        %v2808 = vlaneseq
        %v2809 = vshrl.u32 %v2808, 7
        %v2810 = vsub.s32 5, %v2809
        %v2811 = vrot.slane %v2299, %v2810
        %v2812 = vlaneseq
        %v2813 = vshrl.u32 %v2812, 7
        %v2814 = vsub.s32 6, %v2813
        %v2815 = vrot.slane %v2299, %v2814
        %v2816 = vlaneseq
        %v2817 = vshrl.u32 %v2816, 7
        %v2818 = vsub.s32 7, %v2817
        %v2819 = vrot.slane %v2299, %v2818
        %v2820 = vlaneseq
        %v2821 = vshrl.u32 %v2820, 7
        %v2822 = vsub.s32 0, %v2821
        %v2823 = vrot.slane %v2300, %v2822
        %v2824 = vlaneseq
        %v2825 = vshrl.u32 %v2824, 7
        %v2826 = vsub.s32 1, %v2825
        %v2827 = vrot.slane %v2300, %v2826
        %2828 = vrot.lane.b32.xlu0 %v2791, 47
        %v2829 = vpop.permute.xlu0 %2828
        %2830 = vrot.lane.b32.xlu0 %v2795, 47
        %v2831 = vpop.permute.xlu0 %2830
        %2832 = vrot.lane.b32.xlu0 %v2799, 47
        %v2833 = vpop.permute.xlu0 %2832
        %2834 = vrot.lane.b32.xlu0 %v2803, 47
        %v2835 = vpop.permute.xlu0 %2834
        %2836 = vrot.lane.b32.xlu0 %v2807, 47
        %v2837 = vpop.permute.xlu0 %2836
        %2838 = vrot.lane.b32.xlu0 %v2811, 47
        %v2839 = vpop.permute.xlu0 %2838
        %2840 = vrot.lane.b32.xlu0 %v2815, 47
        %v2841 = vpop.permute.xlu0 %2840
        %2842 = vrot.lane.b32.xlu0 %v2819, 47
        %v2843 = vpop.permute.xlu0 %2842
        %2844 = vrot.lane.b32.xlu0 %v2823, 47
        %v2845 = vpop.permute.xlu0 %2844
        %2846 = vrot.lane.b32.xlu0 %v2827, 47
        %v2847 = vpop.permute.xlu0 %2846
        %v2848 = vsel %vm2151, %v2829, %v2831
        %v2849 = vsel %vm2151, %v2831, %v2833
        %v2850 = vsel %vm2151, %v2833, %v2835
        %v2851 = vsel %vm2151, %v2835, %v2837
        %v2852 = vsel %vm2151, %v2837, %v2839
        %v2853 = vsel %vm2151, %v2839, %v2841
        %v2854 = vsel %vm2151, %v2841, %v2843
        %v2855 = vsel %vm2151, %v2843, %v2845
        %v2856 = vsel %vm2151, %v2845, %v2847
        %v2870 = vlaneseq
        %v2871 = vshrl.u32 %v2870, 7
        %v2872 = vsub.s32 0, %v2871
        %v2873 = vrot.slane %v2340, %v2872
        %v2874 = vlaneseq
        %v2875 = vshrl.u32 %v2874, 7
        %v2876 = vsub.s32 1, %v2875
        %v2877 = vrot.slane %v2340, %v2876
        %v2878 = vlaneseq
        %v2879 = vshrl.u32 %v2878, 7
        %v2880 = vsub.s32 2, %v2879
        %v2881 = vrot.slane %v2340, %v2880
        %v2882 = vlaneseq
        %v2883 = vshrl.u32 %v2882, 7
        %v2884 = vsub.s32 3, %v2883
        %v2885 = vrot.slane %v2340, %v2884
        %v2886 = vlaneseq
        %v2887 = vshrl.u32 %v2886, 7
        %v2888 = vsub.s32 4, %v2887
        %v2889 = vrot.slane %v2340, %v2888
        %v2890 = vlaneseq
        %v2891 = vshrl.u32 %v2890, 7
        %v2892 = vsub.s32 5, %v2891
        %v2893 = vrot.slane %v2340, %v2892
        %v2894 = vlaneseq
        %v2895 = vshrl.u32 %v2894, 7
        %v2896 = vsub.s32 6, %v2895
        %v2897 = vrot.slane %v2340, %v2896
        %v2898 = vlaneseq
        %v2899 = vshrl.u32 %v2898, 7
        %v2900 = vsub.s32 7, %v2899
        %v2901 = vrot.slane %v2340, %v2900
        %v2902 = vlaneseq
        %v2903 = vshrl.u32 %v2902, 7
        %v2904 = vsub.s32 0, %v2903
        %v2905 = vrot.slane %v2341, %v2904
        %v2906 = vlaneseq
        %v2907 = vshrl.u32 %v2906, 7
        %v2908 = vsub.s32 1, %v2907
        %v2909 = vrot.slane %v2341, %v2908
        %v2910 = vlaneseq
        %v2911 = vshrl.u32 %v2910, 7
        %v2912 = vsub.s32 2, %v2911
        %v2913 = vrot.slane %v2341, %v2912
        %2914 = vrot.lane.b32.xlu0 %v2873, 46
        %v2915 = vpop.permute.xlu0 %2914
        %2916 = vrot.lane.b32.xlu0 %v2877, 46
        %v2917 = vpop.permute.xlu0 %2916
        %2918 = vrot.lane.b32.xlu0 %v2881, 46
        %v2919 = vpop.permute.xlu0 %2918
        %2920 = vrot.lane.b32.xlu0 %v2885, 46
        %v2921 = vpop.permute.xlu0 %2920
        %2922 = vrot.lane.b32.xlu0 %v2889, 46
        %v2923 = vpop.permute.xlu0 %2922
        %2924 = vrot.lane.b32.xlu0 %v2893, 46
        %v2925 = vpop.permute.xlu0 %2924
        %2926 = vrot.lane.b32.xlu0 %v2897, 46
        %v2927 = vpop.permute.xlu0 %2926
        %2928 = vrot.lane.b32.xlu0 %v2901, 46
        %v2929 = vpop.permute.xlu0 %2928
        %2930 = vrot.lane.b32.xlu0 %v2905, 46
        %v2931 = vpop.permute.xlu0 %2930
        %2932 = vrot.lane.b32.xlu0 %v2909, 46
        %v2933 = vpop.permute.xlu0 %2932
        %2934 = vrot.lane.b32.xlu0 %v2913, 46
        %v2935 = vpop.permute.xlu0 %2934
        %vm2936 = vcmask 375808
        %v2937 = vsel %vm2936, %v2915, %v2917
        %v2938 = vsel %vm2936, %v2917, %v2919
        %v2939 = vsel %vm2936, %v2919, %v2921
        %v2940 = vsel %vm2936, %v2921, %v2923
        %v2941 = vsel %vm2936, %v2923, %v2925
        %v2942 = vsel %vm2936, %v2925, %v2927
        %v2943 = vsel %vm2936, %v2927, %v2929
        %v2944 = vsel %vm2936, %v2929, %v2931
        %v2945 = vsel %vm2936, %v2931, %v2933
        %v2946 = vsel %vm2936, %v2933, %v2935
        %v2960 = vlaneseq
        %v2961 = vshrl.u32 %v2960, 7
        %v2962 = vsub.s32 0, %v2961
        %v2963 = vrot.slane %v2356, %v2962
        %v2964 = vlaneseq
        %v2965 = vshrl.u32 %v2964, 7
        %v2966 = vsub.s32 1, %v2965
        %v2967 = vrot.slane %v2356, %v2966
        %v2968 = vlaneseq
        %v2969 = vshrl.u32 %v2968, 7
        %v2970 = vsub.s32 2, %v2969
        %v2971 = vrot.slane %v2356, %v2970
        %v2972 = vlaneseq
        %v2973 = vshrl.u32 %v2972, 7
        %v2974 = vsub.s32 3, %v2973
        %v2975 = vrot.slane %v2356, %v2974
        %v2976 = vlaneseq
        %v2977 = vshrl.u32 %v2976, 7
        %v2978 = vsub.s32 4, %v2977
        %v2979 = vrot.slane %v2356, %v2978
        %v2980 = vlaneseq
        %v2981 = vshrl.u32 %v2980, 7
        %v2982 = vsub.s32 5, %v2981
        %v2983 = vrot.slane %v2356, %v2982
        %v2984 = vlaneseq
        %v2985 = vshrl.u32 %v2984, 7
        %v2986 = vsub.s32 6, %v2985
        %v2987 = vrot.slane %v2356, %v2986
        %v2988 = vlaneseq
        %v2989 = vshrl.u32 %v2988, 7
        %v2990 = vsub.s32 7, %v2989
        %v2991 = vrot.slane %v2356, %v2990
        %v2992 = vlaneseq
        %v2993 = vshrl.u32 %v2992, 7
        %v2994 = vsub.s32 0, %v2993
        %v2995 = vrot.slane %v2357, %v2994
        %v2996 = vlaneseq
        %v2997 = vshrl.u32 %v2996, 7
        %v2998 = vsub.s32 1, %v2997
        %v2999 = vrot.slane %v2357, %v2998
        %v3000 = vlaneseq
        %v3001 = vshrl.u32 %v3000, 7
        %v3002 = vsub.s32 2, %v3001
        %v3003 = vrot.slane %v2357, %v3002
        %3004 = vrot.lane.b32.xlu0 %v2963, 96
        %v3005 = vpop.permute.xlu0 %3004
        %3006 = vrot.lane.b32.xlu0 %v2967, 96
        %v3007 = vpop.permute.xlu0 %3006
        %3008 = vrot.lane.b32.xlu0 %v2971, 96
        %v3009 = vpop.permute.xlu0 %3008
        %3010 = vrot.lane.b32.xlu0 %v2975, 96
        %v3011 = vpop.permute.xlu0 %3010
        %3012 = vrot.lane.b32.xlu0 %v2979, 96
        %v3013 = vpop.permute.xlu0 %3012
        %3014 = vrot.lane.b32.xlu0 %v2983, 96
        %v3015 = vpop.permute.xlu0 %3014
        %3016 = vrot.lane.b32.xlu0 %v2987, 96
        %v3017 = vpop.permute.xlu0 %3016
        %3018 = vrot.lane.b32.xlu0 %v2991, 96
        %v3019 = vpop.permute.xlu0 %3018
        %3020 = vrot.lane.b32.xlu0 %v2995, 96
        %v3021 = vpop.permute.xlu0 %3020
        %3022 = vrot.lane.b32.xlu0 %v2999, 96
        %v3023 = vpop.permute.xlu0 %3022
        %3024 = vrot.lane.b32.xlu0 %v3003, 96
        %v3025 = vpop.permute.xlu0 %3024
        %v3026 = vsel %vm1958, %v3005, %v3007
        %v3027 = vsel %vm1958, %v3007, %v3009
        %v3028 = vsel %vm1958, %v3009, %v3011
        %v3029 = vsel %vm1958, %v3011, %v3013
        %v3030 = vsel %vm1958, %v3013, %v3015
        %v3031 = vsel %vm1958, %v3015, %v3017
        %v3032 = vsel %vm1958, %v3017, %v3019
        %v3033 = vsel %vm1958, %v3019, %v3021
        %v3034 = vsel %vm1958, %v3021, %v3023
        %v3035 = vsel %vm1958, %v3023, %v3025
        %v3049 = vlaneseq
        %v3050 = vshrl.u32 %v3049, 7
        %v3051 = vsub.s32 0, %v3050
        %v3052 = vrot.slane %v2371, %v3051
        %v3053 = vlaneseq
        %v3054 = vshrl.u32 %v3053, 7
        %v3055 = vsub.s32 1, %v3054
        %v3056 = vrot.slane %v2371, %v3055
        %v3057 = vlaneseq
        %v3058 = vshrl.u32 %v3057, 7
        %v3059 = vsub.s32 2, %v3058
        %v3060 = vrot.slane %v2371, %v3059
        %v3061 = vlaneseq
        %v3062 = vshrl.u32 %v3061, 7
        %v3063 = vsub.s32 3, %v3062
        %v3064 = vrot.slane %v2371, %v3063
        %v3065 = vlaneseq
        %v3066 = vshrl.u32 %v3065, 7
        %v3067 = vsub.s32 4, %v3066
        %v3068 = vrot.slane %v2371, %v3067
        %v3069 = vlaneseq
        %v3070 = vshrl.u32 %v3069, 7
        %v3071 = vsub.s32 5, %v3070
        %v3072 = vrot.slane %v2371, %v3071
        %v3073 = vlaneseq
        %v3074 = vshrl.u32 %v3073, 7
        %v3075 = vsub.s32 6, %v3074
        %v3076 = vrot.slane %v2371, %v3075
        %v3077 = vlaneseq
        %v3078 = vshrl.u32 %v3077, 7
        %v3079 = vsub.s32 7, %v3078
        %v3080 = vrot.slane %v2371, %v3079
        %v3081 = vlaneseq
        %v3082 = vshrl.u32 %v3081, 7
        %v3083 = vsub.s32 0, %v3082
        %v3084 = vrot.slane %v2372, %v3083
        %v3085 = vlaneseq
        %v3086 = vshrl.u32 %v3085, 7
        %v3087 = vsub.s32 1, %v3086
        %v3088 = vrot.slane %v2372, %v3087
        %v3089 = vlaneseq
        %v3090 = vshrl.u32 %v3089, 7
        %v3091 = vsub.s32 2, %v3090
        %v3092 = vrot.slane %v2372, %v3091
        %3093 = vrot.lane.b32.xlu0 %v3052, 95
        %v3094 = vpop.permute.xlu0 %3093
        %3095 = vrot.lane.b32.xlu0 %v3056, 95
        %v3096 = vpop.permute.xlu0 %3095
        %3097 = vrot.lane.b32.xlu0 %v3060, 95
        %v3098 = vpop.permute.xlu0 %3097
        %3099 = vrot.lane.b32.xlu0 %v3064, 95
        %v3100 = vpop.permute.xlu0 %3099
        %3101 = vrot.lane.b32.xlu0 %v3068, 95
        %v3102 = vpop.permute.xlu0 %3101
        %3103 = vrot.lane.b32.xlu0 %v3072, 95
        %v3104 = vpop.permute.xlu0 %3103
        %3105 = vrot.lane.b32.xlu0 %v3076, 95
        %v3106 = vpop.permute.xlu0 %3105
        %3107 = vrot.lane.b32.xlu0 %v3080, 95
        %v3108 = vpop.permute.xlu0 %3107
        %3109 = vrot.lane.b32.xlu0 %v3084, 95
        %v3110 = vpop.permute.xlu0 %3109
        %3111 = vrot.lane.b32.xlu0 %v3088, 95
        %v3112 = vpop.permute.xlu0 %3111
        %3113 = vrot.lane.b32.xlu0 %v3092, 95
        %v3114 = vpop.permute.xlu0 %3113
        %vm3115 = vcmask 777216
        %v3116 = vsel %vm3115, %v3094, %v3096
        %v3117 = vsel %vm3115, %v3096, %v3098
        %v3118 = vsel %vm3115, %v3098, %v3100
        %v3119 = vsel %vm3115, %v3100, %v3102
        %v3120 = vsel %vm3115, %v3102, %v3104
        %v3121 = vsel %vm3115, %v3104, %v3106
        %v3122 = vsel %vm3115, %v3106, %v3108
        %v3123 = vsel %vm3115, %v3108, %v3110
        %v3124 = vsel %vm3115, %v3110, %v3112
        %v3125 = vsel %vm3115, %v3112, %v3114
        %v3139 = vlaneseq
        %v3140 = vshrl.u32 %v3139, 7
        %v3141 = vsub.s32 0, %v3140
        %v3142 = vrot.slane %v2459, %v3141
        %v3143 = vlaneseq
        %v3144 = vshrl.u32 %v3143, 7
        %v3145 = vsub.s32 1, %v3144
        %v3146 = vrot.slane %v2459, %v3145
        %v3147 = vlaneseq
        %v3148 = vshrl.u32 %v3147, 7
        %v3149 = vsub.s32 2, %v3148
        %v3150 = vrot.slane %v2459, %v3149
        %v3151 = vlaneseq
        %v3152 = vshrl.u32 %v3151, 7
        %v3153 = vsub.s32 3, %v3152
        %v3154 = vrot.slane %v2459, %v3153
        %v3155 = vlaneseq
        %v3156 = vshrl.u32 %v3155, 7
        %v3157 = vsub.s32 4, %v3156
        %v3158 = vrot.slane %v2459, %v3157
        %v3159 = vlaneseq
        %v3160 = vshrl.u32 %v3159, 7
        %v3161 = vsub.s32 5, %v3160
        %v3162 = vrot.slane %v2459, %v3161
        %v3163 = vlaneseq
        %v3164 = vshrl.u32 %v3163, 7
        %v3165 = vsub.s32 6, %v3164
        %v3166 = vrot.slane %v2459, %v3165
        %v3167 = vlaneseq
        %v3168 = vshrl.u32 %v3167, 7
        %v3169 = vsub.s32 7, %v3168
        %v3170 = vrot.slane %v2459, %v3169
        %v3171 = vlaneseq
        %v3172 = vshrl.u32 %v3171, 7
        %v3173 = vsub.s32 0, %v3172
        %v3174 = vrot.slane %v2460, %v3173
        %v3175 = vlaneseq
        %v3176 = vshrl.u32 %v3175, 7
        %v3177 = vsub.s32 1, %v3176
        %v3178 = vrot.slane %v2460, %v3177
        %v3179 = vlaneseq
        %v3180 = vshrl.u32 %v3179, 7
        %v3181 = vsub.s32 2, %v3180
        %v3182 = vrot.slane %v2460, %v3181
        %3183 = vrot.lane.b32.xlu0 %v3142, 94
        %v3184 = vpop.permute.xlu0 %3183
        %3185 = vrot.lane.b32.xlu0 %v3146, 94
        %v3186 = vpop.permute.xlu0 %3185
        %3187 = vrot.lane.b32.xlu0 %v3150, 94
        %v3188 = vpop.permute.xlu0 %3187
        %3189 = vrot.lane.b32.xlu0 %v3154, 94
        %v3190 = vpop.permute.xlu0 %3189
        %3191 = vrot.lane.b32.xlu0 %v3158, 94
        %v3192 = vpop.permute.xlu0 %3191
        %3193 = vrot.lane.b32.xlu0 %v3162, 94
        %v3194 = vpop.permute.xlu0 %3193
        %3195 = vrot.lane.b32.xlu0 %v3166, 94
        %v3196 = vpop.permute.xlu0 %3195
        %3197 = vrot.lane.b32.xlu0 %v3170, 94
        %v3198 = vpop.permute.xlu0 %3197
        %3199 = vrot.lane.b32.xlu0 %v3174, 94
        %v3200 = vpop.permute.xlu0 %3199
        %3201 = vrot.lane.b32.xlu0 %v3178, 94
        %v3202 = vpop.permute.xlu0 %3201
        %3203 = vrot.lane.b32.xlu0 %v3182, 94
        %v3204 = vpop.permute.xlu0 %3203
        %vm3205 = vcmask 769024
        %v3206 = vsel %vm3205, %v3184, %v3186
        %v3207 = vsel %vm3205, %v3186, %v3188
        %v3208 = vsel %vm3205, %v3188, %v3190
        %v3209 = vsel %vm3205, %v3190, %v3192
        %v3210 = vsel %vm3205, %v3192, %v3194
        %v3211 = vsel %vm3205, %v3194, %v3196
        %v3212 = vsel %vm3205, %v3196, %v3198
        %v3213 = vsel %vm3205, %v3198, %v3200
        %v3214 = vsel %vm3205, %v3200, %v3202
        %v3215 = vsel %vm3205, %v3202, %v3204
        %v3216 = vsel %vm2153, %v2466, %v2586
        %v3217 = vsel %vm2153, %v2470, %v2587
        %v3218 = vsel %vm2153, %v2474, %v2588
        %v3219 = vsel %vm2153, %v2478, %v2589
        %v3220 = vsel %vm2153, %v2482, %v2590
        %v3221 = vsel %vm2153, %v2486, %v2591
        %v3222 = vsel %vm2153, %v2490, %v2592
        %v3223 = vsel %vm2153, %v2494, %v2593
        %v3224 = vsel %vm2153, %v2498, %v2594
        %v3225 = vsel %vm2153, %v2502, %v2595
        %v3226 = vsel %vm2153, %v2506, %v2585
        %vm3227 = vcmask 1041408
        %v3228 = vsel %vm3227, %v3216, %v2676
        %v3229 = vsel %vm3227, %v3217, %v2677
        %v3230 = vsel %vm3227, %v3218, %v2678
        %v3231 = vsel %vm3227, %v3219, %v2679
        %v3232 = vsel %vm3227, %v3220, %v2680
        %v3233 = vsel %vm3227, %v3221, %v2681
        %v3234 = vsel %vm3227, %v3222, %v2682
        %v3235 = vsel %vm3227, %v3223, %v2683
        %v3236 = vsel %vm3227, %v3224, %v2684
        %v3237 = vsel %vm3227, %v3225, %v2685
        %v3238 = vsel %vm3227, %v3226, %v2674
        %vm3239 = vcmask 1042432
        %v3240 = vsel %vm3239, %v3228, %v2765
        %v3241 = vsel %vm3239, %v3229, %v2766
        %v3242 = vsel %vm3239, %v3230, %v2767
        %v3243 = vsel %vm3239, %v3231, %v2768
        %v3244 = vsel %vm3239, %v3232, %v2769
        %v3245 = vsel %vm3239, %v3233, %v2770
        %v3246 = vsel %vm3239, %v3234, %v2771
        %v3247 = vsel %vm3239, %v3235, %v2772
        %v3248 = vsel %vm3239, %v3236, %v2773
        %v3249 = vsel %vm3239, %v3237, %v2774
        %v3250 = vsel %vm3239, %v3238, %v2764
        %vm3251 = vcmask 1043456
        %v3252 = vsel %vm3251, %v3240, %v2829
        %v3253 = vsel %vm3251, %v3241, %v2848
        %v3254 = vsel %vm3251, %v3242, %v2849
        %v3255 = vsel %vm3251, %v3243, %v2850
        %v3256 = vsel %vm3251, %v3244, %v2851
        %v3257 = vsel %vm3251, %v3245, %v2852
        %v3258 = vsel %vm3251, %v3246, %v2853
        %v3259 = vsel %vm3251, %v3247, %v2854
        %v3260 = vsel %vm3251, %v3248, %v2855
        %v3261 = vsel %vm3251, %v3249, %v2856
        %v3262 = vsel %vm3251, %v3250, %v2847
        %vm3263 = vcmask 1044480
        %v3264 = vsel %vm3263, %v3252, %v2915
        %v3265 = vsel %vm3263, %v3253, %v2937
        %v3266 = vsel %vm3263, %v3254, %v2938
        %v3267 = vsel %vm3263, %v3255, %v2939
        %v3268 = vsel %vm3263, %v3256, %v2940
        %v3269 = vsel %vm3263, %v3257, %v2941
        %v3270 = vsel %vm3263, %v3258, %v2942
        %v3271 = vsel %vm3263, %v3259, %v2943
        %v3272 = vsel %vm3263, %v3260, %v2944
        %v3273 = vsel %vm3263, %v3261, %v2945
        %v3274 = vsel %vm3263, %v3262, %v2946
        %vm3275 = vcmask 1045504
        %v3276 = vsel %vm3275, %v3264, %v3026
        %v3277 = vsel %vm3275, %v3265, %v3027
        %v3278 = vsel %vm3275, %v3266, %v3028
        %v3279 = vsel %vm3275, %v3267, %v3029
        %v3280 = vsel %vm3275, %v3268, %v3030
        %v3281 = vsel %vm3275, %v3269, %v3031
        %v3282 = vsel %vm3275, %v3270, %v3032
        %v3283 = vsel %vm3275, %v3271, %v3033
        %v3284 = vsel %vm3275, %v3272, %v3034
        %v3285 = vsel %vm3275, %v3273, %v3035
        %v3286 = vsel %vm3275, %v3274, %v3025
        %vm3287 = vcmask 1046528
        %v3288 = vsel %vm3287, %v3276, %v3116
        %v3289 = vsel %vm3287, %v3277, %v3117
        %v3290 = vsel %vm3287, %v3278, %v3118
        %v3291 = vsel %vm3287, %v3279, %v3119
        %v3292 = vsel %vm3287, %v3280, %v3120
        %v3293 = vsel %vm3287, %v3281, %v3121
        %v3294 = vsel %vm3287, %v3282, %v3122
        %v3295 = vsel %vm3287, %v3283, %v3123
        %v3296 = vsel %vm3287, %v3284, %v3124
        %v3297 = vsel %vm3287, %v3285, %v3125
        %v3298 = vsel %vm3287, %v3286, %v3114
        %3300 = vset.pattern.permute.xlu0 9
        %3301 = vperm.xlu0 %3300, %v2059
        %v3302 = vpop.permute.xlu0 %3301
        %3305 = vset.pattern.permute.xlu0 9
        %3306 = vperm.xlu0 %3305, %v2060
        %v3307 = vpop.permute.xlu0 %3306
        %3310 = vset.pattern.permute.xlu0 9
        %3311 = vperm.xlu0 %3310, %v2061
        %v3312 = vpop.permute.xlu0 %3311
        %3315 = vset.pattern.permute.xlu0 9
        %3316 = vperm.xlu0 %3315, %v2062
        %v3317 = vpop.permute.xlu0 %3316
        %3320 = vset.pattern.permute.xlu0 9
        %3321 = vperm.xlu0 %3320, %v2063
        %v3322 = vpop.permute.xlu0 %3321
        %3325 = vset.pattern.permute.xlu0 9
        %3326 = vperm.xlu0 %3325, %v2064
        %v3327 = vpop.permute.xlu0 %3326
        %3330 = vset.pattern.permute.xlu0 9
        %3331 = vperm.xlu0 %3330, %v2065
        %v3332 = vpop.permute.xlu0 %3331
        %3335 = vset.pattern.permute.xlu0 9
        %3336 = vperm.xlu0 %3335, %v2066
        %v3337 = vpop.permute.xlu0 %3336
        %3350 = vrot.lane.b32.xlu0 %v3288, 81
        %v3351 = vpop.permute.xlu0 %3350
        %3352 = vrot.lane.b32.xlu0 %v3289, 81
        %v3353 = vpop.permute.xlu0 %3352
        %3354 = vrot.lane.b32.xlu0 %v3290, 81
        %v3355 = vpop.permute.xlu0 %3354
        %3356 = vrot.lane.b32.xlu0 %v3291, 81
        %v3357 = vpop.permute.xlu0 %3356
        %3358 = vrot.lane.b32.xlu0 %v3292, 81
        %v3359 = vpop.permute.xlu0 %3358
        %3360 = vrot.lane.b32.xlu0 %v3293, 81
        %v3361 = vpop.permute.xlu0 %3360
        %3362 = vrot.lane.b32.xlu0 %v3294, 81
        %v3363 = vpop.permute.xlu0 %3362
        %3364 = vrot.lane.b32.xlu0 %v3295, 81
        %v3365 = vpop.permute.xlu0 %3364
        %3366 = vrot.lane.b32.xlu0 %v3296, 81
        %v3367 = vpop.permute.xlu0 %3366
        %3368 = vrot.lane.b32.xlu0 %v3297, 81
        %v3369 = vpop.permute.xlu0 %3368
        %3370 = vrot.lane.b32.xlu0 %v3298, 81
        %v3371 = vpop.permute.xlu0 %3370
        %3372 = vrot.lane.b32.xlu0 %v3206, 81
        %v3373 = vpop.permute.xlu0 %3372
        %3374 = vrot.lane.b32.xlu0 %v3207, 81
        %v3375 = vpop.permute.xlu0 %3374
        %3376 = vrot.lane.b32.xlu0 %v3208, 81
        %v3377 = vpop.permute.xlu0 %3376
        %3378 = vrot.lane.b32.xlu0 %v3209, 81
        %v3379 = vpop.permute.xlu0 %3378
        %3380 = vrot.lane.b32.xlu0 %v3210, 81
        %v3381 = vpop.permute.xlu0 %3380
        %3382 = vrot.lane.b32.xlu0 %v3211, 81
        %v3383 = vpop.permute.xlu0 %3382
        %3384 = vrot.lane.b32.xlu0 %v3212, 81
        %v3385 = vpop.permute.xlu0 %3384
        %3386 = vrot.lane.b32.xlu0 %v3213, 81
        %v3387 = vpop.permute.xlu0 %3386
        %3388 = vrot.lane.b32.xlu0 %v3214, 81
        %v3389 = vpop.permute.xlu0 %3388
        %3390 = vrot.lane.b32.xlu0 %v3215, 81
        %v3391 = vpop.permute.xlu0 %3390
        %3392 = vrot.lane.b32.xlu0 %v3204, 81
        %v3393 = vpop.permute.xlu0 %3392
        %v3394 = vsel %vm2453, %v3351, %v3353
        %v3395 = vsel %vm2453, %v3353, %v3355
        %v3396 = vsel %vm2453, %v3355, %v3357
        %v3397 = vsel %vm2453, %v3357, %v3359
        %v3398 = vsel %vm2453, %v3359, %v3361
        %v3399 = vsel %vm2453, %v3361, %v3363
        %v3400 = vsel %vm2453, %v3363, %v3365
        %v3401 = vsel %vm2453, %v3365, %v3367
        %v3402 = vsel %vm2453, %v3367, %v3369
        %v3403 = vsel %vm2453, %v3369, %v3371
        %v3404 = vsel %vm2453, %v3373, %v3375
        %v3405 = vsel %vm2453, %v3375, %v3377
        %v3406 = vsel %vm2453, %v3377, %v3379
        %v3407 = vsel %vm2453, %v3379, %v3381
        %v3408 = vsel %vm2453, %v3381, %v3383
        %v3409 = vsel %vm2453, %v3383, %v3385
        %v3410 = vsel %vm2453, %v3385, %v3387
        %v3411 = vsel %vm2453, %v3387, %v3389
        %v3412 = vsel %vm2453, %v3389, %v3391
        %v3413 = vsel %vm2453, %v3391, %v3393
        %vm3424 = vcmask 72704
        %v3425 = vsel %vm3424, %v2059, 0
        %v3427 = vsel %vm3424, %v2060, 0
        %v3429 = vsel %vm3424, %v2061, 0
        %v3431 = vsel %vm3424, %v2062, 0
        %v3433 = vsel %vm3424, %v2063, 0
        %v3435 = vsel %vm3424, %v2064, 0
        %v3437 = vsel %vm3424, %v2065, 0
        %v3439 = vsel %vm3424, %v2066, 0
        %v3441 = vsel %vm2153, %v3404, 0
        %v3443 = vsel %vm2153, %v3405, 0
        %v3445 = vsel %vm2153, %v3406, 0
        %v3447 = vsel %vm2153, %v3407, 0
        %v3449 = vsel %vm2153, %v3408, 0
        %v3451 = vsel %vm2153, %v3409, 0
        %v3453 = vsel %vm2153, %v3410, 0
        %v3455 = vsel %vm2153, %v3411, 0
        %v3457 = vsel %vm2153, %v3412, 0
        %v3459 = vsel %vm2153, %v3413, 0
        %3461 = vmatprep.subr.mxu0 %v3395
        %3462 = vmatpush1.msra.mxu0 %v3394
        %3463 = vmatprep.subr.mxu0 %v3443
        %3464 = vmatpush1.msra.mxu0 %v3441
        %3465 = vmatprep.subr.mxu0 0.0
        %3466 = vmatpush1.msra.mxu0 0.0
        %3467 = vmatprep.subr.mxu0 0.0
        %3468 = vmatpush1.msra.mxu0 0.0
        %3469 = vmatprep.subr.mxu0 0.0
        %3470 = vmatpush1.msra.mxu0 0.0
        %3471 = vmatprep.subr.mxu0 0.0
        %3472 = vmatpush1.msra.mxu0 0.0
        %3473 = vmatprep.subr.mxu0 0.0
        %3474 = vmatpush1.msra.mxu0 0.0
        %3475 = vmatprep.subr.mxu0 0.0
        %3476 = vmatpush1.msra.mxu0 0.0
        %3477 = vmatprep.subr.mxu0 0.0
        %3478 = vmatpush1.msra.mxu0 0.0
        %3479 = vmatprep.subr.mxu0 0.0
        %3480 = vmatpush1.msra.mxu0 0.0
        %3481 = vmatprep.subr.mxu0 0.0
        %3482 = vmatpush1.msra.mxu0 0.0
        %3483 = vmatprep.subr.mxu0 0.0
        %3484 = vmatpush1.msra.mxu0 0.0
        %3485 = vmatprep.subr.mxu0 0.0
        %3486 = vmatpush1.msra.mxu0 0.0
        %3487 = vmatprep.subr.mxu0 0.0
        %3488 = vmatpush1.msra.mxu0 0.0
        %3489 = vmatprep.subr.mxu0 0.0
        %3490 = vmatpush1.msra.mxu0 0.0
        %3491 = vmatprep.subr.mxu0 0.0
        %3492 = vmatpush1.msra.mxu0 0.0
        %3493 = vmatprep.subr.mxu0 0.0
        %3494 = vmatpush1.msra.mxu0 0.0
        %3495 = vmatprep.subr.mxu0 0.0
        %3496 = vmatpush1.msra.mxu0 0.0
        %3497 = vmatprep.subr.mxu0 0.0
        %3498 = vmatpush1.msra.mxu0 0.0
        %3499 = vmatprep.subr.mxu0 0.0
        %3500 = vmatpush1.msra.mxu0 0.0
        %3501 = vmatprep.subr.mxu0 0.0
        %3502 = vmatpush1.msra.mxu0 0.0
        %3503 = vmatprep.subr.mxu0 0.0
        %3504 = vmatpush1.msra.mxu0 0.0
        %3505 = vmatprep.subr.mxu0 0.0
        %3506 = vmatpush1.msra.mxu0 0.0
        %3507 = vmatprep.subr.mxu0 0.0
        %3508 = vmatpush1.msra.mxu0 0.0
        %3509 = vmatprep.subr.mxu0 0.0
        %3510 = vmatpush1.msra.mxu0 0.0
        %3511 = vmatprep.subr.mxu0 0.0
        %3512 = vmatpush1.msra.mxu0 0.0
        %3513 = vmatprep.subr.mxu0 0.0
        %3514 = vmatpush1.msra.mxu0 0.0
        %3515 = vmatprep.subr.mxu0 0.0
        %3516 = vmatpush1.msra.mxu0 0.0
        %3517 = vmatprep.subr.mxu0 0.0
        %3518 = vmatpush1.msra.mxu0 0.0
        %3519 = vmatprep.subr.mxu0 0.0
        %3520 = vmatpush1.msra.mxu0 0.0
        %3521 = vmatprep.subr.mxu0 0.0
        %3522 = vmatpush1.msra.mxu0 0.0
        %3523 = vmatprep.subr.mxu0 0.0
        %3524 = vmatpush1.msra.mxu0 0.0
        %3525 = vmatprep.mubr.f32.mxu0 0.0
        %3526 = vmatmul.mubr.f32.gmra.mrb[0].mxu0 %v3425
        %v3527 = vpop.f32.mrb[0].mxu0
        %v3528 = vadd.f32 %v3302, %v3527
        %v3529 = vpop.f32.mrb[0].mxu0
        %v3530 = vadd.f32 %v3302, %v3529
        %3531 = vmatprep.mubr.f32.mxu0 0.0
        %3532 = vmatmul.mubr.f32.gmra.mrb[0].mxu0 %v3427
        %v3533 = vpop.f32.mrb[0].mxu0
        %v3534 = vadd.f32 %v3307, %v3533
        %v3535 = vpop.f32.mrb[0].mxu0
        %v3536 = vadd.f32 %v3307, %v3535
        %3537 = vmatprep.mubr.f32.mxu0 0.0
        %3538 = vmatmul.mubr.f32.gmra.mrb[0].mxu0 %v3429
        %v3539 = vpop.f32.mrb[0].mxu0
        %v3540 = vadd.f32 %v3312, %v3539
        %v3541 = vpop.f32.mrb[0].mxu0
        %v3542 = vadd.f32 %v3312, %v3541
        %3543 = vmatprep.mubr.f32.mxu0 0.0
        %3544 = vmatmul.mubr.f32.gmra.mrb[0].mxu0 %v3431
        %v3545 = vpop.f32.mrb[0].mxu0
        %v3546 = vadd.f32 %v3317, %v3545
        %v3547 = vpop.f32.mrb[0].mxu0
        %v3548 = vadd.f32 %v3317, %v3547
        %3549 = vmatprep.mubr.f32.mxu0 0.0
        %3550 = vmatmul.mubr.f32.gmra.mrb[0].mxu0 %v3433
        %v3551 = vpop.f32.mrb[0].mxu0
        %v3552 = vadd.f32 %v3322, %v3551
        %v3553 = vpop.f32.mrb[0].mxu0
        %v3554 = vadd.f32 %v3322, %v3553
        %3555 = vmatprep.mubr.f32.mxu0 0.0
        %3556 = vmatmul.mubr.f32.gmra.mrb[0].mxu0 %v3435
        %v3557 = vpop.f32.mrb[0].mxu0
        %v3558 = vadd.f32 %v3327, %v3557
        %v3559 = vpop.f32.mrb[0].mxu0
        %v3560 = vadd.f32 %v3327, %v3559
        %3561 = vmatprep.mubr.f32.mxu0 0.0
        %3562 = vmatmul.mubr.f32.gmra.mrb[0].mxu0 %v3437
        %v3563 = vpop.f32.mrb[0].mxu0
        %v3564 = vadd.f32 %v3332, %v3563
        %v3565 = vpop.f32.mrb[0].mxu0
        %v3566 = vadd.f32 %v3332, %v3565
        %3567 = vmatprep.mubr.f32.mxu0 0.0
        %3568 = vmatmul.mubr.f32.gmra.mrb[0].mxu0 %v3439
        %v3569 = vpop.f32.mrb[0].mxu0
        %v3570 = vadd.f32 %v3337, %v3569
        %v3571 = vpop.f32.mrb[0].mxu0
        %v3572 = vadd.f32 %v3337, %v3571
        %3573 = vdwg.mxu0
        %3574 = vmatprep.subr.mxu0 %v3397
        %3575 = vmatpush1.msra.mxu0 %v3396
        %3576 = vmatprep.subr.mxu0 %v3447
        %3577 = vmatpush1.msra.mxu0 %v3445
        %3578 = vmatprep.subr.mxu0 0.0
        %3579 = vmatpush1.msra.mxu0 0.0
        %3580 = vmatprep.subr.mxu0 0.0
        %3581 = vmatpush1.msra.mxu0 0.0
        %3582 = vmatprep.subr.mxu0 0.0
        %3583 = vmatpush1.msra.mxu0 0.0
        %3584 = vmatprep.subr.mxu0 0.0
        %3585 = vmatpush1.msra.mxu0 0.0
        %3586 = vmatprep.subr.mxu0 0.0
        %3587 = vmatpush1.msra.mxu0 0.0
        %3588 = vmatprep.subr.mxu0 0.0
        %3589 = vmatpush1.msra.mxu0 0.0
        %3590 = vmatprep.subr.mxu0 0.0
        %3591 = vmatpush1.msra.mxu0 0.0
        %3592 = vmatprep.subr.mxu0 0.0
        %3593 = vmatpush1.msra.mxu0 0.0
        %3594 = vmatprep.subr.mxu0 0.0
        %3595 = vmatpush1.msra.mxu0 0.0
        %3596 = vmatprep.subr.mxu0 0.0
        %3597 = vmatpush1.msra.mxu0 0.0
        %3598 = vmatprep.subr.mxu0 0.0
        %3599 = vmatpush1.msra.mxu0 0.0
        %3600 = vmatprep.subr.mxu0 0.0
        %3601 = vmatpush1.msra.mxu0 0.0
        %3602 = vmatprep.subr.mxu0 0.0
        %3603 = vmatpush1.msra.mxu0 0.0
        %3604 = vmatprep.subr.mxu0 0.0
        %3605 = vmatpush1.msra.mxu0 0.0
        %3606 = vmatprep.subr.mxu0 0.0
        %3607 = vmatpush1.msra.mxu0 0.0
        %3608 = vmatprep.subr.mxu0 0.0
        %3609 = vmatpush1.msra.mxu0 0.0
        %3610 = vmatprep.subr.mxu0 0.0
        %3611 = vmatpush1.msra.mxu0 0.0
        %3612 = vmatprep.subr.mxu0 0.0
        %3613 = vmatpush1.msra.mxu0 0.0
        %3614 = vmatprep.subr.mxu0 0.0
        %3615 = vmatpush1.msra.mxu0 0.0
        %3616 = vmatprep.subr.mxu0 0.0
        %3617 = vmatpush1.msra.mxu0 0.0
        %3618 = vmatprep.subr.mxu0 0.0
        %3619 = vmatpush1.msra.mxu0 0.0
        %3620 = vmatprep.subr.mxu0 0.0
        %3621 = vmatpush1.msra.mxu0 0.0
        %3622 = vmatprep.subr.mxu0 0.0
        %3623 = vmatpush1.msra.mxu0 0.0
        %3624 = vmatprep.subr.mxu0 0.0
        %3625 = vmatpush1.msra.mxu0 0.0
        %3626 = vmatprep.subr.mxu0 0.0
        %3627 = vmatpush1.msra.mxu0 0.0
        %3628 = vmatprep.subr.mxu0 0.0
        %3629 = vmatpush1.msra.mxu0 0.0
        %3630 = vmatprep.subr.mxu0 0.0
        %3631 = vmatpush1.msra.mxu0 0.0
        %3632 = vmatprep.subr.mxu0 0.0
        %3633 = vmatpush1.msra.mxu0 0.0
        %3634 = vmatprep.subr.mxu0 0.0
        %3635 = vmatpush1.msra.mxu0 0.0
        %3636 = vmatprep.subr.mxu0 0.0
        %3637 = vmatpush1.msra.mxu0 0.0
        %3638 = vmatprep.mubr.f32.mxu0 0.0
        %3639 = vmatmul.mubr.f32.gmra.mrb[0].mxu0 %v3425
        %v3640 = vpop.f32.mrb[0].mxu0
        %v3641 = vadd.f32 %v3302, %v3640
        %v3642 = vpop.f32.mrb[0].mxu0
        %v3643 = vadd.f32 %v3302, %v3642
        %3644 = vmatprep.mubr.f32.mxu0 0.0
        %3645 = vmatmul.mubr.f32.gmra.mrb[0].mxu0 %v3427
        %v3646 = vpop.f32.mrb[0].mxu0
        %v3647 = vadd.f32 %v3307, %v3646
        %v3648 = vpop.f32.mrb[0].mxu0
        %v3649 = vadd.f32 %v3307, %v3648
        %3650 = vmatprep.mubr.f32.mxu0 0.0
        %3651 = vmatmul.mubr.f32.gmra.mrb[0].mxu0 %v3429
        %v3652 = vpop.f32.mrb[0].mxu0
        %v3653 = vadd.f32 %v3312, %v3652
        %v3654 = vpop.f32.mrb[0].mxu0
        %v3655 = vadd.f32 %v3312, %v3654
        %3656 = vmatprep.mubr.f32.mxu0 0.0
        %3657 = vmatmul.mubr.f32.gmra.mrb[0].mxu0 %v3431
        %v3658 = vpop.f32.mrb[0].mxu0
        %v3659 = vadd.f32 %v3317, %v3658
        %v3660 = vpop.f32.mrb[0].mxu0
        %v3661 = vadd.f32 %v3317, %v3660
        %3662 = vmatprep.mubr.f32.mxu0 0.0
        %3663 = vmatmul.mubr.f32.gmra.mrb[0].mxu0 %v3433
        %v3664 = vpop.f32.mrb[0].mxu0
        %v3665 = vadd.f32 %v3322, %v3664
        %v3666 = vpop.f32.mrb[0].mxu0
        %v3667 = vadd.f32 %v3322, %v3666
        %3668 = vmatprep.mubr.f32.mxu0 0.0
        %3669 = vmatmul.mubr.f32.gmra.mrb[0].mxu0 %v3435
        %v3670 = vpop.f32.mrb[0].mxu0
        %v3671 = vadd.f32 %v3327, %v3670
        %v3672 = vpop.f32.mrb[0].mxu0
        %v3673 = vadd.f32 %v3327, %v3672
        %3674 = vmatprep.mubr.f32.mxu0 0.0
        %3675 = vmatmul.mubr.f32.gmra.mrb[0].mxu0 %v3437
        %v3676 = vpop.f32.mrb[0].mxu0
        %v3677 = vadd.f32 %v3332, %v3676
        %v3678 = vpop.f32.mrb[0].mxu0
        %v3679 = vadd.f32 %v3332, %v3678
        %3680 = vmatprep.mubr.f32.mxu0 0.0
        %3681 = vmatmul.mubr.f32.gmra.mrb[0].mxu0 %v3439
        %v3682 = vpop.f32.mrb[0].mxu0
        %v3683 = vadd.f32 %v3337, %v3682
        %v3684 = vpop.f32.mrb[0].mxu0
        %v3685 = vadd.f32 %v3337, %v3684
        %3686 = vdwg.mxu0
        %3687 = vmatprep.subr.mxu0 %v3399
        %3688 = vmatpush1.msra.mxu0 %v3398
        %3689 = vmatprep.subr.mxu0 %v3451
        %3690 = vmatpush1.msra.mxu0 %v3449
        %3691 = vmatprep.subr.mxu0 0.0
        %3692 = vmatpush1.msra.mxu0 0.0
        %3693 = vmatprep.subr.mxu0 0.0
        %3694 = vmatpush1.msra.mxu0 0.0
        %3695 = vmatprep.subr.mxu0 0.0
        %3696 = vmatpush1.msra.mxu0 0.0
        %3697 = vmatprep.subr.mxu0 0.0
        %3698 = vmatpush1.msra.mxu0 0.0
        %3699 = vmatprep.subr.mxu0 0.0
        %3700 = vmatpush1.msra.mxu0 0.0
        %3701 = vmatprep.subr.mxu0 0.0
        %3702 = vmatpush1.msra.mxu0 0.0
        %3703 = vmatprep.subr.mxu0 0.0
        %3704 = vmatpush1.msra.mxu0 0.0
        %3705 = vmatprep.subr.mxu0 0.0
        %3706 = vmatpush1.msra.mxu0 0.0
        %3707 = vmatprep.subr.mxu0 0.0
        %3708 = vmatpush1.msra.mxu0 0.0
        %3709 = vmatprep.subr.mxu0 0.0
        %3710 = vmatpush1.msra.mxu0 0.0
        %3711 = vmatprep.subr.mxu0 0.0
        %3712 = vmatpush1.msra.mxu0 0.0
        %3713 = vmatprep.subr.mxu0 0.0
        %3714 = vmatpush1.msra.mxu0 0.0
        %3715 = vmatprep.subr.mxu0 0.0
        %3716 = vmatpush1.msra.mxu0 0.0
        %3717 = vmatprep.subr.mxu0 0.0
        %3718 = vmatpush1.msra.mxu0 0.0
        %3719 = vmatprep.subr.mxu0 0.0
        %3720 = vmatpush1.msra.mxu0 0.0
        %3721 = vmatprep.subr.mxu0 0.0
        %3722 = vmatpush1.msra.mxu0 0.0
        %3723 = vmatprep.subr.mxu0 0.0
        %3724 = vmatpush1.msra.mxu0 0.0
        %3725 = vmatprep.subr.mxu0 0.0
        %3726 = vmatpush1.msra.mxu0 0.0
        %3727 = vmatprep.subr.mxu0 0.0
        %3728 = vmatpush1.msra.mxu0 0.0
        %3729 = vmatprep.subr.mxu0 0.0
        %3730 = vmatpush1.msra.mxu0 0.0
        %3731 = vmatprep.subr.mxu0 0.0
        %3732 = vmatpush1.msra.mxu0 0.0
        %3733 = vmatprep.subr.mxu0 0.0
        %3734 = vmatpush1.msra.mxu0 0.0
        %3735 = vmatprep.subr.mxu0 0.0
        %3736 = vmatpush1.msra.mxu0 0.0
        %3737 = vmatprep.subr.mxu0 0.0
        %3738 = vmatpush1.msra.mxu0 0.0
        %3739 = vmatprep.subr.mxu0 0.0
        %3740 = vmatpush1.msra.mxu0 0.0
        %3741 = vmatprep.subr.mxu0 0.0
        %3742 = vmatpush1.msra.mxu0 0.0
        %3743 = vmatprep.subr.mxu0 0.0
        %3744 = vmatpush1.msra.mxu0 0.0
        %3745 = vmatprep.subr.mxu0 0.0
        %3746 = vmatpush1.msra.mxu0 0.0
        %3747 = vmatprep.subr.mxu0 0.0
        %3748 = vmatpush1.msra.mxu0 0.0
        %3749 = vmatprep.subr.mxu0 0.0
        %3750 = vmatpush1.msra.mxu0 0.0
        %3751 = vmatprep.mubr.f32.mxu0 0.0
        %3752 = vmatmul.mubr.f32.gmra.mrb[0].mxu0 %v3425
        %v3753 = vpop.f32.mrb[0].mxu0
        %v3754 = vadd.f32 %v3302, %v3753
        %v3755 = vpop.f32.mrb[0].mxu0
        %v3756 = vadd.f32 %v3302, %v3755
        %3757 = vmatprep.mubr.f32.mxu0 0.0
        %3758 = vmatmul.mubr.f32.gmra.mrb[0].mxu0 %v3427
        %v3759 = vpop.f32.mrb[0].mxu0
        %v3760 = vadd.f32 %v3307, %v3759
        %v3761 = vpop.f32.mrb[0].mxu0
        %v3762 = vadd.f32 %v3307, %v3761
        %3763 = vmatprep.mubr.f32.mxu0 0.0
        %3764 = vmatmul.mubr.f32.gmra.mrb[0].mxu0 %v3429
        %v3765 = vpop.f32.mrb[0].mxu0
        %v3766 = vadd.f32 %v3312, %v3765
        %v3767 = vpop.f32.mrb[0].mxu0
        %v3768 = vadd.f32 %v3312, %v3767
        %3769 = vmatprep.mubr.f32.mxu0 0.0
        %3770 = vmatmul.mubr.f32.gmra.mrb[0].mxu0 %v3431
        %v3771 = vpop.f32.mrb[0].mxu0
        %v3772 = vadd.f32 %v3317, %v3771
        %v3773 = vpop.f32.mrb[0].mxu0
        %v3774 = vadd.f32 %v3317, %v3773
        %3775 = vmatprep.mubr.f32.mxu0 0.0
        %3776 = vmatmul.mubr.f32.gmra.mrb[0].mxu0 %v3433
        %v3777 = vpop.f32.mrb[0].mxu0
        %v3778 = vadd.f32 %v3322, %v3777
        %v3779 = vpop.f32.mrb[0].mxu0
        %v3780 = vadd.f32 %v3322, %v3779
        %3781 = vmatprep.mubr.f32.mxu0 0.0
        %3782 = vmatmul.mubr.f32.gmra.mrb[0].mxu0 %v3435
        %v3783 = vpop.f32.mrb[0].mxu0
        %v3784 = vadd.f32 %v3327, %v3783
        %v3785 = vpop.f32.mrb[0].mxu0
        %v3786 = vadd.f32 %v3327, %v3785
        %3787 = vmatprep.mubr.f32.mxu0 0.0
        %3788 = vmatmul.mubr.f32.gmra.mrb[0].mxu0 %v3437
        %v3789 = vpop.f32.mrb[0].mxu0
        %v3790 = vadd.f32 %v3332, %v3789
        %v3791 = vpop.f32.mrb[0].mxu0
        %v3792 = vadd.f32 %v3332, %v3791
        %3793 = vmatprep.mubr.f32.mxu0 0.0
        %3794 = vmatmul.mubr.f32.gmra.mrb[0].mxu0 %v3439
        %v3795 = vpop.f32.mrb[0].mxu0
        %v3796 = vadd.f32 %v3337, %v3795
        %v3797 = vpop.f32.mrb[0].mxu0
        %v3798 = vadd.f32 %v3337, %v3797
        %3799 = vdwg.mxu0
        %3800 = vmatprep.subr.mxu0 %v3401
        %3801 = vmatpush1.msra.mxu0 %v3400
        %3802 = vmatprep.subr.mxu0 %v3455
        %3803 = vmatpush1.msra.mxu0 %v3453
        %3804 = vmatprep.subr.mxu0 0.0
        %3805 = vmatpush1.msra.mxu0 0.0
        %3806 = vmatprep.subr.mxu0 0.0
        %3807 = vmatpush1.msra.mxu0 0.0
        %3808 = vmatprep.subr.mxu0 0.0
        %3809 = vmatpush1.msra.mxu0 0.0
        %3810 = vmatprep.subr.mxu0 0.0
        %3811 = vmatpush1.msra.mxu0 0.0
        %3812 = vmatprep.subr.mxu0 0.0
        %3813 = vmatpush1.msra.mxu0 0.0
        %3814 = vmatprep.subr.mxu0 0.0
        %3815 = vmatpush1.msra.mxu0 0.0
        %3816 = vmatprep.subr.mxu0 0.0
        %3817 = vmatpush1.msra.mxu0 0.0
        %3818 = vmatprep.subr.mxu0 0.0
        %3819 = vmatpush1.msra.mxu0 0.0
        %3820 = vmatprep.subr.mxu0 0.0
        %3821 = vmatpush1.msra.mxu0 0.0
        %3822 = vmatprep.subr.mxu0 0.0
        %3823 = vmatpush1.msra.mxu0 0.0
        %3824 = vmatprep.subr.mxu0 0.0
        %3825 = vmatpush1.msra.mxu0 0.0
        %3826 = vmatprep.subr.mxu0 0.0
        %3827 = vmatpush1.msra.mxu0 0.0
        %3828 = vmatprep.subr.mxu0 0.0
        %3829 = vmatpush1.msra.mxu0 0.0
        %3830 = vmatprep.subr.mxu0 0.0
        %3831 = vmatpush1.msra.mxu0 0.0
        %3832 = vmatprep.subr.mxu0 0.0
        %3833 = vmatpush1.msra.mxu0 0.0
        %3834 = vmatprep.subr.mxu0 0.0
        %3835 = vmatpush1.msra.mxu0 0.0
        %3836 = vmatprep.subr.mxu0 0.0
        %3837 = vmatpush1.msra.mxu0 0.0
        %3838 = vmatprep.subr.mxu0 0.0
        %3839 = vmatpush1.msra.mxu0 0.0
        %3840 = vmatprep.subr.mxu0 0.0
        %3841 = vmatpush1.msra.mxu0 0.0
        %3842 = vmatprep.subr.mxu0 0.0
        %3843 = vmatpush1.msra.mxu0 0.0
        %3844 = vmatprep.subr.mxu0 0.0
        %3845 = vmatpush1.msra.mxu0 0.0
        %3846 = vmatprep.subr.mxu0 0.0
        %3847 = vmatpush1.msra.mxu0 0.0
        %3848 = vmatprep.subr.mxu0 0.0
        %3849 = vmatpush1.msra.mxu0 0.0
        %3850 = vmatprep.subr.mxu0 0.0
        %3851 = vmatpush1.msra.mxu0 0.0
        %3852 = vmatprep.subr.mxu0 0.0
        %3853 = vmatpush1.msra.mxu0 0.0
        %3854 = vmatprep.subr.mxu0 0.0
        %3855 = vmatpush1.msra.mxu0 0.0
        %3856 = vmatprep.subr.mxu0 0.0
        %3857 = vmatpush1.msra.mxu0 0.0
        %3858 = vmatprep.subr.mxu0 0.0
        %3859 = vmatpush1.msra.mxu0 0.0
        %3860 = vmatprep.subr.mxu0 0.0
        %3861 = vmatpush1.msra.mxu0 0.0
        %3862 = vmatprep.subr.mxu0 0.0
        %3863 = vmatpush1.msra.mxu0 0.0
        %3864 = vmatprep.mubr.f32.mxu0 0.0
        %3865 = vmatmul.mubr.f32.gmra.mrb[0].mxu0 %v3425
        %v3866 = vpop.f32.mrb[0].mxu0
        %v3867 = vadd.f32 %v3302, %v3866
        %v3868 = vpop.f32.mrb[0].mxu0
        %v3869 = vadd.f32 %v3302, %v3868
        %3870 = vmatprep.mubr.f32.mxu0 0.0
        %3871 = vmatmul.mubr.f32.gmra.mrb[0].mxu0 %v3427
        %v3872 = vpop.f32.mrb[0].mxu0
        %v3873 = vadd.f32 %v3307, %v3872
        %v3874 = vpop.f32.mrb[0].mxu0
        %v3875 = vadd.f32 %v3307, %v3874
        %3876 = vmatprep.mubr.f32.mxu0 0.0
        %3877 = vmatmul.mubr.f32.gmra.mrb[0].mxu0 %v3429
        %v3878 = vpop.f32.mrb[0].mxu0
        %v3879 = vadd.f32 %v3312, %v3878
        %v3880 = vpop.f32.mrb[0].mxu0
        %v3881 = vadd.f32 %v3312, %v3880
        %3882 = vmatprep.mubr.f32.mxu0 0.0
        %3883 = vmatmul.mubr.f32.gmra.mrb[0].mxu0 %v3431
        %v3884 = vpop.f32.mrb[0].mxu0
        %v3885 = vadd.f32 %v3317, %v3884
        %v3886 = vpop.f32.mrb[0].mxu0
        %v3887 = vadd.f32 %v3317, %v3886
        %3888 = vmatprep.mubr.f32.mxu0 0.0
        %3889 = vmatmul.mubr.f32.gmra.mrb[0].mxu0 %v3433
        %v3890 = vpop.f32.mrb[0].mxu0
        %v3891 = vadd.f32 %v3322, %v3890
        %v3892 = vpop.f32.mrb[0].mxu0
        %v3893 = vadd.f32 %v3322, %v3892
        %3894 = vmatprep.mubr.f32.mxu0 0.0
        %3895 = vmatmul.mubr.f32.gmra.mrb[0].mxu0 %v3435
        %v3896 = vpop.f32.mrb[0].mxu0
        %v3897 = vadd.f32 %v3327, %v3896
        %v3898 = vpop.f32.mrb[0].mxu0
        %v3899 = vadd.f32 %v3327, %v3898
        %3900 = vmatprep.mubr.f32.mxu0 0.0
        %3901 = vmatmul.mubr.f32.gmra.mrb[0].mxu0 %v3437
        %v3902 = vpop.f32.mrb[0].mxu0
        %v3903 = vadd.f32 %v3332, %v3902
        %v3904 = vpop.f32.mrb[0].mxu0
        %v3905 = vadd.f32 %v3332, %v3904
        %3906 = vmatprep.mubr.f32.mxu0 0.0
        %3907 = vmatmul.mubr.f32.gmra.mrb[0].mxu0 %v3439
        %v3908 = vpop.f32.mrb[0].mxu0
        %v3909 = vadd.f32 %v3337, %v3908
        %v3910 = vpop.f32.mrb[0].mxu0
        %v3911 = vadd.f32 %v3337, %v3910
        %3912 = vdwg.mxu0
        %3913 = vmatprep.subr.mxu0 %v3403
        %3914 = vmatpush1.msra.mxu0 %v3402
        %3915 = vmatprep.subr.mxu0 %v3459
        %3916 = vmatpush1.msra.mxu0 %v3457
        %3917 = vmatprep.subr.mxu0 0.0
        %3918 = vmatpush1.msra.mxu0 0.0
        %3919 = vmatprep.subr.mxu0 0.0
        %3920 = vmatpush1.msra.mxu0 0.0
        %3921 = vmatprep.subr.mxu0 0.0
        %3922 = vmatpush1.msra.mxu0 0.0
        %3923 = vmatprep.subr.mxu0 0.0
        %3924 = vmatpush1.msra.mxu0 0.0
        %3925 = vmatprep.subr.mxu0 0.0
        %3926 = vmatpush1.msra.mxu0 0.0
        %3927 = vmatprep.subr.mxu0 0.0
        %3928 = vmatpush1.msra.mxu0 0.0
        %3929 = vmatprep.subr.mxu0 0.0
        %3930 = vmatpush1.msra.mxu0 0.0
        %3931 = vmatprep.subr.mxu0 0.0
        %3932 = vmatpush1.msra.mxu0 0.0
        %3933 = vmatprep.subr.mxu0 0.0
        %3934 = vmatpush1.msra.mxu0 0.0
        %3935 = vmatprep.subr.mxu0 0.0
        %3936 = vmatpush1.msra.mxu0 0.0
        %3937 = vmatprep.subr.mxu0 0.0
        %3938 = vmatpush1.msra.mxu0 0.0
        %3939 = vmatprep.subr.mxu0 0.0
        %3940 = vmatpush1.msra.mxu0 0.0
        %3941 = vmatprep.subr.mxu0 0.0
        %3942 = vmatpush1.msra.mxu0 0.0
        %3943 = vmatprep.subr.mxu0 0.0
        %3944 = vmatpush1.msra.mxu0 0.0
        %3945 = vmatprep.subr.mxu0 0.0
        %3946 = vmatpush1.msra.mxu0 0.0
        %3947 = vmatprep.subr.mxu0 0.0
        %3948 = vmatpush1.msra.mxu0 0.0
        %3949 = vmatprep.subr.mxu0 0.0
        %3950 = vmatpush1.msra.mxu0 0.0
        %3951 = vmatprep.subr.mxu0 0.0
        %3952 = vmatpush1.msra.mxu0 0.0
        %3953 = vmatprep.subr.mxu0 0.0
        %3954 = vmatpush1.msra.mxu0 0.0
        %3955 = vmatprep.subr.mxu0 0.0
        %3956 = vmatpush1.msra.mxu0 0.0
        %3957 = vmatprep.subr.mxu0 0.0
        %3958 = vmatpush1.msra.mxu0 0.0
        %3959 = vmatprep.subr.mxu0 0.0
        %3960 = vmatpush1.msra.mxu0 0.0
        %3961 = vmatprep.subr.mxu0 0.0
        %3962 = vmatpush1.msra.mxu0 0.0
        %3963 = vmatprep.subr.mxu0 0.0
        %3964 = vmatpush1.msra.mxu0 0.0
        %3965 = vmatprep.subr.mxu0 0.0
        %3966 = vmatpush1.msra.mxu0 0.0
        %3967 = vmatprep.subr.mxu0 0.0
        %3968 = vmatpush1.msra.mxu0 0.0
        %3969 = vmatprep.subr.mxu0 0.0
        %3970 = vmatpush1.msra.mxu0 0.0
        %3971 = vmatprep.subr.mxu0 0.0
        %3972 = vmatpush1.msra.mxu0 0.0
        %3973 = vmatprep.subr.mxu0 0.0
        %3974 = vmatpush1.msra.mxu0 0.0
        %3975 = vmatprep.subr.mxu0 0.0
        %3976 = vmatpush1.msra.mxu0 0.0
        %3977 = vmatprep.mubr.f32.mxu0 0.0
        %3978 = vmatmul.mubr.f32.gmra.mrb[0].mxu0 %v3425
        %v3979 = vpop.f32.mrb[0].mxu0
        %v3980 = vadd.f32 %v3302, %v3979
        %v3981 = vpop.f32.mrb[0].mxu0
        %v3982 = vadd.f32 %v3302, %v3981
        %3983 = vmatprep.mubr.f32.mxu0 0.0
        %3984 = vmatmul.mubr.f32.gmra.mrb[0].mxu0 %v3427
        %v3985 = vpop.f32.mrb[0].mxu0
        %v3986 = vadd.f32 %v3307, %v3985
        %v3987 = vpop.f32.mrb[0].mxu0
        %v3988 = vadd.f32 %v3307, %v3987
        %3989 = vmatprep.mubr.f32.mxu0 0.0
        %3990 = vmatmul.mubr.f32.gmra.mrb[0].mxu0 %v3429
        %v3991 = vpop.f32.mrb[0].mxu0
        %v3992 = vadd.f32 %v3312, %v3991
        %v3993 = vpop.f32.mrb[0].mxu0
        %v3994 = vadd.f32 %v3312, %v3993
        %3995 = vmatprep.mubr.f32.mxu0 0.0
        %3996 = vmatmul.mubr.f32.gmra.mrb[0].mxu0 %v3431
        %v3997 = vpop.f32.mrb[0].mxu0
        %v3998 = vadd.f32 %v3317, %v3997
        %v3999 = vpop.f32.mrb[0].mxu0
        %v4000 = vadd.f32 %v3317, %v3999
        %4001 = vmatprep.mubr.f32.mxu0 0.0
        %4002 = vmatmul.mubr.f32.gmra.mrb[0].mxu0 %v3433
        %v4003 = vpop.f32.mrb[0].mxu0
        %v4004 = vadd.f32 %v3322, %v4003
        %v4005 = vpop.f32.mrb[0].mxu0
        %v4006 = vadd.f32 %v3322, %v4005
        %4007 = vmatprep.mubr.f32.mxu0 0.0
        %4008 = vmatmul.mubr.f32.gmra.mrb[0].mxu0 %v3435
        %v4009 = vpop.f32.mrb[0].mxu0
        %v4010 = vadd.f32 %v3327, %v4009
        %v4011 = vpop.f32.mrb[0].mxu0
        %v4012 = vadd.f32 %v3327, %v4011
        %4013 = vmatprep.mubr.f32.mxu0 0.0
        %4014 = vmatmul.mubr.f32.gmra.mrb[0].mxu0 %v3437
        %v4015 = vpop.f32.mrb[0].mxu0
        %v4016 = vadd.f32 %v3332, %v4015
        %v4017 = vpop.f32.mrb[0].mxu0
        %v4018 = vadd.f32 %v3332, %v4017
        %4019 = vmatprep.mubr.f32.mxu0 0.0
        %4020 = vmatmul.mubr.f32.gmra.mrb[0].mxu0 %v3439
        %v4021 = vpop.f32.mrb[0].mxu0
        %v4022 = vadd.f32 %v3337, %v4021
        %v4023 = vpop.f32.mrb[0].mxu0
        %v4024 = vadd.f32 %v3337, %v4023
        %4025 = vdwg.mxu0
        %v4026 = vmax.f32 %v3528, 0.0
        %v4027 = vmax.f32 %v3530, 0.0
        %v4028 = vmax.f32 %v3641, 0.0
        %v4029 = vmax.f32 %v3643, 0.0
        %v4030 = vmax.f32 %v3754, 0.0
        %v4031 = vmax.f32 %v3756, 0.0
        %v4032 = vmax.f32 %v3867, 0.0
        %v4033 = vmax.f32 %v3869, 0.0
        %v4034 = vmax.f32 %v3980, 0.0
        %v4035 = vmax.f32 %v3982, 0.0
        %v4036 = vmax.f32 %v3534, 0.0
        %v4037 = vmax.f32 %v3536, 0.0
        %v4038 = vmax.f32 %v3647, 0.0
        %v4039 = vmax.f32 %v3649, 0.0
        %v4040 = vmax.f32 %v3760, 0.0
        %v4041 = vmax.f32 %v3762, 0.0
        %v4042 = vmax.f32 %v3873, 0.0
        %v4043 = vmax.f32 %v3875, 0.0
        %v4044 = vmax.f32 %v3986, 0.0
        %v4045 = vmax.f32 %v3988, 0.0
        %v4046 = vmax.f32 %v3540, 0.0
        %v4047 = vmax.f32 %v3542, 0.0
        %v4048 = vmax.f32 %v3653, 0.0
        %v4049 = vmax.f32 %v3655, 0.0
        %v4050 = vmax.f32 %v3766, 0.0
        %v4051 = vmax.f32 %v3768, 0.0
        %v4052 = vmax.f32 %v3879, 0.0
        %v4053 = vmax.f32 %v3881, 0.0
        %v4054 = vmax.f32 %v3992, 0.0
        %v4055 = vmax.f32 %v3994, 0.0
        %v4056 = vmax.f32 %v3546, 0.0
        %v4057 = vmax.f32 %v3548, 0.0
        %v4058 = vmax.f32 %v3659, 0.0
        %v4059 = vmax.f32 %v3661, 0.0
        %v4060 = vmax.f32 %v3772, 0.0
        %v4061 = vmax.f32 %v3774, 0.0
        %v4062 = vmax.f32 %v3885, 0.0
        %v4063 = vmax.f32 %v3887, 0.0
        %v4064 = vmax.f32 %v3998, 0.0
        %v4065 = vmax.f32 %v4000, 0.0
        %v4066 = vmax.f32 %v3552, 0.0
        %v4067 = vmax.f32 %v3554, 0.0
        %v4068 = vmax.f32 %v3665, 0.0
        %v4069 = vmax.f32 %v3667, 0.0
        %v4070 = vmax.f32 %v3778, 0.0
        %v4071 = vmax.f32 %v3780, 0.0
        %v4072 = vmax.f32 %v3891, 0.0
        %v4073 = vmax.f32 %v3893, 0.0
        %v4074 = vmax.f32 %v4004, 0.0
        %v4075 = vmax.f32 %v4006, 0.0
        %v4076 = vmax.f32 %v3558, 0.0
        %v4077 = vmax.f32 %v3560, 0.0
        %v4078 = vmax.f32 %v3671, 0.0
        %v4079 = vmax.f32 %v3673, 0.0
        %v4080 = vmax.f32 %v3784, 0.0
        %v4081 = vmax.f32 %v3786, 0.0
        %v4082 = vmax.f32 %v3897, 0.0
        %v4083 = vmax.f32 %v3899, 0.0
        %v4084 = vmax.f32 %v4010, 0.0
        %v4085 = vmax.f32 %v4012, 0.0
        %v4086 = vmax.f32 %v3564, 0.0
        %v4087 = vmax.f32 %v3566, 0.0
        %v4088 = vmax.f32 %v3677, 0.0
        %v4089 = vmax.f32 %v3679, 0.0
        %v4090 = vmax.f32 %v3790, 0.0
        %v4091 = vmax.f32 %v3792, 0.0
        %v4092 = vmax.f32 %v3903, 0.0
        %v4093 = vmax.f32 %v3905, 0.0
        %v4094 = vmax.f32 %v4016, 0.0
        %v4095 = vmax.f32 %v4018, 0.0
        %v4096 = vmax.f32 %v3570, 0.0
        %v4097 = vmax.f32 %v3572, 0.0
        %v4098 = vmax.f32 %v3683, 0.0
        %v4099 = vmax.f32 %v3685, 0.0
        %v4100 = vmax.f32 %v3796, 0.0
        %v4101 = vmax.f32 %v3798, 0.0
        %v4102 = vmax.f32 %v3909, 0.0
        %v4103 = vmax.f32 %v3911, 0.0
        %v4104 = vmax.f32 %v4022, 0.0
        %v4105 = vmax.f32 %v4024, 0.0
        %v4107 = vsel %vm1932, %v2067, 0
        %v4110 = vsel %vm1932, %v2068, 0
        %4112 = vmatprep.subr.mxu0 %v4027
        %4113 = vmatpush1.msra.mxu0 %v4026
        %4114 = vmatprep.subr.mxu0 %v4037
        %4115 = vmatpush1.msra.mxu0 %v4036
        %4116 = vmatprep.subr.mxu0 %v4047
        %4117 = vmatpush1.msra.mxu0 %v4046
        %4118 = vmatprep.subr.mxu0 %v4057
        %4119 = vmatpush1.msra.mxu0 %v4056
        %4120 = vmatprep.subr.mxu0 %v4067
        %4121 = vmatpush1.msra.mxu0 %v4066
        %4122 = vmatprep.subr.mxu0 %v4077
        %4123 = vmatpush1.msra.mxu0 %v4076
        %4124 = vmatprep.subr.mxu0 %v4087
        %4125 = vmatpush1.msra.mxu0 %v4086
        %4126 = vmatprep.subr.mxu0 %v4097
        %4127 = vmatpush1.msra.mxu0 %v4096
        %4128 = vmatprep.subr.mxu0 0.0
        %4129 = vmatpush1.msra.mxu0 0.0
        %4130 = vmatprep.subr.mxu0 0.0
        %4131 = vmatpush1.msra.mxu0 0.0
        %4132 = vmatprep.subr.mxu0 0.0
        %4133 = vmatpush1.msra.mxu0 0.0
        %4134 = vmatprep.subr.mxu0 0.0
        %4135 = vmatpush1.msra.mxu0 0.0
        %4136 = vmatprep.subr.mxu0 0.0
        %4137 = vmatpush1.msra.mxu0 0.0
        %4138 = vmatprep.subr.mxu0 0.0
        %4139 = vmatpush1.msra.mxu0 0.0
        %4140 = vmatprep.subr.mxu0 0.0
        %4141 = vmatpush1.msra.mxu0 0.0
        %4142 = vmatprep.subr.mxu0 0.0
        %4143 = vmatpush1.msra.mxu0 0.0
        %4144 = vmatprep.subr.mxu0 0.0
        %4145 = vmatpush1.msra.mxu0 0.0
        %4146 = vmatprep.subr.mxu0 0.0
        %4147 = vmatpush1.msra.mxu0 0.0
        %4148 = vmatprep.subr.mxu0 0.0
        %4149 = vmatpush1.msra.mxu0 0.0
        %4150 = vmatprep.subr.mxu0 0.0
        %4151 = vmatpush1.msra.mxu0 0.0
        %4152 = vmatprep.subr.mxu0 0.0
        %4153 = vmatpush1.msra.mxu0 0.0
        %4154 = vmatprep.subr.mxu0 0.0
        %4155 = vmatpush1.msra.mxu0 0.0
        %4156 = vmatprep.subr.mxu0 0.0
        %4157 = vmatpush1.msra.mxu0 0.0
        %4158 = vmatprep.subr.mxu0 0.0
        %4159 = vmatpush1.msra.mxu0 0.0
        %4160 = vmatprep.subr.mxu0 0.0
        %4161 = vmatpush1.msra.mxu0 0.0
        %4162 = vmatprep.subr.mxu0 0.0
        %4163 = vmatpush1.msra.mxu0 0.0
        %4164 = vmatprep.subr.mxu0 0.0
        %4165 = vmatpush1.msra.mxu0 0.0
        %4166 = vmatprep.subr.mxu0 0.0
        %4167 = vmatpush1.msra.mxu0 0.0
        %4168 = vmatprep.subr.mxu0 0.0
        %4169 = vmatpush1.msra.mxu0 0.0
        %4170 = vmatprep.subr.mxu0 0.0
        %4171 = vmatpush1.msra.mxu0 0.0
        %4172 = vmatprep.subr.mxu0 0.0
        %4173 = vmatpush1.msra.mxu0 0.0
        %4174 = vmatprep.subr.mxu0 0.0
        %4175 = vmatpush1.msra.mxu0 0.0
        %4176 = vmatprep.mubr.f32.mxu0 0.0
        %4177 = vmatmul.mubr.f32.gmra.mrb[0].mxu0 %v4107
        %v4178 = vpop.f32.mrb[0].mxu0
        %v4179 = vadd.f32 0.0, %v4178
        %v4180 = vpop.f32.mrb[0].mxu0
        %v4181 = vadd.f32 0.0, %v4180
        %4182 = vmatprep.mubr.f32.mxu0 0.0
        %4183 = vmatmul.mubr.f32.gmra.mrb[0].mxu0 %v4110
        %v4184 = vpop.f32.mrb[0].mxu0
        %v4185 = vadd.f32 0.0, %v4184
        %v4186 = vpop.f32.mrb[0].mxu0
        %v4187 = vadd.f32 0.0, %v4186
        %4188 = vdwg.mxu0
        %4189 = vmatprep.subr.mxu0 %v4029
        %4190 = vmatpush1.msra.mxu0 %v4028
        %4191 = vmatprep.subr.mxu0 %v4039
        %4192 = vmatpush1.msra.mxu0 %v4038
        %4193 = vmatprep.subr.mxu0 %v4049
        %4194 = vmatpush1.msra.mxu0 %v4048
        %4195 = vmatprep.subr.mxu0 %v4059
        %4196 = vmatpush1.msra.mxu0 %v4058
        %4197 = vmatprep.subr.mxu0 %v4069
        %4198 = vmatpush1.msra.mxu0 %v4068
        %4199 = vmatprep.subr.mxu0 %v4079
        %4200 = vmatpush1.msra.mxu0 %v4078
        %4201 = vmatprep.subr.mxu0 %v4089
        %4202 = vmatpush1.msra.mxu0 %v4088
        %4203 = vmatprep.subr.mxu0 %v4099
        %4204 = vmatpush1.msra.mxu0 %v4098
        %4205 = vmatprep.subr.mxu0 0.0
        %4206 = vmatpush1.msra.mxu0 0.0
        %4207 = vmatprep.subr.mxu0 0.0
        %4208 = vmatpush1.msra.mxu0 0.0
        %4209 = vmatprep.subr.mxu0 0.0
        %4210 = vmatpush1.msra.mxu0 0.0
        %4211 = vmatprep.subr.mxu0 0.0
        %4212 = vmatpush1.msra.mxu0 0.0
        %4213 = vmatprep.subr.mxu0 0.0
        %4214 = vmatpush1.msra.mxu0 0.0
        %4215 = vmatprep.subr.mxu0 0.0
        %4216 = vmatpush1.msra.mxu0 0.0
        %4217 = vmatprep.subr.mxu0 0.0
        %4218 = vmatpush1.msra.mxu0 0.0
        %4219 = vmatprep.subr.mxu0 0.0
        %4220 = vmatpush1.msra.mxu0 0.0
        %4221 = vmatprep.subr.mxu0 0.0
        %4222 = vmatpush1.msra.mxu0 0.0
        %4223 = vmatprep.subr.mxu0 0.0
        %4224 = vmatpush1.msra.mxu0 0.0
        %4225 = vmatprep.subr.mxu0 0.0
        %4226 = vmatpush1.msra.mxu0 0.0
        %4227 = vmatprep.subr.mxu0 0.0
        %4228 = vmatpush1.msra.mxu0 0.0
        %4229 = vmatprep.subr.mxu0 0.0
        %4230 = vmatpush1.msra.mxu0 0.0
        %4231 = vmatprep.subr.mxu0 0.0
        %4232 = vmatpush1.msra.mxu0 0.0
        %4233 = vmatprep.subr.mxu0 0.0
        %4234 = vmatpush1.msra.mxu0 0.0
        %4235 = vmatprep.subr.mxu0 0.0
        %4236 = vmatpush1.msra.mxu0 0.0
        %4237 = vmatprep.subr.mxu0 0.0
        %4238 = vmatpush1.msra.mxu0 0.0
        %4239 = vmatprep.subr.mxu0 0.0
        %4240 = vmatpush1.msra.mxu0 0.0
        %4241 = vmatprep.subr.mxu0 0.0
        %4242 = vmatpush1.msra.mxu0 0.0
        %4243 = vmatprep.subr.mxu0 0.0
        %4244 = vmatpush1.msra.mxu0 0.0
        %4245 = vmatprep.subr.mxu0 0.0
        %4246 = vmatpush1.msra.mxu0 0.0
        %4247 = vmatprep.subr.mxu0 0.0
        %4248 = vmatpush1.msra.mxu0 0.0
        %4249 = vmatprep.subr.mxu0 0.0
        %4250 = vmatpush1.msra.mxu0 0.0
        %4251 = vmatprep.subr.mxu0 0.0
        %4252 = vmatpush1.msra.mxu0 0.0
        %4253 = vmatprep.mubr.f32.mxu0 0.0
        %4254 = vmatmul.mubr.f32.gmra.mrb[0].mxu0 %v4107
        %v4255 = vpop.f32.mrb[0].mxu0
        %v4256 = vadd.f32 0.0, %v4255
        %v4257 = vpop.f32.mrb[0].mxu0
        %v4258 = vadd.f32 0.0, %v4257
        %4259 = vmatprep.mubr.f32.mxu0 0.0
        %4260 = vmatmul.mubr.f32.gmra.mrb[0].mxu0 %v4110
        %v4261 = vpop.f32.mrb[0].mxu0
        %v4262 = vadd.f32 0.0, %v4261
        %v4263 = vpop.f32.mrb[0].mxu0
        %v4264 = vadd.f32 0.0, %v4263
        %4265 = vdwg.mxu0
        %4266 = vmatprep.subr.mxu0 %v4031
        %4267 = vmatpush1.msra.mxu0 %v4030
        %4268 = vmatprep.subr.mxu0 %v4041
        %4269 = vmatpush1.msra.mxu0 %v4040
        %4270 = vmatprep.subr.mxu0 %v4051
        %4271 = vmatpush1.msra.mxu0 %v4050
        %4272 = vmatprep.subr.mxu0 %v4061
        %4273 = vmatpush1.msra.mxu0 %v4060
        %4274 = vmatprep.subr.mxu0 %v4071
        %4275 = vmatpush1.msra.mxu0 %v4070
        %4276 = vmatprep.subr.mxu0 %v4081
        %4277 = vmatpush1.msra.mxu0 %v4080
        %4278 = vmatprep.subr.mxu0 %v4091
        %4279 = vmatpush1.msra.mxu0 %v4090
        %4280 = vmatprep.subr.mxu0 %v4101
        %4281 = vmatpush1.msra.mxu0 %v4100
        %4282 = vmatprep.subr.mxu0 0.0
        %4283 = vmatpush1.msra.mxu0 0.0
        %4284 = vmatprep.subr.mxu0 0.0
        %4285 = vmatpush1.msra.mxu0 0.0
        %4286 = vmatprep.subr.mxu0 0.0
        %4287 = vmatpush1.msra.mxu0 0.0
        %4288 = vmatprep.subr.mxu0 0.0
        %4289 = vmatpush1.msra.mxu0 0.0
        %4290 = vmatprep.subr.mxu0 0.0
        %4291 = vmatpush1.msra.mxu0 0.0
        %4292 = vmatprep.subr.mxu0 0.0
        %4293 = vmatpush1.msra.mxu0 0.0
        %4294 = vmatprep.subr.mxu0 0.0
        %4295 = vmatpush1.msra.mxu0 0.0
        %4296 = vmatprep.subr.mxu0 0.0
        %4297 = vmatpush1.msra.mxu0 0.0
        %4298 = vmatprep.subr.mxu0 0.0
        %4299 = vmatpush1.msra.mxu0 0.0
        %4300 = vmatprep.subr.mxu0 0.0
        %4301 = vmatpush1.msra.mxu0 0.0
        %4302 = vmatprep.subr.mxu0 0.0
        %4303 = vmatpush1.msra.mxu0 0.0
        %4304 = vmatprep.subr.mxu0 0.0
        %4305 = vmatpush1.msra.mxu0 0.0
        %4306 = vmatprep.subr.mxu0 0.0
        %4307 = vmatpush1.msra.mxu0 0.0
        %4308 = vmatprep.subr.mxu0 0.0
        %4309 = vmatpush1.msra.mxu0 0.0
        %4310 = vmatprep.subr.mxu0 0.0
        %4311 = vmatpush1.msra.mxu0 0.0
        %4312 = vmatprep.subr.mxu0 0.0
        %4313 = vmatpush1.msra.mxu0 0.0
        %4314 = vmatprep.subr.mxu0 0.0
        %4315 = vmatpush1.msra.mxu0 0.0
        %4316 = vmatprep.subr.mxu0 0.0
        %4317 = vmatpush1.msra.mxu0 0.0
        %4318 = vmatprep.subr.mxu0 0.0
        %4319 = vmatpush1.msra.mxu0 0.0
        %4320 = vmatprep.subr.mxu0 0.0
        %4321 = vmatpush1.msra.mxu0 0.0
        %4322 = vmatprep.subr.mxu0 0.0
        %4323 = vmatpush1.msra.mxu0 0.0
        %4324 = vmatprep.subr.mxu0 0.0
        %4325 = vmatpush1.msra.mxu0 0.0
        %4326 = vmatprep.subr.mxu0 0.0
        %4327 = vmatpush1.msra.mxu0 0.0
        %4328 = vmatprep.subr.mxu0 0.0
        %4329 = vmatpush1.msra.mxu0 0.0
        %4330 = vmatprep.mubr.f32.mxu0 0.0
        %4331 = vmatmul.mubr.f32.gmra.mrb[0].mxu0 %v4107
        %v4332 = vpop.f32.mrb[0].mxu0
        %v4333 = vadd.f32 0.0, %v4332
        %v4334 = vpop.f32.mrb[0].mxu0
        %v4335 = vadd.f32 0.0, %v4334
        %4336 = vmatprep.mubr.f32.mxu0 0.0
        %4337 = vmatmul.mubr.f32.gmra.mrb[0].mxu0 %v4110
        %v4338 = vpop.f32.mrb[0].mxu0
        %v4339 = vadd.f32 0.0, %v4338
        %v4340 = vpop.f32.mrb[0].mxu0
        %v4341 = vadd.f32 0.0, %v4340
        %4342 = vdwg.mxu0
        %4343 = vmatprep.subr.mxu0 %v4033
        %4344 = vmatpush1.msra.mxu0 %v4032
        %4345 = vmatprep.subr.mxu0 %v4043
        %4346 = vmatpush1.msra.mxu0 %v4042
        %4347 = vmatprep.subr.mxu0 %v4053
        %4348 = vmatpush1.msra.mxu0 %v4052
        %4349 = vmatprep.subr.mxu0 %v4063
        %4350 = vmatpush1.msra.mxu0 %v4062
        %4351 = vmatprep.subr.mxu0 %v4073
        %4352 = vmatpush1.msra.mxu0 %v4072
        %4353 = vmatprep.subr.mxu0 %v4083
        %4354 = vmatpush1.msra.mxu0 %v4082
        %4355 = vmatprep.subr.mxu0 %v4093
        %4356 = vmatpush1.msra.mxu0 %v4092
        %4357 = vmatprep.subr.mxu0 %v4103
        %4358 = vmatpush1.msra.mxu0 %v4102
        %4359 = vmatprep.subr.mxu0 0.0
        %4360 = vmatpush1.msra.mxu0 0.0
        %4361 = vmatprep.subr.mxu0 0.0
        %4362 = vmatpush1.msra.mxu0 0.0
        %4363 = vmatprep.subr.mxu0 0.0
        %4364 = vmatpush1.msra.mxu0 0.0
        %4365 = vmatprep.subr.mxu0 0.0
        %4366 = vmatpush1.msra.mxu0 0.0
        %4367 = vmatprep.subr.mxu0 0.0
        %4368 = vmatpush1.msra.mxu0 0.0
        %4369 = vmatprep.subr.mxu0 0.0
        %4370 = vmatpush1.msra.mxu0 0.0
        %4371 = vmatprep.subr.mxu0 0.0
        %4372 = vmatpush1.msra.mxu0 0.0
        %4373 = vmatprep.subr.mxu0 0.0
        %4374 = vmatpush1.msra.mxu0 0.0
        %4375 = vmatprep.subr.mxu0 0.0
        %4376 = vmatpush1.msra.mxu0 0.0
        %4377 = vmatprep.subr.mxu0 0.0
        %4378 = vmatpush1.msra.mxu0 0.0
        %4379 = vmatprep.subr.mxu0 0.0
        %4380 = vmatpush1.msra.mxu0 0.0
        %4381 = vmatprep.subr.mxu0 0.0
        %4382 = vmatpush1.msra.mxu0 0.0
        %4383 = vmatprep.subr.mxu0 0.0
        %4384 = vmatpush1.msra.mxu0 0.0
        %4385 = vmatprep.subr.mxu0 0.0
        %4386 = vmatpush1.msra.mxu0 0.0
        %4387 = vmatprep.subr.mxu0 0.0
        %4388 = vmatpush1.msra.mxu0 0.0
        %4389 = vmatprep.subr.mxu0 0.0
        %4390 = vmatpush1.msra.mxu0 0.0
        %4391 = vmatprep.subr.mxu0 0.0
        %4392 = vmatpush1.msra.mxu0 0.0
        %4393 = vmatprep.subr.mxu0 0.0
        %4394 = vmatpush1.msra.mxu0 0.0
        %4395 = vmatprep.subr.mxu0 0.0
        %4396 = vmatpush1.msra.mxu0 0.0
        %4397 = vmatprep.subr.mxu0 0.0
        %4398 = vmatpush1.msra.mxu0 0.0
        %4399 = vmatprep.subr.mxu0 0.0
        %4400 = vmatpush1.msra.mxu0 0.0
        %4401 = vmatprep.subr.mxu0 0.0
        %4402 = vmatpush1.msra.mxu0 0.0
        %4403 = vmatprep.subr.mxu0 0.0
        %4404 = vmatpush1.msra.mxu0 0.0
        %4405 = vmatprep.subr.mxu0 0.0
        %4406 = vmatpush1.msra.mxu0 0.0
        %4407 = vmatprep.mubr.f32.mxu0 0.0
        %4408 = vmatmul.mubr.f32.gmra.mrb[0].mxu0 %v4107
        %v4409 = vpop.f32.mrb[0].mxu0
        %v4410 = vadd.f32 0.0, %v4409
        %v4411 = vpop.f32.mrb[0].mxu0
        %v4412 = vadd.f32 0.0, %v4411
        %4413 = vmatprep.mubr.f32.mxu0 0.0
        %4414 = vmatmul.mubr.f32.gmra.mrb[0].mxu0 %v4110
        %v4415 = vpop.f32.mrb[0].mxu0
        %v4416 = vadd.f32 0.0, %v4415
        %v4417 = vpop.f32.mrb[0].mxu0
        %v4418 = vadd.f32 0.0, %v4417
        %4419 = vdwg.mxu0
        %4420 = vmatprep.subr.mxu0 %v4035
        %4421 = vmatpush1.msra.mxu0 %v4034
        %4422 = vmatprep.subr.mxu0 %v4045
        %4423 = vmatpush1.msra.mxu0 %v4044
        %4424 = vmatprep.subr.mxu0 %v4055
        %4425 = vmatpush1.msra.mxu0 %v4054
        %4426 = vmatprep.subr.mxu0 %v4065
        %4427 = vmatpush1.msra.mxu0 %v4064
        %4428 = vmatprep.subr.mxu0 %v4075
        %4429 = vmatpush1.msra.mxu0 %v4074
        %4430 = vmatprep.subr.mxu0 %v4085
        %4431 = vmatpush1.msra.mxu0 %v4084
        %4432 = vmatprep.subr.mxu0 %v4095
        %4433 = vmatpush1.msra.mxu0 %v4094
        %4434 = vmatprep.subr.mxu0 %v4105
        %4435 = vmatpush1.msra.mxu0 %v4104
        %4436 = vmatprep.subr.mxu0 0.0
        %4437 = vmatpush1.msra.mxu0 0.0
        %4438 = vmatprep.subr.mxu0 0.0
        %4439 = vmatpush1.msra.mxu0 0.0
        %4440 = vmatprep.subr.mxu0 0.0
        %4441 = vmatpush1.msra.mxu0 0.0
        %4442 = vmatprep.subr.mxu0 0.0
        %4443 = vmatpush1.msra.mxu0 0.0
        %4444 = vmatprep.subr.mxu0 0.0
        %4445 = vmatpush1.msra.mxu0 0.0
        %4446 = vmatprep.subr.mxu0 0.0
        %4447 = vmatpush1.msra.mxu0 0.0
        %4448 = vmatprep.subr.mxu0 0.0
        %4449 = vmatpush1.msra.mxu0 0.0
        %4450 = vmatprep.subr.mxu0 0.0
        %4451 = vmatpush1.msra.mxu0 0.0
        %4452 = vmatprep.subr.mxu0 0.0
        %4453 = vmatpush1.msra.mxu0 0.0
        %4454 = vmatprep.subr.mxu0 0.0
        %4455 = vmatpush1.msra.mxu0 0.0
        %4456 = vmatprep.subr.mxu0 0.0
        %4457 = vmatpush1.msra.mxu0 0.0
        %4458 = vmatprep.subr.mxu0 0.0
        %4459 = vmatpush1.msra.mxu0 0.0
        %4460 = vmatprep.subr.mxu0 0.0
        %4461 = vmatpush1.msra.mxu0 0.0
        %4462 = vmatprep.subr.mxu0 0.0
        %4463 = vmatpush1.msra.mxu0 0.0
        %4464 = vmatprep.subr.mxu0 0.0
        %4465 = vmatpush1.msra.mxu0 0.0
        %4466 = vmatprep.subr.mxu0 0.0
        %4467 = vmatpush1.msra.mxu0 0.0
        %4468 = vmatprep.subr.mxu0 0.0
        %4469 = vmatpush1.msra.mxu0 0.0
        %4470 = vmatprep.subr.mxu0 0.0
        %4471 = vmatpush1.msra.mxu0 0.0
        %4472 = vmatprep.subr.mxu0 0.0
        %4473 = vmatpush1.msra.mxu0 0.0
        %4474 = vmatprep.subr.mxu0 0.0
        %4475 = vmatpush1.msra.mxu0 0.0
        %4476 = vmatprep.subr.mxu0 0.0
        %4477 = vmatpush1.msra.mxu0 0.0
        %4478 = vmatprep.subr.mxu0 0.0
        %4479 = vmatpush1.msra.mxu0 0.0
        %4480 = vmatprep.subr.mxu0 0.0
        %4481 = vmatpush1.msra.mxu0 0.0
        %4482 = vmatprep.subr.mxu0 0.0
        %4483 = vmatpush1.msra.mxu0 0.0
        %4484 = vmatprep.mubr.f32.mxu0 0.0
        %4485 = vmatmul.mubr.f32.gmra.mrb[0].mxu0 %v4107
        %v4486 = vpop.f32.mrb[0].mxu0
        %v4487 = vadd.f32 0.0, %v4486
        %v4488 = vpop.f32.mrb[0].mxu0
        %v4489 = vadd.f32 0.0, %v4488
        %4490 = vmatprep.mubr.f32.mxu0 0.0
        %4491 = vmatmul.mubr.f32.gmra.mrb[0].mxu0 %v4110
        %v4492 = vpop.f32.mrb[0].mxu0
        %v4493 = vadd.f32 0.0, %v4492
        %v4494 = vpop.f32.mrb[0].mxu0
        %v4495 = vadd.f32 0.0, %v4494
        %4496 = vdwg.mxu0
        %4497 = vst [vmem:[#allocation3 + $0x8] sm:$0xff] %v4179
        %4498 = vst [vmem:[#allocation3 + $0x10] sm:$0xff] %v4181
        %4499 = vst [vmem:[#allocation3 + $0x18] sm:$0xff] %v4256
        %4500 = vst [vmem:[#allocation3 + $0x20] sm:$0xff] %v4258
        %4501 = vst [vmem:[#allocation3 + $0x28] sm:$0xff] %v4333
        %4502 = vst [vmem:[#allocation3 + $0x30] sm:$0xff] %v4335
        %4503 = vst [vmem:[#allocation3 + $0x38] sm:$0xff] %v4410
        %4504 = vst [vmem:[#allocation3 + $0x40] sm:$0xff] %v4412
        %4505 = vst [vmem:[#allocation3 + $0x48] sm:$0xff] %v4487
        %4506 = vst [vmem:[#allocation3 + $0x50] sm:$0xff] %v4489
        %4507 = vst [vmem:[#allocation3 + $0x68] sm:$0x1] %v4185
        %4508 = vst [vmem:[#allocation3 + $0x70] sm:$0x1] %v4187
        %4509 = vst [vmem:[#allocation3 + $0x78] sm:$0x1] %v4262
        %4510 = vst [vmem:[#allocation3 + $0x80] sm:$0x1] %v4264
        %4511 = vst [vmem:[#allocation3 + $0x88] sm:$0x1] %v4339
        %4512 = vst [vmem:[#allocation3 + $0x90] sm:$0x1] %v4341
        %4513 = vst [vmem:[#allocation3 + $0x98] sm:$0x1] %v4416
        %4514 = vst [vmem:[#allocation3 + $0xa0] sm:$0x1] %v4418
        %4515 = vst [vmem:[#allocation3 + $0xa8] sm:$0x1] %v4493
        %4516 = vst [vmem:[#allocation3 + $0xb0] sm:$0x1] %v4495
        %v4517 = vld [vmem:[#allocation3] ss:$8 sm:$0xf]
        %v4518 = vld [vmem:[#allocation3] ss:$8 sm:$0xf0]
        %v4519 = vor.u32 %v4517, %v4518
        %s4520 = scalar_lea.vmem [#allocation3], 64
        %v4521 = vld [vmem:[%s4520] ss:$8 sm:$0x7]
        %v4522 = vmul.f32 %v4519, %v2152
        %v4523 = vmul.f32 %v4521, %v2155
        %v4524 = vadd.f32 %v4522, 0.0
        %v4525 = vadd.f32 %v4523, 0.0
        %s4526 = scalar_lea.vmem [#allocation3], 1
        %v4527 = vld [vmem:[%s4526] ss:$8 sm:$0xf]
        %v4528 = vld [vmem:[%s4526] ss:$8 sm:$0xf0]
        %v4529 = vor.u32 %v4527, %v4528
        %s4530 = scalar_lea.vmem [#allocation3], 65
        %v4531 = vld [vmem:[%s4530] ss:$8 sm:$0x7]
        %v4532 = vmul.f32 %v4529, %v2192
        %v4533 = vmul.f32 %v4531, %v2194
        %4536 = vrot.lane.b32.xlu0 %v4532, 127
        %v4537 = vpop.permute.xlu0 %4536
        %4538 = vrot.lane.b32.xlu0 %v4533, 127
        %v4539 = vpop.permute.xlu0 %4538
        %v4540 = vrot.slane %v4537, 1
        %v4541 = vrot.slane %v4539, 1
        %v4542 = vsel %vm3287, %v4540, %v4541
        %v4543 = vsel %vm2223, %v4537, %v4542
        %v4544 = vsel %vm2223, %v4539, %v4541
        %v4547 = vadd.f32 %v4524, %v4543
        %v4548 = vadd.f32 %v4525, %v4544
        %s4549 = scalar_lea.vmem [#allocation3], 2
        %v4550 = vld [vmem:[%s4549] ss:$8 sm:$0xf]
        %v4551 = vld [vmem:[%s4549] ss:$8 sm:$0xf0]
        %v4552 = vor.u32 %v4550, %v4551
        %s4553 = scalar_lea.vmem [#allocation3], 66
        %v4554 = vld [vmem:[%s4553] ss:$8 sm:$0x7]
        %v4555 = vmul.f32 %v4552, %v2208
        %v4556 = vmul.f32 %v4554, %v2210
        %4559 = vrot.lane.b32.xlu0 %v4555, 126
        %v4560 = vpop.permute.xlu0 %4559
        %4561 = vrot.lane.b32.xlu0 %v4556, 126
        %v4562 = vpop.permute.xlu0 %4561
        %v4563 = vrot.slane %v4560, 1
        %v4564 = vrot.slane %v4562, 1
        %v4565 = vsel %vm3287, %v4563, %v4564
        %v4566 = vsel %vm2675, %v4560, %v4565
        %v4567 = vsel %vm2675, %v4562, %v4564
        %v4570 = vadd.f32 %v4547, %v4566
        %v4571 = vadd.f32 %v4548, %v4567
        %s4572 = scalar_lea.vmem [#allocation3], 3
        %v4573 = vld [vmem:[%s4572] ss:$8 sm:$0xf]
        %v4574 = vld [vmem:[%s4572] ss:$8 sm:$0xf0]
        %v4575 = vor.u32 %v4573, %v4574
        %s4576 = scalar_lea.vmem [#allocation3], 67
        %v4577 = vld [vmem:[%s4576] ss:$8 sm:$0x7]
        %v4578 = vmul.f32 %v4575, %v2224
        %v4579 = vmul.f32 %v4577, %v2226
        %4582 = vrot.lane.b32.xlu0 %v4578, 48
        %v4583 = vpop.permute.xlu0 %4582
        %4584 = vrot.lane.b32.xlu0 %v4579, 48
        %v4585 = vpop.permute.xlu0 %4584
        %v4586 = vrot.slane %v4583, 1
        %v4587 = vrot.slane %v4585, 1
        %v4588 = vsel %vm3287, %v4586, %v4587
        %v4589 = vsel %vm2191, %v4583, %v4588
        %v4590 = vsel %vm2191, %v4585, %v4587
        %v4593 = vadd.f32 %v4570, %v4589
        %v4594 = vadd.f32 %v4571, %v4590
        %s4595 = scalar_lea.vmem [#allocation3], 12
        %v4596 = vld [vmem:[%s4595] ss:$8 sm:$0xf]
        %v4597 = vld [vmem:[%s4595] ss:$8 sm:$0xf0]
        %v4598 = vor.u32 %v4596, %v4597
        %s4599 = scalar_lea.vmem [#allocation3], 76
        %v4600 = vld [vmem:[%s4599] ss:$8 sm:$0x3]
        %v4601 = vmul.f32 %v4598, %v2281
        %v4602 = vmul.f32 %v4600, %v2296
        %4605 = vrot.lane.b32.xlu0 %v4601, 47
        %v4606 = vpop.permute.xlu0 %4605
        %4607 = vrot.lane.b32.xlu0 %v4602, 47
        %v4608 = vpop.permute.xlu0 %4607
        %v4609 = vrot.slane %v4606, 7
        %v4610 = vrot.slane %v4608, 7
        %v4611 = vsel %vm2151, %v4609, %v4606
        %v4612 = vsel %vm2153, %v4609, %v4610
        %v4613 = vsel %vm2151, %v4612, %v4608
        %v4616 = vadd.f32 %v4593, %v4611
        %v4617 = vadd.f32 %v4594, %v4613
        %s4618 = scalar_lea.vmem [#allocation3], 13
        %v4619 = vld [vmem:[%s4618] ss:$8 sm:$0xf]
        %v4620 = vld [vmem:[%s4618] ss:$8 sm:$0xf0]
        %v4621 = vor.u32 %v4619, %v4620
        %s4622 = scalar_lea.vmem [#allocation3], 77
        %v4623 = vld [vmem:[%s4622] ss:$8 sm:$0x7]
        %v4624 = vmul.f32 %v4621, %v2335
        %v4625 = vmul.f32 %v4623, %v2337
        %4628 = vrot.lane.b32.xlu0 %v4624, 46
        %v4629 = vpop.permute.xlu0 %4628
        %4630 = vrot.lane.b32.xlu0 %v4625, 46
        %v4631 = vpop.permute.xlu0 %4630
        %v4632 = vrot.slane %v4629, 7
        %v4633 = vrot.slane %v4631, 7
        %v4634 = vsel %vm2936, %v4632, %v4629
        %v4635 = vsel %vm2153, %v4632, %v4633
        %v4636 = vsel %vm2936, %v4635, %v4631
        %v4639 = vadd.f32 %v4616, %v4634
        %v4640 = vadd.f32 %v4617, %v4636
        %s4641 = scalar_lea.vmem [#allocation3], 14
        %v4642 = vld [vmem:[%s4641] ss:$8 sm:$0xf]
        %v4643 = vld [vmem:[%s4641] ss:$8 sm:$0xf0]
        %v4644 = vor.u32 %v4642, %v4643
        %s4645 = scalar_lea.vmem [#allocation3], 78
        %v4646 = vld [vmem:[%s4645] ss:$8 sm:$0x7]
        %v4647 = vmul.f32 %v4644, %v2351
        %v4648 = vmul.f32 %v4646, %v2353
        %4651 = vrot.lane.b32.xlu0 %v4647, 96
        %v4652 = vpop.permute.xlu0 %4651
        %4653 = vrot.lane.b32.xlu0 %v4648, 96
        %v4654 = vpop.permute.xlu0 %4653
        %v4655 = vrot.slane %v4652, 1
        %v4656 = vrot.slane %v4654, 1
        %v4657 = vsel %vm3287, %v4655, %v4656
        %v4658 = vsel %vm1958, %v4652, %v4657
        %v4659 = vsel %vm1958, %v4654, %v4656
        %v4662 = vadd.f32 %v4639, %v4658
        %v4663 = vadd.f32 %v4640, %v4659
        %s4664 = scalar_lea.vmem [#allocation3], 15
        %v4665 = vld [vmem:[%s4664] ss:$8 sm:$0xf]
        %v4666 = vld [vmem:[%s4664] ss:$8 sm:$0xf0]
        %v4667 = vor.u32 %v4665, %v4666
        %s4668 = scalar_lea.vmem [#allocation3], 79
        %v4669 = vld [vmem:[%s4668] ss:$8 sm:$0x7]
        %v4670 = vmul.f32 %v4667, %v2366
        %v4671 = vmul.f32 %v4669, %v2368
        %4674 = vrot.lane.b32.xlu0 %v4670, 95
        %v4675 = vpop.permute.xlu0 %4674
        %4676 = vrot.lane.b32.xlu0 %v4671, 95
        %v4677 = vpop.permute.xlu0 %4676
        %v4678 = vrot.slane %v4675, 1
        %v4679 = vrot.slane %v4677, 1
        %v4680 = vsel %vm3287, %v4678, %v4679
        %v4681 = vsel %vm3115, %v4675, %v4680
        %v4682 = vsel %vm3115, %v4677, %v4679
        %v4685 = vadd.f32 %v4662, %v4681
        %v4686 = vadd.f32 %v4663, %v4682
        %s4687 = scalar_lea.vmem [#allocation3], 104
        %v4688 = vld [vmem:[%s4687] ss:$8 sm:$0xf]
        %v4689 = vld [vmem:[%s4687] ss:$8 sm:$0xf0]
        %v4690 = vor.u32 %v4688, %v4689
        %s4691 = scalar_lea.vmem [#allocation3], 168
        %v4692 = vld [vmem:[%s4691] ss:$8 sm:$0x7]
        %v4693 = vmul.f32 %v4690, %v2454
        %v4694 = vmul.f32 %v4692, %v2456
        %4697 = vrot.lane.b32.xlu0 %v4693, 94
        %v4698 = vpop.permute.xlu0 %4697
        %4699 = vrot.lane.b32.xlu0 %v4694, 94
        %v4700 = vpop.permute.xlu0 %4699
        %v4701 = vrot.slane %v4698, 1
        %v4702 = vrot.slane %v4700, 1
        %v4703 = vsel %vm3287, %v4701, %v4702
        %v4704 = vsel %vm3205, %v4698, %v4703
        %v4705 = vsel %vm3205, %v4700, %v4702
        %v4708 = vadd.f32 %v4685, %v4704
        %v4709 = vadd.f32 %v4686, %v4705
        %4710 = vset.pattern.permute.xlu0 0
        %4711 = vperm.xlu0 %4710, %v2068
        %v4712 = vpop.permute.xlu0 %4711
        %v4713 = vlaneseq
        %v4714 = vshrl.u32 %v4713, 7
        %v4715 = vsub.s32 1, %v4714
        %v4716 = vrot.slane %v4712, %v4715
        %v4718 = vadd.f32 %v4708, %v4716
        %v4719 = vadd.f32 %v4709, %v4716
        %v4720 = vmax.f32 %v4718, 0.0
        %v4721 = vmax.f32 %v4719, 0.0
        %4724 = vrot.lane.b32.xlu0 %v4720, 81
        %v4725 = vpop.permute.xlu0 %4724
        %4726 = vrot.lane.b32.xlu0 %v4721, 81
        %v4727 = vpop.permute.xlu0 %4726
        %v4728 = vrot.slane %v4725, 1
        %v4729 = vrot.slane %v4727, 1
        %v4730 = vsel %vm3287, %v4728, %v4729
        %v4731 = vsel %vm2453, %v4725, %v4730
        %v4732 = vsel %vm2453, %v4727, %v4729
        %4735 = vst [vmem:[#allocation2 + $0x1] sm:$0xff] %v4731
        %vm4736 = vcmp.lt.s32.totalorder %v489, 256
        %vm4737 = vmand %vm490, %vm4736
        %4738 = vst.msk [vmem:[#allocation2 + $0x9] sm:$0x3] %vm4737, %v4732
        %s4739 = scalar_lea.vmem [#allocation15], 64
        %v4740 = vld [vmem:[%s4739] sm:$0xff]
        %v4741 = vld [vmem:[%s4739 + $0x8] sm:$0xff]
        %v4742 = vld [vmem:[%s4739 + $0x10] sm:$0xff]
        %v4743 = vld [vmem:[%s4739 + $0x18] sm:$0xff]
        %v4744 = vld [vmem:[%s4739 + $0x20] sm:$0xff]
        %v4745 = vld [vmem:[%s4739 + $0x28] sm:$0xff]
        %v4746 = vld [vmem:[%s4739 + $0x30] sm:$0xff]
        %v4747 = vld [vmem:[%s4739 + $0x38] sm:$0xff]
        %s4748 = scalar_lea.vmem [#allocation16], 16
        %v4749 = vld [vmem:[%s4748] sm:$0xff]
        %v4750 = vld [vmem:[%s4748 + $0x8] sm:$0x3]
        %v4751 = vld [vmem:[#allocation2] sm:$0xff]
        %v4752 = vld [vmem:[#allocation2 + $0x8] sm:$0x7]
        %v4753 = vmul.f32 %v4751, %v2152
        %v4754 = vmul.f32 %v4752, %v2155
        %v4755 = vmul.f32 %v4751, %v2192
        %v4756 = vmul.f32 %v4752, %v2194
        %v4757 = vmul.f32 %v4751, %v2208
        %v4758 = vmul.f32 %v4752, %v2210
        %v4759 = vmul.f32 %v4751, %v2224
        %v4760 = vmul.f32 %v4752, %v2226
        %v4761 = vld [vmem:[#allocation2 + $0x1] sm:$0xff]
        %v4762 = vld [vmem:[#allocation2 + $0x9] sm:$0x3]
        %v4763 = vmul.f32 %v4761, %v2281
        %v4764 = vmul.f32 %v4762, %v2296
        %v4765 = vld [vmem:[#allocation2 + $0x1] sm:$0xff]
        %v4766 = vld [vmem:[#allocation2 + $0x9] sm:$0x7]
        %v4767 = vmul.f32 %v4765, %v2335
        %v4768 = vmul.f32 %v4766, %v2337
        %v4769 = vmul.f32 %v4765, %v2351
        %v4770 = vmul.f32 %v4766, %v2353
        %v4771 = vmul.f32 %v4765, %v2366
        %v4772 = vmul.f32 %v4766, %v2368
        %v4773 = vmul.f32 %v4765, %v2454
        %v4774 = vmul.f32 %v4766, %v2456
        %v4777 = vlaneseq
        %v4778 = vshrl.u32 %v4777, 7
        %v4779 = vsub.s32 0, %v4778
        %v4780 = vrot.slane %v4753, %v4779
        %v4781 = vlaneseq
        %v4782 = vshrl.u32 %v4781, 7
        %v4783 = vsub.s32 1, %v4782
        %v4784 = vrot.slane %v4753, %v4783
        %v4785 = vlaneseq
        %v4786 = vshrl.u32 %v4785, 7
        %v4787 = vsub.s32 2, %v4786
        %v4788 = vrot.slane %v4753, %v4787
        %v4789 = vlaneseq
        %v4790 = vshrl.u32 %v4789, 7
        %v4791 = vsub.s32 3, %v4790
        %v4792 = vrot.slane %v4753, %v4791
        %v4793 = vlaneseq
        %v4794 = vshrl.u32 %v4793, 7
        %v4795 = vsub.s32 4, %v4794
        %v4796 = vrot.slane %v4753, %v4795
        %v4797 = vlaneseq
        %v4798 = vshrl.u32 %v4797, 7
        %v4799 = vsub.s32 5, %v4798
        %v4800 = vrot.slane %v4753, %v4799
        %v4801 = vlaneseq
        %v4802 = vshrl.u32 %v4801, 7
        %v4803 = vsub.s32 6, %v4802
        %v4804 = vrot.slane %v4753, %v4803
        %v4805 = vlaneseq
        %v4806 = vshrl.u32 %v4805, 7
        %v4807 = vsub.s32 7, %v4806
        %v4808 = vrot.slane %v4753, %v4807
        %v4809 = vlaneseq
        %v4810 = vshrl.u32 %v4809, 7
        %v4811 = vsub.s32 0, %v4810
        %v4812 = vrot.slane %v4754, %v4811
        %v4813 = vlaneseq
        %v4814 = vshrl.u32 %v4813, 7
        %v4815 = vsub.s32 1, %v4814
        %v4816 = vrot.slane %v4754, %v4815
        %v4817 = vlaneseq
        %v4818 = vshrl.u32 %v4817, 7
        %v4819 = vsub.s32 2, %v4818
        %v4820 = vrot.slane %v4754, %v4819
        %v4834 = vlaneseq
        %v4835 = vshrl.u32 %v4834, 7
        %v4836 = vsub.s32 0, %v4835
        %v4837 = vrot.slane %v4755, %v4836
        %v4838 = vlaneseq
        %v4839 = vshrl.u32 %v4838, 7
        %v4840 = vsub.s32 1, %v4839
        %v4841 = vrot.slane %v4755, %v4840
        %v4842 = vlaneseq
        %v4843 = vshrl.u32 %v4842, 7
        %v4844 = vsub.s32 2, %v4843
        %v4845 = vrot.slane %v4755, %v4844
        %v4846 = vlaneseq
        %v4847 = vshrl.u32 %v4846, 7
        %v4848 = vsub.s32 3, %v4847
        %v4849 = vrot.slane %v4755, %v4848
        %v4850 = vlaneseq
        %v4851 = vshrl.u32 %v4850, 7
        %v4852 = vsub.s32 4, %v4851
        %v4853 = vrot.slane %v4755, %v4852
        %v4854 = vlaneseq
        %v4855 = vshrl.u32 %v4854, 7
        %v4856 = vsub.s32 5, %v4855
        %v4857 = vrot.slane %v4755, %v4856
        %v4858 = vlaneseq
        %v4859 = vshrl.u32 %v4858, 7
        %v4860 = vsub.s32 6, %v4859
        %v4861 = vrot.slane %v4755, %v4860
        %v4862 = vlaneseq
        %v4863 = vshrl.u32 %v4862, 7
        %v4864 = vsub.s32 7, %v4863
        %v4865 = vrot.slane %v4755, %v4864
        %v4866 = vlaneseq
        %v4867 = vshrl.u32 %v4866, 7
        %v4868 = vsub.s32 0, %v4867
        %v4869 = vrot.slane %v4756, %v4868
        %v4870 = vlaneseq
        %v4871 = vshrl.u32 %v4870, 7
        %v4872 = vsub.s32 1, %v4871
        %v4873 = vrot.slane %v4756, %v4872
        %v4874 = vlaneseq
        %v4875 = vshrl.u32 %v4874, 7
        %v4876 = vsub.s32 2, %v4875
        %v4877 = vrot.slane %v4756, %v4876
        %4878 = vrot.lane.b32.xlu0 %v4837, 127
        %v4879 = vpop.permute.xlu0 %4878
        %4880 = vrot.lane.b32.xlu0 %v4841, 127
        %v4881 = vpop.permute.xlu0 %4880
        %4882 = vrot.lane.b32.xlu0 %v4845, 127
        %v4883 = vpop.permute.xlu0 %4882
        %4884 = vrot.lane.b32.xlu0 %v4849, 127
        %v4885 = vpop.permute.xlu0 %4884
        %4886 = vrot.lane.b32.xlu0 %v4853, 127
        %v4887 = vpop.permute.xlu0 %4886
        %4888 = vrot.lane.b32.xlu0 %v4857, 127
        %v4889 = vpop.permute.xlu0 %4888
        %4890 = vrot.lane.b32.xlu0 %v4861, 127
        %v4891 = vpop.permute.xlu0 %4890
        %4892 = vrot.lane.b32.xlu0 %v4865, 127
        %v4893 = vpop.permute.xlu0 %4892
        %4894 = vrot.lane.b32.xlu0 %v4869, 127
        %v4895 = vpop.permute.xlu0 %4894
        %4896 = vrot.lane.b32.xlu0 %v4873, 127
        %v4897 = vpop.permute.xlu0 %4896
        %4898 = vrot.lane.b32.xlu0 %v4877, 127
        %v4899 = vpop.permute.xlu0 %4898
        %v4900 = vsel %vm2223, %v4879, %v4881
        %v4901 = vsel %vm2223, %v4881, %v4883
        %v4902 = vsel %vm2223, %v4883, %v4885
        %v4903 = vsel %vm2223, %v4885, %v4887
        %v4904 = vsel %vm2223, %v4887, %v4889
        %v4905 = vsel %vm2223, %v4889, %v4891
        %v4906 = vsel %vm2223, %v4891, %v4893
        %v4907 = vsel %vm2223, %v4893, %v4895
        %v4908 = vsel %vm2223, %v4895, %v4897
        %v4909 = vsel %vm2223, %v4897, %v4899
        %v4923 = vlaneseq
        %v4924 = vshrl.u32 %v4923, 7
        %v4925 = vsub.s32 0, %v4924
        %v4926 = vrot.slane %v4757, %v4925
        %v4927 = vlaneseq
        %v4928 = vshrl.u32 %v4927, 7
        %v4929 = vsub.s32 1, %v4928
        %v4930 = vrot.slane %v4757, %v4929
        %v4931 = vlaneseq
        %v4932 = vshrl.u32 %v4931, 7
        %v4933 = vsub.s32 2, %v4932
        %v4934 = vrot.slane %v4757, %v4933
        %v4935 = vlaneseq
        %v4936 = vshrl.u32 %v4935, 7
        %v4937 = vsub.s32 3, %v4936
        %v4938 = vrot.slane %v4757, %v4937
        %v4939 = vlaneseq
        %v4940 = vshrl.u32 %v4939, 7
        %v4941 = vsub.s32 4, %v4940
        %v4942 = vrot.slane %v4757, %v4941
        %v4943 = vlaneseq
        %v4944 = vshrl.u32 %v4943, 7
        %v4945 = vsub.s32 5, %v4944
        %v4946 = vrot.slane %v4757, %v4945
        %v4947 = vlaneseq
        %v4948 = vshrl.u32 %v4947, 7
        %v4949 = vsub.s32 6, %v4948
        %v4950 = vrot.slane %v4757, %v4949
        %v4951 = vlaneseq
        %v4952 = vshrl.u32 %v4951, 7
        %v4953 = vsub.s32 7, %v4952
        %v4954 = vrot.slane %v4757, %v4953
        %v4955 = vlaneseq
        %v4956 = vshrl.u32 %v4955, 7
        %v4957 = vsub.s32 0, %v4956
        %v4958 = vrot.slane %v4758, %v4957
        %v4959 = vlaneseq
        %v4960 = vshrl.u32 %v4959, 7
        %v4961 = vsub.s32 1, %v4960
        %v4962 = vrot.slane %v4758, %v4961
        %v4963 = vlaneseq
        %v4964 = vshrl.u32 %v4963, 7
        %v4965 = vsub.s32 2, %v4964
        %v4966 = vrot.slane %v4758, %v4965
        %4967 = vrot.lane.b32.xlu0 %v4926, 126
        %v4968 = vpop.permute.xlu0 %4967
        %4969 = vrot.lane.b32.xlu0 %v4930, 126
        %v4970 = vpop.permute.xlu0 %4969
        %4971 = vrot.lane.b32.xlu0 %v4934, 126
        %v4972 = vpop.permute.xlu0 %4971
        %4973 = vrot.lane.b32.xlu0 %v4938, 126
        %v4974 = vpop.permute.xlu0 %4973
        %4975 = vrot.lane.b32.xlu0 %v4942, 126
        %v4976 = vpop.permute.xlu0 %4975
        %4977 = vrot.lane.b32.xlu0 %v4946, 126
        %v4978 = vpop.permute.xlu0 %4977
        %4979 = vrot.lane.b32.xlu0 %v4950, 126
        %v4980 = vpop.permute.xlu0 %4979
        %4981 = vrot.lane.b32.xlu0 %v4954, 126
        %v4982 = vpop.permute.xlu0 %4981
        %4983 = vrot.lane.b32.xlu0 %v4958, 126
        %v4984 = vpop.permute.xlu0 %4983
        %4985 = vrot.lane.b32.xlu0 %v4962, 126
        %v4986 = vpop.permute.xlu0 %4985
        %4987 = vrot.lane.b32.xlu0 %v4966, 126
        %v4988 = vpop.permute.xlu0 %4987
        %v4989 = vsel %vm2675, %v4968, %v4970
        %v4990 = vsel %vm2675, %v4970, %v4972
        %v4991 = vsel %vm2675, %v4972, %v4974
        %v4992 = vsel %vm2675, %v4974, %v4976
        %v4993 = vsel %vm2675, %v4976, %v4978
        %v4994 = vsel %vm2675, %v4978, %v4980
        %v4995 = vsel %vm2675, %v4980, %v4982
        %v4996 = vsel %vm2675, %v4982, %v4984
        %v4997 = vsel %vm2675, %v4984, %v4986
        %v4998 = vsel %vm2675, %v4986, %v4988
        %v5012 = vlaneseq
        %v5013 = vshrl.u32 %v5012, 7
        %v5014 = vsub.s32 0, %v5013
        %v5015 = vrot.slane %v4759, %v5014
        %v5016 = vlaneseq
        %v5017 = vshrl.u32 %v5016, 7
        %v5018 = vsub.s32 1, %v5017
        %v5019 = vrot.slane %v4759, %v5018
        %v5020 = vlaneseq
        %v5021 = vshrl.u32 %v5020, 7
        %v5022 = vsub.s32 2, %v5021
        %v5023 = vrot.slane %v4759, %v5022
        %v5024 = vlaneseq
        %v5025 = vshrl.u32 %v5024, 7
        %v5026 = vsub.s32 3, %v5025
        %v5027 = vrot.slane %v4759, %v5026
        %v5028 = vlaneseq
        %v5029 = vshrl.u32 %v5028, 7
        %v5030 = vsub.s32 4, %v5029
        %v5031 = vrot.slane %v4759, %v5030
        %v5032 = vlaneseq
        %v5033 = vshrl.u32 %v5032, 7
        %v5034 = vsub.s32 5, %v5033
        %v5035 = vrot.slane %v4759, %v5034
        %v5036 = vlaneseq
        %v5037 = vshrl.u32 %v5036, 7
        %v5038 = vsub.s32 6, %v5037
        %v5039 = vrot.slane %v4759, %v5038
        %v5040 = vlaneseq
        %v5041 = vshrl.u32 %v5040, 7
        %v5042 = vsub.s32 7, %v5041
        %v5043 = vrot.slane %v4759, %v5042
        %v5044 = vlaneseq
        %v5045 = vshrl.u32 %v5044, 7
        %v5046 = vsub.s32 0, %v5045
        %v5047 = vrot.slane %v4760, %v5046
        %v5048 = vlaneseq
        %v5049 = vshrl.u32 %v5048, 7
        %v5050 = vsub.s32 1, %v5049
        %v5051 = vrot.slane %v4760, %v5050
        %v5052 = vlaneseq
        %v5053 = vshrl.u32 %v5052, 7
        %v5054 = vsub.s32 2, %v5053
        %v5055 = vrot.slane %v4760, %v5054
        %5056 = vrot.lane.b32.xlu0 %v5015, 48
        %v5057 = vpop.permute.xlu0 %5056
        %5058 = vrot.lane.b32.xlu0 %v5019, 48
        %v5059 = vpop.permute.xlu0 %5058
        %5060 = vrot.lane.b32.xlu0 %v5023, 48
        %v5061 = vpop.permute.xlu0 %5060
        %5062 = vrot.lane.b32.xlu0 %v5027, 48
        %v5063 = vpop.permute.xlu0 %5062
        %5064 = vrot.lane.b32.xlu0 %v5031, 48
        %v5065 = vpop.permute.xlu0 %5064
        %5066 = vrot.lane.b32.xlu0 %v5035, 48
        %v5067 = vpop.permute.xlu0 %5066
        %5068 = vrot.lane.b32.xlu0 %v5039, 48
        %v5069 = vpop.permute.xlu0 %5068
        %5070 = vrot.lane.b32.xlu0 %v5043, 48
        %v5071 = vpop.permute.xlu0 %5070
        %5072 = vrot.lane.b32.xlu0 %v5047, 48
        %v5073 = vpop.permute.xlu0 %5072
        %5074 = vrot.lane.b32.xlu0 %v5051, 48
        %v5075 = vpop.permute.xlu0 %5074
        %5076 = vrot.lane.b32.xlu0 %v5055, 48
        %v5077 = vpop.permute.xlu0 %5076
        %v5078 = vsel %vm2191, %v5057, %v5059
        %v5079 = vsel %vm2191, %v5059, %v5061
        %v5080 = vsel %vm2191, %v5061, %v5063
        %v5081 = vsel %vm2191, %v5063, %v5065
        %v5082 = vsel %vm2191, %v5065, %v5067
        %v5083 = vsel %vm2191, %v5067, %v5069
        %v5084 = vsel %vm2191, %v5069, %v5071
        %v5085 = vsel %vm2191, %v5071, %v5073
        %v5086 = vsel %vm2191, %v5073, %v5075
        %v5087 = vsel %vm2191, %v5075, %v5077
        %v5101 = vlaneseq
        %v5102 = vshrl.u32 %v5101, 7
        %v5103 = vsub.s32 0, %v5102
        %v5104 = vrot.slane %v4763, %v5103
        %v5105 = vlaneseq
        %v5106 = vshrl.u32 %v5105, 7
        %v5107 = vsub.s32 1, %v5106
        %v5108 = vrot.slane %v4763, %v5107
        %v5109 = vlaneseq
        %v5110 = vshrl.u32 %v5109, 7
        %v5111 = vsub.s32 2, %v5110
        %v5112 = vrot.slane %v4763, %v5111
        %v5113 = vlaneseq
        %v5114 = vshrl.u32 %v5113, 7
        %v5115 = vsub.s32 3, %v5114
        %v5116 = vrot.slane %v4763, %v5115
        %v5117 = vlaneseq
        %v5118 = vshrl.u32 %v5117, 7
        %v5119 = vsub.s32 4, %v5118
        %v5120 = vrot.slane %v4763, %v5119
        %v5121 = vlaneseq
        %v5122 = vshrl.u32 %v5121, 7
        %v5123 = vsub.s32 5, %v5122
        %v5124 = vrot.slane %v4763, %v5123
        %v5125 = vlaneseq
        %v5126 = vshrl.u32 %v5125, 7
        %v5127 = vsub.s32 6, %v5126
        %v5128 = vrot.slane %v4763, %v5127
        %v5129 = vlaneseq
        %v5130 = vshrl.u32 %v5129, 7
        %v5131 = vsub.s32 7, %v5130
        %v5132 = vrot.slane %v4763, %v5131
        %v5133 = vlaneseq
        %v5134 = vshrl.u32 %v5133, 7
        %v5135 = vsub.s32 0, %v5134
        %v5136 = vrot.slane %v4764, %v5135
        %v5137 = vlaneseq
        %v5138 = vshrl.u32 %v5137, 7
        %v5139 = vsub.s32 1, %v5138
        %v5140 = vrot.slane %v4764, %v5139
        %5141 = vrot.lane.b32.xlu0 %v5104, 47
        %v5142 = vpop.permute.xlu0 %5141
        %5143 = vrot.lane.b32.xlu0 %v5108, 47
        %v5144 = vpop.permute.xlu0 %5143
        %5145 = vrot.lane.b32.xlu0 %v5112, 47
        %v5146 = vpop.permute.xlu0 %5145
        %5147 = vrot.lane.b32.xlu0 %v5116, 47
        %v5148 = vpop.permute.xlu0 %5147
        %5149 = vrot.lane.b32.xlu0 %v5120, 47
        %v5150 = vpop.permute.xlu0 %5149
        %5151 = vrot.lane.b32.xlu0 %v5124, 47
        %v5152 = vpop.permute.xlu0 %5151
        %5153 = vrot.lane.b32.xlu0 %v5128, 47
        %v5154 = vpop.permute.xlu0 %5153
        %5155 = vrot.lane.b32.xlu0 %v5132, 47
        %v5156 = vpop.permute.xlu0 %5155
        %5157 = vrot.lane.b32.xlu0 %v5136, 47
        %v5158 = vpop.permute.xlu0 %5157
        %5159 = vrot.lane.b32.xlu0 %v5140, 47
        %v5160 = vpop.permute.xlu0 %5159
        %v5161 = vsel %vm2151, %v5142, %v5144
        %v5162 = vsel %vm2151, %v5144, %v5146
        %v5163 = vsel %vm2151, %v5146, %v5148
        %v5164 = vsel %vm2151, %v5148, %v5150
        %v5165 = vsel %vm2151, %v5150, %v5152
        %v5166 = vsel %vm2151, %v5152, %v5154
        %v5167 = vsel %vm2151, %v5154, %v5156
        %v5168 = vsel %vm2151, %v5156, %v5158
        %v5169 = vsel %vm2151, %v5158, %v5160
        %v5183 = vlaneseq
        %v5184 = vshrl.u32 %v5183, 7
        %v5185 = vsub.s32 0, %v5184
        %v5186 = vrot.slane %v4767, %v5185
        %v5187 = vlaneseq
        %v5188 = vshrl.u32 %v5187, 7
        %v5189 = vsub.s32 1, %v5188
        %v5190 = vrot.slane %v4767, %v5189
        %v5191 = vlaneseq
        %v5192 = vshrl.u32 %v5191, 7
        %v5193 = vsub.s32 2, %v5192
        %v5194 = vrot.slane %v4767, %v5193
        %v5195 = vlaneseq
        %v5196 = vshrl.u32 %v5195, 7
        %v5197 = vsub.s32 3, %v5196
        %v5198 = vrot.slane %v4767, %v5197
        %v5199 = vlaneseq
        %v5200 = vshrl.u32 %v5199, 7
        %v5201 = vsub.s32 4, %v5200
        %v5202 = vrot.slane %v4767, %v5201
        %v5203 = vlaneseq
        %v5204 = vshrl.u32 %v5203, 7
        %v5205 = vsub.s32 5, %v5204
        %v5206 = vrot.slane %v4767, %v5205
        %v5207 = vlaneseq
        %v5208 = vshrl.u32 %v5207, 7
        %v5209 = vsub.s32 6, %v5208
        %v5210 = vrot.slane %v4767, %v5209
        %v5211 = vlaneseq
        %v5212 = vshrl.u32 %v5211, 7
        %v5213 = vsub.s32 7, %v5212
        %v5214 = vrot.slane %v4767, %v5213
        %v5215 = vlaneseq
        %v5216 = vshrl.u32 %v5215, 7
        %v5217 = vsub.s32 0, %v5216
        %v5218 = vrot.slane %v4768, %v5217
        %v5219 = vlaneseq
        %v5220 = vshrl.u32 %v5219, 7
        %v5221 = vsub.s32 1, %v5220
        %v5222 = vrot.slane %v4768, %v5221
        %v5223 = vlaneseq
        %v5224 = vshrl.u32 %v5223, 7
        %v5225 = vsub.s32 2, %v5224
        %v5226 = vrot.slane %v4768, %v5225
        %5227 = vrot.lane.b32.xlu0 %v5186, 46
        %v5228 = vpop.permute.xlu0 %5227
        %5229 = vrot.lane.b32.xlu0 %v5190, 46
        %v5230 = vpop.permute.xlu0 %5229
        %5231 = vrot.lane.b32.xlu0 %v5194, 46
        %v5232 = vpop.permute.xlu0 %5231
        %5233 = vrot.lane.b32.xlu0 %v5198, 46
        %v5234 = vpop.permute.xlu0 %5233
        %5235 = vrot.lane.b32.xlu0 %v5202, 46
        %v5236 = vpop.permute.xlu0 %5235
        %5237 = vrot.lane.b32.xlu0 %v5206, 46
        %v5238 = vpop.permute.xlu0 %5237
        %5239 = vrot.lane.b32.xlu0 %v5210, 46
        %v5240 = vpop.permute.xlu0 %5239
        %5241 = vrot.lane.b32.xlu0 %v5214, 46
        %v5242 = vpop.permute.xlu0 %5241
        %5243 = vrot.lane.b32.xlu0 %v5218, 46
        %v5244 = vpop.permute.xlu0 %5243
        %5245 = vrot.lane.b32.xlu0 %v5222, 46
        %v5246 = vpop.permute.xlu0 %5245
        %5247 = vrot.lane.b32.xlu0 %v5226, 46
        %v5248 = vpop.permute.xlu0 %5247
        %v5249 = vsel %vm2936, %v5228, %v5230
        %v5250 = vsel %vm2936, %v5230, %v5232
        %v5251 = vsel %vm2936, %v5232, %v5234
        %v5252 = vsel %vm2936, %v5234, %v5236
        %v5253 = vsel %vm2936, %v5236, %v5238
        %v5254 = vsel %vm2936, %v5238, %v5240
        %v5255 = vsel %vm2936, %v5240, %v5242
        %v5256 = vsel %vm2936, %v5242, %v5244
        %v5257 = vsel %vm2936, %v5244, %v5246
        %v5258 = vsel %vm2936, %v5246, %v5248
        %v5272 = vlaneseq
        %v5273 = vshrl.u32 %v5272, 7
        %v5274 = vsub.s32 0, %v5273
        %v5275 = vrot.slane %v4769, %v5274
        %v5276 = vlaneseq
        %v5277 = vshrl.u32 %v5276, 7
        %v5278 = vsub.s32 1, %v5277
        %v5279 = vrot.slane %v4769, %v5278
        %v5280 = vlaneseq
        %v5281 = vshrl.u32 %v5280, 7
        %v5282 = vsub.s32 2, %v5281
        %v5283 = vrot.slane %v4769, %v5282
        %v5284 = vlaneseq
        %v5285 = vshrl.u32 %v5284, 7
        %v5286 = vsub.s32 3, %v5285
        %v5287 = vrot.slane %v4769, %v5286
        %v5288 = vlaneseq
        %v5289 = vshrl.u32 %v5288, 7
        %v5290 = vsub.s32 4, %v5289
        %v5291 = vrot.slane %v4769, %v5290
        %v5292 = vlaneseq
        %v5293 = vshrl.u32 %v5292, 7
        %v5294 = vsub.s32 5, %v5293
        %v5295 = vrot.slane %v4769, %v5294
        %v5296 = vlaneseq
        %v5297 = vshrl.u32 %v5296, 7
        %v5298 = vsub.s32 6, %v5297
        %v5299 = vrot.slane %v4769, %v5298
        %v5300 = vlaneseq
        %v5301 = vshrl.u32 %v5300, 7
        %v5302 = vsub.s32 7, %v5301
        %v5303 = vrot.slane %v4769, %v5302
        %v5304 = vlaneseq
        %v5305 = vshrl.u32 %v5304, 7
        %v5306 = vsub.s32 0, %v5305
        %v5307 = vrot.slane %v4770, %v5306
        %v5308 = vlaneseq
        %v5309 = vshrl.u32 %v5308, 7
        %v5310 = vsub.s32 1, %v5309
        %v5311 = vrot.slane %v4770, %v5310
        %v5312 = vlaneseq
        %v5313 = vshrl.u32 %v5312, 7
        %v5314 = vsub.s32 2, %v5313
        %v5315 = vrot.slane %v4770, %v5314
        %5316 = vrot.lane.b32.xlu0 %v5275, 96
        %v5317 = vpop.permute.xlu0 %5316
        %5318 = vrot.lane.b32.xlu0 %v5279, 96
        %v5319 = vpop.permute.xlu0 %5318
        %5320 = vrot.lane.b32.xlu0 %v5283, 96
        %v5321 = vpop.permute.xlu0 %5320
        %5322 = vrot.lane.b32.xlu0 %v5287, 96
        %v5323 = vpop.permute.xlu0 %5322
        %5324 = vrot.lane.b32.xlu0 %v5291, 96
        %v5325 = vpop.permute.xlu0 %5324
        %5326 = vrot.lane.b32.xlu0 %v5295, 96
        %v5327 = vpop.permute.xlu0 %5326
        %5328 = vrot.lane.b32.xlu0 %v5299, 96
        %v5329 = vpop.permute.xlu0 %5328
        %5330 = vrot.lane.b32.xlu0 %v5303, 96
        %v5331 = vpop.permute.xlu0 %5330
        %5332 = vrot.lane.b32.xlu0 %v5307, 96
        %v5333 = vpop.permute.xlu0 %5332
        %5334 = vrot.lane.b32.xlu0 %v5311, 96
        %v5335 = vpop.permute.xlu0 %5334
        %5336 = vrot.lane.b32.xlu0 %v5315, 96
        %v5337 = vpop.permute.xlu0 %5336
        %v5338 = vsel %vm1958, %v5317, %v5319
        %v5339 = vsel %vm1958, %v5319, %v5321
        %v5340 = vsel %vm1958, %v5321, %v5323
        %v5341 = vsel %vm1958, %v5323, %v5325
        %v5342 = vsel %vm1958, %v5325, %v5327
        %v5343 = vsel %vm1958, %v5327, %v5329
        %v5344 = vsel %vm1958, %v5329, %v5331
        %v5345 = vsel %vm1958, %v5331, %v5333
        %v5346 = vsel %vm1958, %v5333, %v5335
        %v5347 = vsel %vm1958, %v5335, %v5337
        %v5361 = vlaneseq
        %v5362 = vshrl.u32 %v5361, 7
        %v5363 = vsub.s32 0, %v5362
        %v5364 = vrot.slane %v4771, %v5363
        %v5365 = vlaneseq
        %v5366 = vshrl.u32 %v5365, 7
        %v5367 = vsub.s32 1, %v5366
        %v5368 = vrot.slane %v4771, %v5367
        %v5369 = vlaneseq
        %v5370 = vshrl.u32 %v5369, 7
        %v5371 = vsub.s32 2, %v5370
        %v5372 = vrot.slane %v4771, %v5371
        %v5373 = vlaneseq
        %v5374 = vshrl.u32 %v5373, 7
        %v5375 = vsub.s32 3, %v5374
        %v5376 = vrot.slane %v4771, %v5375
        %v5377 = vlaneseq
        %v5378 = vshrl.u32 %v5377, 7
        %v5379 = vsub.s32 4, %v5378
        %v5380 = vrot.slane %v4771, %v5379
        %v5381 = vlaneseq
        %v5382 = vshrl.u32 %v5381, 7
        %v5383 = vsub.s32 5, %v5382
        %v5384 = vrot.slane %v4771, %v5383
        %v5385 = vlaneseq
        %v5386 = vshrl.u32 %v5385, 7
        %v5387 = vsub.s32 6, %v5386
        %v5388 = vrot.slane %v4771, %v5387
        %v5389 = vlaneseq
        %v5390 = vshrl.u32 %v5389, 7
        %v5391 = vsub.s32 7, %v5390
        %v5392 = vrot.slane %v4771, %v5391
        %v5393 = vlaneseq
        %v5394 = vshrl.u32 %v5393, 7
        %v5395 = vsub.s32 0, %v5394
        %v5396 = vrot.slane %v4772, %v5395
        %v5397 = vlaneseq
        %v5398 = vshrl.u32 %v5397, 7
        %v5399 = vsub.s32 1, %v5398
        %v5400 = vrot.slane %v4772, %v5399
        %v5401 = vlaneseq
        %v5402 = vshrl.u32 %v5401, 7
        %v5403 = vsub.s32 2, %v5402
        %v5404 = vrot.slane %v4772, %v5403
        %5405 = vrot.lane.b32.xlu0 %v5364, 95
        %v5406 = vpop.permute.xlu0 %5405
        %5407 = vrot.lane.b32.xlu0 %v5368, 95
        %v5408 = vpop.permute.xlu0 %5407
        %5409 = vrot.lane.b32.xlu0 %v5372, 95
        %v5410 = vpop.permute.xlu0 %5409
        %5411 = vrot.lane.b32.xlu0 %v5376, 95
        %v5412 = vpop.permute.xlu0 %5411
        %5413 = vrot.lane.b32.xlu0 %v5380, 95
        %v5414 = vpop.permute.xlu0 %5413
        %5415 = vrot.lane.b32.xlu0 %v5384, 95
        %v5416 = vpop.permute.xlu0 %5415
        %5417 = vrot.lane.b32.xlu0 %v5388, 95
        %v5418 = vpop.permute.xlu0 %5417
        %5419 = vrot.lane.b32.xlu0 %v5392, 95
        %v5420 = vpop.permute.xlu0 %5419
        %5421 = vrot.lane.b32.xlu0 %v5396, 95
        %v5422 = vpop.permute.xlu0 %5421
        %5423 = vrot.lane.b32.xlu0 %v5400, 95
        %v5424 = vpop.permute.xlu0 %5423
        %5425 = vrot.lane.b32.xlu0 %v5404, 95
        %v5426 = vpop.permute.xlu0 %5425
        %v5427 = vsel %vm3115, %v5406, %v5408
        %v5428 = vsel %vm3115, %v5408, %v5410
        %v5429 = vsel %vm3115, %v5410, %v5412
        %v5430 = vsel %vm3115, %v5412, %v5414
        %v5431 = vsel %vm3115, %v5414, %v5416
        %v5432 = vsel %vm3115, %v5416, %v5418
        %v5433 = vsel %vm3115, %v5418, %v5420
        %v5434 = vsel %vm3115, %v5420, %v5422
        %v5435 = vsel %vm3115, %v5422, %v5424
        %v5436 = vsel %vm3115, %v5424, %v5426
        %v5450 = vlaneseq
        %v5451 = vshrl.u32 %v5450, 7
        %v5452 = vsub.s32 0, %v5451
        %v5453 = vrot.slane %v4773, %v5452
        %v5454 = vlaneseq
        %v5455 = vshrl.u32 %v5454, 7
        %v5456 = vsub.s32 1, %v5455
        %v5457 = vrot.slane %v4773, %v5456
        %v5458 = vlaneseq
        %v5459 = vshrl.u32 %v5458, 7
        %v5460 = vsub.s32 2, %v5459
        %v5461 = vrot.slane %v4773, %v5460
        %v5462 = vlaneseq
        %v5463 = vshrl.u32 %v5462, 7
        %v5464 = vsub.s32 3, %v5463
        %v5465 = vrot.slane %v4773, %v5464
        %v5466 = vlaneseq
        %v5467 = vshrl.u32 %v5466, 7
        %v5468 = vsub.s32 4, %v5467
        %v5469 = vrot.slane %v4773, %v5468
        %v5470 = vlaneseq
        %v5471 = vshrl.u32 %v5470, 7
        %v5472 = vsub.s32 5, %v5471
        %v5473 = vrot.slane %v4773, %v5472
        %v5474 = vlaneseq
        %v5475 = vshrl.u32 %v5474, 7
        %v5476 = vsub.s32 6, %v5475
        %v5477 = vrot.slane %v4773, %v5476
        %v5478 = vlaneseq
        %v5479 = vshrl.u32 %v5478, 7
        %v5480 = vsub.s32 7, %v5479
        %v5481 = vrot.slane %v4773, %v5480
        %v5482 = vlaneseq
        %v5483 = vshrl.u32 %v5482, 7
        %v5484 = vsub.s32 0, %v5483
        %v5485 = vrot.slane %v4774, %v5484
        %v5486 = vlaneseq
        %v5487 = vshrl.u32 %v5486, 7
        %v5488 = vsub.s32 1, %v5487
        %v5489 = vrot.slane %v4774, %v5488
        %v5490 = vlaneseq
        %v5491 = vshrl.u32 %v5490, 7
        %v5492 = vsub.s32 2, %v5491
        %v5493 = vrot.slane %v4774, %v5492
        %5494 = vrot.lane.b32.xlu0 %v5453, 94
        %v5495 = vpop.permute.xlu0 %5494
        %5496 = vrot.lane.b32.xlu0 %v5457, 94
        %v5497 = vpop.permute.xlu0 %5496
        %5498 = vrot.lane.b32.xlu0 %v5461, 94
        %v5499 = vpop.permute.xlu0 %5498
        %5500 = vrot.lane.b32.xlu0 %v5465, 94
        %v5501 = vpop.permute.xlu0 %5500
        %5502 = vrot.lane.b32.xlu0 %v5469, 94
        %v5503 = vpop.permute.xlu0 %5502
        %5504 = vrot.lane.b32.xlu0 %v5473, 94
        %v5505 = vpop.permute.xlu0 %5504
        %5506 = vrot.lane.b32.xlu0 %v5477, 94
        %v5507 = vpop.permute.xlu0 %5506
        %5508 = vrot.lane.b32.xlu0 %v5481, 94
        %v5509 = vpop.permute.xlu0 %5508
        %5510 = vrot.lane.b32.xlu0 %v5485, 94
        %v5511 = vpop.permute.xlu0 %5510
        %5512 = vrot.lane.b32.xlu0 %v5489, 94
        %v5513 = vpop.permute.xlu0 %5512
        %5514 = vrot.lane.b32.xlu0 %v5493, 94
        %v5515 = vpop.permute.xlu0 %5514
        %v5516 = vsel %vm3205, %v5495, %v5497
        %v5517 = vsel %vm3205, %v5497, %v5499
        %v5518 = vsel %vm3205, %v5499, %v5501
        %v5519 = vsel %vm3205, %v5501, %v5503
        %v5520 = vsel %vm3205, %v5503, %v5505
        %v5521 = vsel %vm3205, %v5505, %v5507
        %v5522 = vsel %vm3205, %v5507, %v5509
        %v5523 = vsel %vm3205, %v5509, %v5511
        %v5524 = vsel %vm3205, %v5511, %v5513
        %v5525 = vsel %vm3205, %v5513, %v5515
        %v5526 = vsel %vm2153, %v4780, %v4900
        %v5527 = vsel %vm2153, %v4784, %v4901
        %v5528 = vsel %vm2153, %v4788, %v4902
        %v5529 = vsel %vm2153, %v4792, %v4903
        %v5530 = vsel %vm2153, %v4796, %v4904
        %v5531 = vsel %vm2153, %v4800, %v4905
        %v5532 = vsel %vm2153, %v4804, %v4906
        %v5533 = vsel %vm2153, %v4808, %v4907
        %v5534 = vsel %vm2153, %v4812, %v4908
        %v5535 = vsel %vm2153, %v4816, %v4909
        %v5536 = vsel %vm2153, %v4820, %v4899
        %v5537 = vsel %vm3227, %v5526, %v4989
        %v5538 = vsel %vm3227, %v5527, %v4990
        %v5539 = vsel %vm3227, %v5528, %v4991
        %v5540 = vsel %vm3227, %v5529, %v4992
        %v5541 = vsel %vm3227, %v5530, %v4993
        %v5542 = vsel %vm3227, %v5531, %v4994
        %v5543 = vsel %vm3227, %v5532, %v4995
        %v5544 = vsel %vm3227, %v5533, %v4996
        %v5545 = vsel %vm3227, %v5534, %v4997
        %v5546 = vsel %vm3227, %v5535, %v4998
        %v5547 = vsel %vm3227, %v5536, %v4988
        %v5548 = vsel %vm3239, %v5537, %v5078
        %v5549 = vsel %vm3239, %v5538, %v5079
        %v5550 = vsel %vm3239, %v5539, %v5080
        %v5551 = vsel %vm3239, %v5540, %v5081
        %v5552 = vsel %vm3239, %v5541, %v5082
        %v5553 = vsel %vm3239, %v5542, %v5083
        %v5554 = vsel %vm3239, %v5543, %v5084
        %v5555 = vsel %vm3239, %v5544, %v5085
        %v5556 = vsel %vm3239, %v5545, %v5086
        %v5557 = vsel %vm3239, %v5546, %v5087
        %v5558 = vsel %vm3239, %v5547, %v5077
        %v5559 = vsel %vm3251, %v5548, %v5142
        %v5560 = vsel %vm3251, %v5549, %v5161
        %v5561 = vsel %vm3251, %v5550, %v5162
        %v5562 = vsel %vm3251, %v5551, %v5163
        %v5563 = vsel %vm3251, %v5552, %v5164
        %v5564 = vsel %vm3251, %v5553, %v5165
        %v5565 = vsel %vm3251, %v5554, %v5166
        %v5566 = vsel %vm3251, %v5555, %v5167
        %v5567 = vsel %vm3251, %v5556, %v5168
        %v5568 = vsel %vm3251, %v5557, %v5169
        %v5569 = vsel %vm3251, %v5558, %v5160
        %v5570 = vsel %vm3263, %v5559, %v5228
        %v5571 = vsel %vm3263, %v5560, %v5249
        %v5572 = vsel %vm3263, %v5561, %v5250
        %v5573 = vsel %vm3263, %v5562, %v5251
        %v5574 = vsel %vm3263, %v5563, %v5252
        %v5575 = vsel %vm3263, %v5564, %v5253
        %v5576 = vsel %vm3263, %v5565, %v5254
        %v5577 = vsel %vm3263, %v5566, %v5255
        %v5578 = vsel %vm3263, %v5567, %v5256
        %v5579 = vsel %vm3263, %v5568, %v5257
        %v5580 = vsel %vm3263, %v5569, %v5258
        %v5581 = vsel %vm3275, %v5570, %v5338
        %v5582 = vsel %vm3275, %v5571, %v5339
        %v5583 = vsel %vm3275, %v5572, %v5340
        %v5584 = vsel %vm3275, %v5573, %v5341
        %v5585 = vsel %vm3275, %v5574, %v5342
        %v5586 = vsel %vm3275, %v5575, %v5343
        %v5587 = vsel %vm3275, %v5576, %v5344
        %v5588 = vsel %vm3275, %v5577, %v5345
        %v5589 = vsel %vm3275, %v5578, %v5346
        %v5590 = vsel %vm3275, %v5579, %v5347
        %v5591 = vsel %vm3275, %v5580, %v5337
        %v5592 = vsel %vm3287, %v5581, %v5427
        %v5593 = vsel %vm3287, %v5582, %v5428
        %v5594 = vsel %vm3287, %v5583, %v5429
        %v5595 = vsel %vm3287, %v5584, %v5430
        %v5596 = vsel %vm3287, %v5585, %v5431
        %v5597 = vsel %vm3287, %v5586, %v5432
        %v5598 = vsel %vm3287, %v5587, %v5433
        %v5599 = vsel %vm3287, %v5588, %v5434
        %v5600 = vsel %vm3287, %v5589, %v5435
        %v5601 = vsel %vm3287, %v5590, %v5436
        %v5602 = vsel %vm3287, %v5591, %v5426
        %5604 = vset.pattern.permute.xlu0 9
        %5605 = vperm.xlu0 %5604, %v4740
        %v5606 = vpop.permute.xlu0 %5605
        %5609 = vset.pattern.permute.xlu0 9
        %5610 = vperm.xlu0 %5609, %v4741
        %v5611 = vpop.permute.xlu0 %5610
        %5614 = vset.pattern.permute.xlu0 9
        %5615 = vperm.xlu0 %5614, %v4742
        %v5616 = vpop.permute.xlu0 %5615
        %5619 = vset.pattern.permute.xlu0 9
        %5620 = vperm.xlu0 %5619, %v4743
        %v5621 = vpop.permute.xlu0 %5620
        %5624 = vset.pattern.permute.xlu0 9
        %5625 = vperm.xlu0 %5624, %v4744
        %v5626 = vpop.permute.xlu0 %5625
        %5629 = vset.pattern.permute.xlu0 9
        %5630 = vperm.xlu0 %5629, %v4745
        %v5631 = vpop.permute.xlu0 %5630
        %5634 = vset.pattern.permute.xlu0 9
        %5635 = vperm.xlu0 %5634, %v4746
        %v5636 = vpop.permute.xlu0 %5635
        %5639 = vset.pattern.permute.xlu0 9
        %5640 = vperm.xlu0 %5639, %v4747
        %v5641 = vpop.permute.xlu0 %5640
        %5654 = vrot.lane.b32.xlu0 %v5592, 81
        %v5655 = vpop.permute.xlu0 %5654
        %5656 = vrot.lane.b32.xlu0 %v5593, 81
        %v5657 = vpop.permute.xlu0 %5656
        %5658 = vrot.lane.b32.xlu0 %v5594, 81
        %v5659 = vpop.permute.xlu0 %5658
        %5660 = vrot.lane.b32.xlu0 %v5595, 81
        %v5661 = vpop.permute.xlu0 %5660
        %5662 = vrot.lane.b32.xlu0 %v5596, 81
        %v5663 = vpop.permute.xlu0 %5662
        %5664 = vrot.lane.b32.xlu0 %v5597, 81
        %v5665 = vpop.permute.xlu0 %5664
        %5666 = vrot.lane.b32.xlu0 %v5598, 81
        %v5667 = vpop.permute.xlu0 %5666
        %5668 = vrot.lane.b32.xlu0 %v5599, 81
        %v5669 = vpop.permute.xlu0 %5668
        %5670 = vrot.lane.b32.xlu0 %v5600, 81
        %v5671 = vpop.permute.xlu0 %5670
        %5672 = vrot.lane.b32.xlu0 %v5601, 81
        %v5673 = vpop.permute.xlu0 %5672
        %5674 = vrot.lane.b32.xlu0 %v5602, 81
        %v5675 = vpop.permute.xlu0 %5674
        %5676 = vrot.lane.b32.xlu0 %v5516, 81
        %v5677 = vpop.permute.xlu0 %5676
        %5678 = vrot.lane.b32.xlu0 %v5517, 81
        %v5679 = vpop.permute.xlu0 %5678
        %5680 = vrot.lane.b32.xlu0 %v5518, 81
        %v5681 = vpop.permute.xlu0 %5680
        %5682 = vrot.lane.b32.xlu0 %v5519, 81
        %v5683 = vpop.permute.xlu0 %5682
        %5684 = vrot.lane.b32.xlu0 %v5520, 81
        %v5685 = vpop.permute.xlu0 %5684
        %5686 = vrot.lane.b32.xlu0 %v5521, 81
        %v5687 = vpop.permute.xlu0 %5686
        %5688 = vrot.lane.b32.xlu0 %v5522, 81
        %v5689 = vpop.permute.xlu0 %5688
        %5690 = vrot.lane.b32.xlu0 %v5523, 81
        %v5691 = vpop.permute.xlu0 %5690
        %5692 = vrot.lane.b32.xlu0 %v5524, 81
        %v5693 = vpop.permute.xlu0 %5692
        %5694 = vrot.lane.b32.xlu0 %v5525, 81
        %v5695 = vpop.permute.xlu0 %5694
        %5696 = vrot.lane.b32.xlu0 %v5515, 81
        %v5697 = vpop.permute.xlu0 %5696
        %v5698 = vsel %vm2453, %v5655, %v5657
        %v5699 = vsel %vm2453, %v5657, %v5659
        %v5700 = vsel %vm2453, %v5659, %v5661
        %v5701 = vsel %vm2453, %v5661, %v5663
        %v5702 = vsel %vm2453, %v5663, %v5665
        %v5703 = vsel %vm2453, %v5665, %v5667
        %v5704 = vsel %vm2453, %v5667, %v5669
        %v5705 = vsel %vm2453, %v5669, %v5671
        %v5706 = vsel %vm2453, %v5671, %v5673
        %v5707 = vsel %vm2453, %v5673, %v5675
        %v5708 = vsel %vm2453, %v5677, %v5679
        %v5709 = vsel %vm2453, %v5679, %v5681
        %v5710 = vsel %vm2453, %v5681, %v5683
        %v5711 = vsel %vm2453, %v5683, %v5685
        %v5712 = vsel %vm2453, %v5685, %v5687
        %v5713 = vsel %vm2453, %v5687, %v5689
        %v5714 = vsel %vm2453, %v5689, %v5691
        %v5715 = vsel %vm2453, %v5691, %v5693
        %v5716 = vsel %vm2453, %v5693, %v5695
        %v5717 = vsel %vm2453, %v5695, %v5697
        %v5728 = vsel %vm3424, %v4740, 0
        %v5730 = vsel %vm3424, %v4741, 0
        %v5732 = vsel %vm3424, %v4742, 0
        %v5734 = vsel %vm3424, %v4743, 0
        %v5736 = vsel %vm3424, %v4744, 0
        %v5738 = vsel %vm3424, %v4745, 0
        %v5740 = vsel %vm3424, %v4746, 0
        %v5742 = vsel %vm3424, %v4747, 0
        %v5744 = vsel %vm2153, %v5708, 0
        %v5746 = vsel %vm2153, %v5709, 0
        %v5748 = vsel %vm2153, %v5710, 0
        %v5750 = vsel %vm2153, %v5711, 0
        %v5752 = vsel %vm2153, %v5712, 0
        %v5754 = vsel %vm2153, %v5713, 0
        %v5756 = vsel %vm2153, %v5714, 0
        %v5758 = vsel %vm2153, %v5715, 0
        %v5760 = vsel %vm2153, %v5716, 0
        %v5762 = vsel %vm2153, %v5717, 0
        %5764 = vmatprep.subr.mxu0 %v5699
        %5765 = vmatpush1.msra.mxu0 %v5698
        %5766 = vmatprep.subr.mxu0 %v5746
        %5767 = vmatpush1.msra.mxu0 %v5744
        %5768 = vmatprep.subr.mxu0 0.0
        %5769 = vmatpush1.msra.mxu0 0.0
        %5770 = vmatprep.subr.mxu0 0.0
        %5771 = vmatpush1.msra.mxu0 0.0
        %5772 = vmatprep.subr.mxu0 0.0
        %5773 = vmatpush1.msra.mxu0 0.0
        %5774 = vmatprep.subr.mxu0 0.0
        %5775 = vmatpush1.msra.mxu0 0.0
        %5776 = vmatprep.subr.mxu0 0.0
        %5777 = vmatpush1.msra.mxu0 0.0
        %5778 = vmatprep.subr.mxu0 0.0
        %5779 = vmatpush1.msra.mxu0 0.0
        %5780 = vmatprep.subr.mxu0 0.0
        %5781 = vmatpush1.msra.mxu0 0.0
        %5782 = vmatprep.subr.mxu0 0.0
        %5783 = vmatpush1.msra.mxu0 0.0
        %5784 = vmatprep.subr.mxu0 0.0
        %5785 = vmatpush1.msra.mxu0 0.0
        %5786 = vmatprep.subr.mxu0 0.0
        %5787 = vmatpush1.msra.mxu0 0.0
        %5788 = vmatprep.subr.mxu0 0.0
        %5789 = vmatpush1.msra.mxu0 0.0
        %5790 = vmatprep.subr.mxu0 0.0
        %5791 = vmatpush1.msra.mxu0 0.0
        %5792 = vmatprep.subr.mxu0 0.0
        %5793 = vmatpush1.msra.mxu0 0.0
        %5794 = vmatprep.subr.mxu0 0.0
        %5795 = vmatpush1.msra.mxu0 0.0
        %5796 = vmatprep.subr.mxu0 0.0
        %5797 = vmatpush1.msra.mxu0 0.0
        %5798 = vmatprep.subr.mxu0 0.0
        %5799 = vmatpush1.msra.mxu0 0.0
        %5800 = vmatprep.subr.mxu0 0.0
        %5801 = vmatpush1.msra.mxu0 0.0
        %5802 = vmatprep.subr.mxu0 0.0
        %5803 = vmatpush1.msra.mxu0 0.0
        %5804 = vmatprep.subr.mxu0 0.0
        %5805 = vmatpush1.msra.mxu0 0.0
        %5806 = vmatprep.subr.mxu0 0.0
        %5807 = vmatpush1.msra.mxu0 0.0
        %5808 = vmatprep.subr.mxu0 0.0
        %5809 = vmatpush1.msra.mxu0 0.0
        %5810 = vmatprep.subr.mxu0 0.0
        %5811 = vmatpush1.msra.mxu0 0.0
        %5812 = vmatprep.subr.mxu0 0.0
        %5813 = vmatpush1.msra.mxu0 0.0
        %5814 = vmatprep.subr.mxu0 0.0
        %5815 = vmatpush1.msra.mxu0 0.0
        %5816 = vmatprep.subr.mxu0 0.0
        %5817 = vmatpush1.msra.mxu0 0.0
        %5818 = vmatprep.subr.mxu0 0.0
        %5819 = vmatpush1.msra.mxu0 0.0
        %5820 = vmatprep.subr.mxu0 0.0
        %5821 = vmatpush1.msra.mxu0 0.0
        %5822 = vmatprep.subr.mxu0 0.0
        %5823 = vmatpush1.msra.mxu0 0.0
        %5824 = vmatprep.subr.mxu0 0.0
        %5825 = vmatpush1.msra.mxu0 0.0
        %5826 = vmatprep.subr.mxu0 0.0
        %5827 = vmatpush1.msra.mxu0 0.0
        %5828 = vmatprep.mubr.f32.mxu0 0.0
        %5829 = vmatmul.mubr.f32.gmra.mrb[0].mxu0 %v5728
        %v5830 = vpop.f32.mrb[0].mxu0
        %v5831 = vadd.f32 %v5606, %v5830
        %v5832 = vpop.f32.mrb[0].mxu0
        %v5833 = vadd.f32 %v5606, %v5832
        %5834 = vmatprep.mubr.f32.mxu0 0.0
        %5835 = vmatmul.mubr.f32.gmra.mrb[0].mxu0 %v5730
        %v5836 = vpop.f32.mrb[0].mxu0
        %v5837 = vadd.f32 %v5611, %v5836
        %v5838 = vpop.f32.mrb[0].mxu0
        %v5839 = vadd.f32 %v5611, %v5838
        %5840 = vmatprep.mubr.f32.mxu0 0.0
        %5841 = vmatmul.mubr.f32.gmra.mrb[0].mxu0 %v5732
        %v5842 = vpop.f32.mrb[0].mxu0
        %v5843 = vadd.f32 %v5616, %v5842
        %v5844 = vpop.f32.mrb[0].mxu0
        %v5845 = vadd.f32 %v5616, %v5844
        %5846 = vmatprep.mubr.f32.mxu0 0.0
        %5847 = vmatmul.mubr.f32.gmra.mrb[0].mxu0 %v5734
        %v5848 = vpop.f32.mrb[0].mxu0
        %v5849 = vadd.f32 %v5621, %v5848
        %v5850 = vpop.f32.mrb[0].mxu0
        %v5851 = vadd.f32 %v5621, %v5850
        %5852 = vmatprep.mubr.f32.mxu0 0.0
        %5853 = vmatmul.mubr.f32.gmra.mrb[0].mxu0 %v5736
        %v5854 = vpop.f32.mrb[0].mxu0
        %v5855 = vadd.f32 %v5626, %v5854
        %v5856 = vpop.f32.mrb[0].mxu0
        %v5857 = vadd.f32 %v5626, %v5856
        %5858 = vmatprep.mubr.f32.mxu0 0.0
        %5859 = vmatmul.mubr.f32.gmra.mrb[0].mxu0 %v5738
        %v5860 = vpop.f32.mrb[0].mxu0
        %v5861 = vadd.f32 %v5631, %v5860
        %v5862 = vpop.f32.mrb[0].mxu0
        %v5863 = vadd.f32 %v5631, %v5862
        %5864 = vmatprep.mubr.f32.mxu0 0.0
        %5865 = vmatmul.mubr.f32.gmra.mrb[0].mxu0 %v5740
        %v5866 = vpop.f32.mrb[0].mxu0
        %v5867 = vadd.f32 %v5636, %v5866
        %v5868 = vpop.f32.mrb[0].mxu0
        %v5869 = vadd.f32 %v5636, %v5868
        %5870 = vmatprep.mubr.f32.mxu0 0.0
        %5871 = vmatmul.mubr.f32.gmra.mrb[0].mxu0 %v5742
        %v5872 = vpop.f32.mrb[0].mxu0
        %v5873 = vadd.f32 %v5641, %v5872
        %v5874 = vpop.f32.mrb[0].mxu0
        %v5875 = vadd.f32 %v5641, %v5874
        %5876 = vdwg.mxu0
        %5877 = vmatprep.subr.mxu0 %v5701
        %5878 = vmatpush1.msra.mxu0 %v5700
        %5879 = vmatprep.subr.mxu0 %v5750
        %5880 = vmatpush1.msra.mxu0 %v5748
        %5881 = vmatprep.subr.mxu0 0.0
        %5882 = vmatpush1.msra.mxu0 0.0
        %5883 = vmatprep.subr.mxu0 0.0
        %5884 = vmatpush1.msra.mxu0 0.0
        %5885 = vmatprep.subr.mxu0 0.0
        %5886 = vmatpush1.msra.mxu0 0.0
        %5887 = vmatprep.subr.mxu0 0.0
        %5888 = vmatpush1.msra.mxu0 0.0
        %5889 = vmatprep.subr.mxu0 0.0
        %5890 = vmatpush1.msra.mxu0 0.0
        %5891 = vmatprep.subr.mxu0 0.0
        %5892 = vmatpush1.msra.mxu0 0.0
        %5893 = vmatprep.subr.mxu0 0.0
        %5894 = vmatpush1.msra.mxu0 0.0
        %5895 = vmatprep.subr.mxu0 0.0
        %5896 = vmatpush1.msra.mxu0 0.0
        %5897 = vmatprep.subr.mxu0 0.0
        %5898 = vmatpush1.msra.mxu0 0.0
        %5899 = vmatprep.subr.mxu0 0.0
        %5900 = vmatpush1.msra.mxu0 0.0
        %5901 = vmatprep.subr.mxu0 0.0
        %5902 = vmatpush1.msra.mxu0 0.0
        %5903 = vmatprep.subr.mxu0 0.0
        %5904 = vmatpush1.msra.mxu0 0.0
        %5905 = vmatprep.subr.mxu0 0.0
        %5906 = vmatpush1.msra.mxu0 0.0
        %5907 = vmatprep.subr.mxu0 0.0
        %5908 = vmatpush1.msra.mxu0 0.0
        %5909 = vmatprep.subr.mxu0 0.0
        %5910 = vmatpush1.msra.mxu0 0.0
        %5911 = vmatprep.subr.mxu0 0.0
        %5912 = vmatpush1.msra.mxu0 0.0
        %5913 = vmatprep.subr.mxu0 0.0
        %5914 = vmatpush1.msra.mxu0 0.0
        %5915 = vmatprep.subr.mxu0 0.0
        %5916 = vmatpush1.msra.mxu0 0.0
        %5917 = vmatprep.subr.mxu0 0.0
        %5918 = vmatpush1.msra.mxu0 0.0
        %5919 = vmatprep.subr.mxu0 0.0
        %5920 = vmatpush1.msra.mxu0 0.0
        %5921 = vmatprep.subr.mxu0 0.0
        %5922 = vmatpush1.msra.mxu0 0.0
        %5923 = vmatprep.subr.mxu0 0.0
        %5924 = vmatpush1.msra.mxu0 0.0
        %5925 = vmatprep.subr.mxu0 0.0
        %5926 = vmatpush1.msra.mxu0 0.0
        %5927 = vmatprep.subr.mxu0 0.0
        %5928 = vmatpush1.msra.mxu0 0.0
        %5929 = vmatprep.subr.mxu0 0.0
        %5930 = vmatpush1.msra.mxu0 0.0
        %5931 = vmatprep.subr.mxu0 0.0
        %5932 = vmatpush1.msra.mxu0 0.0
        %5933 = vmatprep.subr.mxu0 0.0
        %5934 = vmatpush1.msra.mxu0 0.0
        %5935 = vmatprep.subr.mxu0 0.0
        %5936 = vmatpush1.msra.mxu0 0.0
        %5937 = vmatprep.subr.mxu0 0.0
        %5938 = vmatpush1.msra.mxu0 0.0
        %5939 = vmatprep.subr.mxu0 0.0
        %5940 = vmatpush1.msra.mxu0 0.0
        %5941 = vmatprep.mubr.f32.mxu0 0.0
        %5942 = vmatmul.mubr.f32.gmra.mrb[0].mxu0 %v5728
        %v5943 = vpop.f32.mrb[0].mxu0
        %v5944 = vadd.f32 %v5606, %v5943
        %v5945 = vpop.f32.mrb[0].mxu0
        %v5946 = vadd.f32 %v5606, %v5945
        %5947 = vmatprep.mubr.f32.mxu0 0.0
        %5948 = vmatmul.mubr.f32.gmra.mrb[0].mxu0 %v5730
        %v5949 = vpop.f32.mrb[0].mxu0
        %v5950 = vadd.f32 %v5611, %v5949
        %v5951 = vpop.f32.mrb[0].mxu0
        %v5952 = vadd.f32 %v5611, %v5951
        %5953 = vmatprep.mubr.f32.mxu0 0.0
        %5954 = vmatmul.mubr.f32.gmra.mrb[0].mxu0 %v5732
        %v5955 = vpop.f32.mrb[0].mxu0
        %v5956 = vadd.f32 %v5616, %v5955
        %v5957 = vpop.f32.mrb[0].mxu0
        %v5958 = vadd.f32 %v5616, %v5957
        %5959 = vmatprep.mubr.f32.mxu0 0.0
        %5960 = vmatmul.mubr.f32.gmra.mrb[0].mxu0 %v5734
        %v5961 = vpop.f32.mrb[0].mxu0
        %v5962 = vadd.f32 %v5621, %v5961
        %v5963 = vpop.f32.mrb[0].mxu0
        %v5964 = vadd.f32 %v5621, %v5963
        %5965 = vmatprep.mubr.f32.mxu0 0.0
        %5966 = vmatmul.mubr.f32.gmra.mrb[0].mxu0 %v5736
        %v5967 = vpop.f32.mrb[0].mxu0
        %v5968 = vadd.f32 %v5626, %v5967
        %v5969 = vpop.f32.mrb[0].mxu0
        %v5970 = vadd.f32 %v5626, %v5969
        %5971 = vmatprep.mubr.f32.mxu0 0.0
        %5972 = vmatmul.mubr.f32.gmra.mrb[0].mxu0 %v5738
        %v5973 = vpop.f32.mrb[0].mxu0
        %v5974 = vadd.f32 %v5631, %v5973
        %v5975 = vpop.f32.mrb[0].mxu0
        %v5976 = vadd.f32 %v5631, %v5975
        %5977 = vmatprep.mubr.f32.mxu0 0.0
        %5978 = vmatmul.mubr.f32.gmra.mrb[0].mxu0 %v5740
        %v5979 = vpop.f32.mrb[0].mxu0
        %v5980 = vadd.f32 %v5636, %v5979
        %v5981 = vpop.f32.mrb[0].mxu0
        %v5982 = vadd.f32 %v5636, %v5981
        %5983 = vmatprep.mubr.f32.mxu0 0.0
        %5984 = vmatmul.mubr.f32.gmra.mrb[0].mxu0 %v5742
        %v5985 = vpop.f32.mrb[0].mxu0
        %v5986 = vadd.f32 %v5641, %v5985
        %v5987 = vpop.f32.mrb[0].mxu0
        %v5988 = vadd.f32 %v5641, %v5987
        %5989 = vdwg.mxu0
        %5990 = vmatprep.subr.mxu0 %v5703
        %5991 = vmatpush1.msra.mxu0 %v5702
        %5992 = vmatprep.subr.mxu0 %v5754
        %5993 = vmatpush1.msra.mxu0 %v5752
        %5994 = vmatprep.subr.mxu0 0.0
        %5995 = vmatpush1.msra.mxu0 0.0
        %5996 = vmatprep.subr.mxu0 0.0
        %5997 = vmatpush1.msra.mxu0 0.0
        %5998 = vmatprep.subr.mxu0 0.0
        %5999 = vmatpush1.msra.mxu0 0.0
        %6000 = vmatprep.subr.mxu0 0.0
        %6001 = vmatpush1.msra.mxu0 0.0
        %6002 = vmatprep.subr.mxu0 0.0
        %6003 = vmatpush1.msra.mxu0 0.0
        %6004 = vmatprep.subr.mxu0 0.0
        %6005 = vmatpush1.msra.mxu0 0.0
        %6006 = vmatprep.subr.mxu0 0.0
        %6007 = vmatpush1.msra.mxu0 0.0
        %6008 = vmatprep.subr.mxu0 0.0
        %6009 = vmatpush1.msra.mxu0 0.0
        %6010 = vmatprep.subr.mxu0 0.0
        %6011 = vmatpush1.msra.mxu0 0.0
        %6012 = vmatprep.subr.mxu0 0.0
        %6013 = vmatpush1.msra.mxu0 0.0
        %6014 = vmatprep.subr.mxu0 0.0
        %6015 = vmatpush1.msra.mxu0 0.0
        %6016 = vmatprep.subr.mxu0 0.0
        %6017 = vmatpush1.msra.mxu0 0.0
        %6018 = vmatprep.subr.mxu0 0.0
        %6019 = vmatpush1.msra.mxu0 0.0
        %6020 = vmatprep.subr.mxu0 0.0
        %6021 = vmatpush1.msra.mxu0 0.0
        %6022 = vmatprep.subr.mxu0 0.0
        %6023 = vmatpush1.msra.mxu0 0.0
        %6024 = vmatprep.subr.mxu0 0.0
        %6025 = vmatpush1.msra.mxu0 0.0
        %6026 = vmatprep.subr.mxu0 0.0
        %6027 = vmatpush1.msra.mxu0 0.0
        %6028 = vmatprep.subr.mxu0 0.0
        %6029 = vmatpush1.msra.mxu0 0.0
        %6030 = vmatprep.subr.mxu0 0.0
        %6031 = vmatpush1.msra.mxu0 0.0
        %6032 = vmatprep.subr.mxu0 0.0
        %6033 = vmatpush1.msra.mxu0 0.0
        %6034 = vmatprep.subr.mxu0 0.0
        %6035 = vmatpush1.msra.mxu0 0.0
        %6036 = vmatprep.subr.mxu0 0.0
        %6037 = vmatpush1.msra.mxu0 0.0
        %6038 = vmatprep.subr.mxu0 0.0
        %6039 = vmatpush1.msra.mxu0 0.0
        %6040 = vmatprep.subr.mxu0 0.0
        %6041 = vmatpush1.msra.mxu0 0.0
        %6042 = vmatprep.subr.mxu0 0.0
        %6043 = vmatpush1.msra.mxu0 0.0
        %6044 = vmatprep.subr.mxu0 0.0
        %6045 = vmatpush1.msra.mxu0 0.0
        %6046 = vmatprep.subr.mxu0 0.0
        %6047 = vmatpush1.msra.mxu0 0.0
        %6048 = vmatprep.subr.mxu0 0.0
        %6049 = vmatpush1.msra.mxu0 0.0
        %6050 = vmatprep.subr.mxu0 0.0
        %6051 = vmatpush1.msra.mxu0 0.0
        %6052 = vmatprep.subr.mxu0 0.0
        %6053 = vmatpush1.msra.mxu0 0.0
        %6054 = vmatprep.mubr.f32.mxu0 0.0
        %6055 = vmatmul.mubr.f32.gmra.mrb[0].mxu0 %v5728
        %v6056 = vpop.f32.mrb[0].mxu0
        %v6057 = vadd.f32 %v5606, %v6056
        %v6058 = vpop.f32.mrb[0].mxu0
        %v6059 = vadd.f32 %v5606, %v6058
        %6060 = vmatprep.mubr.f32.mxu0 0.0
        %6061 = vmatmul.mubr.f32.gmra.mrb[0].mxu0 %v5730
        %v6062 = vpop.f32.mrb[0].mxu0
        %v6063 = vadd.f32 %v5611, %v6062
        %v6064 = vpop.f32.mrb[0].mxu0
        %v6065 = vadd.f32 %v5611, %v6064
        %6066 = vmatprep.mubr.f32.mxu0 0.0
        %6067 = vmatmul.mubr.f32.gmra.mrb[0].mxu0 %v5732
        %v6068 = vpop.f32.mrb[0].mxu0
        %v6069 = vadd.f32 %v5616, %v6068
        %v6070 = vpop.f32.mrb[0].mxu0
        %v6071 = vadd.f32 %v5616, %v6070
        %6072 = vmatprep.mubr.f32.mxu0 0.0
        %6073 = vmatmul.mubr.f32.gmra.mrb[0].mxu0 %v5734
        %v6074 = vpop.f32.mrb[0].mxu0
        %v6075 = vadd.f32 %v5621, %v6074
        %v6076 = vpop.f32.mrb[0].mxu0
        %v6077 = vadd.f32 %v5621, %v6076
        %6078 = vmatprep.mubr.f32.mxu0 0.0
        %6079 = vmatmul.mubr.f32.gmra.mrb[0].mxu0 %v5736
        %v6080 = vpop.f32.mrb[0].mxu0
        %v6081 = vadd.f32 %v5626, %v6080
        %v6082 = vpop.f32.mrb[0].mxu0
        %v6083 = vadd.f32 %v5626, %v6082
        %6084 = vmatprep.mubr.f32.mxu0 0.0
        %6085 = vmatmul.mubr.f32.gmra.mrb[0].mxu0 %v5738
        %v6086 = vpop.f32.mrb[0].mxu0
        %v6087 = vadd.f32 %v5631, %v6086
        %v6088 = vpop.f32.mrb[0].mxu0
        %v6089 = vadd.f32 %v5631, %v6088
        %6090 = vmatprep.mubr.f32.mxu0 0.0
        %6091 = vmatmul.mubr.f32.gmra.mrb[0].mxu0 %v5740
        %v6092 = vpop.f32.mrb[0].mxu0
        %v6093 = vadd.f32 %v5636, %v6092
        %v6094 = vpop.f32.mrb[0].mxu0
        %v6095 = vadd.f32 %v5636, %v6094
        %6096 = vmatprep.mubr.f32.mxu0 0.0
        %6097 = vmatmul.mubr.f32.gmra.mrb[0].mxu0 %v5742
        %v6098 = vpop.f32.mrb[0].mxu0
        %v6099 = vadd.f32 %v5641, %v6098
        %v6100 = vpop.f32.mrb[0].mxu0
        %v6101 = vadd.f32 %v5641, %v6100
        %6102 = vdwg.mxu0
        %6103 = vmatprep.subr.mxu0 %v5705
        %6104 = vmatpush1.msra.mxu0 %v5704
        %6105 = vmatprep.subr.mxu0 %v5758
        %6106 = vmatpush1.msra.mxu0 %v5756
        %6107 = vmatprep.subr.mxu0 0.0
        %6108 = vmatpush1.msra.mxu0 0.0
        %6109 = vmatprep.subr.mxu0 0.0
        %6110 = vmatpush1.msra.mxu0 0.0
        %6111 = vmatprep.subr.mxu0 0.0
        %6112 = vmatpush1.msra.mxu0 0.0
        %6113 = vmatprep.subr.mxu0 0.0
        %6114 = vmatpush1.msra.mxu0 0.0
        %6115 = vmatprep.subr.mxu0 0.0
        %6116 = vmatpush1.msra.mxu0 0.0
        %6117 = vmatprep.subr.mxu0 0.0
        %6118 = vmatpush1.msra.mxu0 0.0
        %6119 = vmatprep.subr.mxu0 0.0
        %6120 = vmatpush1.msra.mxu0 0.0
        %6121 = vmatprep.subr.mxu0 0.0
        %6122 = vmatpush1.msra.mxu0 0.0
        %6123 = vmatprep.subr.mxu0 0.0
        %6124 = vmatpush1.msra.mxu0 0.0
        %6125 = vmatprep.subr.mxu0 0.0
        %6126 = vmatpush1.msra.mxu0 0.0
        %6127 = vmatprep.subr.mxu0 0.0
        %6128 = vmatpush1.msra.mxu0 0.0
        %6129 = vmatprep.subr.mxu0 0.0
        %6130 = vmatpush1.msra.mxu0 0.0
        %6131 = vmatprep.subr.mxu0 0.0
        %6132 = vmatpush1.msra.mxu0 0.0
        %6133 = vmatprep.subr.mxu0 0.0
        %6134 = vmatpush1.msra.mxu0 0.0
        %6135 = vmatprep.subr.mxu0 0.0
        %6136 = vmatpush1.msra.mxu0 0.0
        %6137 = vmatprep.subr.mxu0 0.0
        %6138 = vmatpush1.msra.mxu0 0.0
        %6139 = vmatprep.subr.mxu0 0.0
        %6140 = vmatpush1.msra.mxu0 0.0
        %6141 = vmatprep.subr.mxu0 0.0
        %6142 = vmatpush1.msra.mxu0 0.0
        %6143 = vmatprep.subr.mxu0 0.0
        %6144 = vmatpush1.msra.mxu0 0.0
        %6145 = vmatprep.subr.mxu0 0.0
        %6146 = vmatpush1.msra.mxu0 0.0
        %6147 = vmatprep.subr.mxu0 0.0
        %6148 = vmatpush1.msra.mxu0 0.0
        %6149 = vmatprep.subr.mxu0 0.0
        %6150 = vmatpush1.msra.mxu0 0.0
        %6151 = vmatprep.subr.mxu0 0.0
        %6152 = vmatpush1.msra.mxu0 0.0
        %6153 = vmatprep.subr.mxu0 0.0
        %6154 = vmatpush1.msra.mxu0 0.0
        %6155 = vmatprep.subr.mxu0 0.0
        %6156 = vmatpush1.msra.mxu0 0.0
        %6157 = vmatprep.subr.mxu0 0.0
        %6158 = vmatpush1.msra.mxu0 0.0
        %6159 = vmatprep.subr.mxu0 0.0
        %6160 = vmatpush1.msra.mxu0 0.0
        %6161 = vmatprep.subr.mxu0 0.0
        %6162 = vmatpush1.msra.mxu0 0.0
        %6163 = vmatprep.subr.mxu0 0.0
        %6164 = vmatpush1.msra.mxu0 0.0
        %6165 = vmatprep.subr.mxu0 0.0
        %6166 = vmatpush1.msra.mxu0 0.0
        %6167 = vmatprep.mubr.f32.mxu0 0.0
        %6168 = vmatmul.mubr.f32.gmra.mrb[0].mxu0 %v5728
        %v6169 = vpop.f32.mrb[0].mxu0
        %v6170 = vadd.f32 %v5606, %v6169
        %v6171 = vpop.f32.mrb[0].mxu0
        %v6172 = vadd.f32 %v5606, %v6171
        %6173 = vmatprep.mubr.f32.mxu0 0.0
        %6174 = vmatmul.mubr.f32.gmra.mrb[0].mxu0 %v5730
        %v6175 = vpop.f32.mrb[0].mxu0
        %v6176 = vadd.f32 %v5611, %v6175
        %v6177 = vpop.f32.mrb[0].mxu0
        %v6178 = vadd.f32 %v5611, %v6177
        %6179 = vmatprep.mubr.f32.mxu0 0.0
        %6180 = vmatmul.mubr.f32.gmra.mrb[0].mxu0 %v5732
        %v6181 = vpop.f32.mrb[0].mxu0
        %v6182 = vadd.f32 %v5616, %v6181
        %v6183 = vpop.f32.mrb[0].mxu0
        %v6184 = vadd.f32 %v5616, %v6183
        %6185 = vmatprep.mubr.f32.mxu0 0.0
        %6186 = vmatmul.mubr.f32.gmra.mrb[0].mxu0 %v5734
        %v6187 = vpop.f32.mrb[0].mxu0
        %v6188 = vadd.f32 %v5621, %v6187
        %v6189 = vpop.f32.mrb[0].mxu0
        %v6190 = vadd.f32 %v5621, %v6189
        %6191 = vmatprep.mubr.f32.mxu0 0.0
        %6192 = vmatmul.mubr.f32.gmra.mrb[0].mxu0 %v5736
        %v6193 = vpop.f32.mrb[0].mxu0
        %v6194 = vadd.f32 %v5626, %v6193
        %v6195 = vpop.f32.mrb[0].mxu0
        %v6196 = vadd.f32 %v5626, %v6195
        %6197 = vmatprep.mubr.f32.mxu0 0.0
        %6198 = vmatmul.mubr.f32.gmra.mrb[0].mxu0 %v5738
        %v6199 = vpop.f32.mrb[0].mxu0
        %v6200 = vadd.f32 %v5631, %v6199
        %v6201 = vpop.f32.mrb[0].mxu0
        %v6202 = vadd.f32 %v5631, %v6201
        %6203 = vmatprep.mubr.f32.mxu0 0.0
        %6204 = vmatmul.mubr.f32.gmra.mrb[0].mxu0 %v5740
        %v6205 = vpop.f32.mrb[0].mxu0
        %v6206 = vadd.f32 %v5636, %v6205
        %v6207 = vpop.f32.mrb[0].mxu0
        %v6208 = vadd.f32 %v5636, %v6207
        %6209 = vmatprep.mubr.f32.mxu0 0.0
        %6210 = vmatmul.mubr.f32.gmra.mrb[0].mxu0 %v5742
        %v6211 = vpop.f32.mrb[0].mxu0
        %v6212 = vadd.f32 %v5641, %v6211
        %v6213 = vpop.f32.mrb[0].mxu0
        %v6214 = vadd.f32 %v5641, %v6213
        %6215 = vdwg.mxu0
        %6216 = vmatprep.subr.mxu0 %v5707
        %6217 = vmatpush1.msra.mxu0 %v5706
        %6218 = vmatprep.subr.mxu0 %v5762
        %6219 = vmatpush1.msra.mxu0 %v5760
        %6220 = vmatprep.subr.mxu0 0.0
        %6221 = vmatpush1.msra.mxu0 0.0
        %6222 = vmatprep.subr.mxu0 0.0
        %6223 = vmatpush1.msra.mxu0 0.0
        %6224 = vmatprep.subr.mxu0 0.0
        %6225 = vmatpush1.msra.mxu0 0.0
        %6226 = vmatprep.subr.mxu0 0.0
        %6227 = vmatpush1.msra.mxu0 0.0
        %6228 = vmatprep.subr.mxu0 0.0
        %6229 = vmatpush1.msra.mxu0 0.0
        %6230 = vmatprep.subr.mxu0 0.0
        %6231 = vmatpush1.msra.mxu0 0.0
        %6232 = vmatprep.subr.mxu0 0.0
        %6233 = vmatpush1.msra.mxu0 0.0
        %6234 = vmatprep.subr.mxu0 0.0
        %6235 = vmatpush1.msra.mxu0 0.0
        %6236 = vmatprep.subr.mxu0 0.0
        %6237 = vmatpush1.msra.mxu0 0.0
        %6238 = vmatprep.subr.mxu0 0.0
        %6239 = vmatpush1.msra.mxu0 0.0
        %6240 = vmatprep.subr.mxu0 0.0
        %6241 = vmatpush1.msra.mxu0 0.0
        %6242 = vmatprep.subr.mxu0 0.0
        %6243 = vmatpush1.msra.mxu0 0.0
        %6244 = vmatprep.subr.mxu0 0.0
        %6245 = vmatpush1.msra.mxu0 0.0
        %6246 = vmatprep.subr.mxu0 0.0
        %6247 = vmatpush1.msra.mxu0 0.0
        %6248 = vmatprep.subr.mxu0 0.0
        %6249 = vmatpush1.msra.mxu0 0.0
        %6250 = vmatprep.subr.mxu0 0.0
        %6251 = vmatpush1.msra.mxu0 0.0
        %6252 = vmatprep.subr.mxu0 0.0
        %6253 = vmatpush1.msra.mxu0 0.0
        %6254 = vmatprep.subr.mxu0 0.0
        %6255 = vmatpush1.msra.mxu0 0.0
        %6256 = vmatprep.subr.mxu0 0.0
        %6257 = vmatpush1.msra.mxu0 0.0
        %6258 = vmatprep.subr.mxu0 0.0
        %6259 = vmatpush1.msra.mxu0 0.0
        %6260 = vmatprep.subr.mxu0 0.0
        %6261 = vmatpush1.msra.mxu0 0.0
        %6262 = vmatprep.subr.mxu0 0.0
        %6263 = vmatpush1.msra.mxu0 0.0
        %6264 = vmatprep.subr.mxu0 0.0
        %6265 = vmatpush1.msra.mxu0 0.0
        %6266 = vmatprep.subr.mxu0 0.0
        %6267 = vmatpush1.msra.mxu0 0.0
        %6268 = vmatprep.subr.mxu0 0.0
        %6269 = vmatpush1.msra.mxu0 0.0
        %6270 = vmatprep.subr.mxu0 0.0
        %6271 = vmatpush1.msra.mxu0 0.0
        %6272 = vmatprep.subr.mxu0 0.0
        %6273 = vmatpush1.msra.mxu0 0.0
        %6274 = vmatprep.subr.mxu0 0.0
        %6275 = vmatpush1.msra.mxu0 0.0
        %6276 = vmatprep.subr.mxu0 0.0
        %6277 = vmatpush1.msra.mxu0 0.0
        %6278 = vmatprep.subr.mxu0 0.0
        %6279 = vmatpush1.msra.mxu0 0.0
        %6280 = vmatprep.mubr.f32.mxu0 0.0
        %6281 = vmatmul.mubr.f32.gmra.mrb[0].mxu0 %v5728
        %v6282 = vpop.f32.mrb[0].mxu0
        %v6283 = vadd.f32 %v5606, %v6282
        %v6284 = vpop.f32.mrb[0].mxu0
        %v6285 = vadd.f32 %v5606, %v6284
        %6286 = vmatprep.mubr.f32.mxu0 0.0
        %6287 = vmatmul.mubr.f32.gmra.mrb[0].mxu0 %v5730
        %v6288 = vpop.f32.mrb[0].mxu0
        %v6289 = vadd.f32 %v5611, %v6288
        %v6290 = vpop.f32.mrb[0].mxu0
        %v6291 = vadd.f32 %v5611, %v6290
        %6292 = vmatprep.mubr.f32.mxu0 0.0
        %6293 = vmatmul.mubr.f32.gmra.mrb[0].mxu0 %v5732
        %v6294 = vpop.f32.mrb[0].mxu0
        %v6295 = vadd.f32 %v5616, %v6294
        %v6296 = vpop.f32.mrb[0].mxu0
        %v6297 = vadd.f32 %v5616, %v6296
        %6298 = vmatprep.mubr.f32.mxu0 0.0
        %6299 = vmatmul.mubr.f32.gmra.mrb[0].mxu0 %v5734
        %v6300 = vpop.f32.mrb[0].mxu0
        %v6301 = vadd.f32 %v5621, %v6300
        %v6302 = vpop.f32.mrb[0].mxu0
        %v6303 = vadd.f32 %v5621, %v6302
        %6304 = vmatprep.mubr.f32.mxu0 0.0
        %6305 = vmatmul.mubr.f32.gmra.mrb[0].mxu0 %v5736
        %v6306 = vpop.f32.mrb[0].mxu0
        %v6307 = vadd.f32 %v5626, %v6306
        %v6308 = vpop.f32.mrb[0].mxu0
        %v6309 = vadd.f32 %v5626, %v6308
        %6310 = vmatprep.mubr.f32.mxu0 0.0
        %6311 = vmatmul.mubr.f32.gmra.mrb[0].mxu0 %v5738
        %v6312 = vpop.f32.mrb[0].mxu0
        %v6313 = vadd.f32 %v5631, %v6312
        %v6314 = vpop.f32.mrb[0].mxu0
        %v6315 = vadd.f32 %v5631, %v6314
        %6316 = vmatprep.mubr.f32.mxu0 0.0
        %6317 = vmatmul.mubr.f32.gmra.mrb[0].mxu0 %v5740
        %v6318 = vpop.f32.mrb[0].mxu0
        %v6319 = vadd.f32 %v5636, %v6318
        %v6320 = vpop.f32.mrb[0].mxu0
        %v6321 = vadd.f32 %v5636, %v6320
        %6322 = vmatprep.mubr.f32.mxu0 0.0
        %6323 = vmatmul.mubr.f32.gmra.mrb[0].mxu0 %v5742
        %v6324 = vpop.f32.mrb[0].mxu0
        %v6325 = vadd.f32 %v5641, %v6324
        %v6326 = vpop.f32.mrb[0].mxu0
        %v6327 = vadd.f32 %v5641, %v6326
        %6328 = vdwg.mxu0
        %v6329 = vmax.f32 %v5831, 0.0
        %v6330 = vmax.f32 %v5833, 0.0
        %v6331 = vmax.f32 %v5944, 0.0
        %v6332 = vmax.f32 %v5946, 0.0
        %v6333 = vmax.f32 %v6057, 0.0
        %v6334 = vmax.f32 %v6059, 0.0
        %v6335 = vmax.f32 %v6170, 0.0
        %v6336 = vmax.f32 %v6172, 0.0
        %v6337 = vmax.f32 %v6283, 0.0
        %v6338 = vmax.f32 %v6285, 0.0
        %v6339 = vmax.f32 %v5837, 0.0
        %v6340 = vmax.f32 %v5839, 0.0
        %v6341 = vmax.f32 %v5950, 0.0
        %v6342 = vmax.f32 %v5952, 0.0
        %v6343 = vmax.f32 %v6063, 0.0
        %v6344 = vmax.f32 %v6065, 0.0
        %v6345 = vmax.f32 %v6176, 0.0
        %v6346 = vmax.f32 %v6178, 0.0
        %v6347 = vmax.f32 %v6289, 0.0
        %v6348 = vmax.f32 %v6291, 0.0
        %v6349 = vmax.f32 %v5843, 0.0
        %v6350 = vmax.f32 %v5845, 0.0
        %v6351 = vmax.f32 %v5956, 0.0
        %v6352 = vmax.f32 %v5958, 0.0
        %v6353 = vmax.f32 %v6069, 0.0
        %v6354 = vmax.f32 %v6071, 0.0
        %v6355 = vmax.f32 %v6182, 0.0
        %v6356 = vmax.f32 %v6184, 0.0
        %v6357 = vmax.f32 %v6295, 0.0
        %v6358 = vmax.f32 %v6297, 0.0
        %v6359 = vmax.f32 %v5849, 0.0
        %v6360 = vmax.f32 %v5851, 0.0
        %v6361 = vmax.f32 %v5962, 0.0
        %v6362 = vmax.f32 %v5964, 0.0
        %v6363 = vmax.f32 %v6075, 0.0
        %v6364 = vmax.f32 %v6077, 0.0
        %v6365 = vmax.f32 %v6188, 0.0
        %v6366 = vmax.f32 %v6190, 0.0
        %v6367 = vmax.f32 %v6301, 0.0
        %v6368 = vmax.f32 %v6303, 0.0
        %v6369 = vmax.f32 %v5855, 0.0
        %v6370 = vmax.f32 %v5857, 0.0
        %v6371 = vmax.f32 %v5968, 0.0
        %v6372 = vmax.f32 %v5970, 0.0
        %v6373 = vmax.f32 %v6081, 0.0
        %v6374 = vmax.f32 %v6083, 0.0
        %v6375 = vmax.f32 %v6194, 0.0
        %v6376 = vmax.f32 %v6196, 0.0
        %v6377 = vmax.f32 %v6307, 0.0
        %v6378 = vmax.f32 %v6309, 0.0
        %v6379 = vmax.f32 %v5861, 0.0
        %v6380 = vmax.f32 %v5863, 0.0
        %v6381 = vmax.f32 %v5974, 0.0
        %v6382 = vmax.f32 %v5976, 0.0
        %v6383 = vmax.f32 %v6087, 0.0
        %v6384 = vmax.f32 %v6089, 0.0
        %v6385 = vmax.f32 %v6200, 0.0
        %v6386 = vmax.f32 %v6202, 0.0
        %v6387 = vmax.f32 %v6313, 0.0
        %v6388 = vmax.f32 %v6315, 0.0
        %v6389 = vmax.f32 %v5867, 0.0
        %v6390 = vmax.f32 %v5869, 0.0
        %v6391 = vmax.f32 %v5980, 0.0
        %v6392 = vmax.f32 %v5982, 0.0
        %v6393 = vmax.f32 %v6093, 0.0
        %v6394 = vmax.f32 %v6095, 0.0
        %v6395 = vmax.f32 %v6206, 0.0
        %v6396 = vmax.f32 %v6208, 0.0
        %v6397 = vmax.f32 %v6319, 0.0
        %v6398 = vmax.f32 %v6321, 0.0
        %v6399 = vmax.f32 %v5873, 0.0
        %v6400 = vmax.f32 %v5875, 0.0
        %v6401 = vmax.f32 %v5986, 0.0
        %v6402 = vmax.f32 %v5988, 0.0
        %v6403 = vmax.f32 %v6099, 0.0
        %v6404 = vmax.f32 %v6101, 0.0
        %v6405 = vmax.f32 %v6212, 0.0
        %v6406 = vmax.f32 %v6214, 0.0
        %v6407 = vmax.f32 %v6325, 0.0
        %v6408 = vmax.f32 %v6327, 0.0
        %v6410 = vsel %vm1932, %v4749, 0
        %v6413 = vsel %vm1932, %v4750, 0
        %6415 = vmatprep.subr.mxu0 %v6330
        %6416 = vmatpush1.msra.mxu0 %v6329
        %6417 = vmatprep.subr.mxu0 %v6340
        %6418 = vmatpush1.msra.mxu0 %v6339
        %6419 = vmatprep.subr.mxu0 %v6350
        %6420 = vmatpush1.msra.mxu0 %v6349
        %6421 = vmatprep.subr.mxu0 %v6360
        %6422 = vmatpush1.msra.mxu0 %v6359
        %6423 = vmatprep.subr.mxu0 %v6370
        %6424 = vmatpush1.msra.mxu0 %v6369
        %6425 = vmatprep.subr.mxu0 %v6380
        %6426 = vmatpush1.msra.mxu0 %v6379
        %6427 = vmatprep.subr.mxu0 %v6390
        %6428 = vmatpush1.msra.mxu0 %v6389
        %6429 = vmatprep.subr.mxu0 %v6400
        %6430 = vmatpush1.msra.mxu0 %v6399
        %6431 = vmatprep.subr.mxu0 0.0
        %6432 = vmatpush1.msra.mxu0 0.0
        %6433 = vmatprep.subr.mxu0 0.0
        %6434 = vmatpush1.msra.mxu0 0.0
        %6435 = vmatprep.subr.mxu0 0.0
        %6436 = vmatpush1.msra.mxu0 0.0
        %6437 = vmatprep.subr.mxu0 0.0
        %6438 = vmatpush1.msra.mxu0 0.0
        %6439 = vmatprep.subr.mxu0 0.0
        %6440 = vmatpush1.msra.mxu0 0.0
        %6441 = vmatprep.subr.mxu0 0.0
        %6442 = vmatpush1.msra.mxu0 0.0
        %6443 = vmatprep.subr.mxu0 0.0
        %6444 = vmatpush1.msra.mxu0 0.0
        %6445 = vmatprep.subr.mxu0 0.0
        %6446 = vmatpush1.msra.mxu0 0.0
        %6447 = vmatprep.subr.mxu0 0.0
        %6448 = vmatpush1.msra.mxu0 0.0
        %6449 = vmatprep.subr.mxu0 0.0
        %6450 = vmatpush1.msra.mxu0 0.0
        %6451 = vmatprep.subr.mxu0 0.0
        %6452 = vmatpush1.msra.mxu0 0.0
        %6453 = vmatprep.subr.mxu0 0.0
        %6454 = vmatpush1.msra.mxu0 0.0
        %6455 = vmatprep.subr.mxu0 0.0
        %6456 = vmatpush1.msra.mxu0 0.0
        %6457 = vmatprep.subr.mxu0 0.0
        %6458 = vmatpush1.msra.mxu0 0.0
        %6459 = vmatprep.subr.mxu0 0.0
        %6460 = vmatpush1.msra.mxu0 0.0
        %6461 = vmatprep.subr.mxu0 0.0
        %6462 = vmatpush1.msra.mxu0 0.0
        %6463 = vmatprep.subr.mxu0 0.0
        %6464 = vmatpush1.msra.mxu0 0.0
        %6465 = vmatprep.subr.mxu0 0.0
        %6466 = vmatpush1.msra.mxu0 0.0
        %6467 = vmatprep.subr.mxu0 0.0
        %6468 = vmatpush1.msra.mxu0 0.0
        %6469 = vmatprep.subr.mxu0 0.0
        %6470 = vmatpush1.msra.mxu0 0.0
        %6471 = vmatprep.subr.mxu0 0.0
        %6472 = vmatpush1.msra.mxu0 0.0
        %6473 = vmatprep.subr.mxu0 0.0
        %6474 = vmatpush1.msra.mxu0 0.0
        %6475 = vmatprep.subr.mxu0 0.0
        %6476 = vmatpush1.msra.mxu0 0.0
        %6477 = vmatprep.subr.mxu0 0.0
        %6478 = vmatpush1.msra.mxu0 0.0
        %6479 = vmatprep.mubr.f32.mxu0 0.0
        %6480 = vmatmul.mubr.f32.gmra.mrb[0].mxu0 %v6410
        %v6481 = vpop.f32.mrb[0].mxu0
        %v6482 = vadd.f32 0.0, %v6481
        %v6483 = vpop.f32.mrb[0].mxu0
        %v6484 = vadd.f32 0.0, %v6483
        %6485 = vmatprep.mubr.f32.mxu0 0.0
        %6486 = vmatmul.mubr.f32.gmra.mrb[0].mxu0 %v6413
        %v6487 = vpop.f32.mrb[0].mxu0
        %v6488 = vadd.f32 0.0, %v6487
        %v6489 = vpop.f32.mrb[0].mxu0
        %v6490 = vadd.f32 0.0, %v6489
        %6491 = vdwg.mxu0
        %6492 = vmatprep.subr.mxu0 %v6332
        %6493 = vmatpush1.msra.mxu0 %v6331
        %6494 = vmatprep.subr.mxu0 %v6342
        %6495 = vmatpush1.msra.mxu0 %v6341
        %6496 = vmatprep.subr.mxu0 %v6352
        %6497 = vmatpush1.msra.mxu0 %v6351
        %6498 = vmatprep.subr.mxu0 %v6362
        %6499 = vmatpush1.msra.mxu0 %v6361
        %6500 = vmatprep.subr.mxu0 %v6372
        %6501 = vmatpush1.msra.mxu0 %v6371
        %6502 = vmatprep.subr.mxu0 %v6382
        %6503 = vmatpush1.msra.mxu0 %v6381
        %6504 = vmatprep.subr.mxu0 %v6392
        %6505 = vmatpush1.msra.mxu0 %v6391
        %6506 = vmatprep.subr.mxu0 %v6402
        %6507 = vmatpush1.msra.mxu0 %v6401
        %6508 = vmatprep.subr.mxu0 0.0
        %6509 = vmatpush1.msra.mxu0 0.0
        %6510 = vmatprep.subr.mxu0 0.0
        %6511 = vmatpush1.msra.mxu0 0.0
        %6512 = vmatprep.subr.mxu0 0.0
        %6513 = vmatpush1.msra.mxu0 0.0
        %6514 = vmatprep.subr.mxu0 0.0
        %6515 = vmatpush1.msra.mxu0 0.0
        %6516 = vmatprep.subr.mxu0 0.0
        %6517 = vmatpush1.msra.mxu0 0.0
        %6518 = vmatprep.subr.mxu0 0.0
        %6519 = vmatpush1.msra.mxu0 0.0
        %6520 = vmatprep.subr.mxu0 0.0
        %6521 = vmatpush1.msra.mxu0 0.0
        %6522 = vmatprep.subr.mxu0 0.0
        %6523 = vmatpush1.msra.mxu0 0.0
        %6524 = vmatprep.subr.mxu0 0.0
        %6525 = vmatpush1.msra.mxu0 0.0
        %6526 = vmatprep.subr.mxu0 0.0
        %6527 = vmatpush1.msra.mxu0 0.0
        %6528 = vmatprep.subr.mxu0 0.0
        %6529 = vmatpush1.msra.mxu0 0.0
        %6530 = vmatprep.subr.mxu0 0.0
        %6531 = vmatpush1.msra.mxu0 0.0
        %6532 = vmatprep.subr.mxu0 0.0
        %6533 = vmatpush1.msra.mxu0 0.0
        %6534 = vmatprep.subr.mxu0 0.0
        %6535 = vmatpush1.msra.mxu0 0.0
        %6536 = vmatprep.subr.mxu0 0.0
        %6537 = vmatpush1.msra.mxu0 0.0
        %6538 = vmatprep.subr.mxu0 0.0
        %6539 = vmatpush1.msra.mxu0 0.0
        %6540 = vmatprep.subr.mxu0 0.0
        %6541 = vmatpush1.msra.mxu0 0.0
        %6542 = vmatprep.subr.mxu0 0.0
        %6543 = vmatpush1.msra.mxu0 0.0
        %6544 = vmatprep.subr.mxu0 0.0
        %6545 = vmatpush1.msra.mxu0 0.0
        %6546 = vmatprep.subr.mxu0 0.0
        %6547 = vmatpush1.msra.mxu0 0.0
        %6548 = vmatprep.subr.mxu0 0.0
        %6549 = vmatpush1.msra.mxu0 0.0
        %6550 = vmatprep.subr.mxu0 0.0
        %6551 = vmatpush1.msra.mxu0 0.0
        %6552 = vmatprep.subr.mxu0 0.0
        %6553 = vmatpush1.msra.mxu0 0.0
        %6554 = vmatprep.subr.mxu0 0.0
        %6555 = vmatpush1.msra.mxu0 0.0
        %6556 = vmatprep.mubr.f32.mxu0 0.0
        %6557 = vmatmul.mubr.f32.gmra.mrb[0].mxu0 %v6410
        %v6558 = vpop.f32.mrb[0].mxu0
        %v6559 = vadd.f32 0.0, %v6558
        %v6560 = vpop.f32.mrb[0].mxu0
        %v6561 = vadd.f32 0.0, %v6560
        %6562 = vmatprep.mubr.f32.mxu0 0.0
        %6563 = vmatmul.mubr.f32.gmra.mrb[0].mxu0 %v6413
        %v6564 = vpop.f32.mrb[0].mxu0
        %v6565 = vadd.f32 0.0, %v6564
        %v6566 = vpop.f32.mrb[0].mxu0
        %v6567 = vadd.f32 0.0, %v6566
        %6568 = vdwg.mxu0
        %6569 = vmatprep.subr.mxu0 %v6334
        %6570 = vmatpush1.msra.mxu0 %v6333
        %6571 = vmatprep.subr.mxu0 %v6344
        %6572 = vmatpush1.msra.mxu0 %v6343
        %6573 = vmatprep.subr.mxu0 %v6354
        %6574 = vmatpush1.msra.mxu0 %v6353
        %6575 = vmatprep.subr.mxu0 %v6364
        %6576 = vmatpush1.msra.mxu0 %v6363
        %6577 = vmatprep.subr.mxu0 %v6374
        %6578 = vmatpush1.msra.mxu0 %v6373
        %6579 = vmatprep.subr.mxu0 %v6384
        %6580 = vmatpush1.msra.mxu0 %v6383
        %6581 = vmatprep.subr.mxu0 %v6394
        %6582 = vmatpush1.msra.mxu0 %v6393
        %6583 = vmatprep.subr.mxu0 %v6404
        %6584 = vmatpush1.msra.mxu0 %v6403
        %6585 = vmatprep.subr.mxu0 0.0
        %6586 = vmatpush1.msra.mxu0 0.0
        %6587 = vmatprep.subr.mxu0 0.0
        %6588 = vmatpush1.msra.mxu0 0.0
        %6589 = vmatprep.subr.mxu0 0.0
        %6590 = vmatpush1.msra.mxu0 0.0
        %6591 = vmatprep.subr.mxu0 0.0
        %6592 = vmatpush1.msra.mxu0 0.0
        %6593 = vmatprep.subr.mxu0 0.0
        %6594 = vmatpush1.msra.mxu0 0.0
        %6595 = vmatprep.subr.mxu0 0.0
        %6596 = vmatpush1.msra.mxu0 0.0
        %6597 = vmatprep.subr.mxu0 0.0
        %6598 = vmatpush1.msra.mxu0 0.0
        %6599 = vmatprep.subr.mxu0 0.0
        %6600 = vmatpush1.msra.mxu0 0.0
        %6601 = vmatprep.subr.mxu0 0.0
        %6602 = vmatpush1.msra.mxu0 0.0
        %6603 = vmatprep.subr.mxu0 0.0
        %6604 = vmatpush1.msra.mxu0 0.0
        %6605 = vmatprep.subr.mxu0 0.0
        %6606 = vmatpush1.msra.mxu0 0.0
        %6607 = vmatprep.subr.mxu0 0.0
        %6608 = vmatpush1.msra.mxu0 0.0
        %6609 = vmatprep.subr.mxu0 0.0
        %6610 = vmatpush1.msra.mxu0 0.0
        %6611 = vmatprep.subr.mxu0 0.0
        %6612 = vmatpush1.msra.mxu0 0.0
        %6613 = vmatprep.subr.mxu0 0.0
        %6614 = vmatpush1.msra.mxu0 0.0
        %6615 = vmatprep.subr.mxu0 0.0
        %6616 = vmatpush1.msra.mxu0 0.0
        %6617 = vmatprep.subr.mxu0 0.0
        %6618 = vmatpush1.msra.mxu0 0.0
        %6619 = vmatprep.subr.mxu0 0.0
        %6620 = vmatpush1.msra.mxu0 0.0
        %6621 = vmatprep.subr.mxu0 0.0
        %6622 = vmatpush1.msra.mxu0 0.0
        %6623 = vmatprep.subr.mxu0 0.0
        %6624 = vmatpush1.msra.mxu0 0.0
        %6625 = vmatprep.subr.mxu0 0.0
        %6626 = vmatpush1.msra.mxu0 0.0
        %6627 = vmatprep.subr.mxu0 0.0
        %6628 = vmatpush1.msra.mxu0 0.0
        %6629 = vmatprep.subr.mxu0 0.0
        %6630 = vmatpush1.msra.mxu0 0.0
        %6631 = vmatprep.subr.mxu0 0.0
        %6632 = vmatpush1.msra.mxu0 0.0
        %6633 = vmatprep.mubr.f32.mxu0 0.0
        %6634 = vmatmul.mubr.f32.gmra.mrb[0].mxu0 %v6410
        %v6635 = vpop.f32.mrb[0].mxu0
        %v6636 = vadd.f32 0.0, %v6635
        %v6637 = vpop.f32.mrb[0].mxu0
        %v6638 = vadd.f32 0.0, %v6637
        %6639 = vmatprep.mubr.f32.mxu0 0.0
        %6640 = vmatmul.mubr.f32.gmra.mrb[0].mxu0 %v6413
        %v6641 = vpop.f32.mrb[0].mxu0
        %v6642 = vadd.f32 0.0, %v6641
        %v6643 = vpop.f32.mrb[0].mxu0
        %v6644 = vadd.f32 0.0, %v6643
        %6645 = vdwg.mxu0
        %6646 = vmatprep.subr.mxu0 %v6336
        %6647 = vmatpush1.msra.mxu0 %v6335
        %6648 = vmatprep.subr.mxu0 %v6346
        %6649 = vmatpush1.msra.mxu0 %v6345
        %6650 = vmatprep.subr.mxu0 %v6356
        %6651 = vmatpush1.msra.mxu0 %v6355
        %6652 = vmatprep.subr.mxu0 %v6366
        %6653 = vmatpush1.msra.mxu0 %v6365
        %6654 = vmatprep.subr.mxu0 %v6376
        %6655 = vmatpush1.msra.mxu0 %v6375
        %6656 = vmatprep.subr.mxu0 %v6386
        %6657 = vmatpush1.msra.mxu0 %v6385
        %6658 = vmatprep.subr.mxu0 %v6396
        %6659 = vmatpush1.msra.mxu0 %v6395
        %6660 = vmatprep.subr.mxu0 %v6406
        %6661 = vmatpush1.msra.mxu0 %v6405
        %6662 = vmatprep.subr.mxu0 0.0
        %6663 = vmatpush1.msra.mxu0 0.0
        %6664 = vmatprep.subr.mxu0 0.0
        %6665 = vmatpush1.msra.mxu0 0.0
        %6666 = vmatprep.subr.mxu0 0.0
        %6667 = vmatpush1.msra.mxu0 0.0
        %6668 = vmatprep.subr.mxu0 0.0
        %6669 = vmatpush1.msra.mxu0 0.0
        %6670 = vmatprep.subr.mxu0 0.0
        %6671 = vmatpush1.msra.mxu0 0.0
        %6672 = vmatprep.subr.mxu0 0.0
        %6673 = vmatpush1.msra.mxu0 0.0
        %6674 = vmatprep.subr.mxu0 0.0
        %6675 = vmatpush1.msra.mxu0 0.0
        %6676 = vmatprep.subr.mxu0 0.0
        %6677 = vmatpush1.msra.mxu0 0.0
        %6678 = vmatprep.subr.mxu0 0.0
        %6679 = vmatpush1.msra.mxu0 0.0
        %6680 = vmatprep.subr.mxu0 0.0
        %6681 = vmatpush1.msra.mxu0 0.0
        %6682 = vmatprep.subr.mxu0 0.0
        %6683 = vmatpush1.msra.mxu0 0.0
        %6684 = vmatprep.subr.mxu0 0.0
        %6685 = vmatpush1.msra.mxu0 0.0
        %6686 = vmatprep.subr.mxu0 0.0
        %6687 = vmatpush1.msra.mxu0 0.0
        %6688 = vmatprep.subr.mxu0 0.0
        %6689 = vmatpush1.msra.mxu0 0.0
        %6690 = vmatprep.subr.mxu0 0.0
        %6691 = vmatpush1.msra.mxu0 0.0
        %6692 = vmatprep.subr.mxu0 0.0
        %6693 = vmatpush1.msra.mxu0 0.0
        %6694 = vmatprep.subr.mxu0 0.0
        %6695 = vmatpush1.msra.mxu0 0.0
        %6696 = vmatprep.subr.mxu0 0.0
        %6697 = vmatpush1.msra.mxu0 0.0
        %6698 = vmatprep.subr.mxu0 0.0
        %6699 = vmatpush1.msra.mxu0 0.0
        %6700 = vmatprep.subr.mxu0 0.0
        %6701 = vmatpush1.msra.mxu0 0.0
        %6702 = vmatprep.subr.mxu0 0.0
        %6703 = vmatpush1.msra.mxu0 0.0
        %6704 = vmatprep.subr.mxu0 0.0
        %6705 = vmatpush1.msra.mxu0 0.0
        %6706 = vmatprep.subr.mxu0 0.0
        %6707 = vmatpush1.msra.mxu0 0.0
        %6708 = vmatprep.subr.mxu0 0.0
        %6709 = vmatpush1.msra.mxu0 0.0
        %6710 = vmatprep.mubr.f32.mxu0 0.0
        %6711 = vmatmul.mubr.f32.gmra.mrb[0].mxu0 %v6410
        %v6712 = vpop.f32.mrb[0].mxu0
        %v6713 = vadd.f32 0.0, %v6712
        %v6714 = vpop.f32.mrb[0].mxu0
        %v6715 = vadd.f32 0.0, %v6714
        %6716 = vmatprep.mubr.f32.mxu0 0.0
        %6717 = vmatmul.mubr.f32.gmra.mrb[0].mxu0 %v6413
        %v6718 = vpop.f32.mrb[0].mxu0
        %v6719 = vadd.f32 0.0, %v6718
        %v6720 = vpop.f32.mrb[0].mxu0
        %v6721 = vadd.f32 0.0, %v6720
        %6722 = vdwg.mxu0
        %6723 = vmatprep.subr.mxu0 %v6338
        %6724 = vmatpush1.msra.mxu0 %v6337
        %6725 = vmatprep.subr.mxu0 %v6348
        %6726 = vmatpush1.msra.mxu0 %v6347
        %6727 = vmatprep.subr.mxu0 %v6358
        %6728 = vmatpush1.msra.mxu0 %v6357
        %6729 = vmatprep.subr.mxu0 %v6368
        %6730 = vmatpush1.msra.mxu0 %v6367
        %6731 = vmatprep.subr.mxu0 %v6378
        %6732 = vmatpush1.msra.mxu0 %v6377
        %6733 = vmatprep.subr.mxu0 %v6388
        %6734 = vmatpush1.msra.mxu0 %v6387
        %6735 = vmatprep.subr.mxu0 %v6398
        %6736 = vmatpush1.msra.mxu0 %v6397
        %6737 = vmatprep.subr.mxu0 %v6408
        %6738 = vmatpush1.msra.mxu0 %v6407
        %6739 = vmatprep.subr.mxu0 0.0
        %6740 = vmatpush1.msra.mxu0 0.0
        %6741 = vmatprep.subr.mxu0 0.0
        %6742 = vmatpush1.msra.mxu0 0.0
        %6743 = vmatprep.subr.mxu0 0.0
        %6744 = vmatpush1.msra.mxu0 0.0
        %6745 = vmatprep.subr.mxu0 0.0
        %6746 = vmatpush1.msra.mxu0 0.0
        %6747 = vmatprep.subr.mxu0 0.0
        %6748 = vmatpush1.msra.mxu0 0.0
        %6749 = vmatprep.subr.mxu0 0.0
        %6750 = vmatpush1.msra.mxu0 0.0
        %6751 = vmatprep.subr.mxu0 0.0
        %6752 = vmatpush1.msra.mxu0 0.0
        %6753 = vmatprep.subr.mxu0 0.0
        %6754 = vmatpush1.msra.mxu0 0.0
        %6755 = vmatprep.subr.mxu0 0.0
        %6756 = vmatpush1.msra.mxu0 0.0
        %6757 = vmatprep.subr.mxu0 0.0
        %6758 = vmatpush1.msra.mxu0 0.0
        %6759 = vmatprep.subr.mxu0 0.0
        %6760 = vmatpush1.msra.mxu0 0.0
        %6761 = vmatprep.subr.mxu0 0.0
        %6762 = vmatpush1.msra.mxu0 0.0
        %6763 = vmatprep.subr.mxu0 0.0
        %6764 = vmatpush1.msra.mxu0 0.0
        %6765 = vmatprep.subr.mxu0 0.0
        %6766 = vmatpush1.msra.mxu0 0.0
        %6767 = vmatprep.subr.mxu0 0.0
        %6768 = vmatpush1.msra.mxu0 0.0
        %6769 = vmatprep.subr.mxu0 0.0
        %6770 = vmatpush1.msra.mxu0 0.0
        %6771 = vmatprep.subr.mxu0 0.0
        %6772 = vmatpush1.msra.mxu0 0.0
        %6773 = vmatprep.subr.mxu0 0.0
        %6774 = vmatpush1.msra.mxu0 0.0
        %6775 = vmatprep.subr.mxu0 0.0
        %6776 = vmatpush1.msra.mxu0 0.0
        %6777 = vmatprep.subr.mxu0 0.0
        %6778 = vmatpush1.msra.mxu0 0.0
        %6779 = vmatprep.subr.mxu0 0.0
        %6780 = vmatpush1.msra.mxu0 0.0
        %6781 = vmatprep.subr.mxu0 0.0
        %6782 = vmatpush1.msra.mxu0 0.0
        %6783 = vmatprep.subr.mxu0 0.0
        %6784 = vmatpush1.msra.mxu0 0.0
        %6785 = vmatprep.subr.mxu0 0.0
        %6786 = vmatpush1.msra.mxu0 0.0
        %6787 = vmatprep.mubr.f32.mxu0 0.0
        %6788 = vmatmul.mubr.f32.gmra.mrb[0].mxu0 %v6410
        %v6789 = vpop.f32.mrb[0].mxu0
        %v6790 = vadd.f32 0.0, %v6789
        %v6791 = vpop.f32.mrb[0].mxu0
        %v6792 = vadd.f32 0.0, %v6791
        %6793 = vmatprep.mubr.f32.mxu0 0.0
        %6794 = vmatmul.mubr.f32.gmra.mrb[0].mxu0 %v6413
        %v6795 = vpop.f32.mrb[0].mxu0
        %v6796 = vadd.f32 0.0, %v6795
        %v6797 = vpop.f32.mrb[0].mxu0
        %v6798 = vadd.f32 0.0, %v6797
        %6799 = vdwg.mxu0
        %6800 = vst [vmem:[#allocation3 + $0x8] sm:$0xff] %v6482
        %6801 = vst [vmem:[#allocation3 + $0x10] sm:$0xff] %v6484
        %6802 = vst [vmem:[#allocation3 + $0x18] sm:$0xff] %v6559
        %6803 = vst [vmem:[#allocation3 + $0x20] sm:$0xff] %v6561
        %6804 = vst [vmem:[#allocation3 + $0x28] sm:$0xff] %v6636
        %6805 = vst [vmem:[#allocation3 + $0x30] sm:$0xff] %v6638
        %6806 = vst [vmem:[#allocation3 + $0x38] sm:$0xff] %v6713
        %6807 = vst [vmem:[#allocation3 + $0x40] sm:$0xff] %v6715
        %6808 = vst [vmem:[#allocation3 + $0x48] sm:$0xff] %v6790
        %6809 = vst [vmem:[#allocation3 + $0x50] sm:$0xff] %v6792
        %6810 = vst [vmem:[#allocation3 + $0x68] sm:$0x1] %v6488
        %6811 = vst [vmem:[#allocation3 + $0x70] sm:$0x1] %v6490
        %6812 = vst [vmem:[#allocation3 + $0x78] sm:$0x1] %v6565
        %6813 = vst [vmem:[#allocation3 + $0x80] sm:$0x1] %v6567
        %6814 = vst [vmem:[#allocation3 + $0x88] sm:$0x1] %v6642
        %6815 = vst [vmem:[#allocation3 + $0x90] sm:$0x1] %v6644
        %6816 = vst [vmem:[#allocation3 + $0x98] sm:$0x1] %v6719
        %6817 = vst [vmem:[#allocation3 + $0xa0] sm:$0x1] %v6721
        %6818 = vst [vmem:[#allocation3 + $0xa8] sm:$0x1] %v6796
        %6819 = vst [vmem:[#allocation3 + $0xb0] sm:$0x1] %v6798
        %v6820 = vld [vmem:[#allocation3] ss:$8 sm:$0xf]
        %v6821 = vld [vmem:[#allocation3] ss:$8 sm:$0xf0]
        %v6822 = vor.u32 %v6820, %v6821
        %v6823 = vld [vmem:[%s4520] ss:$8 sm:$0x7]
        %v6824 = vmul.f32 %v6822, %v2152
        %v6825 = vmul.f32 %v6823, %v2155
        %v6826 = vadd.f32 %v6824, 0.0
        %v6827 = vadd.f32 %v6825, 0.0
        %v6828 = vld [vmem:[%s4526] ss:$8 sm:$0xf]
        %v6829 = vld [vmem:[%s4526] ss:$8 sm:$0xf0]
        %v6830 = vor.u32 %v6828, %v6829
        %v6831 = vld [vmem:[%s4530] ss:$8 sm:$0x7]
        %v6832 = vmul.f32 %v6830, %v2192
        %v6833 = vmul.f32 %v6831, %v2194
        %6836 = vrot.lane.b32.xlu0 %v6832, 127
        %v6837 = vpop.permute.xlu0 %6836
        %6838 = vrot.lane.b32.xlu0 %v6833, 127
        %v6839 = vpop.permute.xlu0 %6838
        %v6840 = vrot.slane %v6837, 1
        %v6841 = vrot.slane %v6839, 1
        %v6842 = vsel %vm3287, %v6840, %v6841
        %v6843 = vsel %vm2223, %v6837, %v6842
        %v6844 = vsel %vm2223, %v6839, %v6841
        %v6847 = vadd.f32 %v6826, %v6843
        %v6848 = vadd.f32 %v6827, %v6844
        %v6849 = vld [vmem:[%s4549] ss:$8 sm:$0xf]
        %v6850 = vld [vmem:[%s4549] ss:$8 sm:$0xf0]
        %v6851 = vor.u32 %v6849, %v6850
        %v6852 = vld [vmem:[%s4553] ss:$8 sm:$0x7]
        %v6853 = vmul.f32 %v6851, %v2208
        %v6854 = vmul.f32 %v6852, %v2210
        %6857 = vrot.lane.b32.xlu0 %v6853, 126
        %v6858 = vpop.permute.xlu0 %6857
        %6859 = vrot.lane.b32.xlu0 %v6854, 126
        %v6860 = vpop.permute.xlu0 %6859
        %v6861 = vrot.slane %v6858, 1
        %v6862 = vrot.slane %v6860, 1
        %v6863 = vsel %vm3287, %v6861, %v6862
        %v6864 = vsel %vm2675, %v6858, %v6863
        %v6865 = vsel %vm2675, %v6860, %v6862
        %v6868 = vadd.f32 %v6847, %v6864
        %v6869 = vadd.f32 %v6848, %v6865
        %v6870 = vld [vmem:[%s4572] ss:$8 sm:$0xf]
        %v6871 = vld [vmem:[%s4572] ss:$8 sm:$0xf0]
        %v6872 = vor.u32 %v6870, %v6871
        %v6873 = vld [vmem:[%s4576] ss:$8 sm:$0x7]
        %v6874 = vmul.f32 %v6872, %v2224
        %v6875 = vmul.f32 %v6873, %v2226
        %6878 = vrot.lane.b32.xlu0 %v6874, 48
        %v6879 = vpop.permute.xlu0 %6878
        %6880 = vrot.lane.b32.xlu0 %v6875, 48
        %v6881 = vpop.permute.xlu0 %6880
        %v6882 = vrot.slane %v6879, 1
        %v6883 = vrot.slane %v6881, 1
        %v6884 = vsel %vm3287, %v6882, %v6883
        %v6885 = vsel %vm2191, %v6879, %v6884
        %v6886 = vsel %vm2191, %v6881, %v6883
        %v6889 = vadd.f32 %v6868, %v6885
        %v6890 = vadd.f32 %v6869, %v6886
        %v6891 = vld [vmem:[%s4595] ss:$8 sm:$0xf]
        %v6892 = vld [vmem:[%s4595] ss:$8 sm:$0xf0]
        %v6893 = vor.u32 %v6891, %v6892
        %v6894 = vld [vmem:[%s4599] ss:$8 sm:$0x3]
        %v6895 = vmul.f32 %v6893, %v2281
        %v6896 = vmul.f32 %v6894, %v2296
        %6899 = vrot.lane.b32.xlu0 %v6895, 47
        %v6900 = vpop.permute.xlu0 %6899
        %6901 = vrot.lane.b32.xlu0 %v6896, 47
        %v6902 = vpop.permute.xlu0 %6901
        %v6903 = vrot.slane %v6900, 7
        %v6904 = vrot.slane %v6902, 7
        %v6905 = vsel %vm2151, %v6903, %v6900
        %v6906 = vsel %vm2153, %v6903, %v6904
        %v6907 = vsel %vm2151, %v6906, %v6902
        %v6910 = vadd.f32 %v6889, %v6905
        %v6911 = vadd.f32 %v6890, %v6907
        %v6912 = vld [vmem:[%s4618] ss:$8 sm:$0xf]
        %v6913 = vld [vmem:[%s4618] ss:$8 sm:$0xf0]
        %v6914 = vor.u32 %v6912, %v6913
        %v6915 = vld [vmem:[%s4622] ss:$8 sm:$0x7]
        %v6916 = vmul.f32 %v6914, %v2335
        %v6917 = vmul.f32 %v6915, %v2337
        %6920 = vrot.lane.b32.xlu0 %v6916, 46
        %v6921 = vpop.permute.xlu0 %6920
        %6922 = vrot.lane.b32.xlu0 %v6917, 46
        %v6923 = vpop.permute.xlu0 %6922
        %v6924 = vrot.slane %v6921, 7
        %v6925 = vrot.slane %v6923, 7
        %v6926 = vsel %vm2936, %v6924, %v6921
        %v6927 = vsel %vm2153, %v6924, %v6925
        %v6928 = vsel %vm2936, %v6927, %v6923
        %v6931 = vadd.f32 %v6910, %v6926
        %v6932 = vadd.f32 %v6911, %v6928
        %v6933 = vld [vmem:[%s4641] ss:$8 sm:$0xf]
        %v6934 = vld [vmem:[%s4641] ss:$8 sm:$0xf0]
        %v6935 = vor.u32 %v6933, %v6934
        %v6936 = vld [vmem:[%s4645] ss:$8 sm:$0x7]
        %v6937 = vmul.f32 %v6935, %v2351
        %v6938 = vmul.f32 %v6936, %v2353
        %6941 = vrot.lane.b32.xlu0 %v6937, 96
        %v6942 = vpop.permute.xlu0 %6941
        %6943 = vrot.lane.b32.xlu0 %v6938, 96
        %v6944 = vpop.permute.xlu0 %6943
        %v6945 = vrot.slane %v6942, 1
        %v6946 = vrot.slane %v6944, 1
        %v6947 = vsel %vm3287, %v6945, %v6946
        %v6948 = vsel %vm1958, %v6942, %v6947
        %v6949 = vsel %vm1958, %v6944, %v6946
        %v6952 = vadd.f32 %v6931, %v6948
        %v6953 = vadd.f32 %v6932, %v6949
        %v6954 = vld [vmem:[%s4664] ss:$8 sm:$0xf]
        %v6955 = vld [vmem:[%s4664] ss:$8 sm:$0xf0]
        %v6956 = vor.u32 %v6954, %v6955
        %v6957 = vld [vmem:[%s4668] ss:$8 sm:$0x7]
        %v6958 = vmul.f32 %v6956, %v2366
        %v6959 = vmul.f32 %v6957, %v2368
        %6962 = vrot.lane.b32.xlu0 %v6958, 95
        %v6963 = vpop.permute.xlu0 %6962
        %6964 = vrot.lane.b32.xlu0 %v6959, 95
        %v6965 = vpop.permute.xlu0 %6964
        %v6966 = vrot.slane %v6963, 1
        %v6967 = vrot.slane %v6965, 1
        %v6968 = vsel %vm3287, %v6966, %v6967
        %v6969 = vsel %vm3115, %v6963, %v6968
        %v6970 = vsel %vm3115, %v6965, %v6967
        %v6973 = vadd.f32 %v6952, %v6969
        %v6974 = vadd.f32 %v6953, %v6970
        %v6975 = vld [vmem:[%s4687] ss:$8 sm:$0xf]
        %v6976 = vld [vmem:[%s4687] ss:$8 sm:$0xf0]
        %v6977 = vor.u32 %v6975, %v6976
        %v6978 = vld [vmem:[%s4691] ss:$8 sm:$0x7]
        %v6979 = vmul.f32 %v6977, %v2454
        %v6980 = vmul.f32 %v6978, %v2456
        %6983 = vrot.lane.b32.xlu0 %v6979, 94
        %v6984 = vpop.permute.xlu0 %6983
        %6985 = vrot.lane.b32.xlu0 %v6980, 94
        %v6986 = vpop.permute.xlu0 %6985
        %v6987 = vrot.slane %v6984, 1
        %v6988 = vrot.slane %v6986, 1
        %v6989 = vsel %vm3287, %v6987, %v6988
        %v6990 = vsel %vm3205, %v6984, %v6989
        %v6991 = vsel %vm3205, %v6986, %v6988
        %v6994 = vadd.f32 %v6973, %v6990
        %v6995 = vadd.f32 %v6974, %v6991
        %6996 = vset.pattern.permute.xlu0 0
        %6997 = vperm.xlu0 %6996, %v4750
        %v6998 = vpop.permute.xlu0 %6997
        %v6999 = vlaneseq
        %v7000 = vshrl.u32 %v6999, 7
        %v7001 = vsub.s32 1, %v7000
        %v7002 = vrot.slane %v6998, %v7001
        %v7004 = vadd.f32 %v6994, %v7002
        %v7005 = vadd.f32 %v6995, %v7002
        %v7006 = vmax.f32 %v7004, 0.0
        %v7007 = vmax.f32 %v7005, 0.0
        %7010 = vrot.lane.b32.xlu0 %v7006, 81
        %v7011 = vpop.permute.xlu0 %7010
        %7012 = vrot.lane.b32.xlu0 %v7007, 81
        %v7013 = vpop.permute.xlu0 %7012
        %v7014 = vrot.slane %v7011, 1
        %v7015 = vrot.slane %v7013, 1
        %v7016 = vsel %vm3287, %v7014, %v7015
        %v7017 = vsel %vm2453, %v7011, %v7016
        %v7018 = vsel %vm2453, %v7013, %v7015
        %7021 = vst [vmem:[#allocation2 + $0x1] sm:$0xff] %v7017
        %7022 = vst.msk [vmem:[#allocation2 + $0x9] sm:$0x3] %vm4737, %v7018
        %v7023 = vld [vmem:[#allocation2 + $0x1] sm:$0x1]
        %v7024 = vld [vmem:[#allocation2 + $0x1] sm:$0x3]
        %v7025 = vld [vmem:[#allocation2 + $0x2] sm:$0x1]
        %v7026 = vld [vmem:[#allocation2 + $0x2] sm:$0x3]
        %v7027 = vld [vmem:[#allocation2 + $0x3] sm:$0x3]
        %v7028 = vld [vmem:[#allocation2 + $0x4] sm:$0x1]
        %v7029 = vld [vmem:[#allocation2 + $0x4] sm:$0x3]
        %v7030 = vld [vmem:[#allocation2 + $0x5] sm:$0x1]
        %v7031 = vld [vmem:[#allocation2 + $0x6] sm:$0x1]
        %v7032 = vld [vmem:[#allocation2 + $0x6] sm:$0x3]
        %v7033 = vld [vmem:[#allocation2 + $0x7] sm:$0x1]
        %v7034 = vld [vmem:[#allocation2 + $0x7] sm:$0x3]
        %v7035 = vld [vmem:[#allocation2 + $0x8] sm:$0x3]
        %v7036 = vld [vmem:[#allocation2 + $0x9] sm:$0x1]
        %v7037 = vld [vmem:[#allocation2 + $0x9] sm:$0x3]
        %v7038 = vld [vmem:[#allocation2 + $0xa] sm:$0x1]
        %v7040 = vlaneseq
        %v7041 = vshrl.u32 %v7040, 7
        %v7042 = vsub.s32 0, %v7041
        %v7043 = vrot.slane %v7024, %v7042
        %v7044 = vlaneseq
        %v7045 = vshrl.u32 %v7044, 7
        %v7046 = vsub.s32 1, %v7045
        %v7047 = vrot.slane %v7024, %v7046
        %7048 = vrot.lane.b32.xlu0 %v7043, 48
        %v7049 = vpop.permute.xlu0 %7048
        %7050 = vrot.lane.b32.xlu0 %v7047, 48
        %v7051 = vpop.permute.xlu0 %7050
        %v7052 = vsel %vm2191, %v7049, %v7051
        %v7055 = vlaneseq
        %v7056 = vshrl.u32 %v7055, 7
        %v7057 = vsub.s32 0, %v7056
        %v7058 = vrot.slane %v7025, %v7057
        %7059 = vrot.lane.b32.xlu0 %v7058, 96
        %v7060 = vpop.permute.xlu0 %7059
        %v7063 = vlaneseq
        %v7064 = vshrl.u32 %v7063, 7
        %v7065 = vsub.s32 0, %v7064
        %v7066 = vrot.slane %v7026, %v7065
        %v7067 = vlaneseq
        %v7068 = vshrl.u32 %v7067, 7
        %v7069 = vsub.s32 1, %v7068
        %v7070 = vrot.slane %v7026, %v7069
        %7071 = vrot.lane.b32.xlu0 %v7066, 16
        %v7072 = vpop.permute.xlu0 %7071
        %7073 = vrot.lane.b32.xlu0 %v7070, 16
        %v7074 = vpop.permute.xlu0 %7073
        %v7075 = vsel %vm769, %v7072, %v7074
        %v7078 = vlaneseq
        %v7079 = vshrl.u32 %v7078, 7
        %v7080 = vsub.s32 0, %v7079
        %v7081 = vrot.slane %v7027, %v7080
        %v7082 = vlaneseq
        %v7083 = vshrl.u32 %v7082, 7
        %v7084 = vsub.s32 1, %v7083
        %v7085 = vrot.slane %v7027, %v7084
        %7086 = vrot.lane.b32.xlu0 %v7081, 64
        %v7087 = vpop.permute.xlu0 %7086
        %7088 = vrot.lane.b32.xlu0 %v7085, 64
        %v7089 = vpop.permute.xlu0 %7088
        %v7090 = vsel %vm1932, %v7087, %v7089
        %v7093 = vlaneseq
        %v7094 = vshrl.u32 %v7093, 7
        %v7095 = vsub.s32 0, %v7094
        %v7096 = vrot.slane %v7028, %v7095
        %7097 = vrot.lane.b32.xlu0 %v7096, 112
        %v7098 = vpop.permute.xlu0 %7097
        %v7101 = vlaneseq
        %v7102 = vshrl.u32 %v7101, 7
        %v7103 = vsub.s32 0, %v7102
        %v7104 = vrot.slane %v7029, %v7103
        %v7105 = vlaneseq
        %v7106 = vshrl.u32 %v7105, 7
        %v7107 = vsub.s32 1, %v7106
        %v7108 = vrot.slane %v7029, %v7107
        %7109 = vrot.lane.b32.xlu0 %v7104, 32
        %v7110 = vpop.permute.xlu0 %7109
        %7111 = vrot.lane.b32.xlu0 %v7108, 32
        %v7112 = vpop.permute.xlu0 %7111
        %vm7113 = vcmask 261120
        %v7114 = vsel %vm7113, %v7110, %v7112
        %v7117 = vlaneseq
        %v7118 = vshrl.u32 %v7117, 7
        %v7119 = vsub.s32 0, %v7118
        %v7120 = vrot.slane %v7030, %v7119
        %7121 = vrot.lane.b32.xlu0 %v7120, 80
        %v7122 = vpop.permute.xlu0 %7121
        %v7125 = vlaneseq
        %v7126 = vshrl.u32 %v7125, 7
        %v7127 = vsub.s32 0, %v7126
        %v7128 = vrot.slane %v7032, %v7127
        %v7129 = vlaneseq
        %v7130 = vshrl.u32 %v7129, 7
        %v7131 = vsub.s32 1, %v7130
        %v7132 = vrot.slane %v7032, %v7131
        %7133 = vrot.lane.b32.xlu0 %v7128, 48
        %v7134 = vpop.permute.xlu0 %7133
        %7135 = vrot.lane.b32.xlu0 %v7132, 48
        %v7136 = vpop.permute.xlu0 %7135
        %v7137 = vsel %vm2191, %v7134, %v7136
        %v7140 = vlaneseq
        %v7141 = vshrl.u32 %v7140, 7
        %v7142 = vsub.s32 0, %v7141
        %v7143 = vrot.slane %v7033, %v7142
        %7144 = vrot.lane.b32.xlu0 %v7143, 96
        %v7145 = vpop.permute.xlu0 %7144
        %v7148 = vlaneseq
        %v7149 = vshrl.u32 %v7148, 7
        %v7150 = vsub.s32 0, %v7149
        %v7151 = vrot.slane %v7034, %v7150
        %v7152 = vlaneseq
        %v7153 = vshrl.u32 %v7152, 7
        %v7154 = vsub.s32 1, %v7153
        %v7155 = vrot.slane %v7034, %v7154
        %7156 = vrot.lane.b32.xlu0 %v7151, 16
        %v7157 = vpop.permute.xlu0 %7156
        %7158 = vrot.lane.b32.xlu0 %v7155, 16
        %v7159 = vpop.permute.xlu0 %7158
        %v7160 = vsel %vm769, %v7157, %v7159
        %v7163 = vlaneseq
        %v7164 = vshrl.u32 %v7163, 7
        %v7165 = vsub.s32 0, %v7164
        %v7166 = vrot.slane %v7035, %v7165
        %v7167 = vlaneseq
        %v7168 = vshrl.u32 %v7167, 7
        %v7169 = vsub.s32 1, %v7168
        %v7170 = vrot.slane %v7035, %v7169
        %7171 = vrot.lane.b32.xlu0 %v7166, 64
        %v7172 = vpop.permute.xlu0 %7171
        %7173 = vrot.lane.b32.xlu0 %v7170, 64
        %v7174 = vpop.permute.xlu0 %7173
        %v7175 = vsel %vm1932, %v7172, %v7174
        %v7178 = vlaneseq
        %v7179 = vshrl.u32 %v7178, 7
        %v7180 = vsub.s32 0, %v7179
        %v7181 = vrot.slane %v7036, %v7180
        %7182 = vrot.lane.b32.xlu0 %v7181, 112
        %v7183 = vpop.permute.xlu0 %7182
        %v7186 = vlaneseq
        %v7187 = vshrl.u32 %v7186, 7
        %v7188 = vsub.s32 0, %v7187
        %v7189 = vrot.slane %v7037, %v7188
        %v7190 = vlaneseq
        %v7191 = vshrl.u32 %v7190, 7
        %v7192 = vsub.s32 1, %v7191
        %v7193 = vrot.slane %v7037, %v7192
        %7194 = vrot.lane.b32.xlu0 %v7189, 32
        %v7195 = vpop.permute.xlu0 %7194
        %7196 = vrot.lane.b32.xlu0 %v7193, 32
        %v7197 = vpop.permute.xlu0 %7196
        %v7198 = vsel %vm7113, %v7195, %v7197
        %v7201 = vlaneseq
        %v7202 = vshrl.u32 %v7201, 7
        %v7203 = vsub.s32 0, %v7202
        %v7204 = vrot.slane %v7038, %v7203
        %7205 = vrot.lane.b32.xlu0 %v7204, 80
        %v7206 = vpop.permute.xlu0 %7205
        %v7208 = vsel %vm2153, %v7023, %v7052
        %v7209 = vsel %vm3227, %v7208, %v7060
        %v7210 = vsel %vm3239, %v7209, %v7075
        %v7211 = vsel %vm3251, %v7210, %v7090
        %v7212 = vsel %vm3263, %v7211, %v7098
        %v7213 = vsel %vm3275, %v7212, %v7114
        %v7214 = vsel %vm3287, %v7213, %v7122
        %v7215 = vsel %vm2153, %v7031, %v7137
        %v7216 = vsel %vm3227, %v7215, %v7145
        %v7217 = vsel %vm3239, %v7216, %v7160
        %v7218 = vsel %vm3251, %v7217, %v7175
        %v7219 = vsel %vm3263, %v7218, %v7183
        %v7220 = vsel %vm3275, %v7219, %v7198
        %v7221 = vsel %vm3287, %v7220, %v7206
        %s7222 = scalar_lea.vmem [#allocation7], 160
        %v7223 = vld [vmem:[%s7222] sm:$0xff]
        %v7224 = vld [vmem:[%s7222 + $0x8] sm:$0xff]
        %v7225 = vld [vmem:[%s7222 + $0x10] sm:$0xff]
        %v7226 = vld [vmem:[%s7222 + $0x18] sm:$0xff]
        %v7227 = vld [vmem:[%s7222 + $0x20] sm:$0xff]
        %v7228 = vld [vmem:[%s7222 + $0x28] sm:$0xff]
        %v7229 = vld [vmem:[%s7222 + $0x30] sm:$0xff]
        %v7230 = vld [vmem:[%s7222 + $0x38] sm:$0xff]
        %v7231 = vld [vmem:[%s7222 + $0x40] sm:$0xff]
        %v7232 = vld [vmem:[%s7222 + $0x48] sm:$0xff]
        %v7233 = vld [vmem:[%s7222 + $0x50] sm:$0xff]
        %v7234 = vld [vmem:[%s7222 + $0x58] sm:$0xff]
        %v7235 = vld [vmem:[%s7222 + $0x60] sm:$0xff]
        %v7236 = vld [vmem:[%s7222 + $0x68] sm:$0xff]
        %v7237 = vld [vmem:[%s7222 + $0x70] sm:$0xff]
        %v7238 = vld [vmem:[%s7222 + $0x78] sm:$0xff]
        %v7239 = vld [vmem:[%s7222 + $0x80] sm:$0xff]
        %v7240 = vld [vmem:[%s7222 + $0x88] sm:$0xff]
        %v7241 = vld [vmem:[%s7222 + $0x90] sm:$0xff]
        %v7242 = vld [vmem:[%s7222 + $0x98] sm:$0xff]
        %s7243 = scalar_lea.vmem [#allocation9], 80
        %v7244 = vld [vmem:[%s7243] sm:$0xff]
        %v7245 = vld [vmem:[%s7243 + $0x8] sm:$0xff]
        %v7246 = vld [vmem:[%s7243 + $0x10] sm:$0xff]
        %v7247 = vld [vmem:[%s7243 + $0x18] sm:$0xff]
        %v7248 = vld [vmem:[%s7243 + $0x20] sm:$0xff]
        %v7249 = vld [vmem:[%s7243 + $0x28] sm:$0xff]
        %v7250 = vld [vmem:[%s7243 + $0x30] sm:$0xff]
        %v7251 = vld [vmem:[%s7243 + $0x38] sm:$0xff]
        %v7252 = vld [vmem:[%s7243 + $0x40] sm:$0xff]
        %v7253 = vld [vmem:[%s7243 + $0x48] sm:$0xff]
        %s7254 = scalar_lea.vmem [#allocation10], 160
        %v7255 = vld [vmem:[%s7254] sm:$0xff]
        %v7256 = vld [vmem:[%s7254 + $0x8] sm:$0xff]
        %v7257 = vld [vmem:[%s7254 + $0x10] sm:$0xff]
        %v7258 = vld [vmem:[%s7254 + $0x18] sm:$0xff]
        %v7259 = vld [vmem:[%s7254 + $0x20] sm:$0xff]
        %v7260 = vld [vmem:[%s7254 + $0x28] sm:$0xff]
        %v7261 = vld [vmem:[%s7254 + $0x30] sm:$0xff]
        %v7262 = vld [vmem:[%s7254 + $0x38] sm:$0xff]
        %v7263 = vld [vmem:[%s7254 + $0x40] sm:$0xff]
        %v7264 = vld [vmem:[%s7254 + $0x48] sm:$0xff]
        %v7265 = vld [vmem:[%s7254 + $0x50] sm:$0xff]
        %v7266 = vld [vmem:[%s7254 + $0x58] sm:$0xff]
        %v7267 = vld [vmem:[%s7254 + $0x60] sm:$0xff]
        %v7268 = vld [vmem:[%s7254 + $0x68] sm:$0xff]
        %v7269 = vld [vmem:[%s7254 + $0x70] sm:$0xff]
        %v7270 = vld [vmem:[%s7254 + $0x78] sm:$0xff]
        %v7271 = vld [vmem:[%s7254 + $0x80] sm:$0xff]
        %v7272 = vld [vmem:[%s7254 + $0x88] sm:$0xff]
        %v7273 = vld [vmem:[%s7254 + $0x90] sm:$0xff]
        %v7274 = vld [vmem:[%s7254 + $0x98] sm:$0xff]
        %s7275 = scalar_lea.vmem [#allocation12], 256
        %v7276 = vld [vmem:[%s7275] sm:$0xff]
        %v7277 = vld [vmem:[%s7275 + $0x8] sm:$0xff]
        %v7278 = vld [vmem:[%s7275 + $0x10] sm:$0xff]
        %v7279 = vld [vmem:[%s7275 + $0x18] sm:$0xff]
        %v7280 = vld [vmem:[%s7275 + $0x20] sm:$0xff]
        %v7281 = vld [vmem:[%s7275 + $0x28] sm:$0xff]
        %v7282 = vld [vmem:[%s7275 + $0x30] sm:$0xff]
        %v7283 = vld [vmem:[%s7275 + $0x38] sm:$0xff]
        %v7284 = vld [vmem:[%s7275 + $0x40] sm:$0xff]
        %v7285 = vld [vmem:[%s7275 + $0x48] sm:$0xff]
        %v7286 = vld [vmem:[%s7275 + $0x50] sm:$0xff]
        %v7287 = vld [vmem:[%s7275 + $0x58] sm:$0xff]
        %v7288 = vld [vmem:[%s7275 + $0x60] sm:$0xff]
        %v7289 = vld [vmem:[%s7275 + $0x68] sm:$0xff]
        %v7290 = vld [vmem:[%s7275 + $0x70] sm:$0xff]
        %v7291 = vld [vmem:[%s7275 + $0x78] sm:$0xff]
        %v7292 = vld [vmem:[%s7275 + $0x80] sm:$0xff]
        %v7293 = vld [vmem:[%s7275 + $0x88] sm:$0xff]
        %v7294 = vld [vmem:[%s7275 + $0x90] sm:$0xff]
        %v7295 = vld [vmem:[%s7275 + $0x98] sm:$0xff]
        %v7296 = vld [vmem:[%s7275 + $0xa0] sm:$0xff]
        %v7297 = vld [vmem:[%s7275 + $0xa8] sm:$0xff]
        %v7298 = vld [vmem:[%s7275 + $0xb0] sm:$0xff]
        %v7299 = vld [vmem:[%s7275 + $0xb8] sm:$0xff]
        %v7300 = vld [vmem:[%s7275 + $0xc0] sm:$0xff]
        %v7301 = vld [vmem:[%s7275 + $0xc8] sm:$0xff]
        %v7302 = vld [vmem:[%s7275 + $0xd0] sm:$0xff]
        %v7303 = vld [vmem:[%s7275 + $0xd8] sm:$0xff]
        %v7304 = vld [vmem:[%s7275 + $0xe0] sm:$0xff]
        %v7305 = vld [vmem:[%s7275 + $0xe8] sm:$0xff]
        %v7306 = vld [vmem:[%s7275 + $0xf0] sm:$0xff]
        %v7307 = vld [vmem:[%s7275 + $0xf8] sm:$0xff]
        %s7308 = scalar_lea.vmem [#allocation13], 16
        %v7309 = vld [vmem:[%s7308] sm:$0xff]
        %v7310 = vld [vmem:[%s7308 + $0x8] sm:$0xff]
        %v7311 = vlaneseq
        %v7312 = vshrl.u32 %v7311, 7
        %v7313 = vsub.s32 0, %v7312
        %v7314 = vrot.slane %v7309, %v7313
        %v7315 = vlaneseq
        %v7316 = vshrl.u32 %v7315, 7
        %v7317 = vsub.s32 0, %v7316
        %v7318 = vrot.slane %v7310, %v7317
        %v7320 = vsel %vm591, %v7214, 0
        %v7323 = vsel %vm591, %v7221, 0
        %7325 = vmatprep.subr.mxu0 %v7224
        %7326 = vmatpush1.msra.mxu0 %v7223
        %7327 = vmatprep.subr.mxu0 %v7226
        %7328 = vmatpush1.msra.mxu0 %v7225
        %7329 = vmatprep.subr.mxu0 %v7228
        %7330 = vmatpush1.msra.mxu0 %v7227
        %7331 = vmatprep.subr.mxu0 %v7230
        %7332 = vmatpush1.msra.mxu0 %v7229
        %7333 = vmatprep.subr.mxu0 %v7232
        %7334 = vmatpush1.msra.mxu0 %v7231
        %7335 = vmatprep.subr.mxu0 %v7234
        %7336 = vmatpush1.msra.mxu0 %v7233
        %7337 = vmatprep.subr.mxu0 %v7236
        %7338 = vmatpush1.msra.mxu0 %v7235
        %7339 = vmatprep.subr.mxu0 %v7238
        %7340 = vmatpush1.msra.mxu0 %v7237
        %7341 = vmatprep.subr.mxu0 %v7240
        %7342 = vmatpush1.msra.mxu0 %v7239
        %7343 = vmatprep.subr.mxu0 %v7242
        %7344 = vmatpush1.msra.mxu0 %v7241
        %7345 = vmatprep.subr.mxu0 0.0
        %7346 = vmatpush1.msra.mxu0 0.0
        %7347 = vmatprep.subr.mxu0 0.0
        %7348 = vmatpush1.msra.mxu0 0.0
        %7349 = vmatprep.subr.mxu0 0.0
        %7350 = vmatpush1.msra.mxu0 0.0
        %7351 = vmatprep.subr.mxu0 0.0
        %7352 = vmatpush1.msra.mxu0 0.0
        %7353 = vmatprep.subr.mxu0 0.0
        %7354 = vmatpush1.msra.mxu0 0.0
        %7355 = vmatprep.subr.mxu0 0.0
        %7356 = vmatpush1.msra.mxu0 0.0
        %7357 = vmatprep.subr.mxu0 0.0
        %7358 = vmatpush1.msra.mxu0 0.0
        %7359 = vmatprep.subr.mxu0 0.0
        %7360 = vmatpush1.msra.mxu0 0.0
        %7361 = vmatprep.subr.mxu0 0.0
        %7362 = vmatpush1.msra.mxu0 0.0
        %7363 = vmatprep.subr.mxu0 0.0
        %7364 = vmatpush1.msra.mxu0 0.0
        %7365 = vmatprep.subr.mxu0 0.0
        %7366 = vmatpush1.msra.mxu0 0.0
        %7367 = vmatprep.subr.mxu0 0.0
        %7368 = vmatpush1.msra.mxu0 0.0
        %7369 = vmatprep.subr.mxu0 0.0
        %7370 = vmatpush1.msra.mxu0 0.0
        %7371 = vmatprep.subr.mxu0 0.0
        %7372 = vmatpush1.msra.mxu0 0.0
        %7373 = vmatprep.subr.mxu0 0.0
        %7374 = vmatpush1.msra.mxu0 0.0
        %7375 = vmatprep.subr.mxu0 0.0
        %7376 = vmatpush1.msra.mxu0 0.0
        %7377 = vmatprep.subr.mxu0 0.0
        %7378 = vmatpush1.msra.mxu0 0.0
        %7379 = vmatprep.subr.mxu0 0.0
        %7380 = vmatpush1.msra.mxu0 0.0
        %7381 = vmatprep.subr.mxu0 0.0
        %7382 = vmatpush1.msra.mxu0 0.0
        %7383 = vmatprep.subr.mxu0 0.0
        %7384 = vmatpush1.msra.mxu0 0.0
        %7385 = vmatprep.subr.mxu0 0.0
        %7386 = vmatpush1.msra.mxu0 0.0
        %7387 = vmatprep.subr.mxu0 0.0
        %7388 = vmatpush1.msra.mxu0 0.0
        %7389 = vmatprep.mubr.f32.mxu0 0.0
        %7390 = vmatmul.mubr.f32.gmra.mrb[0].mxu0 %v7320
        %v7391 = vpop.f32.mrb[0].mxu0
        %v7392 = vadd.f32 %v7314, %v7391
        %v7393 = vpop.f32.mrb[0].mxu0
        %v7394 = vadd.f32 %v7318, %v7393
        %7395 = vmatprep.mubr.f32.mxu0 0.0
        %7396 = vmatmul.mubr.f32.gmra.mrb[0].mxu0 %v7323
        %v7397 = vpop.f32.mrb[0].mxu0
        %v7398 = vadd.f32 %v7314, %v7397
        %v7399 = vpop.f32.mrb[0].mxu0
        %v7400 = vadd.f32 %v7318, %v7399
        %7401 = vdwg.mxu0
        %v7402 = vmul.f32 %v7392, 0.2236068
        %v7403 = vmul.f32 %v7398, 0.2236068
        %7406 = vrot.lane.b32.xlu0 %v7392, 48
        %v7407 = vpop.permute.xlu0 %7406
        %7408 = vrot.lane.b32.xlu0 %v7398, 48
        %v7409 = vpop.permute.xlu0 %7408
        %v7411 = vsel %vm683, %v7402, 0
        %v7414 = vsel %vm683, %v7403, 0
        %v7416 = vsel %vm683, %v7407, 0
        %v7418 = vsel %vm683, %v7409, 0
        %7420 = vmatprep.subr.mxu0 0.0
        %7421 = vmatpush1.xpose.msra.mxu0 %v7416
        %7422 = vmatprep.subr.mxu0 0.0
        %7423 = vmatpush1.xpose.msra.mxu0 %v7418
        %7424 = vmatprep.subr.mxu0 0.0
        %7425 = vmatpush1.xpose.msra.mxu0 0.0
        %7426 = vmatprep.subr.mxu0 0.0
        %7427 = vmatpush1.xpose.msra.mxu0 0.0
        %7428 = vmatprep.subr.mxu0 0.0
        %7429 = vmatpush1.xpose.msra.mxu0 0.0
        %7430 = vmatprep.subr.mxu0 0.0
        %7431 = vmatpush1.xpose.msra.mxu0 0.0
        %7432 = vmatprep.subr.mxu0 0.0
        %7433 = vmatpush1.xpose.msra.mxu0 0.0
        %7434 = vmatprep.subr.mxu0 0.0
        %7435 = vmatpush1.xpose.msra.mxu0 0.0
        %7436 = vmatprep.subr.mxu0 0.0
        %7437 = vmatpush1.xpose.msra.mxu0 0.0
        %7438 = vmatprep.subr.mxu0 0.0
        %7439 = vmatpush1.xpose.msra.mxu0 0.0
        %7440 = vmatprep.subr.mxu0 0.0
        %7441 = vmatpush1.xpose.msra.mxu0 0.0
        %7442 = vmatprep.subr.mxu0 0.0
        %7443 = vmatpush1.xpose.msra.mxu0 0.0
        %7444 = vmatprep.subr.mxu0 0.0
        %7445 = vmatpush1.xpose.msra.mxu0 0.0
        %7446 = vmatprep.subr.mxu0 0.0
        %7447 = vmatpush1.xpose.msra.mxu0 0.0
        %7448 = vmatprep.subr.mxu0 0.0
        %7449 = vmatpush1.xpose.msra.mxu0 0.0
        %7450 = vmatprep.subr.mxu0 0.0
        %7451 = vmatpush1.xpose.msra.mxu0 0.0
        %7452 = vmatprep.subr.mxu0 0.0
        %7453 = vmatpush1.xpose.msra.mxu0 0.0
        %7454 = vmatprep.subr.mxu0 0.0
        %7455 = vmatpush1.xpose.msra.mxu0 0.0
        %7456 = vmatprep.subr.mxu0 0.0
        %7457 = vmatpush1.xpose.msra.mxu0 0.0
        %7458 = vmatprep.subr.mxu0 0.0
        %7459 = vmatpush1.xpose.msra.mxu0 0.0
        %7460 = vmatprep.subr.mxu0 0.0
        %7461 = vmatpush1.xpose.msra.mxu0 0.0
        %7462 = vmatprep.subr.mxu0 0.0
        %7463 = vmatpush1.xpose.msra.mxu0 0.0
        %7464 = vmatprep.subr.mxu0 0.0
        %7465 = vmatpush1.xpose.msra.mxu0 0.0
        %7466 = vmatprep.subr.mxu0 0.0
        %7467 = vmatpush1.xpose.msra.mxu0 0.0
        %7468 = vmatprep.subr.mxu0 0.0
        %7469 = vmatpush1.xpose.msra.mxu0 0.0
        %7470 = vmatprep.subr.mxu0 0.0
        %7471 = vmatpush1.xpose.msra.mxu0 0.0
        %7472 = vmatprep.subr.mxu0 0.0
        %7473 = vmatpush1.xpose.msra.mxu0 0.0
        %7474 = vmatprep.subr.mxu0 0.0
        %7475 = vmatpush1.xpose.msra.mxu0 0.0
        %7476 = vmatprep.subr.mxu0 0.0
        %7477 = vmatpush1.xpose.msra.mxu0 0.0
        %7478 = vmatprep.subr.mxu0 0.0
        %7479 = vmatpush1.xpose.msra.mxu0 0.0
        %7480 = vmatprep.subr.mxu0 0.0
        %7481 = vmatpush1.xpose.msra.mxu0 0.0
        %7482 = vmatprep.subr.mxu0 0.0
        %7483 = vmatpush1.xpose.msra.mxu0 0.0
        %7484 = vmatprep.mubr.f32.mxu0 0.0
        %7485 = vmatmul.mubr.f32.gmra.mrb[0].mxu0 %v7411
        %v7486 = vpop.f32.mrb[0].mxu0
        %v7487 = vadd.f32 0.0, %v7486
        %v7488 = vpop.f32.mrb[0].mxu0
        %7489 = vmatprep.mubr.f32.mxu0 0.0
        %7490 = vmatmul.mubr.f32.gmra.mrb[0].mxu0 %v7414
        %v7491 = vpop.f32.mrb[0].mxu0
        %v7492 = vadd.f32 0.0, %v7491
        %v7493 = vpop.f32.mrb[0].mxu0
        %7494 = vdwg.mxu0
        %v7495 = vsel %vm769, %v7487, -inf
        %7496 = vmax.xlane.f32.xlu0 %v7495
        %v7497 = vpop.xlane.xlu0 %7496
        %v7498 = vsel %vm769, %v7492, -inf
        %7499 = vmax.xlane.f32.xlu0 %v7498
        %v7500 = vpop.xlane.xlu0 %7499
        %v7501 = vsub.f32 %v7487, %v7497
        %v7502 = vsub.f32 %v7492, %v7500
        %v7503 = vmul.f32 %v7501, 1.442695
        %v7504 = vpow.pop %v7503
        %v7505 = vmul.f32 %v7502, 1.442695
        %v7506 = vpow.pop %v7505
        %v7507 = vsel %vm769, %v7504, 0.0
        %7508 = vadd.xlane.f32.xlu0 %v7507
        %v7509 = vpop.xlane.xlu0 %7508
        %v7510 = vsel %vm769, %v7506, 0.0
        %7511 = vadd.xlane.f32.xlu0 %v7510
        %v7512 = vpop.xlane.xlu0 %7511
        %v7513 = vrcp.pop %v7509
        %v7514 = vmul.f32 %v7504, %v7513
        %v7515 = vrcp.pop %v7512
        %v7516 = vmul.f32 %v7506, %v7515
        %7519 = vrot.lane.b32.xlu0 %v7394, 96
        %v7520 = vpop.permute.xlu0 %7519
        %7521 = vrot.lane.b32.xlu0 %v7400, 96
        %v7522 = vpop.permute.xlu0 %7521
        %v7526 = vsel %vm769, %v7514, 0
        %v7529 = vsel %vm769, %v7516, 0
        %7531 = vmatprep.subr.mxu0 0.0
        %7532 = vmatpush1.msra.mxu0 %v7520
        %7533 = vmatprep.subr.mxu0 0.0
        %7534 = vmatpush1.msra.mxu0 %v7522
        %7535 = vmatprep.subr.mxu0 0.0
        %7536 = vmatpush1.msra.mxu0 0.0
        %7537 = vmatprep.subr.mxu0 0.0
        %7538 = vmatpush1.msra.mxu0 0.0
        %7539 = vmatprep.subr.mxu0 0.0
        %7540 = vmatpush1.msra.mxu0 0.0
        %7541 = vmatprep.subr.mxu0 0.0
        %7542 = vmatpush1.msra.mxu0 0.0
        %7543 = vmatprep.subr.mxu0 0.0
        %7544 = vmatpush1.msra.mxu0 0.0
        %7545 = vmatprep.subr.mxu0 0.0
        %7546 = vmatpush1.msra.mxu0 0.0
        %7547 = vmatprep.subr.mxu0 0.0
        %7548 = vmatpush1.msra.mxu0 0.0
        %7549 = vmatprep.subr.mxu0 0.0
        %7550 = vmatpush1.msra.mxu0 0.0
        %7551 = vmatprep.subr.mxu0 0.0
        %7552 = vmatpush1.msra.mxu0 0.0
        %7553 = vmatprep.subr.mxu0 0.0
        %7554 = vmatpush1.msra.mxu0 0.0
        %7555 = vmatprep.subr.mxu0 0.0
        %7556 = vmatpush1.msra.mxu0 0.0
        %7557 = vmatprep.subr.mxu0 0.0
        %7558 = vmatpush1.msra.mxu0 0.0
        %7559 = vmatprep.subr.mxu0 0.0
        %7560 = vmatpush1.msra.mxu0 0.0
        %7561 = vmatprep.subr.mxu0 0.0
        %7562 = vmatpush1.msra.mxu0 0.0
        %7563 = vmatprep.subr.mxu0 0.0
        %7564 = vmatpush1.msra.mxu0 0.0
        %7565 = vmatprep.subr.mxu0 0.0
        %7566 = vmatpush1.msra.mxu0 0.0
        %7567 = vmatprep.subr.mxu0 0.0
        %7568 = vmatpush1.msra.mxu0 0.0
        %7569 = vmatprep.subr.mxu0 0.0
        %7570 = vmatpush1.msra.mxu0 0.0
        %7571 = vmatprep.subr.mxu0 0.0
        %7572 = vmatpush1.msra.mxu0 0.0
        %7573 = vmatprep.subr.mxu0 0.0
        %7574 = vmatpush1.msra.mxu0 0.0
        %7575 = vmatprep.subr.mxu0 0.0
        %7576 = vmatpush1.msra.mxu0 0.0
        %7577 = vmatprep.subr.mxu0 0.0
        %7578 = vmatpush1.msra.mxu0 0.0
        %7579 = vmatprep.subr.mxu0 0.0
        %7580 = vmatpush1.msra.mxu0 0.0
        %7581 = vmatprep.subr.mxu0 0.0
        %7582 = vmatpush1.msra.mxu0 0.0
        %7583 = vmatprep.subr.mxu0 0.0
        %7584 = vmatpush1.msra.mxu0 0.0
        %7585 = vmatprep.subr.mxu0 0.0
        %7586 = vmatpush1.msra.mxu0 0.0
        %7587 = vmatprep.subr.mxu0 0.0
        %7588 = vmatpush1.msra.mxu0 0.0
        %7589 = vmatprep.subr.mxu0 0.0
        %7590 = vmatpush1.msra.mxu0 0.0
        %7591 = vmatprep.subr.mxu0 0.0
        %7592 = vmatpush1.msra.mxu0 0.0
        %7593 = vmatprep.subr.mxu0 0.0
        %7594 = vmatpush1.msra.mxu0 0.0
        %7595 = vmatprep.mubr.f32.mxu0 0.0
        %7596 = vmatmul.mubr.f32.gmra.mrb[0].mxu0 %v7526
        %v7597 = vpop.f32.mrb[0].mxu0
        %v7598 = vadd.f32 0.0, %v7597
        %v7599 = vpop.f32.mrb[0].mxu0
        %7600 = vmatprep.mubr.f32.mxu0 0.0
        %7601 = vmatmul.mubr.f32.gmra.mrb[0].mxu0 %v7529
        %v7602 = vpop.f32.mrb[0].mxu0
        %v7603 = vadd.f32 0.0, %v7602
        %v7604 = vpop.f32.mrb[0].mxu0
        %7605 = vdwg.mxu0
        %7606 = vrot.lane.b32.xlu0 %v7402, 108
        %v7607 = vpop.permute.xlu0 %7606
        %7608 = vrot.lane.b32.xlu0 %v7403, 108
        %v7609 = vpop.permute.xlu0 %7608
        %7610 = vrot.lane.b32.xlu0 %v7392, 28
        %v7611 = vpop.permute.xlu0 %7610
        %7612 = vrot.lane.b32.xlu0 %v7398, 28
        %v7613 = vpop.permute.xlu0 %7612
        %v7614 = vsel %vm683, %v7607, 0
        %v7616 = vsel %vm683, %v7609, 0
        %v7618 = vsel %vm683, %v7611, 0
        %v7620 = vsel %vm683, %v7613, 0
        %7622 = vmatprep.subr.mxu0 0.0
        %7623 = vmatpush1.xpose.msra.mxu0 %v7618
        %7624 = vmatprep.subr.mxu0 0.0
        %7625 = vmatpush1.xpose.msra.mxu0 %v7620
        %7626 = vmatprep.subr.mxu0 0.0
        %7627 = vmatpush1.xpose.msra.mxu0 0.0
        %7628 = vmatprep.subr.mxu0 0.0
        %7629 = vmatpush1.xpose.msra.mxu0 0.0
        %7630 = vmatprep.subr.mxu0 0.0
        %7631 = vmatpush1.xpose.msra.mxu0 0.0
        %7632 = vmatprep.subr.mxu0 0.0
        %7633 = vmatpush1.xpose.msra.mxu0 0.0
        %7634 = vmatprep.subr.mxu0 0.0
        %7635 = vmatpush1.xpose.msra.mxu0 0.0
        %7636 = vmatprep.subr.mxu0 0.0
        %7637 = vmatpush1.xpose.msra.mxu0 0.0
        %7638 = vmatprep.subr.mxu0 0.0
        %7639 = vmatpush1.xpose.msra.mxu0 0.0
        %7640 = vmatprep.subr.mxu0 0.0
        %7641 = vmatpush1.xpose.msra.mxu0 0.0
        %7642 = vmatprep.subr.mxu0 0.0
        %7643 = vmatpush1.xpose.msra.mxu0 0.0
        %7644 = vmatprep.subr.mxu0 0.0
        %7645 = vmatpush1.xpose.msra.mxu0 0.0
        %7646 = vmatprep.subr.mxu0 0.0
        %7647 = vmatpush1.xpose.msra.mxu0 0.0
        %7648 = vmatprep.subr.mxu0 0.0
        %7649 = vmatpush1.xpose.msra.mxu0 0.0
        %7650 = vmatprep.subr.mxu0 0.0
        %7651 = vmatpush1.xpose.msra.mxu0 0.0
        %7652 = vmatprep.subr.mxu0 0.0
        %7653 = vmatpush1.xpose.msra.mxu0 0.0
        %7654 = vmatprep.subr.mxu0 0.0
        %7655 = vmatpush1.xpose.msra.mxu0 0.0
        %7656 = vmatprep.subr.mxu0 0.0
        %7657 = vmatpush1.xpose.msra.mxu0 0.0
        %7658 = vmatprep.subr.mxu0 0.0
        %7659 = vmatpush1.xpose.msra.mxu0 0.0
        %7660 = vmatprep.subr.mxu0 0.0
        %7661 = vmatpush1.xpose.msra.mxu0 0.0
        %7662 = vmatprep.subr.mxu0 0.0
        %7663 = vmatpush1.xpose.msra.mxu0 0.0
        %7664 = vmatprep.subr.mxu0 0.0
        %7665 = vmatpush1.xpose.msra.mxu0 0.0
        %7666 = vmatprep.subr.mxu0 0.0
        %7667 = vmatpush1.xpose.msra.mxu0 0.0
        %7668 = vmatprep.subr.mxu0 0.0
        %7669 = vmatpush1.xpose.msra.mxu0 0.0
        %7670 = vmatprep.subr.mxu0 0.0
        %7671 = vmatpush1.xpose.msra.mxu0 0.0
        %7672 = vmatprep.subr.mxu0 0.0
        %7673 = vmatpush1.xpose.msra.mxu0 0.0
        %7674 = vmatprep.subr.mxu0 0.0
        %7675 = vmatpush1.xpose.msra.mxu0 0.0
        %7676 = vmatprep.subr.mxu0 0.0
        %7677 = vmatpush1.xpose.msra.mxu0 0.0
        %7678 = vmatprep.subr.mxu0 0.0
        %7679 = vmatpush1.xpose.msra.mxu0 0.0
        %7680 = vmatprep.subr.mxu0 0.0
        %7681 = vmatpush1.xpose.msra.mxu0 0.0
        %7682 = vmatprep.subr.mxu0 0.0
        %7683 = vmatpush1.xpose.msra.mxu0 0.0
        %7684 = vmatprep.subr.mxu0 0.0
        %7685 = vmatpush1.xpose.msra.mxu0 0.0
        %7686 = vmatprep.mubr.f32.mxu0 0.0
        %7687 = vmatmul.mubr.f32.gmra.mrb[0].mxu0 %v7614
        %v7688 = vpop.f32.mrb[0].mxu0
        %v7689 = vadd.f32 0.0, %v7688
        %v7690 = vpop.f32.mrb[0].mxu0
        %7691 = vmatprep.mubr.f32.mxu0 0.0
        %7692 = vmatmul.mubr.f32.gmra.mrb[0].mxu0 %v7616
        %v7693 = vpop.f32.mrb[0].mxu0
        %v7694 = vadd.f32 0.0, %v7693
        %v7695 = vpop.f32.mrb[0].mxu0
        %7696 = vdwg.mxu0
        %v7697 = vsel %vm769, %v7689, -inf
        %7698 = vmax.xlane.f32.xlu0 %v7697
        %v7699 = vpop.xlane.xlu0 %7698
        %v7700 = vsel %vm769, %v7694, -inf
        %7701 = vmax.xlane.f32.xlu0 %v7700
        %v7702 = vpop.xlane.xlu0 %7701
        %v7703 = vsub.f32 %v7689, %v7699
        %v7704 = vsub.f32 %v7694, %v7702
        %v7705 = vmul.f32 %v7703, 1.442695
        %v7706 = vpow.pop %v7705
        %v7707 = vmul.f32 %v7704, 1.442695
        %v7708 = vpow.pop %v7707
        %v7709 = vsel %vm769, %v7706, 0.0
        %7710 = vadd.xlane.f32.xlu0 %v7709
        %v7711 = vpop.xlane.xlu0 %7710
        %v7712 = vsel %vm769, %v7708, 0.0
        %7713 = vadd.xlane.f32.xlu0 %v7712
        %v7714 = vpop.xlane.xlu0 %7713
        %v7715 = vrcp.pop %v7711
        %v7716 = vmul.f32 %v7706, %v7715
        %v7717 = vrcp.pop %v7714
        %v7718 = vmul.f32 %v7708, %v7717
        %7719 = vrot.lane.b32.xlu0 %v7394, 76
        %v7720 = vpop.permute.xlu0 %7719
        %7721 = vrot.lane.b32.xlu0 %v7400, 76
        %v7722 = vpop.permute.xlu0 %7721
        %v7726 = vsel %vm769, %v7716, 0
        %v7729 = vsel %vm769, %v7718, 0
        %7731 = vmatprep.subr.mxu0 0.0
        %7732 = vmatpush1.msra.mxu0 %v7720
        %7733 = vmatprep.subr.mxu0 0.0
        %7734 = vmatpush1.msra.mxu0 %v7722
        %7735 = vmatprep.subr.mxu0 0.0
        %7736 = vmatpush1.msra.mxu0 0.0
        %7737 = vmatprep.subr.mxu0 0.0
        %7738 = vmatpush1.msra.mxu0 0.0
        %7739 = vmatprep.subr.mxu0 0.0
        %7740 = vmatpush1.msra.mxu0 0.0
        %7741 = vmatprep.subr.mxu0 0.0
        %7742 = vmatpush1.msra.mxu0 0.0
        %7743 = vmatprep.subr.mxu0 0.0
        %7744 = vmatpush1.msra.mxu0 0.0
        %7745 = vmatprep.subr.mxu0 0.0
        %7746 = vmatpush1.msra.mxu0 0.0
        %7747 = vmatprep.subr.mxu0 0.0
        %7748 = vmatpush1.msra.mxu0 0.0
        %7749 = vmatprep.subr.mxu0 0.0
        %7750 = vmatpush1.msra.mxu0 0.0
        %7751 = vmatprep.subr.mxu0 0.0
        %7752 = vmatpush1.msra.mxu0 0.0
        %7753 = vmatprep.subr.mxu0 0.0
        %7754 = vmatpush1.msra.mxu0 0.0
        %7755 = vmatprep.subr.mxu0 0.0
        %7756 = vmatpush1.msra.mxu0 0.0
        %7757 = vmatprep.subr.mxu0 0.0
        %7758 = vmatpush1.msra.mxu0 0.0
        %7759 = vmatprep.subr.mxu0 0.0
        %7760 = vmatpush1.msra.mxu0 0.0
        %7761 = vmatprep.subr.mxu0 0.0
        %7762 = vmatpush1.msra.mxu0 0.0
        %7763 = vmatprep.subr.mxu0 0.0
        %7764 = vmatpush1.msra.mxu0 0.0
        %7765 = vmatprep.subr.mxu0 0.0
        %7766 = vmatpush1.msra.mxu0 0.0
        %7767 = vmatprep.subr.mxu0 0.0
        %7768 = vmatpush1.msra.mxu0 0.0
        %7769 = vmatprep.subr.mxu0 0.0
        %7770 = vmatpush1.msra.mxu0 0.0
        %7771 = vmatprep.subr.mxu0 0.0
        %7772 = vmatpush1.msra.mxu0 0.0
        %7773 = vmatprep.subr.mxu0 0.0
        %7774 = vmatpush1.msra.mxu0 0.0
        %7775 = vmatprep.subr.mxu0 0.0
        %7776 = vmatpush1.msra.mxu0 0.0
        %7777 = vmatprep.subr.mxu0 0.0
        %7778 = vmatpush1.msra.mxu0 0.0
        %7779 = vmatprep.subr.mxu0 0.0
        %7780 = vmatpush1.msra.mxu0 0.0
        %7781 = vmatprep.subr.mxu0 0.0
        %7782 = vmatpush1.msra.mxu0 0.0
        %7783 = vmatprep.subr.mxu0 0.0
        %7784 = vmatpush1.msra.mxu0 0.0
        %7785 = vmatprep.subr.mxu0 0.0
        %7786 = vmatpush1.msra.mxu0 0.0
        %7787 = vmatprep.subr.mxu0 0.0
        %7788 = vmatpush1.msra.mxu0 0.0
        %7789 = vmatprep.subr.mxu0 0.0
        %7790 = vmatpush1.msra.mxu0 0.0
        %7791 = vmatprep.subr.mxu0 0.0
        %7792 = vmatpush1.msra.mxu0 0.0
        %7793 = vmatprep.subr.mxu0 0.0
        %7794 = vmatpush1.msra.mxu0 0.0
        %7795 = vmatprep.mubr.f32.mxu0 0.0
        %7796 = vmatmul.mubr.f32.gmra.mrb[0].mxu0 %v7726
        %v7797 = vpop.f32.mrb[0].mxu0
        %v7798 = vadd.f32 0.0, %v7797
        %v7799 = vpop.f32.mrb[0].mxu0
        %7800 = vmatprep.mubr.f32.mxu0 0.0
        %7801 = vmatmul.mubr.f32.gmra.mrb[0].mxu0 %v7729
        %v7802 = vpop.f32.mrb[0].mxu0
        %v7803 = vadd.f32 0.0, %v7802
        %v7804 = vpop.f32.mrb[0].mxu0
        %7805 = vdwg.mxu0
        %7806 = vrot.lane.b32.xlu0 %v7402, 88
        %v7807 = vpop.permute.xlu0 %7806
        %7808 = vrot.lane.b32.xlu0 %v7403, 88
        %v7809 = vpop.permute.xlu0 %7808
        %7810 = vrot.lane.b32.xlu0 %v7392, 8
        %v7811 = vpop.permute.xlu0 %7810
        %7812 = vrot.lane.b32.xlu0 %v7394, 8
        %v7813 = vpop.permute.xlu0 %7812
        %7814 = vrot.lane.b32.xlu0 %v7398, 8
        %v7815 = vpop.permute.xlu0 %7814
        %7816 = vrot.lane.b32.xlu0 %v7400, 8
        %v7817 = vpop.permute.xlu0 %7816
        %v7818 = vsel %vm1093, %v7811, %v7813
        %v7819 = vsel %vm1093, %v7815, %v7817
        %v7820 = vsel %vm683, %v7807, 0
        %v7822 = vsel %vm683, %v7809, 0
        %v7824 = vsel %vm683, %v7818, 0
        %v7826 = vsel %vm683, %v7819, 0
        %7828 = vmatprep.subr.mxu0 0.0
        %7829 = vmatpush1.xpose.msra.mxu0 %v7824
        %7830 = vmatprep.subr.mxu0 0.0
        %7831 = vmatpush1.xpose.msra.mxu0 %v7826
        %7832 = vmatprep.subr.mxu0 0.0
        %7833 = vmatpush1.xpose.msra.mxu0 0.0
        %7834 = vmatprep.subr.mxu0 0.0
        %7835 = vmatpush1.xpose.msra.mxu0 0.0
        %7836 = vmatprep.subr.mxu0 0.0
        %7837 = vmatpush1.xpose.msra.mxu0 0.0
        %7838 = vmatprep.subr.mxu0 0.0
        %7839 = vmatpush1.xpose.msra.mxu0 0.0
        %7840 = vmatprep.subr.mxu0 0.0
        %7841 = vmatpush1.xpose.msra.mxu0 0.0
        %7842 = vmatprep.subr.mxu0 0.0
        %7843 = vmatpush1.xpose.msra.mxu0 0.0
        %7844 = vmatprep.subr.mxu0 0.0
        %7845 = vmatpush1.xpose.msra.mxu0 0.0
        %7846 = vmatprep.subr.mxu0 0.0
        %7847 = vmatpush1.xpose.msra.mxu0 0.0
        %7848 = vmatprep.subr.mxu0 0.0
        %7849 = vmatpush1.xpose.msra.mxu0 0.0
        %7850 = vmatprep.subr.mxu0 0.0
        %7851 = vmatpush1.xpose.msra.mxu0 0.0
        %7852 = vmatprep.subr.mxu0 0.0
        %7853 = vmatpush1.xpose.msra.mxu0 0.0
        %7854 = vmatprep.subr.mxu0 0.0
        %7855 = vmatpush1.xpose.msra.mxu0 0.0
        %7856 = vmatprep.subr.mxu0 0.0
        %7857 = vmatpush1.xpose.msra.mxu0 0.0
        %7858 = vmatprep.subr.mxu0 0.0
        %7859 = vmatpush1.xpose.msra.mxu0 0.0
        %7860 = vmatprep.subr.mxu0 0.0
        %7861 = vmatpush1.xpose.msra.mxu0 0.0
        %7862 = vmatprep.subr.mxu0 0.0
        %7863 = vmatpush1.xpose.msra.mxu0 0.0
        %7864 = vmatprep.subr.mxu0 0.0
        %7865 = vmatpush1.xpose.msra.mxu0 0.0
        %7866 = vmatprep.subr.mxu0 0.0
        %7867 = vmatpush1.xpose.msra.mxu0 0.0
        %7868 = vmatprep.subr.mxu0 0.0
        %7869 = vmatpush1.xpose.msra.mxu0 0.0
        %7870 = vmatprep.subr.mxu0 0.0
        %7871 = vmatpush1.xpose.msra.mxu0 0.0
        %7872 = vmatprep.subr.mxu0 0.0
        %7873 = vmatpush1.xpose.msra.mxu0 0.0
        %7874 = vmatprep.subr.mxu0 0.0
        %7875 = vmatpush1.xpose.msra.mxu0 0.0
        %7876 = vmatprep.subr.mxu0 0.0
        %7877 = vmatpush1.xpose.msra.mxu0 0.0
        %7878 = vmatprep.subr.mxu0 0.0
        %7879 = vmatpush1.xpose.msra.mxu0 0.0
        %7880 = vmatprep.subr.mxu0 0.0
        %7881 = vmatpush1.xpose.msra.mxu0 0.0
        %7882 = vmatprep.subr.mxu0 0.0
        %7883 = vmatpush1.xpose.msra.mxu0 0.0
        %7884 = vmatprep.subr.mxu0 0.0
        %7885 = vmatpush1.xpose.msra.mxu0 0.0
        %7886 = vmatprep.subr.mxu0 0.0
        %7887 = vmatpush1.xpose.msra.mxu0 0.0
        %7888 = vmatprep.subr.mxu0 0.0
        %7889 = vmatpush1.xpose.msra.mxu0 0.0
        %7890 = vmatprep.subr.mxu0 0.0
        %7891 = vmatpush1.xpose.msra.mxu0 0.0
        %7892 = vmatprep.mubr.f32.mxu0 0.0
        %7893 = vmatmul.mubr.f32.gmra.mrb[0].mxu0 %v7820
        %v7894 = vpop.f32.mrb[0].mxu0
        %v7895 = vadd.f32 0.0, %v7894
        %v7896 = vpop.f32.mrb[0].mxu0
        %7897 = vmatprep.mubr.f32.mxu0 0.0
        %7898 = vmatmul.mubr.f32.gmra.mrb[0].mxu0 %v7822
        %v7899 = vpop.f32.mrb[0].mxu0
        %v7900 = vadd.f32 0.0, %v7899
        %v7901 = vpop.f32.mrb[0].mxu0
        %7902 = vdwg.mxu0
        %v7903 = vsel %vm769, %v7895, -inf
        %7904 = vmax.xlane.f32.xlu0 %v7903
        %v7905 = vpop.xlane.xlu0 %7904
        %v7906 = vsel %vm769, %v7900, -inf
        %7907 = vmax.xlane.f32.xlu0 %v7906
        %v7908 = vpop.xlane.xlu0 %7907
        %v7909 = vsub.f32 %v7895, %v7905
        %v7910 = vsub.f32 %v7900, %v7908
        %v7911 = vmul.f32 %v7909, 1.442695
        %v7912 = vpow.pop %v7911
        %v7913 = vmul.f32 %v7910, 1.442695
        %v7914 = vpow.pop %v7913
        %v7915 = vsel %vm769, %v7912, 0.0
        %7916 = vadd.xlane.f32.xlu0 %v7915
        %v7917 = vpop.xlane.xlu0 %7916
        %v7918 = vsel %vm769, %v7914, 0.0
        %7919 = vadd.xlane.f32.xlu0 %v7918
        %v7920 = vpop.xlane.xlu0 %7919
        %v7921 = vrcp.pop %v7917
        %v7922 = vmul.f32 %v7912, %v7921
        %v7923 = vrcp.pop %v7920
        %v7924 = vmul.f32 %v7914, %v7923
        %7925 = vrot.lane.b32.xlu0 %v7394, 56
        %v7926 = vpop.permute.xlu0 %7925
        %7927 = vrot.lane.b32.xlu0 %v7400, 56
        %v7928 = vpop.permute.xlu0 %7927
        %v7932 = vsel %vm769, %v7922, 0
        %v7935 = vsel %vm769, %v7924, 0
        %7937 = vmatprep.subr.mxu0 0.0
        %7938 = vmatpush1.msra.mxu0 %v7926
        %7939 = vmatprep.subr.mxu0 0.0
        %7940 = vmatpush1.msra.mxu0 %v7928
        %7941 = vmatprep.subr.mxu0 0.0
        %7942 = vmatpush1.msra.mxu0 0.0
        %7943 = vmatprep.subr.mxu0 0.0
        %7944 = vmatpush1.msra.mxu0 0.0
        %7945 = vmatprep.subr.mxu0 0.0
        %7946 = vmatpush1.msra.mxu0 0.0
        %7947 = vmatprep.subr.mxu0 0.0
        %7948 = vmatpush1.msra.mxu0 0.0
        %7949 = vmatprep.subr.mxu0 0.0
        %7950 = vmatpush1.msra.mxu0 0.0
        %7951 = vmatprep.subr.mxu0 0.0
        %7952 = vmatpush1.msra.mxu0 0.0
        %7953 = vmatprep.subr.mxu0 0.0
        %7954 = vmatpush1.msra.mxu0 0.0
        %7955 = vmatprep.subr.mxu0 0.0
        %7956 = vmatpush1.msra.mxu0 0.0
        %7957 = vmatprep.subr.mxu0 0.0
        %7958 = vmatpush1.msra.mxu0 0.0
        %7959 = vmatprep.subr.mxu0 0.0
        %7960 = vmatpush1.msra.mxu0 0.0
        %7961 = vmatprep.subr.mxu0 0.0
        %7962 = vmatpush1.msra.mxu0 0.0
        %7963 = vmatprep.subr.mxu0 0.0
        %7964 = vmatpush1.msra.mxu0 0.0
        %7965 = vmatprep.subr.mxu0 0.0
        %7966 = vmatpush1.msra.mxu0 0.0
        %7967 = vmatprep.subr.mxu0 0.0
        %7968 = vmatpush1.msra.mxu0 0.0
        %7969 = vmatprep.subr.mxu0 0.0
        %7970 = vmatpush1.msra.mxu0 0.0
        %7971 = vmatprep.subr.mxu0 0.0
        %7972 = vmatpush1.msra.mxu0 0.0
        %7973 = vmatprep.subr.mxu0 0.0
        %7974 = vmatpush1.msra.mxu0 0.0
        %7975 = vmatprep.subr.mxu0 0.0
        %7976 = vmatpush1.msra.mxu0 0.0
        %7977 = vmatprep.subr.mxu0 0.0
        %7978 = vmatpush1.msra.mxu0 0.0
        %7979 = vmatprep.subr.mxu0 0.0
        %7980 = vmatpush1.msra.mxu0 0.0
        %7981 = vmatprep.subr.mxu0 0.0
        %7982 = vmatpush1.msra.mxu0 0.0
        %7983 = vmatprep.subr.mxu0 0.0
        %7984 = vmatpush1.msra.mxu0 0.0
        %7985 = vmatprep.subr.mxu0 0.0
        %7986 = vmatpush1.msra.mxu0 0.0
        %7987 = vmatprep.subr.mxu0 0.0
        %7988 = vmatpush1.msra.mxu0 0.0
        %7989 = vmatprep.subr.mxu0 0.0
        %7990 = vmatpush1.msra.mxu0 0.0
        %7991 = vmatprep.subr.mxu0 0.0
        %7992 = vmatpush1.msra.mxu0 0.0
        %7993 = vmatprep.subr.mxu0 0.0
        %7994 = vmatpush1.msra.mxu0 0.0
        %7995 = vmatprep.subr.mxu0 0.0
        %7996 = vmatpush1.msra.mxu0 0.0
        %7997 = vmatprep.subr.mxu0 0.0
        %7998 = vmatpush1.msra.mxu0 0.0
        %7999 = vmatprep.subr.mxu0 0.0
        %8000 = vmatpush1.msra.mxu0 0.0
        %8001 = vmatprep.mubr.f32.mxu0 0.0
        %8002 = vmatmul.mubr.f32.gmra.mrb[0].mxu0 %v7932
        %v8003 = vpop.f32.mrb[0].mxu0
        %v8004 = vadd.f32 0.0, %v8003
        %v8005 = vpop.f32.mrb[0].mxu0
        %8006 = vmatprep.mubr.f32.mxu0 0.0
        %8007 = vmatmul.mubr.f32.gmra.mrb[0].mxu0 %v7935
        %v8008 = vpop.f32.mrb[0].mxu0
        %v8009 = vadd.f32 0.0, %v8008
        %v8010 = vpop.f32.mrb[0].mxu0
        %8011 = vdwg.mxu0
        %8012 = vrot.lane.b32.xlu0 %v7402, 68
        %v8013 = vpop.permute.xlu0 %8012
        %8014 = vrot.lane.b32.xlu0 %v7403, 68
        %v8015 = vpop.permute.xlu0 %8014
        %8016 = vrot.lane.b32.xlu0 %v7394, 116
        %v8017 = vpop.permute.xlu0 %8016
        %8018 = vrot.lane.b32.xlu0 %v7400, 116
        %v8019 = vpop.permute.xlu0 %8018
        %v8020 = vsel %vm683, %v8013, 0
        %v8022 = vsel %vm683, %v8015, 0
        %v8024 = vsel %vm683, %v8017, 0
        %v8026 = vsel %vm683, %v8019, 0
        %8028 = vmatprep.subr.mxu0 0.0
        %8029 = vmatpush1.xpose.msra.mxu0 %v8024
        %8030 = vmatprep.subr.mxu0 0.0
        %8031 = vmatpush1.xpose.msra.mxu0 %v8026
        %8032 = vmatprep.subr.mxu0 0.0
        %8033 = vmatpush1.xpose.msra.mxu0 0.0
        %8034 = vmatprep.subr.mxu0 0.0
        %8035 = vmatpush1.xpose.msra.mxu0 0.0
        %8036 = vmatprep.subr.mxu0 0.0
        %8037 = vmatpush1.xpose.msra.mxu0 0.0
        %8038 = vmatprep.subr.mxu0 0.0
        %8039 = vmatpush1.xpose.msra.mxu0 0.0
        %8040 = vmatprep.subr.mxu0 0.0
        %8041 = vmatpush1.xpose.msra.mxu0 0.0
        %8042 = vmatprep.subr.mxu0 0.0
        %8043 = vmatpush1.xpose.msra.mxu0 0.0
        %8044 = vmatprep.subr.mxu0 0.0
        %8045 = vmatpush1.xpose.msra.mxu0 0.0
        %8046 = vmatprep.subr.mxu0 0.0
        %8047 = vmatpush1.xpose.msra.mxu0 0.0
        %8048 = vmatprep.subr.mxu0 0.0
        %8049 = vmatpush1.xpose.msra.mxu0 0.0
        %8050 = vmatprep.subr.mxu0 0.0
        %8051 = vmatpush1.xpose.msra.mxu0 0.0
        %8052 = vmatprep.subr.mxu0 0.0
        %8053 = vmatpush1.xpose.msra.mxu0 0.0
        %8054 = vmatprep.subr.mxu0 0.0
        %8055 = vmatpush1.xpose.msra.mxu0 0.0
        %8056 = vmatprep.subr.mxu0 0.0
        %8057 = vmatpush1.xpose.msra.mxu0 0.0
        %8058 = vmatprep.subr.mxu0 0.0
        %8059 = vmatpush1.xpose.msra.mxu0 0.0
        %8060 = vmatprep.subr.mxu0 0.0
        %8061 = vmatpush1.xpose.msra.mxu0 0.0
        %8062 = vmatprep.subr.mxu0 0.0
        %8063 = vmatpush1.xpose.msra.mxu0 0.0
        %8064 = vmatprep.subr.mxu0 0.0
        %8065 = vmatpush1.xpose.msra.mxu0 0.0
        %8066 = vmatprep.subr.mxu0 0.0
        %8067 = vmatpush1.xpose.msra.mxu0 0.0
        %8068 = vmatprep.subr.mxu0 0.0
        %8069 = vmatpush1.xpose.msra.mxu0 0.0
        %8070 = vmatprep.subr.mxu0 0.0
        %8071 = vmatpush1.xpose.msra.mxu0 0.0
        %8072 = vmatprep.subr.mxu0 0.0
        %8073 = vmatpush1.xpose.msra.mxu0 0.0
        %8074 = vmatprep.subr.mxu0 0.0
        %8075 = vmatpush1.xpose.msra.mxu0 0.0
        %8076 = vmatprep.subr.mxu0 0.0
        %8077 = vmatpush1.xpose.msra.mxu0 0.0
        %8078 = vmatprep.subr.mxu0 0.0
        %8079 = vmatpush1.xpose.msra.mxu0 0.0
        %8080 = vmatprep.subr.mxu0 0.0
        %8081 = vmatpush1.xpose.msra.mxu0 0.0
        %8082 = vmatprep.subr.mxu0 0.0
        %8083 = vmatpush1.xpose.msra.mxu0 0.0
        %8084 = vmatprep.subr.mxu0 0.0
        %8085 = vmatpush1.xpose.msra.mxu0 0.0
        %8086 = vmatprep.subr.mxu0 0.0
        %8087 = vmatpush1.xpose.msra.mxu0 0.0
        %8088 = vmatprep.subr.mxu0 0.0
        %8089 = vmatpush1.xpose.msra.mxu0 0.0
        %8090 = vmatprep.subr.mxu0 0.0
        %8091 = vmatpush1.xpose.msra.mxu0 0.0
        %8092 = vmatprep.mubr.f32.mxu0 0.0
        %8093 = vmatmul.mubr.f32.gmra.mrb[0].mxu0 %v8020
        %v8094 = vpop.f32.mrb[0].mxu0
        %v8095 = vadd.f32 0.0, %v8094
        %v8096 = vpop.f32.mrb[0].mxu0
        %8097 = vmatprep.mubr.f32.mxu0 0.0
        %8098 = vmatmul.mubr.f32.gmra.mrb[0].mxu0 %v8022
        %v8099 = vpop.f32.mrb[0].mxu0
        %v8100 = vadd.f32 0.0, %v8099
        %v8101 = vpop.f32.mrb[0].mxu0
        %8102 = vdwg.mxu0
        %v8103 = vsel %vm769, %v8095, -inf
        %8104 = vmax.xlane.f32.xlu0 %v8103
        %v8105 = vpop.xlane.xlu0 %8104
        %v8106 = vsel %vm769, %v8100, -inf
        %8107 = vmax.xlane.f32.xlu0 %v8106
        %v8108 = vpop.xlane.xlu0 %8107
        %v8109 = vsub.f32 %v8095, %v8105
        %v8110 = vsub.f32 %v8100, %v8108
        %v8111 = vmul.f32 %v8109, 1.442695
        %v8112 = vpow.pop %v8111
        %v8113 = vmul.f32 %v8110, 1.442695
        %v8114 = vpow.pop %v8113
        %v8115 = vsel %vm769, %v8112, 0.0
        %8116 = vadd.xlane.f32.xlu0 %v8115
        %v8117 = vpop.xlane.xlu0 %8116
        %v8118 = vsel %vm769, %v8114, 0.0
        %8119 = vadd.xlane.f32.xlu0 %v8118
        %v8120 = vpop.xlane.xlu0 %8119
        %v8121 = vrcp.pop %v8117
        %v8122 = vmul.f32 %v8112, %v8121
        %v8123 = vrcp.pop %v8120
        %v8124 = vmul.f32 %v8114, %v8123
        %8125 = vrot.lane.b32.xlu0 %v7394, 36
        %v8126 = vpop.permute.xlu0 %8125
        %8127 = vrot.lane.b32.xlu0 %v7400, 36
        %v8128 = vpop.permute.xlu0 %8127
        %v8132 = vsel %vm769, %v8122, 0
        %v8135 = vsel %vm769, %v8124, 0
        %8137 = vmatprep.subr.mxu0 0.0
        %8138 = vmatpush1.msra.mxu0 %v8126
        %8139 = vmatprep.subr.mxu0 0.0
        %8140 = vmatpush1.msra.mxu0 %v8128
        %8141 = vmatprep.subr.mxu0 0.0
        %8142 = vmatpush1.msra.mxu0 0.0
        %8143 = vmatprep.subr.mxu0 0.0
        %8144 = vmatpush1.msra.mxu0 0.0
        %8145 = vmatprep.subr.mxu0 0.0
        %8146 = vmatpush1.msra.mxu0 0.0
        %8147 = vmatprep.subr.mxu0 0.0
        %8148 = vmatpush1.msra.mxu0 0.0
        %8149 = vmatprep.subr.mxu0 0.0
        %8150 = vmatpush1.msra.mxu0 0.0
        %8151 = vmatprep.subr.mxu0 0.0
        %8152 = vmatpush1.msra.mxu0 0.0
        %8153 = vmatprep.subr.mxu0 0.0
        %8154 = vmatpush1.msra.mxu0 0.0
        %8155 = vmatprep.subr.mxu0 0.0
        %8156 = vmatpush1.msra.mxu0 0.0
        %8157 = vmatprep.subr.mxu0 0.0
        %8158 = vmatpush1.msra.mxu0 0.0
        %8159 = vmatprep.subr.mxu0 0.0
        %8160 = vmatpush1.msra.mxu0 0.0
        %8161 = vmatprep.subr.mxu0 0.0
        %8162 = vmatpush1.msra.mxu0 0.0
        %8163 = vmatprep.subr.mxu0 0.0
        %8164 = vmatpush1.msra.mxu0 0.0
        %8165 = vmatprep.subr.mxu0 0.0
        %8166 = vmatpush1.msra.mxu0 0.0
        %8167 = vmatprep.subr.mxu0 0.0
        %8168 = vmatpush1.msra.mxu0 0.0
        %8169 = vmatprep.subr.mxu0 0.0
        %8170 = vmatpush1.msra.mxu0 0.0
        %8171 = vmatprep.subr.mxu0 0.0
        %8172 = vmatpush1.msra.mxu0 0.0
        %8173 = vmatprep.subr.mxu0 0.0
        %8174 = vmatpush1.msra.mxu0 0.0
        %8175 = vmatprep.subr.mxu0 0.0
        %8176 = vmatpush1.msra.mxu0 0.0
        %8177 = vmatprep.subr.mxu0 0.0
        %8178 = vmatpush1.msra.mxu0 0.0
        %8179 = vmatprep.subr.mxu0 0.0
        %8180 = vmatpush1.msra.mxu0 0.0
        %8181 = vmatprep.subr.mxu0 0.0
        %8182 = vmatpush1.msra.mxu0 0.0
        %8183 = vmatprep.subr.mxu0 0.0
        %8184 = vmatpush1.msra.mxu0 0.0
        %8185 = vmatprep.subr.mxu0 0.0
        %8186 = vmatpush1.msra.mxu0 0.0
        %8187 = vmatprep.subr.mxu0 0.0
        %8188 = vmatpush1.msra.mxu0 0.0
        %8189 = vmatprep.subr.mxu0 0.0
        %8190 = vmatpush1.msra.mxu0 0.0
        %8191 = vmatprep.subr.mxu0 0.0
        %8192 = vmatpush1.msra.mxu0 0.0
        %8193 = vmatprep.subr.mxu0 0.0
        %8194 = vmatpush1.msra.mxu0 0.0
        %8195 = vmatprep.subr.mxu0 0.0
        %8196 = vmatpush1.msra.mxu0 0.0
        %8197 = vmatprep.subr.mxu0 0.0
        %8198 = vmatpush1.msra.mxu0 0.0
        %8199 = vmatprep.subr.mxu0 0.0
        %8200 = vmatpush1.msra.mxu0 0.0
        %8201 = vmatprep.mubr.f32.mxu0 0.0
        %8202 = vmatmul.mubr.f32.gmra.mrb[0].mxu0 %v8132
        %v8203 = vpop.f32.mrb[0].mxu0
        %v8204 = vadd.f32 0.0, %v8203
        %v8205 = vpop.f32.mrb[0].mxu0
        %8206 = vmatprep.mubr.f32.mxu0 0.0
        %8207 = vmatmul.mubr.f32.gmra.mrb[0].mxu0 %v8135
        %v8208 = vpop.f32.mrb[0].mxu0
        %v8209 = vadd.f32 0.0, %v8208
        %v8210 = vpop.f32.mrb[0].mxu0
        %8211 = vdwg.mxu0
        %8214 = vrot.lane.b32.xlu0 %v7798, 20
        %v8215 = vpop.permute.xlu0 %8214
        %8216 = vrot.lane.b32.xlu0 %v7803, 20
        %v8217 = vpop.permute.xlu0 %8216
        %8222 = vrot.lane.b32.xlu0 %v8004, 40
        %v8223 = vpop.permute.xlu0 %8222
        %8224 = vrot.lane.b32.xlu0 %v8009, 40
        %v8225 = vpop.permute.xlu0 %8224
        %8230 = vrot.lane.b32.xlu0 %v8204, 60
        %v8231 = vpop.permute.xlu0 %8230
        %8232 = vrot.lane.b32.xlu0 %v8209, 60
        %v8233 = vpop.permute.xlu0 %8232
        %v8236 = vsel %vm683, %v7598, %v8215
        %v8237 = vsel %vm683, %v7603, %v8217
        %v8238 = vsel %vm1514, %v8236, %v8223
        %v8239 = vsel %vm1514, %v8237, %v8225
        %v8240 = vsel %vm1517, %v8238, %v8231
        %v8241 = vsel %vm1517, %v8239, %v8233
        %v8242 = vlaneseq
        %v8243 = vshrl.u32 %v8242, 7
        %v8244 = vsub.s32 1, %v8243
        %v8245 = vrot.slane %v7309, %v8244
        %v8247 = vsel %vm591, %v8240, 0
        %v8250 = vsel %vm591, %v8241, 0
        %8252 = vmatprep.subr.mxu0 0.0
        %8253 = vmatpush1.msra.mxu0 %v7244
        %8254 = vmatprep.subr.mxu0 0.0
        %8255 = vmatpush1.msra.mxu0 %v7245
        %8256 = vmatprep.subr.mxu0 0.0
        %8257 = vmatpush1.msra.mxu0 %v7246
        %8258 = vmatprep.subr.mxu0 0.0
        %8259 = vmatpush1.msra.mxu0 %v7247
        %8260 = vmatprep.subr.mxu0 0.0
        %8261 = vmatpush1.msra.mxu0 %v7248
        %8262 = vmatprep.subr.mxu0 0.0
        %8263 = vmatpush1.msra.mxu0 %v7249
        %8264 = vmatprep.subr.mxu0 0.0
        %8265 = vmatpush1.msra.mxu0 %v7250
        %8266 = vmatprep.subr.mxu0 0.0
        %8267 = vmatpush1.msra.mxu0 %v7251
        %8268 = vmatprep.subr.mxu0 0.0
        %8269 = vmatpush1.msra.mxu0 %v7252
        %8270 = vmatprep.subr.mxu0 0.0
        %8271 = vmatpush1.msra.mxu0 %v7253
        %8272 = vmatprep.subr.mxu0 0.0
        %8273 = vmatpush1.msra.mxu0 0.0
        %8274 = vmatprep.subr.mxu0 0.0
        %8275 = vmatpush1.msra.mxu0 0.0
        %8276 = vmatprep.subr.mxu0 0.0
        %8277 = vmatpush1.msra.mxu0 0.0
        %8278 = vmatprep.subr.mxu0 0.0
        %8279 = vmatpush1.msra.mxu0 0.0
        %8280 = vmatprep.subr.mxu0 0.0
        %8281 = vmatpush1.msra.mxu0 0.0
        %8282 = vmatprep.subr.mxu0 0.0
        %8283 = vmatpush1.msra.mxu0 0.0
        %8284 = vmatprep.subr.mxu0 0.0
        %8285 = vmatpush1.msra.mxu0 0.0
        %8286 = vmatprep.subr.mxu0 0.0
        %8287 = vmatpush1.msra.mxu0 0.0
        %8288 = vmatprep.subr.mxu0 0.0
        %8289 = vmatpush1.msra.mxu0 0.0
        %8290 = vmatprep.subr.mxu0 0.0
        %8291 = vmatpush1.msra.mxu0 0.0
        %8292 = vmatprep.subr.mxu0 0.0
        %8293 = vmatpush1.msra.mxu0 0.0
        %8294 = vmatprep.subr.mxu0 0.0
        %8295 = vmatpush1.msra.mxu0 0.0
        %8296 = vmatprep.subr.mxu0 0.0
        %8297 = vmatpush1.msra.mxu0 0.0
        %8298 = vmatprep.subr.mxu0 0.0
        %8299 = vmatpush1.msra.mxu0 0.0
        %8300 = vmatprep.subr.mxu0 0.0
        %8301 = vmatpush1.msra.mxu0 0.0
        %8302 = vmatprep.subr.mxu0 0.0
        %8303 = vmatpush1.msra.mxu0 0.0
        %8304 = vmatprep.subr.mxu0 0.0
        %8305 = vmatpush1.msra.mxu0 0.0
        %8306 = vmatprep.subr.mxu0 0.0
        %8307 = vmatpush1.msra.mxu0 0.0
        %8308 = vmatprep.subr.mxu0 0.0
        %8309 = vmatpush1.msra.mxu0 0.0
        %8310 = vmatprep.subr.mxu0 0.0
        %8311 = vmatpush1.msra.mxu0 0.0
        %8312 = vmatprep.subr.mxu0 0.0
        %8313 = vmatpush1.msra.mxu0 0.0
        %8314 = vmatprep.subr.mxu0 0.0
        %8315 = vmatpush1.msra.mxu0 0.0
        %8316 = vmatprep.mubr.f32.mxu0 0.0
        %8317 = vmatmul.mubr.f32.gmra.mrb[0].mxu0 %v8247
        %v8318 = vpop.f32.mrb[0].mxu0
        %v8319 = vadd.f32 %v8245, %v8318
        %v8320 = vpop.f32.mrb[0].mxu0
        %8321 = vmatprep.mubr.f32.mxu0 0.0
        %8322 = vmatmul.mubr.f32.gmra.mrb[0].mxu0 %v8250
        %v8323 = vpop.f32.mrb[0].mxu0
        %v8324 = vadd.f32 %v8245, %v8323
        %v8325 = vpop.f32.mrb[0].mxu0
        %8326 = vdwg.mxu0
        %v8327 = vadd.f32 %v7214, %v8319
        %v8328 = vadd.f32 %v7221, %v8324
        %v8329 = vsel %vm591, %v8327, 0.0
        %8330 = vadd.xlane.f32.xlu0 %v8329
        %v8331 = vpop.xlane.xlu0 %8330
        %v8332 = vsel %vm591, %v8328, 0.0
        %8333 = vadd.xlane.f32.xlu0 %v8332
        %v8334 = vpop.xlane.xlu0 %8333
        %v8335 = vmul.f32 %v8331, %v1613
        %v8336 = vmul.f32 %v8334, %v1613
        %v8337 = vsub.f32 %v8327, %v8335
        %v8338 = vsub.f32 %v8328, %v8336
        %v8339 = vmul.f32 %v8337, %v8337
        %v8340 = vmul.f32 %v8338, %v8338
        %v8341 = vsel %vm591, %v8339, 0.0
        %8342 = vadd.xlane.f32.xlu0 %v8341
        %v8343 = vpop.xlane.xlu0 %8342
        %v8344 = vsel %vm591, %v8340, 0.0
        %8345 = vadd.xlane.f32.xlu0 %v8344
        %v8346 = vpop.xlane.xlu0 %8345
        %v8347 = vmul.f32 %v8343, %v1613
        %v8348 = vmul.f32 %v8346, %v1613
        %v8349 = vadd.f32 %v8347, 1e-05
        %v8350 = vadd.f32 %v8348, 1e-05
        %v8351 = vrsqrt.pop %v8349
        %v8352 = vrsqrt.pop %v8350
        %v8353 = vmul.f32 %v8337, %v8351
        %v8354 = vmul.f32 %v8338, %v8352
        %v8355 = vlaneseq
        %v8356 = vshrl.u32 %v8355, 7
        %v8357 = vsub.s32 2, %v8356
        %v8358 = vrot.slane %v7309, %v8357
        %v8359 = vmul.f32 %v8353, %v8358
        %v8360 = vmul.f32 %v8354, %v8358
        %v8361 = vlaneseq
        %v8362 = vshrl.u32 %v8361, 7
        %v8363 = vsub.s32 3, %v8362
        %v8364 = vrot.slane %v7309, %v8363
        %v8365 = vadd.f32 %v8359, %v8364
        %v8366 = vadd.f32 %v8360, %v8364
        %v8367 = vlaneseq
        %v8368 = vshrl.u32 %v8367, 7
        %v8369 = vsub.s32 4, %v8368
        %v8370 = vrot.slane %v7309, %v8369
        %v8371 = vlaneseq
        %v8372 = vshrl.u32 %v8371, 7
        %v8373 = vsub.s32 4, %v8372
        %v8374 = vrot.slane %v7310, %v8373
        %v8376 = vsel %vm591, %v8365, 0
        %v8379 = vsel %vm591, %v8366, 0
        %8381 = vmatprep.subr.mxu0 %v7256
        %8382 = vmatpush1.msra.mxu0 %v7255
        %8383 = vmatprep.subr.mxu0 %v7258
        %8384 = vmatpush1.msra.mxu0 %v7257
        %8385 = vmatprep.subr.mxu0 %v7260
        %8386 = vmatpush1.msra.mxu0 %v7259
        %8387 = vmatprep.subr.mxu0 %v7262
        %8388 = vmatpush1.msra.mxu0 %v7261
        %8389 = vmatprep.subr.mxu0 %v7264
        %8390 = vmatpush1.msra.mxu0 %v7263
        %8391 = vmatprep.subr.mxu0 %v7266
        %8392 = vmatpush1.msra.mxu0 %v7265
        %8393 = vmatprep.subr.mxu0 %v7268
        %8394 = vmatpush1.msra.mxu0 %v7267
        %8395 = vmatprep.subr.mxu0 %v7270
        %8396 = vmatpush1.msra.mxu0 %v7269
        %8397 = vmatprep.subr.mxu0 %v7272
        %8398 = vmatpush1.msra.mxu0 %v7271
        %8399 = vmatprep.subr.mxu0 %v7274
        %8400 = vmatpush1.msra.mxu0 %v7273
        %8401 = vmatprep.subr.mxu0 0.0
        %8402 = vmatpush1.msra.mxu0 0.0
        %8403 = vmatprep.subr.mxu0 0.0
        %8404 = vmatpush1.msra.mxu0 0.0
        %8405 = vmatprep.subr.mxu0 0.0
        %8406 = vmatpush1.msra.mxu0 0.0
        %8407 = vmatprep.subr.mxu0 0.0
        %8408 = vmatpush1.msra.mxu0 0.0
        %8409 = vmatprep.subr.mxu0 0.0
        %8410 = vmatpush1.msra.mxu0 0.0
        %8411 = vmatprep.subr.mxu0 0.0
        %8412 = vmatpush1.msra.mxu0 0.0
        %8413 = vmatprep.subr.mxu0 0.0
        %8414 = vmatpush1.msra.mxu0 0.0
        %8415 = vmatprep.subr.mxu0 0.0
        %8416 = vmatpush1.msra.mxu0 0.0
        %8417 = vmatprep.subr.mxu0 0.0
        %8418 = vmatpush1.msra.mxu0 0.0
        %8419 = vmatprep.subr.mxu0 0.0
        %8420 = vmatpush1.msra.mxu0 0.0
        %8421 = vmatprep.subr.mxu0 0.0
        %8422 = vmatpush1.msra.mxu0 0.0
        %8423 = vmatprep.subr.mxu0 0.0
        %8424 = vmatpush1.msra.mxu0 0.0
        %8425 = vmatprep.subr.mxu0 0.0
        %8426 = vmatpush1.msra.mxu0 0.0
        %8427 = vmatprep.subr.mxu0 0.0
        %8428 = vmatpush1.msra.mxu0 0.0
        %8429 = vmatprep.subr.mxu0 0.0
        %8430 = vmatpush1.msra.mxu0 0.0
        %8431 = vmatprep.subr.mxu0 0.0
        %8432 = vmatpush1.msra.mxu0 0.0
        %8433 = vmatprep.subr.mxu0 0.0
        %8434 = vmatpush1.msra.mxu0 0.0
        %8435 = vmatprep.subr.mxu0 0.0
        %8436 = vmatpush1.msra.mxu0 0.0
        %8437 = vmatprep.subr.mxu0 0.0
        %8438 = vmatpush1.msra.mxu0 0.0
        %8439 = vmatprep.subr.mxu0 0.0
        %8440 = vmatpush1.msra.mxu0 0.0
        %8441 = vmatprep.subr.mxu0 0.0
        %8442 = vmatpush1.msra.mxu0 0.0
        %8443 = vmatprep.subr.mxu0 0.0
        %8444 = vmatpush1.msra.mxu0 0.0
        %8445 = vmatprep.mubr.f32.mxu0 0.0
        %8446 = vmatmul.mubr.f32.gmra.mrb[0].mxu0 %v8376
        %v8447 = vpop.f32.mrb[0].mxu0
        %v8448 = vadd.f32 %v8370, %v8447
        %v8449 = vpop.f32.mrb[0].mxu0
        %v8450 = vadd.f32 %v8374, %v8449
        %8451 = vmatprep.mubr.f32.mxu0 0.0
        %8452 = vmatmul.mubr.f32.gmra.mrb[0].mxu0 %v8379
        %v8453 = vpop.f32.mrb[0].mxu0
        %v8454 = vadd.f32 %v8370, %v8453
        %v8455 = vpop.f32.mrb[0].mxu0
        %v8456 = vadd.f32 %v8374, %v8455
        %8457 = vdwg.mxu0
        %v8458 = vmax.f32 %v8448, 0.0
        %v8459 = vmax.f32 %v8450, 0.0
        %v8460 = vmax.f32 %v8454, 0.0
        %v8461 = vmax.f32 %v8456, 0.0
        %v8462 = vlaneseq
        %v8463 = vshrl.u32 %v8462, 7
        %v8464 = vsub.s32 5, %v8463
        %v8465 = vrot.slane %v7309, %v8464
        %8466 = vmatprep.subr.mxu0 0.0
        %8467 = vmatpush1.msra.mxu0 %v7276
        %8468 = vmatprep.subr.mxu0 0.0
        %8469 = vmatpush1.msra.mxu0 %v7277
        %8470 = vmatprep.subr.mxu0 0.0
        %8471 = vmatpush1.msra.mxu0 %v7278
        %8472 = vmatprep.subr.mxu0 0.0
        %8473 = vmatpush1.msra.mxu0 %v7279
        %8474 = vmatprep.subr.mxu0 0.0
        %8475 = vmatpush1.msra.mxu0 %v7280
        %8476 = vmatprep.subr.mxu0 0.0
        %8477 = vmatpush1.msra.mxu0 %v7281
        %8478 = vmatprep.subr.mxu0 0.0
        %8479 = vmatpush1.msra.mxu0 %v7282
        %8480 = vmatprep.subr.mxu0 0.0
        %8481 = vmatpush1.msra.mxu0 %v7283
        %8482 = vmatprep.subr.mxu0 0.0
        %8483 = vmatpush1.msra.mxu0 %v7284
        %8484 = vmatprep.subr.mxu0 0.0
        %8485 = vmatpush1.msra.mxu0 %v7285
        %8486 = vmatprep.subr.mxu0 0.0
        %8487 = vmatpush1.msra.mxu0 %v7286
        %8488 = vmatprep.subr.mxu0 0.0
        %8489 = vmatpush1.msra.mxu0 %v7287
        %8490 = vmatprep.subr.mxu0 0.0
        %8491 = vmatpush1.msra.mxu0 %v7288
        %8492 = vmatprep.subr.mxu0 0.0
        %8493 = vmatpush1.msra.mxu0 %v7289
        %8494 = vmatprep.subr.mxu0 0.0
        %8495 = vmatpush1.msra.mxu0 %v7290
        %8496 = vmatprep.subr.mxu0 0.0
        %8497 = vmatpush1.msra.mxu0 %v7291
        %8498 = vmatprep.subr.mxu0 0.0
        %8499 = vmatpush1.msra.mxu0 %v7292
        %8500 = vmatprep.subr.mxu0 0.0
        %8501 = vmatpush1.msra.mxu0 %v7293
        %8502 = vmatprep.subr.mxu0 0.0
        %8503 = vmatpush1.msra.mxu0 %v7294
        %8504 = vmatprep.subr.mxu0 0.0
        %8505 = vmatpush1.msra.mxu0 %v7295
        %8506 = vmatprep.subr.mxu0 0.0
        %8507 = vmatpush1.msra.mxu0 %v7296
        %8508 = vmatprep.subr.mxu0 0.0
        %8509 = vmatpush1.msra.mxu0 %v7297
        %8510 = vmatprep.subr.mxu0 0.0
        %8511 = vmatpush1.msra.mxu0 %v7298
        %8512 = vmatprep.subr.mxu0 0.0
        %8513 = vmatpush1.msra.mxu0 %v7299
        %8514 = vmatprep.subr.mxu0 0.0
        %8515 = vmatpush1.msra.mxu0 %v7300
        %8516 = vmatprep.subr.mxu0 0.0
        %8517 = vmatpush1.msra.mxu0 %v7301
        %8518 = vmatprep.subr.mxu0 0.0
        %8519 = vmatpush1.msra.mxu0 %v7302
        %8520 = vmatprep.subr.mxu0 0.0
        %8521 = vmatpush1.msra.mxu0 %v7303
        %8522 = vmatprep.subr.mxu0 0.0
        %8523 = vmatpush1.msra.mxu0 %v7304
        %8524 = vmatprep.subr.mxu0 0.0
        %8525 = vmatpush1.msra.mxu0 %v7305
        %8526 = vmatprep.subr.mxu0 0.0
        %8527 = vmatpush1.msra.mxu0 %v7306
        %8528 = vmatprep.subr.mxu0 0.0
        %8529 = vmatpush1.msra.mxu0 %v7307
        %8530 = vmatprep.mubr.f32.mxu0 %v8459
        %8531 = vmatmul.mubr.f32.gmra.mrb[0].mxu0 %v8458
        %v8532 = vpop.f32.mrb[0].mxu0
        %v8533 = vadd.f32 %v8465, %v8532
        %v8534 = vpop.f32.mrb[0].mxu0
        %8535 = vmatprep.mubr.f32.mxu0 %v8461
        %8536 = vmatmul.mubr.f32.gmra.mrb[0].mxu0 %v8460
        %v8537 = vpop.f32.mrb[0].mxu0
        %v8538 = vadd.f32 %v8465, %v8537
        %v8539 = vpop.f32.mrb[0].mxu0
        %8540 = vdwg.mxu0
        %v8541 = vadd.f32 %v8365, %v8533
        %v8542 = vadd.f32 %v8366, %v8538
        %v8543 = vsel %vm591, %v8541, 0.0
        %8544 = vadd.xlane.f32.xlu0 %v8543
        %v8545 = vpop.xlane.xlu0 %8544
        %v8546 = vsel %vm591, %v8542, 0.0
        %8547 = vadd.xlane.f32.xlu0 %v8546
        %v8548 = vpop.xlane.xlu0 %8547
        %v8549 = vmul.f32 %v8545, %v1613
        %v8550 = vmul.f32 %v8548, %v1613
        %v8551 = vsub.f32 %v8541, %v8549
        %v8552 = vsub.f32 %v8542, %v8550
        %v8553 = vmul.f32 %v8551, %v8551
        %v8554 = vmul.f32 %v8552, %v8552
        %v8555 = vsel %vm591, %v8553, 0.0
        %8556 = vadd.xlane.f32.xlu0 %v8555
        %v8557 = vpop.xlane.xlu0 %8556
        %v8558 = vsel %vm591, %v8554, 0.0
        %8559 = vadd.xlane.f32.xlu0 %v8558
        %v8560 = vpop.xlane.xlu0 %8559
        %v8561 = vmul.f32 %v8557, %v1613
        %v8562 = vmul.f32 %v8560, %v1613
        %v8563 = vadd.f32 %v8561, 1e-05
        %v8564 = vadd.f32 %v8562, 1e-05
        %v8565 = vrsqrt.pop %v8563
        %v8566 = vrsqrt.pop %v8564
        %v8567 = vmul.f32 %v8551, %v8565
        %v8568 = vmul.f32 %v8552, %v8566
        %v8569 = vlaneseq
        %v8570 = vshrl.u32 %v8569, 7
        %v8571 = vsub.s32 6, %v8570
        %v8572 = vrot.slane %v7309, %v8571
        %v8573 = vmul.f32 %v8567, %v8572
        %v8574 = vmul.f32 %v8568, %v8572
        %v8575 = vlaneseq
        %v8576 = vshrl.u32 %v8575, 7
        %v8577 = vsub.s32 7, %v8576
        %v8578 = vrot.slane %v7309, %v8577
        %v8579 = vadd.f32 %v8573, %v8578
        %v8580 = vadd.f32 %v8574, %v8578
        %8581 = vst.msk [vmem:[%s466] sm:$0xff] %vm591, %v8579
        %8582 = vst.msk [vmem:[%s466 + $0x8] sm:$0xff] %vm591, %v8580
        %s8583 = sand.u32 %s232, 1
        %s8584 = scalar_lea.sflag [#allocation6], %s8583
        %s8585 = sand.u32 %s232, 1
        %s8586 = smul.addr %s8585, 16
        %s8587 = scalar_lea.vmem [#allocation19], %s8586
        // Predicated region
        $region93: #{mel_autoencoder_forward.1} parent=55 // pred_check
          %p8588 = pneg %p242
        $region94: #{mel_autoencoder_forward.1} parent=55 // pred_check_branch
          %8590 = sbr.rel (%p8588) target = $region96
        $region95: #{mel_autoencoder_forward.1} parent=55 // pred_region
          %s8592 = ssub.s32 256, 256
          %8593 = vsyncadd %s8584, %s8592
          %s8594 = smul.addr %s30, 2
          %s8595 = smul.addr %s8594, 128
          %s8596 = scalar_lea.hbm %s9, %s8595
          %s8597 = sshll.u32 %s8587, 4
          %s8598 = int_to_ptr.vmem [resolvable:$true] %s8597
          %8603 = dma.vmem_to_hbm [thread:$0]  %s8598, 256, %s8596, %s8584, 128, 128, 8
        $region96: #{mel_autoencoder_forward.1} parent=55 // pred_fallthru
          _
      $region56: #{mel_autoencoder_forward.1} parent=5 // pred_fallthru
        _
      %p8604 = scmp.le.s32.totalorder 2, %s25
      // Predicated region
      $region97: #{mel_autoencoder_forward.1} parent=5 // pred_check
        %p8605 = pneg %p8604
      $region98: #{mel_autoencoder_forward.1} parent=5 // pred_check_branch
        %8607 = sbr.rel (%p8605) target = $region100
      $region99: #{mel_autoencoder_forward.1} parent=5 // pred_region
        %s8608 = ssub.s32 %s25, 2
        // Predicated region
        $region101: #{mel_autoencoder_forward.1} parent=99 // pred_check
          %p8609 = pneg %p248
        $region102: #{mel_autoencoder_forward.1} parent=99 // pred_check_branch
          %8611 = sbr.rel (%p8609) target = $region104
        $region103: #{mel_autoencoder_forward.1} parent=99 // pred_region
          %s8612 = sand.u32 %s233, 1
          %s8613 = scalar_lea.sflag [#allocation6], %s8612
          %s8614 = sand.u32 %s233, 1
          %s8615 = smul.addr %s8614, 16
          %s8616 = scalar_lea.vmem [#allocation19], %s8615
          %8617 = dma.done %s8613, 256
        $region104: #{mel_autoencoder_forward.1} parent=99 // pred_fallthru
          _
      $region100: #{mel_autoencoder_forward.1} parent=5 // pred_fallthru
        _
    $region6: #{mel_autoencoder_forward.1} parent=1 // loop_footer
      %s29 = sadd.s32 1, %s25
    $region7: #{mel_autoencoder_forward.1} parent=1 // loop_footer_branch
      %24 = sbr.rel target = $region3
    $region8: #{mel_autoencoder_forward.1} parent=1 // loop_exit
      _
    %8618 = vsyncpa [#allocation5], 1
    %s8619 = scalar_lea.sflag [#allocation5], 1
    %8620 = vsyncpa %s8619, 1
    %8621 = vsyncpa [#allocation8], 1
    %8622 = vsyncpa [#allocation11], 1
    %8623 = vsyncpa [#allocation14], 1
    %8624 = vsyncpa [#allocation17], 1
    %8625 = vsyncpa [#allocation6], 1
    %s8626 = scalar_lea.sflag [#allocation6], 1
    %8627 = vsyncpa %s8626, 1

</llo_original>
